<compile_context>
chip_gen: v7x
topology: tpu7x:2x2x1
jax: 0.10.0
libtpu: 0.0.40
codegen_flags: <defaults>
</compile_context>

<pallas_src>
import functools

import numpy as np
import jax
import jax.numpy as jnp
from jax.experimental import pallas as pl
from jax.experimental.pallas import tpu as pltpu

# ---- model hyper-params (small synthetic sizes) -------------------------------------------
D_LAT = 32            # latent dim (stand-in for 512)
HID = 64              # lerper hidden width
LEVELS = 6            # w+ levels for a 16x16 generator
NC_BASE = 8           # channels: {4x4: 32, 8x8: 16, 16x16: 8}
MULT = 1.0            # cfg.model.mult
LR_MUL = 0.1          # cfg.model.lr_mul (equalized-lr multiplier)
LRELU_GAIN = float(np.sqrt(2.0))
GEN_RES = 16          # synthesis output resolution of the synthetic student
IMSIZE = 256          # resize_imgs target (as in the original module)

_C4, _C8, _C16 = NC_BASE * 4, NC_BASE * 2, NC_BASE
_LAYER_CFGS = (
    dict(ci=_C4, co=_C4, up=False, w_idx=0),    # 4x4
    dict(ci=_C4, co=_C8, up=True,  w_idx=1),    # 8x8
    dict(ci=_C8, co=_C8, up=False, w_idx=2),    # 8x8
    dict(ci=_C8, co=_C16, up=True,  w_idx=3),   # 16x16
    dict(ci=_C16, co=_C16, up=False, w_idx=4),  # 16x16
)
RGB_W_IDX = 5


# =============================== fused Pallas kernel ========================================

def _fused_forward_kernel(*refs, B):
    """Whole forward pass in one kernel; activations are [C, B*H*W] (HW, samples on lanes)."""
    n_layers = len(_LAYER_CFGS)
    (cond_ref, wT_ref, w1_ref, b1_ref, w2_ref, b2_ref,
     affw_ref, affb_ref, const_ref, up4_ref, up8_ref) = refs[:11]
    layer_refs = refs[11:11 + 5 * n_layers]
    rgbw_ref, rgbb_ref, rgbsel_ref, rm_ref, wbig_ref = refs[11 + 5 * n_layers:-1]
    out_ref = refs[-1]

    def lrelu(v):
        return jnp.where(v >= 0.0, v, 0.2 * v) * LRELU_GAIN

    # ---- OnnxLevelsDynamicLerper (transposed): new_w = w + (gender*magnitude)*tanh(MLP(w))
    wT = wT_ref[...]                                                      # [D, rows_pad]
    h = jnp.dot(w1_ref[...], wT, preferred_element_type=jnp.float32) + b1_ref[...]
    h = lrelu(h)                                                          # [HID, rows_pad]
    d = jnp.tanh(jnp.dot(w2_ref[...], h, preferred_element_type=jnp.float32) + b2_ref[...])
    new_wT = wT + cond_ref[...] * d                                       # [D, rows_pad]

    # ---- all 6 style affines in ONE matmul (the "+1" is folded into the bias) -------------
    styles = jnp.dot(affw_ref[...], new_wT,
                     preferred_element_type=jnp.float32) + affb_ref[...]  # [sumCi, rows_pad]

    # ---- synthesis: const -> modulated 3x3 convs (+ nearest upsamples) ---------------------
    H = W = 4
    x = const_ref[...]                                                    # [C4, B*16]
    off = 0
    for li, cfg in enumerate(_LAYER_CFGS):
        w9_ref, wsq_ref, bias_ref, esel_ref, shift_ref = layer_refs[5 * li:5 * li + 5]
        ci = cfg["ci"]
        if cfg["up"]:
            # nearest-neighbour upsample = one matmul with a block-diagonal 0/1 matrix
            up_ref = up4_ref if H == 4 else up8_ref
            x = jnp.dot(x, up_ref[...], preferred_element_type=jnp.float32)
            H, W = 2 * H, 2 * W
        bhw = B * H * W
        use_roll = (bhw % 128 == 0)

        # activation-side modulation: per-input-channel style broadcast to each sample block
        s_in = jnp.dot(styles[off:off + ci, :], esel_ref[...],
                       preferred_element_type=jnp.float32)                # [Ci, B*HW]
        x_mod = x * s_in
        demod = jax.lax.rsqrt(
            jnp.dot(wsq_ref[...], s_in * s_in,
                    preferred_element_type=jnp.float32) + 1e-8)           # [Co, B*HW]

        # in-kernel im2col: 9 shifted/masked copies stacked along the sublane axis
        taps, tnc = [], 0
        for dy in (-1, 0, 1):
            for dx in (-1, 0, 1):
                s = dy * W + dx
                if s == 0:
                    taps.append(x_mod)
                    continue
                if use_roll:
                    xt = pltpu.roll(x_mod, shift=(-s) % bhw, axis=1)      # XLU lane roll
                    xt = xt * shift_ref[pl.ds(tnc, 1), :]                 # boundary mask [1,BHW]
                else:
                    # 4x4 layer: tiny host-precomputed block-diag shift matrix (lane width 32)
                    xt = jnp.dot(x_mod, shift_ref[tnc],
                                 preferred_element_type=jnp.float32)
                taps.append(xt)
                tnc += 1
        x9 = jnp.concatenate(taps, axis=0)                                # [9*Ci, B*HW]

        # one bf16 MXU matmul per conv layer, f32 accumulate
        y = jnp.dot(w9_ref[...], x9.astype(jnp.bfloat16),
                    preferred_element_type=jnp.float32)                   # [Co, B*HW]
        x = lrelu(demod * y + bias_ref[...])
        off += ci

    # ---- toRGB (1x1 modulated conv, no demod, linear) --------------------------------------
    s_rgb = jnp.dot(styles[off:off + _C16, :], rgbsel_ref[...],
                    preferred_element_type=jnp.float32)                   # [C16, B*256]
    img = jnp.dot(rgbw_ref[...], x * s_rgb,
                  preferred_element_type=jnp.float32) + rgbb_ref[...]     # [3, B*256]

    # ---- fused bilinear resize to IMSIZE: out = RM @ img16 @ RM^T per (sample, channel) ----
    G = GEN_RES
    rows = []
    for ph in range(G):
        pieces = []
        for b in range(B):
            base = b * G * G + ph * G
            for ch in range(3):
                pieces.append(img[ch:ch + 1, base:base + G])              # [1, G]
        rows.append(jnp.concatenate(pieces, axis=1))                      # [1, B*3*G]
    z = jnp.concatenate(rows, axis=0)                                     # [G, B*3*G]
    zh = jnp.dot(rm_ref[...], z, preferred_element_type=jnp.float32)      # [IMSIZE, B*3*G]
    zw = jnp.dot(zh.astype(jnp.bfloat16), wbig_ref[...],
                 preferred_element_type=jnp.float32)                      # [IMSIZE, B*3*IMSIZE]
    for b in range(B):
        for ch in range(3):
            c0 = (b * 3 + ch) * IMSIZE
            out_ref[b, ch, :, :] = zw[:, c0:c0 + IMSIZE].astype(out_ref.dtype)


# =============================== host-precomputed constant matrices =========================

def _nearest_up_block(H, W, B):
    """Block-diagonal nearest-neighbour upsample matrix [B*HW, B*4HW]."""
    base = np.zeros((H * W, 4 * H * W), np.float32)
    for h in range(H):
        for w in range(W):
            for a in range(2):
                for c in range(2):
                    base[h * W + w, (2 * h + a) * (2 * W) + (2 * w + c)] = 1.0
    hw, hw2 = H * W, 4 * H * W
    m = np.zeros((B * hw, B * hw2), np.float32)
    for b in range(B):
        m[b * hw:(b + 1) * hw, b * hw2:(b + 1) * hw2] = base
    return m


def _style_select(w_idx, HW, B, L, R):
    """[R, B*HW] 0/1 matrix: broadcasts styles of row b*L+w_idx over sample b's lane block."""
    m = np.zeros((R, B * HW), np.float32)
    for b in range(B):
        m[b * L + w_idx, b * HW:(b + 1) * HW] = 1.0
    return m


def _tap_masks(H, W, B):
    """[8, B*HW] boundary masks (0/1) for the 8 non-center 3x3 taps (row-major dy,dx)."""
    masks = np.zeros((8, B * H * W), np.float32)
    t = 0
    for dy in (-1, 0, 1):
        for dx in (-1, 0, 1):
            if dy == 0 and dx == 0:
                continue
            m = np.zeros((H, W), np.float32)
            for ph in range(H):
                for pw in range(W):
                    if 0 <= ph + dy < H and 0 <= pw + dx < W:
                        m[ph, pw] = 1.0
            masks[t] = np.tile(m.reshape(-1), B)
            t += 1
    return masks


def _tap_shift_mats(H, W, B):
    """[8, B*HW, B*HW] block-diagonal masked shift matrices (used when B*HW % 128 != 0)."""
    HW = H * W
    mats = np.zeros((8, B * HW, B * HW), np.float32)
    t = 0
    for dy in (-1, 0, 1):
        for dx in (-1, 0, 1):
            if dy == 0 and dx == 0:
                continue
            s = dy * W + dx
            blk = np.zeros((HW, HW), np.float32)
            for ph in range(H):
                for pw in range(W):
                    if 0 <= ph + dy < H and 0 <= pw + dx < W:
                        p = ph * W + pw
                        blk[p + s, p] = 1.0
            for b in range(B):
                mats[t, b * HW:(b + 1) * HW, b * HW:(b + 1) * HW] = blk
            t += 1
    return mats


def _bilinear_matrix(n_in, n_out):
    scale = n_in / n_out
    m = np.zeros((n_out, n_in), np.float32)
    for i in range(n_out):
        x = (i + 0.5) * scale - 0.5
        x0 = int(np.floor(x))
        frac = x - x0
        lo = min(max(x0, 0), n_in - 1)
        hi = min(max(x0 + 1, 0), n_in - 1)
        m[i, lo] += 1.0 - frac
        m[i, hi] += frac
    return m


def _resize_w_big(B, rm):
    """Block-diagonal RM^T over (sample, channel): [B*3*G, B*3*IMSIZE]."""
    G = GEN_RES
    m = np.zeros((B * 3 * G, B * 3 * IMSIZE), np.float32)
    for bc in range(B * 3):
        m[bc * G:(bc + 1) * G, bc * IMSIZE:(bc + 1) * IMSIZE] = rm.T
    return m


# =============================== wrapper ====================================================

def test_prod_server_model(w_plus, gender, magnitude, params):
    B, L, D = w_plus.shape
    f, g = params["f"], params["g"]
    R = ((B * L + 7) // 8) * 8                                            # rows padded to 8

    # lerper inputs (transposed layout: D on sublanes, rows on lanes)
    wT = jnp.pad(w_plus.reshape(B * L, D).astype(jnp.float32),
                 ((0, R - B * L), (0, 0))).T                              # [D, R]
    cond = jnp.broadcast_to(
        gender.reshape(-1) * magnitude.reshape(-1), (B,)).astype(jnp.float32)
    cond_row = jnp.pad(jnp.repeat(cond, L), (0, R - B * L)).reshape(1, R)

    # equalized-lr multipliers folded into the static params (free, one-time)
    f_w1T = (f["w1"] * (LR_MUL * MULT)).T                                 # [HID, D]
    f_b1T = (f["b1"] * LR_MUL).T                                          # [HID, 1]
    f_w2T = (f["w2"] * LR_MUL).T                                          # [D, HID]
    f_b2T = (f["b2"] * LR_MUL).T                                          # [D, 1]

    aff_ws = [lyr["aff_w"] for lyr in g["layers"]] + [g["torgb"]["aff_w"]]
    aff_bs = [lyr["aff_b"] for lyr in g["layers"]] + [g["torgb"]["aff_b"]]
    aff_allT = jnp.concatenate(aff_ws, axis=1).T                          # [sumCi, D]
    aff_b_allT = (jnp.concatenate(aff_bs, axis=1) + 1.0).T                # [sumCi, 1], +1 folded

    const_tiled = jnp.tile(g["const"], (1, B))                            # [C4, B*16]
    up4_blk = jnp.asarray(_nearest_up_block(4, 4, B))                     # [B*16, B*64]
    up8_blk = jnp.asarray(_nearest_up_block(8, 8, B))                     # [B*64, B*256]

    flat_inputs = [cond_row, wT, f_w1T, f_b1T, f_w2T, f_b2T,
                   aff_allT, aff_b_allT, const_tiled, up4_blk, up8_blk]

    H = W = 4
    for cfg, lyr in zip(_LAYER_CFGS, g["layers"]):
        if cfg["up"]:
            H, W = 2 * H, 2 * W
        bhw = B * H * W
        esel = jnp.asarray(_style_select(cfg["w_idx"], H * W, B, L, R))
        if bhw % 128 == 0:
            shift = jnp.asarray(_tap_masks(H, W, B))                      # roll + mask path
        else:
            shift = jnp.asarray(_tap_shift_mats(H, W, B))                 # tiny matmul path
        flat_inputs += [lyr["w9"], lyr["wsq"], lyr["bias"], esel, shift]

    rm_np = _bilinear_matrix(GEN_RES, IMSIZE)
    flat_inputs += [g["torgb"]["w"], g["torgb"]["bias"],
                    jnp.asarray(_style_select(RGB_W_IDX, GEN_RES * GEN_RES, B, L, R)),
                    jnp.asarray(rm_np),
                    jnp.asarray(_resize_w_big(B, rm_np)).astype(jnp.bfloat16)]

    out = pl.pallas_call(
        functools.partial(_fused_forward_kernel, B=B),
        out_shape=jax.ShapeDtypeStruct((B, 3, IMSIZE, IMSIZE), jnp.float32),
        in_specs=[pl.BlockSpec(memory_space=pltpu.MemorySpace.VMEM)] * len(flat_inputs),
        out_specs=pl.BlockSpec(memory_space=pltpu.MemorySpace.VMEM),
    )(*flat_inputs)
    return out


# =============================== deterministic params =======================================

def init_params(key):
    ks = iter(jax.random.split(key, 64))
    f = {
        "w1": jax.random.normal(next(ks), (D_LAT, HID), jnp.float32) / np.sqrt(D_LAT),
        "b1": jnp.zeros((1, HID), jnp.float32),
        "w2": jax.random.normal(next(ks), (HID, D_LAT), jnp.float32) / np.sqrt(HID),
        "b2": jnp.zeros((1, D_LAT), jnp.float32),
    }
    layers = []
    for cfg in _LAYER_CFGS:
        ci, co = cfg["ci"], cfg["co"]
        wc = jax.random.normal(next(ks), (co, ci, 3, 3), jnp.float32) / np.sqrt(ci * 9)
        layers.append({
            # tap-major [Co, 9*Ci]; column = (ky*3+kx)*Ci + ci (matches in-kernel im2col stack)
            "w9": jnp.transpose(wc, (0, 2, 3, 1)).reshape(co, 9 * ci).astype(jnp.bfloat16),
            "wsq": jnp.sum(wc * wc, axis=(2, 3)),                          # [Co, Ci] for demod
            "bias": jnp.zeros((co, 1), jnp.float32),
            "aff_w": jax.random.normal(next(ks), (D_LAT, ci), jnp.float32) / np.sqrt(D_LAT),
            "aff_b": jnp.zeros((1, ci), jnp.float32),
        })
    torgb = {
        "w": jax.random.normal(next(ks), (3, _C16), jnp.float32) / np.sqrt(_C16),
        "bias": jnp.zeros((3, 1), jnp.float32),
        "aff_w": jax.random.normal(next(ks), (D_LAT, _C16), jnp.float32) / np.sqrt(D_LAT),
        "aff_b": jnp.zeros((1, _C16), jnp.float32),
    }
    g = {
        "const": jax.random.normal(next(ks), (_C4, 16), jnp.float32),      # learned 4x4 const
        "layers": layers,
        "torgb": torgb,
    }
    return {"f": f, "g": g}


# =============================== main =======================================================

if __name__ == "__main__":
    key = jax.random.PRNGKey(0)
    kp, kw = jax.random.split(key)
    params = init_params(kp)

    B = 2
    w_plus = jax.random.normal(kw, (B, LEVELS, D_LAT), jnp.float32)
    gender = jnp.ones((1,), jnp.float32)            # mirrors `gender = torch.ones(1)`
    magnitude = jnp.full((1,), 0.7, jnp.float32)

    fwd = jax.jit(functools.partial(test_prod_server_model, params=params))
    img = jax.block_until_ready(fwd(w_plus, gender, magnitude))

    assert img.shape == (B, 3, IMSIZE, IMSIZE), img.shape
    assert img.dtype == jnp.float32
    assert bool(jnp.all(jnp.isfinite(img)))
    print("KERNEL_OK")
</pallas_src>

<mosaic_0001>
module attributes {stable_mosaic.version = 11 : i64} {
  func.func @_fused_forward_kernel(%arg0: memref<1x16xf32, #tpu.memory_space<vmem>>, %arg1: memref<32x16xf32, #tpu.memory_space<vmem>>, %arg2: memref<64x32xf32, #tpu.memory_space<vmem>>, %arg3: memref<64x1xf32, #tpu.memory_space<vmem>>, %arg4: memref<32x64xf32, #tpu.memory_space<vmem>>, %arg5: memref<32x1xf32, #tpu.memory_space<vmem>>, %arg6: memref<112x32xf32, #tpu.memory_space<vmem>>, %arg7: memref<112x1xf32, #tpu.memory_space<vmem>>, %arg8: memref<32x32xf32, #tpu.memory_space<vmem>>, %arg9: memref<32x128xf32, #tpu.memory_space<vmem>>, %arg10: memref<128x512xf32, #tpu.memory_space<vmem>>, %arg11: memref<32x288xbf16, #tpu.memory_space<vmem>>, %arg12: memref<32x32xf32, #tpu.memory_space<vmem>>, %arg13: memref<32x1xf32, #tpu.memory_space<vmem>>, %arg14: memref<16x32xf32, #tpu.memory_space<vmem>>, %arg15: memref<8x32x32xf32, #tpu.memory_space<vmem>>, %arg16: memref<16x288xbf16, #tpu.memory_space<vmem>>, %arg17: memref<16x32xf32, #tpu.memory_space<vmem>>, %arg18: memref<16x1xf32, #tpu.memory_space<vmem>>, %arg19: memref<16x128xf32, #tpu.memory_space<vmem>>, %arg20: memref<8x128xf32, #tpu.memory_space<vmem>>, %arg21: memref<16x144xbf16, #tpu.memory_space<vmem>>, %arg22: memref<16x16xf32, #tpu.memory_space<vmem>>, %arg23: memref<16x1xf32, #tpu.memory_space<vmem>>, %arg24: memref<16x128xf32, #tpu.memory_space<vmem>>, %arg25: memref<8x128xf32, #tpu.memory_space<vmem>>, %arg26: memref<8x144xbf16, #tpu.memory_space<vmem>>, %arg27: memref<8x16xf32, #tpu.memory_space<vmem>>, %arg28: memref<8x1xf32, #tpu.memory_space<vmem>>, %arg29: memref<16x512xf32, #tpu.memory_space<vmem>>, %arg30: memref<8x512xf32, #tpu.memory_space<vmem>>, %arg31: memref<8x72xbf16, #tpu.memory_space<vmem>>, %arg32: memref<8x8xf32, #tpu.memory_space<vmem>>, %arg33: memref<8x1xf32, #tpu.memory_space<vmem>>, %arg34: memref<16x512xf32, #tpu.memory_space<vmem>>, %arg35: memref<8x512xf32, #tpu.memory_space<vmem>>, %arg36: memref<3x8xf32, #tpu.memory_space<vmem>>, %arg37: memref<3x1xf32, #tpu.memory_space<vmem>>, %arg38: memref<16x512xf32, #tpu.memory_space<vmem>>, %arg39: memref<256x16xf32, #tpu.memory_space<vmem>>, %arg40: memref<96x1536xbf16, #tpu.memory_space<vmem>>, %arg41: memref<2x3x256x256xf32, #tpu.memory_space<vmem>>) attributes {dimension_semantics = [], scalar_prefetch = 0 : i64, scratch_operands = 0 : i64, tpu.core_type = #tpu.core_type<tc>} {
    %c0 = arith.constant 0 : index
    %c0_0 = arith.constant 0 : index
    %0 = vector.load %arg1[%c0, %c0_0] : memref<32x16xf32, #tpu.memory_space<vmem>>, vector<32x16xf32>
    %c0_1 = arith.constant 0 : index
    %c0_2 = arith.constant 0 : index
    %1 = vector.load %arg2[%c0_1, %c0_2] : memref<64x32xf32, #tpu.memory_space<vmem>>, vector<64x32xf32>
    %cst = arith.constant dense<0.000000e+00> : vector<64x16xf32>
    %2 = tpu.matmul %1, %0, %cst {dimension_numbers = #tpu.dot_dimension_numbers<[1], [0], [0], [1], [0, 0, 1, 1], [], []>} : vector<64x32xf32>, vector<32x16xf32>, vector<64x16xf32> -> vector<64x16xf32>
    %c0_3 = arith.constant 0 : index
    %c0_4 = arith.constant 0 : index
    %3 = vector.load %arg3[%c0_3, %c0_4] : memref<64x1xf32, #tpu.memory_space<vmem>>, vector<64x1xf32>
    %4 = vector.broadcast %3 : vector<64x1xf32> to vector<64x16xf32>
    %5 = arith.addf %2, %4 : vector<64x16xf32>
    %cst_5 = arith.constant 0.000000e+00 : f32
    %6 = vector.broadcast %cst_5 : f32 to vector<64x16xf32>
    %7 = arith.cmpf oge, %5, %6 : vector<64x16xf32>
    %cst_6 = arith.constant 2.000000e-01 : f32
    %8 = vector.broadcast %cst_6 : f32 to vector<64x16xf32>
    %9 = arith.mulf %8, %5 : vector<64x16xf32>
    %10 = arith.select %7, %5, %9 : vector<64x16xi1>, vector<64x16xf32>
    %cst_7 = arith.constant 1.41421354 : f32
    %11 = vector.broadcast %cst_7 : f32 to vector<64x16xf32>
    %12 = arith.mulf %10, %11 : vector<64x16xf32>
    %c0_8 = arith.constant 0 : index
    %c0_9 = arith.constant 0 : index
    %13 = vector.load %arg4[%c0_8, %c0_9] : memref<32x64xf32, #tpu.memory_space<vmem>>, vector<32x64xf32>
    %cst_10 = arith.constant dense<0.000000e+00> : vector<32x16xf32>
    %14 = tpu.matmul %13, %12, %cst_10 {dimension_numbers = #tpu.dot_dimension_numbers<[1], [0], [0], [1], [0, 0, 1, 1], [], []>} : vector<32x64xf32>, vector<64x16xf32>, vector<32x16xf32> -> vector<32x16xf32>
    %c0_11 = arith.constant 0 : index
    %c0_12 = arith.constant 0 : index
    %15 = vector.load %arg5[%c0_11, %c0_12] : memref<32x1xf32, #tpu.memory_space<vmem>>, vector<32x1xf32>
    %16 = vector.broadcast %15 : vector<32x1xf32> to vector<32x16xf32>
    %17 = arith.addf %14, %16 : vector<32x16xf32>
    %18 = math.tanh %17 : vector<32x16xf32>
    %c0_13 = arith.constant 0 : index
    %c0_14 = arith.constant 0 : index
    %19 = vector.load %arg0[%c0_13, %c0_14] : memref<1x16xf32, #tpu.memory_space<vmem>>, vector<1x16xf32>
    %20 = vector.broadcast %19 : vector<1x16xf32> to vector<32x16xf32>
    %21 = arith.mulf %20, %18 : vector<32x16xf32>
    %22 = arith.addf %0, %21 : vector<32x16xf32>
    %c0_15 = arith.constant 0 : index
    %c0_16 = arith.constant 0 : index
    %23 = vector.load %arg6[%c0_15, %c0_16] : memref<112x32xf32, #tpu.memory_space<vmem>>, vector<112x32xf32>
    %cst_17 = arith.constant dense<0.000000e+00> : vector<112x16xf32>
    %24 = tpu.matmul %23, %22, %cst_17 {dimension_numbers = #tpu.dot_dimension_numbers<[1], [0], [0], [1], [0, 0, 1, 1], [], []>} : vector<112x32xf32>, vector<32x16xf32>, vector<112x16xf32> -> vector<112x16xf32>
    %c0_18 = arith.constant 0 : index
    %c0_19 = arith.constant 0 : index
    %25 = vector.load %arg7[%c0_18, %c0_19] : memref<112x1xf32, #tpu.memory_space<vmem>>, vector<112x1xf32>
    %26 = vector.broadcast %25 : vector<112x1xf32> to vector<112x16xf32>
    %27 = arith.addf %24, %26 : vector<112x16xf32>
    %c0_20 = arith.constant 0 : index
    %c0_21 = arith.constant 0 : index
    %28 = vector.load %arg8[%c0_20, %c0_21] : memref<32x32xf32, #tpu.memory_space<vmem>>, vector<32x32xf32>
    %29 = vector.extract_strided_slice %27 {offsets = [0, 0], sizes = [32, 16], strides = [1, 1]} : vector<112x16xf32> to vector<32x16xf32>
    %c0_22 = arith.constant 0 : index
    %c0_23 = arith.constant 0 : index
    %30 = vector.load %arg14[%c0_22, %c0_23] : memref<16x32xf32, #tpu.memory_space<vmem>>, vector<16x32xf32>
    %cst_24 = arith.constant dense<0.000000e+00> : vector<32x32xf32>
    %31 = tpu.matmul %29, %30, %cst_24 {dimension_numbers = #tpu.dot_dimension_numbers<[1], [0], [0], [1], [0, 0, 1, 1], [], []>} : vector<32x16xf32>, vector<16x32xf32>, vector<32x32xf32> -> vector<32x32xf32>
    %32 = arith.mulf %28, %31 : vector<32x32xf32>
    %c0_25 = arith.constant 0 : index
    %c0_26 = arith.constant 0 : index
    %33 = vector.load %arg12[%c0_25, %c0_26] : memref<32x32xf32, #tpu.memory_space<vmem>>, vector<32x32xf32>
    %34 = arith.mulf %31, %31 : vector<32x32xf32>
    %cst_27 = arith.constant dense<0.000000e+00> : vector<32x32xf32>
    %35 = tpu.matmul %33, %34, %cst_27 {dimension_numbers = #tpu.dot_dimension_numbers<[1], [0], [0], [1], [0, 0, 1, 1], [], []>} : vector<32x32xf32>, vector<32x32xf32>, vector<32x32xf32> -> vector<32x32xf32>
    %cst_28 = arith.constant 9.99999993E-9 : f32
    %36 = vector.broadcast %cst_28 : f32 to vector<32x32xf32>
    %37 = arith.addf %35, %36 : vector<32x32xf32>
    %38 = math.rsqrt %37 : vector<32x32xf32>
    %c0_29 = arith.constant 0 : index
    %c0_30 = arith.constant 0 : index
    %c0_31 = arith.constant 0 : index
    %39 = vector.load %arg15[%c0_29, %c0_30, %c0_31] : memref<8x32x32xf32, #tpu.memory_space<vmem>>, vector<1x32x32xf32>
    %40 = vector.shape_cast %39 : vector<1x32x32xf32> to vector<32x32xf32>
    %cst_32 = arith.constant dense<0.000000e+00> : vector<32x32xf32>
    %41 = tpu.matmul %32, %40, %cst_32 {dimension_numbers = #tpu.dot_dimension_numbers<[1], [0], [0], [1], [0, 0, 1, 1], [], []>} : vector<32x32xf32>, vector<32x32xf32>, vector<32x32xf32> -> vector<32x32xf32>
    %c1 = arith.constant 1 : index
    %c0_33 = arith.constant 0 : index
    %c0_34 = arith.constant 0 : index
    %42 = vector.load %arg15[%c1, %c0_33, %c0_34] : memref<8x32x32xf32, #tpu.memory_space<vmem>>, vector<1x32x32xf32>
    %43 = vector.shape_cast %42 : vector<1x32x32xf32> to vector<32x32xf32>
    %cst_35 = arith.constant dense<0.000000e+00> : vector<32x32xf32>
    %44 = tpu.matmul %32, %43, %cst_35 {dimension_numbers = #tpu.dot_dimension_numbers<[1], [0], [0], [1], [0, 0, 1, 1], [], []>} : vector<32x32xf32>, vector<32x32xf32>, vector<32x32xf32> -> vector<32x32xf32>
    %c2 = arith.constant 2 : index
    %c0_36 = arith.constant 0 : index
    %c0_37 = arith.constant 0 : index
    %45 = vector.load %arg15[%c2, %c0_36, %c0_37] : memref<8x32x32xf32, #tpu.memory_space<vmem>>, vector<1x32x32xf32>
    %46 = vector.shape_cast %45 : vector<1x32x32xf32> to vector<32x32xf32>
    %cst_38 = arith.constant dense<0.000000e+00> : vector<32x32xf32>
    %47 = tpu.matmul %32, %46, %cst_38 {dimension_numbers = #tpu.dot_dimension_numbers<[1], [0], [0], [1], [0, 0, 1, 1], [], []>} : vector<32x32xf32>, vector<32x32xf32>, vector<32x32xf32> -> vector<32x32xf32>
    %c3 = arith.constant 3 : index
    %c0_39 = arith.constant 0 : index
    %c0_40 = arith.constant 0 : index
    %48 = vector.load %arg15[%c3, %c0_39, %c0_40] : memref<8x32x32xf32, #tpu.memory_space<vmem>>, vector<1x32x32xf32>
    %49 = vector.shape_cast %48 : vector<1x32x32xf32> to vector<32x32xf32>
    %cst_41 = arith.constant dense<0.000000e+00> : vector<32x32xf32>
    %50 = tpu.matmul %32, %49, %cst_41 {dimension_numbers = #tpu.dot_dimension_numbers<[1], [0], [0], [1], [0, 0, 1, 1], [], []>} : vector<32x32xf32>, vector<32x32xf32>, vector<32x32xf32> -> vector<32x32xf32>
    %c4 = arith.constant 4 : index
    %c0_42 = arith.constant 0 : index
    %c0_43 = arith.constant 0 : index
    %51 = vector.load %arg15[%c4, %c0_42, %c0_43] : memref<8x32x32xf32, #tpu.memory_space<vmem>>, vector<1x32x32xf32>
    %52 = vector.shape_cast %51 : vector<1x32x32xf32> to vector<32x32xf32>
    %cst_44 = arith.constant dense<0.000000e+00> : vector<32x32xf32>
    %53 = tpu.matmul %32, %52, %cst_44 {dimension_numbers = #tpu.dot_dimension_numbers<[1], [0], [0], [1], [0, 0, 1, 1], [], []>} : vector<32x32xf32>, vector<32x32xf32>, vector<32x32xf32> -> vector<32x32xf32>
    %c5 = arith.constant 5 : index
    %c0_45 = arith.constant 0 : index
    %c0_46 = arith.constant 0 : index
    %54 = vector.load %arg15[%c5, %c0_45, %c0_46] : memref<8x32x32xf32, #tpu.memory_space<vmem>>, vector<1x32x32xf32>
    %55 = vector.shape_cast %54 : vector<1x32x32xf32> to vector<32x32xf32>
    %cst_47 = arith.constant dense<0.000000e+00> : vector<32x32xf32>
    %56 = tpu.matmul %32, %55, %cst_47 {dimension_numbers = #tpu.dot_dimension_numbers<[1], [0], [0], [1], [0, 0, 1, 1], [], []>} : vector<32x32xf32>, vector<32x32xf32>, vector<32x32xf32> -> vector<32x32xf32>
    %c6 = arith.constant 6 : index
    %c0_48 = arith.constant 0 : index
    %c0_49 = arith.constant 0 : index
    %57 = vector.load %arg15[%c6, %c0_48, %c0_49] : memref<8x32x32xf32, #tpu.memory_space<vmem>>, vector<1x32x32xf32>
    %58 = vector.shape_cast %57 : vector<1x32x32xf32> to vector<32x32xf32>
    %cst_50 = arith.constant dense<0.000000e+00> : vector<32x32xf32>
    %59 = tpu.matmul %32, %58, %cst_50 {dimension_numbers = #tpu.dot_dimension_numbers<[1], [0], [0], [1], [0, 0, 1, 1], [], []>} : vector<32x32xf32>, vector<32x32xf32>, vector<32x32xf32> -> vector<32x32xf32>
    %c7 = arith.constant 7 : index
    %c0_51 = arith.constant 0 : index
    %c0_52 = arith.constant 0 : index
    %60 = vector.load %arg15[%c7, %c0_51, %c0_52] : memref<8x32x32xf32, #tpu.memory_space<vmem>>, vector<1x32x32xf32>
    %61 = vector.shape_cast %60 : vector<1x32x32xf32> to vector<32x32xf32>
    %cst_53 = arith.constant dense<0.000000e+00> : vector<32x32xf32>
    %62 = tpu.matmul %32, %61, %cst_53 {dimension_numbers = #tpu.dot_dimension_numbers<[1], [0], [0], [1], [0, 0, 1, 1], [], []>} : vector<32x32xf32>, vector<32x32xf32>, vector<32x32xf32> -> vector<32x32xf32>
    %63 = tpu.concatenate %41, %44, %47, %50, %32, %53, %56, %59, %62 in 0 : vector<32x32xf32>, vector<32x32xf32>, vector<32x32xf32>, vector<32x32xf32>, vector<32x32xf32>, vector<32x32xf32>, vector<32x32xf32>, vector<32x32xf32>, vector<32x32xf32> -> vector<288x32xf32>
    %c0_54 = arith.constant 0 : index
    %c0_55 = arith.constant 0 : index
    %64 = vector.load %arg11[%c0_54, %c0_55] : memref<32x288xbf16, #tpu.memory_space<vmem>>, vector<32x288xbf16>
    %65 = arith.truncf %63 : vector<288x32xf32> to vector<288x32xbf16>
    %cst_56 = arith.constant dense<0.000000e+00> : vector<32x32xf32>
    %66 = tpu.matmul %64, %65, %cst_56 {dimension_numbers = #tpu.dot_dimension_numbers<[1], [0], [0], [1], [0, 0, 1, 1], [], []>} : vector<32x288xbf16>, vector<288x32xbf16>, vector<32x32xf32> -> vector<32x32xf32>
    %67 = arith.mulf %38, %66 : vector<32x32xf32>
    %c0_57 = arith.constant 0 : index
    %c0_58 = arith.constant 0 : index
    %68 = vector.load %arg13[%c0_57, %c0_58] : memref<32x1xf32, #tpu.memory_space<vmem>>, vector<32x1xf32>
    %69 = vector.broadcast %68 : vector<32x1xf32> to vector<32x32xf32>
    %70 = arith.addf %67, %69 : vector<32x32xf32>
    %cst_59 = arith.constant 0.000000e+00 : f32
    %71 = vector.broadcast %cst_59 : f32 to vector<32x32xf32>
    %72 = arith.cmpf oge, %70, %71 : vector<32x32xf32>
    %cst_60 = arith.constant 2.000000e-01 : f32
    %73 = vector.broadcast %cst_60 : f32 to vector<32x32xf32>
    %74 = arith.mulf %73, %70 : vector<32x32xf32>
    %75 = arith.select %72, %70, %74 : vector<32x32xi1>, vector<32x32xf32>
    %cst_61 = arith.constant 1.41421354 : f32
    %76 = vector.broadcast %cst_61 : f32 to vector<32x32xf32>
    %77 = arith.mulf %75, %76 : vector<32x32xf32>
    %c0_62 = arith.constant 0 : index
    %c0_63 = arith.constant 0 : index
    %78 = vector.load %arg9[%c0_62, %c0_63] : memref<32x128xf32, #tpu.memory_space<vmem>>, vector<32x128xf32>
    %cst_64 = arith.constant dense<0.000000e+00> : vector<32x128xf32>
    %79 = tpu.matmul %77, %78, %cst_64 {dimension_numbers = #tpu.dot_dimension_numbers<[1], [0], [0], [1], [0, 0, 1, 1], [], []>} : vector<32x32xf32>, vector<32x128xf32>, vector<32x128xf32> -> vector<32x128xf32>
    %80 = vector.extract_strided_slice %27 {offsets = [32, 0], sizes = [32, 16], strides = [1, 1]} : vector<112x16xf32> to vector<32x16xf32>
    %c0_65 = arith.constant 0 : index
    %c0_66 = arith.constant 0 : index
    %81 = vector.load %arg19[%c0_65, %c0_66] : memref<16x128xf32, #tpu.memory_space<vmem>>, vector<16x128xf32>
    %cst_67 = arith.constant dense<0.000000e+00> : vector<32x128xf32>
    %82 = tpu.matmul %80, %81, %cst_67 {dimension_numbers = #tpu.dot_dimension_numbers<[1], [0], [0], [1], [0, 0, 1, 1], [], []>} : vector<32x16xf32>, vector<16x128xf32>, vector<32x128xf32> -> vector<32x128xf32>
    %83 = arith.mulf %79, %82 : vector<32x128xf32>
    %c0_68 = arith.constant 0 : index
    %c0_69 = arith.constant 0 : index
    %84 = vector.load %arg17[%c0_68, %c0_69] : memref<16x32xf32, #tpu.memory_space<vmem>>, vector<16x32xf32>
    %85 = arith.mulf %82, %82 : vector<32x128xf32>
    %cst_70 = arith.constant dense<0.000000e+00> : vector<16x128xf32>
    %86 = tpu.matmul %84, %85, %cst_70 {dimension_numbers = #tpu.dot_dimension_numbers<[1], [0], [0], [1], [0, 0, 1, 1], [], []>} : vector<16x32xf32>, vector<32x128xf32>, vector<16x128xf32> -> vector<16x128xf32>
    %cst_71 = arith.constant 9.99999993E-9 : f32
    %87 = vector.broadcast %cst_71 : f32 to vector<16x128xf32>
    %88 = arith.addf %86, %87 : vector<16x128xf32>
    %89 = math.rsqrt %88 : vector<16x128xf32>
    %c9_i32 = arith.constant 9 : i32
    %90 = tpu.dynamic_rotate %83 by %c9_i32 dim 1 : vector<32x128xf32>, i32 -> vector<32x128xf32>
    %c0_72 = arith.constant 0 : index
    %c0_73 = arith.constant 0 : index
    %91 = vector.load %arg20[%c0_72, %c0_73] : memref<8x128xf32, #tpu.memory_space<vmem>>, vector<1x128xf32>
    %92 = vector.broadcast %91 : vector<1x128xf32> to vector<32x128xf32>
    %93 = arith.mulf %90, %92 : vector<32x128xf32>
    %c8_i32 = arith.constant 8 : i32
    %94 = tpu.dynamic_rotate %83 by %c8_i32 dim 1 : vector<32x128xf32>, i32 -> vector<32x128xf32>
    %c1_74 = arith.constant 1 : index
    %c0_75 = arith.constant 0 : index
    %95 = vector.load %arg20[%c1_74, %c0_75] : memref<8x128xf32, #tpu.memory_space<vmem>>, vector<1x128xf32>
    %96 = vector.broadcast %95 : vector<1x128xf32> to vector<32x128xf32>
    %97 = arith.mulf %94, %96 : vector<32x128xf32>
    %c7_i32 = arith.constant 7 : i32
    %98 = tpu.dynamic_rotate %83 by %c7_i32 dim 1 : vector<32x128xf32>, i32 -> vector<32x128xf32>
    %c2_76 = arith.constant 2 : index
    %c0_77 = arith.constant 0 : index
    %99 = vector.load %arg20[%c2_76, %c0_77] : memref<8x128xf32, #tpu.memory_space<vmem>>, vector<1x128xf32>
    %100 = vector.broadcast %99 : vector<1x128xf32> to vector<32x128xf32>
    %101 = arith.mulf %98, %100 : vector<32x128xf32>
    %c1_i32 = arith.constant 1 : i32
    %102 = tpu.dynamic_rotate %83 by %c1_i32 dim 1 : vector<32x128xf32>, i32 -> vector<32x128xf32>
    %c3_78 = arith.constant 3 : index
    %c0_79 = arith.constant 0 : index
    %103 = vector.load %arg20[%c3_78, %c0_79] : memref<8x128xf32, #tpu.memory_space<vmem>>, vector<1x128xf32>
    %104 = vector.broadcast %103 : vector<1x128xf32> to vector<32x128xf32>
    %105 = arith.mulf %102, %104 : vector<32x128xf32>
    %c127_i32 = arith.constant 127 : i32
    %106 = tpu.dynamic_rotate %83 by %c127_i32 dim 1 : vector<32x128xf32>, i32 -> vector<32x128xf32>
    %c4_80 = arith.constant 4 : index
    %c0_81 = arith.constant 0 : index
    %107 = vector.load %arg20[%c4_80, %c0_81] : memref<8x128xf32, #tpu.memory_space<vmem>>, vector<1x128xf32>
    %108 = vector.broadcast %107 : vector<1x128xf32> to vector<32x128xf32>
    %109 = arith.mulf %106, %108 : vector<32x128xf32>
    %c121_i32 = arith.constant 121 : i32
    %110 = tpu.dynamic_rotate %83 by %c121_i32 dim 1 : vector<32x128xf32>, i32 -> vector<32x128xf32>
    %c5_82 = arith.constant 5 : index
    %c0_83 = arith.constant 0 : index
    %111 = vector.load %arg20[%c5_82, %c0_83] : memref<8x128xf32, #tpu.memory_space<vmem>>, vector<1x128xf32>
    %112 = vector.broadcast %111 : vector<1x128xf32> to vector<32x128xf32>
    %113 = arith.mulf %110, %112 : vector<32x128xf32>
    %c120_i32 = arith.constant 120 : i32
    %114 = tpu.dynamic_rotate %83 by %c120_i32 dim 1 : vector<32x128xf32>, i32 -> vector<32x128xf32>
    %c6_84 = arith.constant 6 : index
    %c0_85 = arith.constant 0 : index
    %115 = vector.load %arg20[%c6_84, %c0_85] : memref<8x128xf32, #tpu.memory_space<vmem>>, vector<1x128xf32>
    %116 = vector.broadcast %115 : vector<1x128xf32> to vector<32x128xf32>
    %117 = arith.mulf %114, %116 : vector<32x128xf32>
    %c119_i32 = arith.constant 119 : i32
    %118 = tpu.dynamic_rotate %83 by %c119_i32 dim 1 : vector<32x128xf32>, i32 -> vector<32x128xf32>
    %c7_86 = arith.constant 7 : index
    %c0_87 = arith.constant 0 : index
    %119 = vector.load %arg20[%c7_86, %c0_87] : memref<8x128xf32, #tpu.memory_space<vmem>>, vector<1x128xf32>
    %120 = vector.broadcast %119 : vector<1x128xf32> to vector<32x128xf32>
    %121 = arith.mulf %118, %120 : vector<32x128xf32>
    %122 = tpu.concatenate %93, %97, %101, %105, %83, %109, %113, %117, %121 in 0 : vector<32x128xf32>, vector<32x128xf32>, vector<32x128xf32>, vector<32x128xf32>, vector<32x128xf32>, vector<32x128xf32>, vector<32x128xf32>, vector<32x128xf32>, vector<32x128xf32> -> vector<288x128xf32>
    %c0_88 = arith.constant 0 : index
    %c0_89 = arith.constant 0 : index
    %123 = vector.load %arg16[%c0_88, %c0_89] : memref<16x288xbf16, #tpu.memory_space<vmem>>, vector<16x288xbf16>
    %124 = arith.truncf %122 : vector<288x128xf32> to vector<288x128xbf16>
    %cst_90 = arith.constant dense<0.000000e+00> : vector<16x128xf32>
    %125 = tpu.matmul %123, %124, %cst_90 {dimension_numbers = #tpu.dot_dimension_numbers<[1], [0], [0], [1], [0, 0, 1, 1], [], []>} : vector<16x288xbf16>, vector<288x128xbf16>, vector<16x128xf32> -> vector<16x128xf32>
    %126 = arith.mulf %89, %125 : vector<16x128xf32>
    %c0_91 = arith.constant 0 : index
    %c0_92 = arith.constant 0 : index
    %127 = vector.load %arg18[%c0_91, %c0_92] : memref<16x1xf32, #tpu.memory_space<vmem>>, vector<16x1xf32>
    %128 = vector.broadcast %127 : vector<16x1xf32> to vector<16x128xf32>
    %129 = arith.addf %126, %128 : vector<16x128xf32>
    %cst_93 = arith.constant 0.000000e+00 : f32
    %130 = vector.broadcast %cst_93 : f32 to vector<16x128xf32>
    %131 = arith.cmpf oge, %129, %130 : vector<16x128xf32>
    %cst_94 = arith.constant 2.000000e-01 : f32
    %132 = vector.broadcast %cst_94 : f32 to vector<16x128xf32>
    %133 = arith.mulf %132, %129 : vector<16x128xf32>
    %134 = arith.select %131, %129, %133 : vector<16x128xi1>, vector<16x128xf32>
    %cst_95 = arith.constant 1.41421354 : f32
    %135 = vector.broadcast %cst_95 : f32 to vector<16x128xf32>
    %136 = arith.mulf %134, %135 : vector<16x128xf32>
    %137 = vector.extract_strided_slice %27 {offsets = [64, 0], sizes = [16, 16], strides = [1, 1]} : vector<112x16xf32> to vector<16x16xf32>
    %c0_96 = arith.constant 0 : index
    %c0_97 = arith.constant 0 : index
    %138 = vector.load %arg24[%c0_96, %c0_97] : memref<16x128xf32, #tpu.memory_space<vmem>>, vector<16x128xf32>
    %cst_98 = arith.constant dense<0.000000e+00> : vector<16x128xf32>
    %139 = tpu.matmul %137, %138, %cst_98 {dimension_numbers = #tpu.dot_dimension_numbers<[1], [0], [0], [1], [0, 0, 1, 1], [], []>} : vector<16x16xf32>, vector<16x128xf32>, vector<16x128xf32> -> vector<16x128xf32>
    %140 = arith.mulf %136, %139 : vector<16x128xf32>
    %c0_99 = arith.constant 0 : index
    %c0_100 = arith.constant 0 : index
    %141 = vector.load %arg22[%c0_99, %c0_100] : memref<16x16xf32, #tpu.memory_space<vmem>>, vector<16x16xf32>
    %142 = arith.mulf %139, %139 : vector<16x128xf32>
    %cst_101 = arith.constant dense<0.000000e+00> : vector<16x128xf32>
    %143 = tpu.matmul %141, %142, %cst_101 {dimension_numbers = #tpu.dot_dimension_numbers<[1], [0], [0], [1], [0, 0, 1, 1], [], []>} : vector<16x16xf32>, vector<16x128xf32>, vector<16x128xf32> -> vector<16x128xf32>
    %cst_102 = arith.constant 9.99999993E-9 : f32
    %144 = vector.broadcast %cst_102 : f32 to vector<16x128xf32>
    %145 = arith.addf %143, %144 : vector<16x128xf32>
    %146 = math.rsqrt %145 : vector<16x128xf32>
    %c9_i32_103 = arith.constant 9 : i32
    %147 = tpu.dynamic_rotate %140 by %c9_i32_103 dim 1 : vector<16x128xf32>, i32 -> vector<16x128xf32>
    %c0_104 = arith.constant 0 : index
    %c0_105 = arith.constant 0 : index
    %148 = vector.load %arg25[%c0_104, %c0_105] : memref<8x128xf32, #tpu.memory_space<vmem>>, vector<1x128xf32>
    %149 = vector.broadcast %148 : vector<1x128xf32> to vector<16x128xf32>
    %150 = arith.mulf %147, %149 : vector<16x128xf32>
    %c8_i32_106 = arith.constant 8 : i32
    %151 = tpu.dynamic_rotate %140 by %c8_i32_106 dim 1 : vector<16x128xf32>, i32 -> vector<16x128xf32>
    %c1_107 = arith.constant 1 : index
    %c0_108 = arith.constant 0 : index
    %152 = vector.load %arg25[%c1_107, %c0_108] : memref<8x128xf32, #tpu.memory_space<vmem>>, vector<1x128xf32>
    %153 = vector.broadcast %152 : vector<1x128xf32> to vector<16x128xf32>
    %154 = arith.mulf %151, %153 : vector<16x128xf32>
    %c7_i32_109 = arith.constant 7 : i32
    %155 = tpu.dynamic_rotate %140 by %c7_i32_109 dim 1 : vector<16x128xf32>, i32 -> vector<16x128xf32>
    %c2_110 = arith.constant 2 : index
    %c0_111 = arith.constant 0 : index
    %156 = vector.load %arg25[%c2_110, %c0_111] : memref<8x128xf32, #tpu.memory_space<vmem>>, vector<1x128xf32>
    %157 = vector.broadcast %156 : vector<1x128xf32> to vector<16x128xf32>
    %158 = arith.mulf %155, %157 : vector<16x128xf32>
    %c1_i32_112 = arith.constant 1 : i32
    %159 = tpu.dynamic_rotate %140 by %c1_i32_112 dim 1 : vector<16x128xf32>, i32 -> vector<16x128xf32>
    %c3_113 = arith.constant 3 : index
    %c0_114 = arith.constant 0 : index
    %160 = vector.load %arg25[%c3_113, %c0_114] : memref<8x128xf32, #tpu.memory_space<vmem>>, vector<1x128xf32>
    %161 = vector.broadcast %160 : vector<1x128xf32> to vector<16x128xf32>
    %162 = arith.mulf %159, %161 : vector<16x128xf32>
    %c127_i32_115 = arith.constant 127 : i32
    %163 = tpu.dynamic_rotate %140 by %c127_i32_115 dim 1 : vector<16x128xf32>, i32 -> vector<16x128xf32>
    %c4_116 = arith.constant 4 : index
    %c0_117 = arith.constant 0 : index
    %164 = vector.load %arg25[%c4_116, %c0_117] : memref<8x128xf32, #tpu.memory_space<vmem>>, vector<1x128xf32>
    %165 = vector.broadcast %164 : vector<1x128xf32> to vector<16x128xf32>
    %166 = arith.mulf %163, %165 : vector<16x128xf32>
    %c121_i32_118 = arith.constant 121 : i32
    %167 = tpu.dynamic_rotate %140 by %c121_i32_118 dim 1 : vector<16x128xf32>, i32 -> vector<16x128xf32>
    %c5_119 = arith.constant 5 : index
    %c0_120 = arith.constant 0 : index
    %168 = vector.load %arg25[%c5_119, %c0_120] : memref<8x128xf32, #tpu.memory_space<vmem>>, vector<1x128xf32>
    %169 = vector.broadcast %168 : vector<1x128xf32> to vector<16x128xf32>
    %170 = arith.mulf %167, %169 : vector<16x128xf32>
    %c120_i32_121 = arith.constant 120 : i32
    %171 = tpu.dynamic_rotate %140 by %c120_i32_121 dim 1 : vector<16x128xf32>, i32 -> vector<16x128xf32>
    %c6_122 = arith.constant 6 : index
    %c0_123 = arith.constant 0 : index
    %172 = vector.load %arg25[%c6_122, %c0_123] : memref<8x128xf32, #tpu.memory_space<vmem>>, vector<1x128xf32>
    %173 = vector.broadcast %172 : vector<1x128xf32> to vector<16x128xf32>
    %174 = arith.mulf %171, %173 : vector<16x128xf32>
    %c119_i32_124 = arith.constant 119 : i32
    %175 = tpu.dynamic_rotate %140 by %c119_i32_124 dim 1 : vector<16x128xf32>, i32 -> vector<16x128xf32>
    %c7_125 = arith.constant 7 : index
    %c0_126 = arith.constant 0 : index
    %176 = vector.load %arg25[%c7_125, %c0_126] : memref<8x128xf32, #tpu.memory_space<vmem>>, vector<1x128xf32>
    %177 = vector.broadcast %176 : vector<1x128xf32> to vector<16x128xf32>
    %178 = arith.mulf %175, %177 : vector<16x128xf32>
    %179 = tpu.concatenate %150, %154, %158, %162, %140, %166, %170, %174, %178 in 0 : vector<16x128xf32>, vector<16x128xf32>, vector<16x128xf32>, vector<16x128xf32>, vector<16x128xf32>, vector<16x128xf32>, vector<16x128xf32>, vector<16x128xf32>, vector<16x128xf32> -> vector<144x128xf32>
    %c0_127 = arith.constant 0 : index
    %c0_128 = arith.constant 0 : index
    %180 = vector.load %arg21[%c0_127, %c0_128] : memref<16x144xbf16, #tpu.memory_space<vmem>>, vector<16x144xbf16>
    %181 = arith.truncf %179 : vector<144x128xf32> to vector<144x128xbf16>
    %cst_129 = arith.constant dense<0.000000e+00> : vector<16x128xf32>
    %182 = tpu.matmul %180, %181, %cst_129 {dimension_numbers = #tpu.dot_dimension_numbers<[1], [0], [0], [1], [0, 0, 1, 1], [], []>} : vector<16x144xbf16>, vector<144x128xbf16>, vector<16x128xf32> -> vector<16x128xf32>
    %183 = arith.mulf %146, %182 : vector<16x128xf32>
    %c0_130 = arith.constant 0 : index
    %c0_131 = arith.constant 0 : index
    %184 = vector.load %arg23[%c0_130, %c0_131] : memref<16x1xf32, #tpu.memory_space<vmem>>, vector<16x1xf32>
    %185 = vector.broadcast %184 : vector<16x1xf32> to vector<16x128xf32>
    %186 = arith.addf %183, %185 : vector<16x128xf32>
    %cst_132 = arith.constant 0.000000e+00 : f32
    %187 = vector.broadcast %cst_132 : f32 to vector<16x128xf32>
    %188 = arith.cmpf oge, %186, %187 : vector<16x128xf32>
    %cst_133 = arith.constant 2.000000e-01 : f32
    %189 = vector.broadcast %cst_133 : f32 to vector<16x128xf32>
    %190 = arith.mulf %189, %186 : vector<16x128xf32>
    %191 = arith.select %188, %186, %190 : vector<16x128xi1>, vector<16x128xf32>
    %cst_134 = arith.constant 1.41421354 : f32
    %192 = vector.broadcast %cst_134 : f32 to vector<16x128xf32>
    %193 = arith.mulf %191, %192 : vector<16x128xf32>
    %c0_135 = arith.constant 0 : index
    %c0_136 = arith.constant 0 : index
    %194 = vector.load %arg10[%c0_135, %c0_136] : memref<128x512xf32, #tpu.memory_space<vmem>>, vector<128x512xf32>
    %cst_137 = arith.constant dense<0.000000e+00> : vector<16x512xf32>
    %195 = tpu.matmul %193, %194, %cst_137 {dimension_numbers = #tpu.dot_dimension_numbers<[1], [0], [0], [1], [0, 0, 1, 1], [], []>} : vector<16x128xf32>, vector<128x512xf32>, vector<16x512xf32> -> vector<16x512xf32>
    %196 = vector.extract_strided_slice %27 {offsets = [80, 0], sizes = [16, 16], strides = [1, 1]} : vector<112x16xf32> to vector<16x16xf32>
    %c0_138 = arith.constant 0 : index
    %c0_139 = arith.constant 0 : index
    %197 = vector.load %arg29[%c0_138, %c0_139] : memref<16x512xf32, #tpu.memory_space<vmem>>, vector<16x512xf32>
    %cst_140 = arith.constant dense<0.000000e+00> : vector<16x512xf32>
    %198 = tpu.matmul %196, %197, %cst_140 {dimension_numbers = #tpu.dot_dimension_numbers<[1], [0], [0], [1], [0, 0, 1, 1], [], []>} : vector<16x16xf32>, vector<16x512xf32>, vector<16x512xf32> -> vector<16x512xf32>
    %199 = arith.mulf %195, %198 : vector<16x512xf32>
    %c0_141 = arith.constant 0 : index
    %c0_142 = arith.constant 0 : index
    %200 = vector.load %arg27[%c0_141, %c0_142] : memref<8x16xf32, #tpu.memory_space<vmem>>, vector<8x16xf32>
    %201 = arith.mulf %198, %198 : vector<16x512xf32>
    %cst_143 = arith.constant dense<0.000000e+00> : vector<8x512xf32>
    %202 = tpu.matmul %200, %201, %cst_143 {dimension_numbers = #tpu.dot_dimension_numbers<[1], [0], [0], [1], [0, 0, 1, 1], [], []>} : vector<8x16xf32>, vector<16x512xf32>, vector<8x512xf32> -> vector<8x512xf32>
    %cst_144 = arith.constant 9.99999993E-9 : f32
    %203 = vector.broadcast %cst_144 : f32 to vector<8x512xf32>
    %204 = arith.addf %202, %203 : vector<8x512xf32>
    %205 = math.rsqrt %204 : vector<8x512xf32>
    %c17_i32 = arith.constant 17 : i32
    %206 = tpu.dynamic_rotate %199 by %c17_i32 dim 1 : vector<16x512xf32>, i32 -> vector<16x512xf32>
    %c0_145 = arith.constant 0 : index
    %c0_146 = arith.constant 0 : index
    %207 = vector.load %arg30[%c0_145, %c0_146] : memref<8x512xf32, #tpu.memory_space<vmem>>, vector<1x512xf32>
    %208 = vector.broadcast %207 : vector<1x512xf32> to vector<16x512xf32>
    %209 = arith.mulf %206, %208 : vector<16x512xf32>
    %c16_i32 = arith.constant 16 : i32
    %210 = tpu.dynamic_rotate %199 by %c16_i32 dim 1 : vector<16x512xf32>, i32 -> vector<16x512xf32>
    %c1_147 = arith.constant 1 : index
    %c0_148 = arith.constant 0 : index
    %211 = vector.load %arg30[%c1_147, %c0_148] : memref<8x512xf32, #tpu.memory_space<vmem>>, vector<1x512xf32>
    %212 = vector.broadcast %211 : vector<1x512xf32> to vector<16x512xf32>
    %213 = arith.mulf %210, %212 : vector<16x512xf32>
    %c15_i32 = arith.constant 15 : i32
    %214 = tpu.dynamic_rotate %199 by %c15_i32 dim 1 : vector<16x512xf32>, i32 -> vector<16x512xf32>
    %c2_149 = arith.constant 2 : index
    %c0_150 = arith.constant 0 : index
    %215 = vector.load %arg30[%c2_149, %c0_150] : memref<8x512xf32, #tpu.memory_space<vmem>>, vector<1x512xf32>
    %216 = vector.broadcast %215 : vector<1x512xf32> to vector<16x512xf32>
    %217 = arith.mulf %214, %216 : vector<16x512xf32>
    %c1_i32_151 = arith.constant 1 : i32
    %218 = tpu.dynamic_rotate %199 by %c1_i32_151 dim 1 : vector<16x512xf32>, i32 -> vector<16x512xf32>
    %c3_152 = arith.constant 3 : index
    %c0_153 = arith.constant 0 : index
    %219 = vector.load %arg30[%c3_152, %c0_153] : memref<8x512xf32, #tpu.memory_space<vmem>>, vector<1x512xf32>
    %220 = vector.broadcast %219 : vector<1x512xf32> to vector<16x512xf32>
    %221 = arith.mulf %218, %220 : vector<16x512xf32>
    %c511_i32 = arith.constant 511 : i32
    %222 = tpu.dynamic_rotate %199 by %c511_i32 dim 1 : vector<16x512xf32>, i32 -> vector<16x512xf32>
    %c4_154 = arith.constant 4 : index
    %c0_155 = arith.constant 0 : index
    %223 = vector.load %arg30[%c4_154, %c0_155] : memref<8x512xf32, #tpu.memory_space<vmem>>, vector<1x512xf32>
    %224 = vector.broadcast %223 : vector<1x512xf32> to vector<16x512xf32>
    %225 = arith.mulf %222, %224 : vector<16x512xf32>
    %c497_i32 = arith.constant 497 : i32
    %226 = tpu.dynamic_rotate %199 by %c497_i32 dim 1 : vector<16x512xf32>, i32 -> vector<16x512xf32>
    %c5_156 = arith.constant 5 : index
    %c0_157 = arith.constant 0 : index
    %227 = vector.load %arg30[%c5_156, %c0_157] : memref<8x512xf32, #tpu.memory_space<vmem>>, vector<1x512xf32>
    %228 = vector.broadcast %227 : vector<1x512xf32> to vector<16x512xf32>
    %229 = arith.mulf %226, %228 : vector<16x512xf32>
    %c496_i32 = arith.constant 496 : i32
    %230 = tpu.dynamic_rotate %199 by %c496_i32 dim 1 : vector<16x512xf32>, i32 -> vector<16x512xf32>
    %c6_158 = arith.constant 6 : index
    %c0_159 = arith.constant 0 : index
    %231 = vector.load %arg30[%c6_158, %c0_159] : memref<8x512xf32, #tpu.memory_space<vmem>>, vector<1x512xf32>
    %232 = vector.broadcast %231 : vector<1x512xf32> to vector<16x512xf32>
    %233 = arith.mulf %230, %232 : vector<16x512xf32>
    %c495_i32 = arith.constant 495 : i32
    %234 = tpu.dynamic_rotate %199 by %c495_i32 dim 1 : vector<16x512xf32>, i32 -> vector<16x512xf32>
    %c7_160 = arith.constant 7 : index
    %c0_161 = arith.constant 0 : index
    %235 = vector.load %arg30[%c7_160, %c0_161] : memref<8x512xf32, #tpu.memory_space<vmem>>, vector<1x512xf32>
    %236 = vector.broadcast %235 : vector<1x512xf32> to vector<16x512xf32>
    %237 = arith.mulf %234, %236 : vector<16x512xf32>
    %238 = tpu.concatenate %209, %213, %217, %221, %199, %225, %229, %233, %237 in 0 : vector<16x512xf32>, vector<16x512xf32>, vector<16x512xf32>, vector<16x512xf32>, vector<16x512xf32>, vector<16x512xf32>, vector<16x512xf32>, vector<16x512xf32>, vector<16x512xf32> -> vector<144x512xf32>
    %c0_162 = arith.constant 0 : index
    %c0_163 = arith.constant 0 : index
    %239 = vector.load %arg26[%c0_162, %c0_163] : memref<8x144xbf16, #tpu.memory_space<vmem>>, vector<8x144xbf16>
    %240 = arith.truncf %238 : vector<144x512xf32> to vector<144x512xbf16>
    %cst_164 = arith.constant dense<0.000000e+00> : vector<8x512xf32>
    %241 = tpu.matmul %239, %240, %cst_164 {dimension_numbers = #tpu.dot_dimension_numbers<[1], [0], [0], [1], [0, 0, 1, 1], [], []>} : vector<8x144xbf16>, vector<144x512xbf16>, vector<8x512xf32> -> vector<8x512xf32>
    %242 = arith.mulf %205, %241 : vector<8x512xf32>
    %c0_165 = arith.constant 0 : index
    %c0_166 = arith.constant 0 : index
    %243 = vector.load %arg28[%c0_165, %c0_166] : memref<8x1xf32, #tpu.memory_space<vmem>>, vector<8x1xf32>
    %244 = vector.broadcast %243 : vector<8x1xf32> to vector<8x512xf32>
    %245 = arith.addf %242, %244 : vector<8x512xf32>
    %cst_167 = arith.constant 0.000000e+00 : f32
    %246 = vector.broadcast %cst_167 : f32 to vector<8x512xf32>
    %247 = arith.cmpf oge, %245, %246 : vector<8x512xf32>
    %cst_168 = arith.constant 2.000000e-01 : f32
    %248 = vector.broadcast %cst_168 : f32 to vector<8x512xf32>
    %249 = arith.mulf %248, %245 : vector<8x512xf32>
    %250 = arith.select %247, %245, %249 : vector<8x512xi1>, vector<8x512xf32>
    %cst_169 = arith.constant 1.41421354 : f32
    %251 = vector.broadcast %cst_169 : f32 to vector<8x512xf32>
    %252 = arith.mulf %250, %251 : vector<8x512xf32>
    %253 = vector.extract_strided_slice %27 {offsets = [96, 0], sizes = [8, 16], strides = [1, 1]} : vector<112x16xf32> to vector<8x16xf32>
    %c0_170 = arith.constant 0 : index
    %c0_171 = arith.constant 0 : index
    %254 = vector.load %arg34[%c0_170, %c0_171] : memref<16x512xf32, #tpu.memory_space<vmem>>, vector<16x512xf32>
    %cst_172 = arith.constant dense<0.000000e+00> : vector<8x512xf32>
    %255 = tpu.matmul %253, %254, %cst_172 {dimension_numbers = #tpu.dot_dimension_numbers<[1], [0], [0], [1], [0, 0, 1, 1], [], []>} : vector<8x16xf32>, vector<16x512xf32>, vector<8x512xf32> -> vector<8x512xf32>
    %256 = arith.mulf %252, %255 : vector<8x512xf32>
    %c0_173 = arith.constant 0 : index
    %c0_174 = arith.constant 0 : index
    %257 = vector.load %arg32[%c0_173, %c0_174] : memref<8x8xf32, #tpu.memory_space<vmem>>, vector<8x8xf32>
    %258 = arith.mulf %255, %255 : vector<8x512xf32>
    %cst_175 = arith.constant dense<0.000000e+00> : vector<8x512xf32>
    %259 = tpu.matmul %257, %258, %cst_175 {dimension_numbers = #tpu.dot_dimension_numbers<[1], [0], [0], [1], [0, 0, 1, 1], [], []>} : vector<8x8xf32>, vector<8x512xf32>, vector<8x512xf32> -> vector<8x512xf32>
    %cst_176 = arith.constant 9.99999993E-9 : f32
    %260 = vector.broadcast %cst_176 : f32 to vector<8x512xf32>
    %261 = arith.addf %259, %260 : vector<8x512xf32>
    %262 = math.rsqrt %261 : vector<8x512xf32>
    %c17_i32_177 = arith.constant 17 : i32
    %263 = tpu.dynamic_rotate %256 by %c17_i32_177 dim 1 : vector<8x512xf32>, i32 -> vector<8x512xf32>
    %c0_178 = arith.constant 0 : index
    %c0_179 = arith.constant 0 : index
    %264 = vector.load %arg35[%c0_178, %c0_179] : memref<8x512xf32, #tpu.memory_space<vmem>>, vector<1x512xf32>
    %265 = vector.broadcast %264 : vector<1x512xf32> to vector<8x512xf32>
    %266 = arith.mulf %263, %265 : vector<8x512xf32>
    %c16_i32_180 = arith.constant 16 : i32
    %267 = tpu.dynamic_rotate %256 by %c16_i32_180 dim 1 : vector<8x512xf32>, i32 -> vector<8x512xf32>
    %c1_181 = arith.constant 1 : index
    %c0_182 = arith.constant 0 : index
    %268 = vector.load %arg35[%c1_181, %c0_182] : memref<8x512xf32, #tpu.memory_space<vmem>>, vector<1x512xf32>
    %269 = vector.broadcast %268 : vector<1x512xf32> to vector<8x512xf32>
    %270 = arith.mulf %267, %269 : vector<8x512xf32>
    %c15_i32_183 = arith.constant 15 : i32
    %271 = tpu.dynamic_rotate %256 by %c15_i32_183 dim 1 : vector<8x512xf32>, i32 -> vector<8x512xf32>
    %c2_184 = arith.constant 2 : index
    %c0_185 = arith.constant 0 : index
    %272 = vector.load %arg35[%c2_184, %c0_185] : memref<8x512xf32, #tpu.memory_space<vmem>>, vector<1x512xf32>
    %273 = vector.broadcast %272 : vector<1x512xf32> to vector<8x512xf32>
    %274 = arith.mulf %271, %273 : vector<8x512xf32>
    %c1_i32_186 = arith.constant 1 : i32
    %275 = tpu.dynamic_rotate %256 by %c1_i32_186 dim 1 : vector<8x512xf32>, i32 -> vector<8x512xf32>
    %c3_187 = arith.constant 3 : index
    %c0_188 = arith.constant 0 : index
    %276 = vector.load %arg35[%c3_187, %c0_188] : memref<8x512xf32, #tpu.memory_space<vmem>>, vector<1x512xf32>
    %277 = vector.broadcast %276 : vector<1x512xf32> to vector<8x512xf32>
    %278 = arith.mulf %275, %277 : vector<8x512xf32>
    %c511_i32_189 = arith.constant 511 : i32
    %279 = tpu.dynamic_rotate %256 by %c511_i32_189 dim 1 : vector<8x512xf32>, i32 -> vector<8x512xf32>
    %c4_190 = arith.constant 4 : index
    %c0_191 = arith.constant 0 : index
    %280 = vector.load %arg35[%c4_190, %c0_191] : memref<8x512xf32, #tpu.memory_space<vmem>>, vector<1x512xf32>
    %281 = vector.broadcast %280 : vector<1x512xf32> to vector<8x512xf32>
    %282 = arith.mulf %279, %281 : vector<8x512xf32>
    %c497_i32_192 = arith.constant 497 : i32
    %283 = tpu.dynamic_rotate %256 by %c497_i32_192 dim 1 : vector<8x512xf32>, i32 -> vector<8x512xf32>
    %c5_193 = arith.constant 5 : index
    %c0_194 = arith.constant 0 : index
    %284 = vector.load %arg35[%c5_193, %c0_194] : memref<8x512xf32, #tpu.memory_space<vmem>>, vector<1x512xf32>
    %285 = vector.broadcast %284 : vector<1x512xf32> to vector<8x512xf32>
    %286 = arith.mulf %283, %285 : vector<8x512xf32>
    %c496_i32_195 = arith.constant 496 : i32
    %287 = tpu.dynamic_rotate %256 by %c496_i32_195 dim 1 : vector<8x512xf32>, i32 -> vector<8x512xf32>
    %c6_196 = arith.constant 6 : index
    %c0_197 = arith.constant 0 : index
    %288 = vector.load %arg35[%c6_196, %c0_197] : memref<8x512xf32, #tpu.memory_space<vmem>>, vector<1x512xf32>
    %289 = vector.broadcast %288 : vector<1x512xf32> to vector<8x512xf32>
    %290 = arith.mulf %287, %289 : vector<8x512xf32>
    %c495_i32_198 = arith.constant 495 : i32
    %291 = tpu.dynamic_rotate %256 by %c495_i32_198 dim 1 : vector<8x512xf32>, i32 -> vector<8x512xf32>
    %c7_199 = arith.constant 7 : index
    %c0_200 = arith.constant 0 : index
    %292 = vector.load %arg35[%c7_199, %c0_200] : memref<8x512xf32, #tpu.memory_space<vmem>>, vector<1x512xf32>
    %293 = vector.broadcast %292 : vector<1x512xf32> to vector<8x512xf32>
    %294 = arith.mulf %291, %293 : vector<8x512xf32>
    %295 = tpu.concatenate %266, %270, %274, %278, %256, %282, %286, %290, %294 in 0 : vector<8x512xf32>, vector<8x512xf32>, vector<8x512xf32>, vector<8x512xf32>, vector<8x512xf32>, vector<8x512xf32>, vector<8x512xf32>, vector<8x512xf32>, vector<8x512xf32> -> vector<72x512xf32>
    %c0_201 = arith.constant 0 : index
    %c0_202 = arith.constant 0 : index
    %296 = vector.load %arg31[%c0_201, %c0_202] : memref<8x72xbf16, #tpu.memory_space<vmem>>, vector<8x72xbf16>
    %297 = arith.truncf %295 : vector<72x512xf32> to vector<72x512xbf16>
    %cst_203 = arith.constant dense<0.000000e+00> : vector<8x512xf32>
    %298 = tpu.matmul %296, %297, %cst_203 {dimension_numbers = #tpu.dot_dimension_numbers<[1], [0], [0], [1], [0, 0, 1, 1], [], []>} : vector<8x72xbf16>, vector<72x512xbf16>, vector<8x512xf32> -> vector<8x512xf32>
    %299 = arith.mulf %262, %298 : vector<8x512xf32>
    %c0_204 = arith.constant 0 : index
    %c0_205 = arith.constant 0 : index
    %300 = vector.load %arg33[%c0_204, %c0_205] : memref<8x1xf32, #tpu.memory_space<vmem>>, vector<8x1xf32>
    %301 = vector.broadcast %300 : vector<8x1xf32> to vector<8x512xf32>
    %302 = arith.addf %299, %301 : vector<8x512xf32>
    %cst_206 = arith.constant 0.000000e+00 : f32
    %303 = vector.broadcast %cst_206 : f32 to vector<8x512xf32>
    %304 = arith.cmpf oge, %302, %303 : vector<8x512xf32>
    %cst_207 = arith.constant 2.000000e-01 : f32
    %305 = vector.broadcast %cst_207 : f32 to vector<8x512xf32>
    %306 = arith.mulf %305, %302 : vector<8x512xf32>
    %307 = arith.select %304, %302, %306 : vector<8x512xi1>, vector<8x512xf32>
    %cst_208 = arith.constant 1.41421354 : f32
    %308 = vector.broadcast %cst_208 : f32 to vector<8x512xf32>
    %309 = arith.mulf %307, %308 : vector<8x512xf32>
    %310 = vector.extract_strided_slice %27 {offsets = [104, 0], sizes = [8, 16], strides = [1, 1]} : vector<112x16xf32> to vector<8x16xf32>
    %c0_209 = arith.constant 0 : index
    %c0_210 = arith.constant 0 : index
    %311 = vector.load %arg38[%c0_209, %c0_210] : memref<16x512xf32, #tpu.memory_space<vmem>>, vector<16x512xf32>
    %cst_211 = arith.constant dense<0.000000e+00> : vector<8x512xf32>
    %312 = tpu.matmul %310, %311, %cst_211 {dimension_numbers = #tpu.dot_dimension_numbers<[1], [0], [0], [1], [0, 0, 1, 1], [], []>} : vector<8x16xf32>, vector<16x512xf32>, vector<8x512xf32> -> vector<8x512xf32>
    %c0_212 = arith.constant 0 : index
    %c0_213 = arith.constant 0 : index
    %313 = vector.load %arg36[%c0_212, %c0_213] : memref<3x8xf32, #tpu.memory_space<vmem>>, vector<3x8xf32>
    %314 = arith.mulf %309, %312 : vector<8x512xf32>
    %cst_214 = arith.constant dense<0.000000e+00> : vector<3x512xf32>
    %315 = tpu.matmul %313, %314, %cst_214 {dimension_numbers = #tpu.dot_dimension_numbers<[1], [0], [0], [1], [0, 0, 1, 1], [], []>} : vector<3x8xf32>, vector<8x512xf32>, vector<3x512xf32> -> vector<3x512xf32>
    %c0_215 = arith.constant 0 : index
    %c0_216 = arith.constant 0 : index
    %316 = vector.load %arg37[%c0_215, %c0_216] : memref<3x1xf32, #tpu.memory_space<vmem>>, vector<3x1xf32>
    %317 = vector.broadcast %316 : vector<3x1xf32> to vector<3x512xf32>
    %318 = arith.addf %315, %317 : vector<3x512xf32>
    %319 = vector.extract_strided_slice %318 {offsets = [0, 0], sizes = [1, 16], strides = [1, 1]} : vector<3x512xf32> to vector<1x16xf32>
    %320 = vector.extract_strided_slice %318 {offsets = [1, 0], sizes = [1, 16], strides = [1, 1]} : vector<3x512xf32> to vector<1x16xf32>
    %321 = vector.extract_strided_slice %318 {offsets = [2, 0], sizes = [1, 16], strides = [1, 1]} : vector<3x512xf32> to vector<1x16xf32>
    %322 = vector.extract_strided_slice %318 {offsets = [0, 256], sizes = [1, 16], strides = [1, 1]} : vector<3x512xf32> to vector<1x16xf32>
    %323 = vector.extract_strided_slice %318 {offsets = [1, 256], sizes = [1, 16], strides = [1, 1]} : vector<3x512xf32> to vector<1x16xf32>
    %324 = vector.extract_strided_slice %318 {offsets = [2, 256], sizes = [1, 16], strides = [1, 1]} : vector<3x512xf32> to vector<1x16xf32>
    %325 = tpu.concatenate %319, %320, %321, %322, %323, %324 in 1 : vector<1x16xf32>, vector<1x16xf32>, vector<1x16xf32>, vector<1x16xf32>, vector<1x16xf32>, vector<1x16xf32> -> vector<1x96xf32>
    %326 = vector.extract_strided_slice %318 {offsets = [0, 16], sizes = [1, 16], strides = [1, 1]} : vector<3x512xf32> to vector<1x16xf32>
    %327 = vector.extract_strided_slice %318 {offsets = [1, 16], sizes = [1, 16], strides = [1, 1]} : vector<3x512xf32> to vector<1x16xf32>
    %328 = vector.extract_strided_slice %318 {offsets = [2, 16], sizes = [1, 16], strides = [1, 1]} : vector<3x512xf32> to vector<1x16xf32>
    %329 = vector.extract_strided_slice %318 {offsets = [0, 272], sizes = [1, 16], strides = [1, 1]} : vector<3x512xf32> to vector<1x16xf32>
    %330 = vector.extract_strided_slice %318 {offsets = [1, 272], sizes = [1, 16], strides = [1, 1]} : vector<3x512xf32> to vector<1x16xf32>
    %331 = vector.extract_strided_slice %318 {offsets = [2, 272], sizes = [1, 16], strides = [1, 1]} : vector<3x512xf32> to vector<1x16xf32>
    %332 = tpu.concatenate %326, %327, %328, %329, %330, %331 in 1 : vector<1x16xf32>, vector<1x16xf32>, vector<1x16xf32>, vector<1x16xf32>, vector<1x16xf32>, vector<1x16xf32> -> vector<1x96xf32>
    %333 = vector.extract_strided_slice %318 {offsets = [0, 32], sizes = [1, 16], strides = [1, 1]} : vector<3x512xf32> to vector<1x16xf32>
    %334 = vector.extract_strided_slice %318 {offsets = [1, 32], sizes = [1, 16], strides = [1, 1]} : vector<3x512xf32> to vector<1x16xf32>
    %335 = vector.extract_strided_slice %318 {offsets = [2, 32], sizes = [1, 16], strides = [1, 1]} : vector<3x512xf32> to vector<1x16xf32>
    %336 = vector.extract_strided_slice %318 {offsets = [0, 288], sizes = [1, 16], strides = [1, 1]} : vector<3x512xf32> to vector<1x16xf32>
    %337 = vector.extract_strided_slice %318 {offsets = [1, 288], sizes = [1, 16], strides = [1, 1]} : vector<3x512xf32> to vector<1x16xf32>
    %338 = vector.extract_strided_slice %318 {offsets = [2, 288], sizes = [1, 16], strides = [1, 1]} : vector<3x512xf32> to vector<1x16xf32>
    %339 = tpu.concatenate %333, %334, %335, %336, %337, %338 in 1 : vector<1x16xf32>, vector<1x16xf32>, vector<1x16xf32>, vector<1x16xf32>, vector<1x16xf32>, vector<1x16xf32> -> vector<1x96xf32>
    %340 = vector.extract_strided_slice %318 {offsets = [0, 48], sizes = [1, 16], strides = [1, 1]} : vector<3x512xf32> to vector<1x16xf32>
    %341 = vector.extract_strided_slice %318 {offsets = [1, 48], sizes = [1, 16], strides = [1, 1]} : vector<3x512xf32> to vector<1x16xf32>
    %342 = vector.extract_strided_slice %318 {offsets = [2, 48], sizes = [1, 16], strides = [1, 1]} : vector<3x512xf32> to vector<1x16xf32>
    %343 = vector.extract_strided_slice %318 {offsets = [0, 304], sizes = [1, 16], strides = [1, 1]} : vector<3x512xf32> to vector<1x16xf32>
    %344 = vector.extract_strided_slice %318 {offsets = [1, 304], sizes = [1, 16], strides = [1, 1]} : vector<3x512xf32> to vector<1x16xf32>
    %345 = vector.extract_strided_slice %318 {offsets = [2, 304], sizes = [1, 16], strides = [1, 1]} : vector<3x512xf32> to vector<1x16xf32>
    %346 = tpu.concatenate %340, %341, %342, %343, %344, %345 in 1 : vector<1x16xf32>, vector<1x16xf32>, vector<1x16xf32>, vector<1x16xf32>, vector<1x16xf32>, vector<1x16xf32> -> vector<1x96xf32>
    %347 = vector.extract_strided_slice %318 {offsets = [0, 64], sizes = [1, 16], strides = [1, 1]} : vector<3x512xf32> to vector<1x16xf32>
    %348 = vector.extract_strided_slice %318 {offsets = [1, 64], sizes = [1, 16], strides = [1, 1]} : vector<3x512xf32> to vector<1x16xf32>
    %349 = vector.extract_strided_slice %318 {offsets = [2, 64], sizes = [1, 16], strides = [1, 1]} : vector<3x512xf32> to vector<1x16xf32>
    %350 = vector.extract_strided_slice %318 {offsets = [0, 320], sizes = [1, 16], strides = [1, 1]} : vector<3x512xf32> to vector<1x16xf32>
    %351 = vector.extract_strided_slice %318 {offsets = [1, 320], sizes = [1, 16], strides = [1, 1]} : vector<3x512xf32> to vector<1x16xf32>
    %352 = vector.extract_strided_slice %318 {offsets = [2, 320], sizes = [1, 16], strides = [1, 1]} : vector<3x512xf32> to vector<1x16xf32>
    %353 = tpu.concatenate %347, %348, %349, %350, %351, %352 in 1 : vector<1x16xf32>, vector<1x16xf32>, vector<1x16xf32>, vector<1x16xf32>, vector<1x16xf32>, vector<1x16xf32> -> vector<1x96xf32>
    %354 = vector.extract_strided_slice %318 {offsets = [0, 80], sizes = [1, 16], strides = [1, 1]} : vector<3x512xf32> to vector<1x16xf32>
    %355 = vector.extract_strided_slice %318 {offsets = [1, 80], sizes = [1, 16], strides = [1, 1]} : vector<3x512xf32> to vector<1x16xf32>
    %356 = vector.extract_strided_slice %318 {offsets = [2, 80], sizes = [1, 16], strides = [1, 1]} : vector<3x512xf32> to vector<1x16xf32>
    %357 = vector.extract_strided_slice %318 {offsets = [0, 336], sizes = [1, 16], strides = [1, 1]} : vector<3x512xf32> to vector<1x16xf32>
    %358 = vector.extract_strided_slice %318 {offsets = [1, 336], sizes = [1, 16], strides = [1, 1]} : vector<3x512xf32> to vector<1x16xf32>
    %359 = vector.extract_strided_slice %318 {offsets = [2, 336], sizes = [1, 16], strides = [1, 1]} : vector<3x512xf32> to vector<1x16xf32>
    %360 = tpu.concatenate %354, %355, %356, %357, %358, %359 in 1 : vector<1x16xf32>, vector<1x16xf32>, vector<1x16xf32>, vector<1x16xf32>, vector<1x16xf32>, vector<1x16xf32> -> vector<1x96xf32>
    %361 = vector.extract_strided_slice %318 {offsets = [0, 96], sizes = [1, 16], strides = [1, 1]} : vector<3x512xf32> to vector<1x16xf32>
    %362 = vector.extract_strided_slice %318 {offsets = [1, 96], sizes = [1, 16], strides = [1, 1]} : vector<3x512xf32> to vector<1x16xf32>
    %363 = vector.extract_strided_slice %318 {offsets = [2, 96], sizes = [1, 16], strides = [1, 1]} : vector<3x512xf32> to vector<1x16xf32>
    %364 = vector.extract_strided_slice %318 {offsets = [0, 352], sizes = [1, 16], strides = [1, 1]} : vector<3x512xf32> to vector<1x16xf32>
    %365 = vector.extract_strided_slice %318 {offsets = [1, 352], sizes = [1, 16], strides = [1, 1]} : vector<3x512xf32> to vector<1x16xf32>
    %366 = vector.extract_strided_slice %318 {offsets = [2, 352], sizes = [1, 16], strides = [1, 1]} : vector<3x512xf32> to vector<1x16xf32>
    %367 = tpu.concatenate %361, %362, %363, %364, %365, %366 in 1 : vector<1x16xf32>, vector<1x16xf32>, vector<1x16xf32>, vector<1x16xf32>, vector<1x16xf32>, vector<1x16xf32> -> vector<1x96xf32>
    %368 = vector.extract_strided_slice %318 {offsets = [0, 112], sizes = [1, 16], strides = [1, 1]} : vector<3x512xf32> to vector<1x16xf32>
    %369 = vector.extract_strided_slice %318 {offsets = [1, 112], sizes = [1, 16], strides = [1, 1]} : vector<3x512xf32> to vector<1x16xf32>
    %370 = vector.extract_strided_slice %318 {offsets = [2, 112], sizes = [1, 16], strides = [1, 1]} : vector<3x512xf32> to vector<1x16xf32>
    %371 = vector.extract_strided_slice %318 {offsets = [0, 368], sizes = [1, 16], strides = [1, 1]} : vector<3x512xf32> to vector<1x16xf32>
    %372 = vector.extract_strided_slice %318 {offsets = [1, 368], sizes = [1, 16], strides = [1, 1]} : vector<3x512xf32> to vector<1x16xf32>
    %373 = vector.extract_strided_slice %318 {offsets = [2, 368], sizes = [1, 16], strides = [1, 1]} : vector<3x512xf32> to vector<1x16xf32>
    %374 = tpu.concatenate %368, %369, %370, %371, %372, %373 in 1 : vector<1x16xf32>, vector<1x16xf32>, vector<1x16xf32>, vector<1x16xf32>, vector<1x16xf32>, vector<1x16xf32> -> vector<1x96xf32>
    %375 = vector.extract_strided_slice %318 {offsets = [0, 128], sizes = [1, 16], strides = [1, 1]} : vector<3x512xf32> to vector<1x16xf32>
    %376 = vector.extract_strided_slice %318 {offsets = [1, 128], sizes = [1, 16], strides = [1, 1]} : vector<3x512xf32> to vector<1x16xf32>
    %377 = vector.extract_strided_slice %318 {offsets = [2, 128], sizes = [1, 16], strides = [1, 1]} : vector<3x512xf32> to vector<1x16xf32>
    %378 = vector.extract_strided_slice %318 {offsets = [0, 384], sizes = [1, 16], strides = [1, 1]} : vector<3x512xf32> to vector<1x16xf32>
    %379 = vector.extract_strided_slice %318 {offsets = [1, 384], sizes = [1, 16], strides = [1, 1]} : vector<3x512xf32> to vector<1x16xf32>
    %380 = vector.extract_strided_slice %318 {offsets = [2, 384], sizes = [1, 16], strides = [1, 1]} : vector<3x512xf32> to vector<1x16xf32>
    %381 = tpu.concatenate %375, %376, %377, %378, %379, %380 in 1 : vector<1x16xf32>, vector<1x16xf32>, vector<1x16xf32>, vector<1x16xf32>, vector<1x16xf32>, vector<1x16xf32> -> vector<1x96xf32>
    %382 = vector.extract_strided_slice %318 {offsets = [0, 144], sizes = [1, 16], strides = [1, 1]} : vector<3x512xf32> to vector<1x16xf32>
    %383 = vector.extract_strided_slice %318 {offsets = [1, 144], sizes = [1, 16], strides = [1, 1]} : vector<3x512xf32> to vector<1x16xf32>
    %384 = vector.extract_strided_slice %318 {offsets = [2, 144], sizes = [1, 16], strides = [1, 1]} : vector<3x512xf32> to vector<1x16xf32>
    %385 = vector.extract_strided_slice %318 {offsets = [0, 400], sizes = [1, 16], strides = [1, 1]} : vector<3x512xf32> to vector<1x16xf32>
    %386 = vector.extract_strided_slice %318 {offsets = [1, 400], sizes = [1, 16], strides = [1, 1]} : vector<3x512xf32> to vector<1x16xf32>
    %387 = vector.extract_strided_slice %318 {offsets = [2, 400], sizes = [1, 16], strides = [1, 1]} : vector<3x512xf32> to vector<1x16xf32>
    %388 = tpu.concatenate %382, %383, %384, %385, %386, %387 in 1 : vector<1x16xf32>, vector<1x16xf32>, vector<1x16xf32>, vector<1x16xf32>, vector<1x16xf32>, vector<1x16xf32> -> vector<1x96xf32>
    %389 = vector.extract_strided_slice %318 {offsets = [0, 160], sizes = [1, 16], strides = [1, 1]} : vector<3x512xf32> to vector<1x16xf32>
    %390 = vector.extract_strided_slice %318 {offsets = [1, 160], sizes = [1, 16], strides = [1, 1]} : vector<3x512xf32> to vector<1x16xf32>
    %391 = vector.extract_strided_slice %318 {offsets = [2, 160], sizes = [1, 16], strides = [1, 1]} : vector<3x512xf32> to vector<1x16xf32>
    %392 = vector.extract_strided_slice %318 {offsets = [0, 416], sizes = [1, 16], strides = [1, 1]} : vector<3x512xf32> to vector<1x16xf32>
    %393 = vector.extract_strided_slice %318 {offsets = [1, 416], sizes = [1, 16], strides = [1, 1]} : vector<3x512xf32> to vector<1x16xf32>
    %394 = vector.extract_strided_slice %318 {offsets = [2, 416], sizes = [1, 16], strides = [1, 1]} : vector<3x512xf32> to vector<1x16xf32>
    %395 = tpu.concatenate %389, %390, %391, %392, %393, %394 in 1 : vector<1x16xf32>, vector<1x16xf32>, vector<1x16xf32>, vector<1x16xf32>, vector<1x16xf32>, vector<1x16xf32> -> vector<1x96xf32>
    %396 = vector.extract_strided_slice %318 {offsets = [0, 176], sizes = [1, 16], strides = [1, 1]} : vector<3x512xf32> to vector<1x16xf32>
    %397 = vector.extract_strided_slice %318 {offsets = [1, 176], sizes = [1, 16], strides = [1, 1]} : vector<3x512xf32> to vector<1x16xf32>
    %398 = vector.extract_strided_slice %318 {offsets = [2, 176], sizes = [1, 16], strides = [1, 1]} : vector<3x512xf32> to vector<1x16xf32>
    %399 = vector.extract_strided_slice %318 {offsets = [0, 432], sizes = [1, 16], strides = [1, 1]} : vector<3x512xf32> to vector<1x16xf32>
    %400 = vector.extract_strided_slice %318 {offsets = [1, 432], sizes = [1, 16], strides = [1, 1]} : vector<3x512xf32> to vector<1x16xf32>
    %401 = vector.extract_strided_slice %318 {offsets = [2, 432], sizes = [1, 16], strides = [1, 1]} : vector<3x512xf32> to vector<1x16xf32>
    %402 = tpu.concatenate %396, %397, %398, %399, %400, %401 in 1 : vector<1x16xf32>, vector<1x16xf32>, vector<1x16xf32>, vector<1x16xf32>, vector<1x16xf32>, vector<1x16xf32> -> vector<1x96xf32>
    %403 = vector.extract_strided_slice %318 {offsets = [0, 192], sizes = [1, 16], strides = [1, 1]} : vector<3x512xf32> to vector<1x16xf32>
    %404 = vector.extract_strided_slice %318 {offsets = [1, 192], sizes = [1, 16], strides = [1, 1]} : vector<3x512xf32> to vector<1x16xf32>
    %405 = vector.extract_strided_slice %318 {offsets = [2, 192], sizes = [1, 16], strides = [1, 1]} : vector<3x512xf32> to vector<1x16xf32>
    %406 = vector.extract_strided_slice %318 {offsets = [0, 448], sizes = [1, 16], strides = [1, 1]} : vector<3x512xf32> to vector<1x16xf32>
    %407 = vector.extract_strided_slice %318 {offsets = [1, 448], sizes = [1, 16], strides = [1, 1]} : vector<3x512xf32> to vector<1x16xf32>
    %408 = vector.extract_strided_slice %318 {offsets = [2, 448], sizes = [1, 16], strides = [1, 1]} : vector<3x512xf32> to vector<1x16xf32>
    %409 = tpu.concatenate %403, %404, %405, %406, %407, %408 in 1 : vector<1x16xf32>, vector<1x16xf32>, vector<1x16xf32>, vector<1x16xf32>, vector<1x16xf32>, vector<1x16xf32> -> vector<1x96xf32>
    %410 = vector.extract_strided_slice %318 {offsets = [0, 208], sizes = [1, 16], strides = [1, 1]} : vector<3x512xf32> to vector<1x16xf32>
    %411 = vector.extract_strided_slice %318 {offsets = [1, 208], sizes = [1, 16], strides = [1, 1]} : vector<3x512xf32> to vector<1x16xf32>
    %412 = vector.extract_strided_slice %318 {offsets = [2, 208], sizes = [1, 16], strides = [1, 1]} : vector<3x512xf32> to vector<1x16xf32>
    %413 = vector.extract_strided_slice %318 {offsets = [0, 464], sizes = [1, 16], strides = [1, 1]} : vector<3x512xf32> to vector<1x16xf32>
    %414 = vector.extract_strided_slice %318 {offsets = [1, 464], sizes = [1, 16], strides = [1, 1]} : vector<3x512xf32> to vector<1x16xf32>
    %415 = vector.extract_strided_slice %318 {offsets = [2, 464], sizes = [1, 16], strides = [1, 1]} : vector<3x512xf32> to vector<1x16xf32>
    %416 = tpu.concatenate %410, %411, %412, %413, %414, %415 in 1 : vector<1x16xf32>, vector<1x16xf32>, vector<1x16xf32>, vector<1x16xf32>, vector<1x16xf32>, vector<1x16xf32> -> vector<1x96xf32>
    %417 = vector.extract_strided_slice %318 {offsets = [0, 224], sizes = [1, 16], strides = [1, 1]} : vector<3x512xf32> to vector<1x16xf32>
    %418 = vector.extract_strided_slice %318 {offsets = [1, 224], sizes = [1, 16], strides = [1, 1]} : vector<3x512xf32> to vector<1x16xf32>
    %419 = vector.extract_strided_slice %318 {offsets = [2, 224], sizes = [1, 16], strides = [1, 1]} : vector<3x512xf32> to vector<1x16xf32>
    %420 = vector.extract_strided_slice %318 {offsets = [0, 480], sizes = [1, 16], strides = [1, 1]} : vector<3x512xf32> to vector<1x16xf32>
    %421 = vector.extract_strided_slice %318 {offsets = [1, 480], sizes = [1, 16], strides = [1, 1]} : vector<3x512xf32> to vector<1x16xf32>
    %422 = vector.extract_strided_slice %318 {offsets = [2, 480], sizes = [1, 16], strides = [1, 1]} : vector<3x512xf32> to vector<1x16xf32>
    %423 = tpu.concatenate %417, %418, %419, %420, %421, %422 in 1 : vector<1x16xf32>, vector<1x16xf32>, vector<1x16xf32>, vector<1x16xf32>, vector<1x16xf32>, vector<1x16xf32> -> vector<1x96xf32>
    %424 = vector.extract_strided_slice %318 {offsets = [0, 240], sizes = [1, 16], strides = [1, 1]} : vector<3x512xf32> to vector<1x16xf32>
    %425 = vector.extract_strided_slice %318 {offsets = [1, 240], sizes = [1, 16], strides = [1, 1]} : vector<3x512xf32> to vector<1x16xf32>
    %426 = vector.extract_strided_slice %318 {offsets = [2, 240], sizes = [1, 16], strides = [1, 1]} : vector<3x512xf32> to vector<1x16xf32>
    %427 = vector.extract_strided_slice %318 {offsets = [0, 496], sizes = [1, 16], strides = [1, 1]} : vector<3x512xf32> to vector<1x16xf32>
    %428 = vector.extract_strided_slice %318 {offsets = [1, 496], sizes = [1, 16], strides = [1, 1]} : vector<3x512xf32> to vector<1x16xf32>
    %429 = vector.extract_strided_slice %318 {offsets = [2, 496], sizes = [1, 16], strides = [1, 1]} : vector<3x512xf32> to vector<1x16xf32>
    %430 = tpu.concatenate %424, %425, %426, %427, %428, %429 in 1 : vector<1x16xf32>, vector<1x16xf32>, vector<1x16xf32>, vector<1x16xf32>, vector<1x16xf32>, vector<1x16xf32> -> vector<1x96xf32>
    %431 = tpu.concatenate %325, %332, %339, %346, %353, %360, %367, %374, %381, %388, %395, %402, %409, %416, %423, %430 in 0 : vector<1x96xf32>, vector<1x96xf32>, vector<1x96xf32>, vector<1x96xf32>, vector<1x96xf32>, vector<1x96xf32>, vector<1x96xf32>, vector<1x96xf32>, vector<1x96xf32>, vector<1x96xf32>, vector<1x96xf32>, vector<1x96xf32>, vector<1x96xf32>, vector<1x96xf32>, vector<1x96xf32>, vector<1x96xf32> -> vector<16x96xf32>
    %c0_217 = arith.constant 0 : index
    %c0_218 = arith.constant 0 : index
    %432 = vector.load %arg39[%c0_217, %c0_218] : memref<256x16xf32, #tpu.memory_space<vmem>>, vector<256x16xf32>
    %cst_219 = arith.constant dense<0.000000e+00> : vector<256x96xf32>
    %433 = tpu.matmul %432, %431, %cst_219 {dimension_numbers = #tpu.dot_dimension_numbers<[1], [0], [0], [1], [0, 0, 1, 1], [], []>} : vector<256x16xf32>, vector<16x96xf32>, vector<256x96xf32> -> vector<256x96xf32>
    %434 = arith.truncf %433 : vector<256x96xf32> to vector<256x96xbf16>
    %c0_220 = arith.constant 0 : index
    %c0_221 = arith.constant 0 : index
    %435 = vector.load %arg40[%c0_220, %c0_221] : memref<96x1536xbf16, #tpu.memory_space<vmem>>, vector<96x1536xbf16>
    %cst_222 = arith.constant dense<0.000000e+00> : vector<256x1536xf32>
    %436 = tpu.matmul %434, %435, %cst_222 {dimension_numbers = #tpu.dot_dimension_numbers<[1], [0], [0], [1], [0, 0, 1, 1], [], []>} : vector<256x96xbf16>, vector<96x1536xbf16>, vector<256x1536xf32> -> vector<256x1536xf32>
    %437 = vector.extract_strided_slice %436 {offsets = [0, 0], sizes = [256, 256], strides = [1, 1]} : vector<256x1536xf32> to vector<256x256xf32>
    %c0_223 = arith.constant 0 : index
    %c0_224 = arith.constant 0 : index
    %c0_225 = arith.constant 0 : index
    %c0_226 = arith.constant 0 : index
    %438 = vector.load %arg41[%c0_223, %c0_224, %c0_225, %c0_226] : memref<2x3x256x256xf32, #tpu.memory_space<vmem>>, vector<1x1x256x256xf32>
    %439 = vector.shape_cast %438 : vector<1x1x256x256xf32> to vector<256x256xf32>
    %440 = vector.shape_cast %437 : vector<256x256xf32> to vector<1x1x256x256xf32>
    tpu.vector_store %arg41[%c0_223, %c0_224, %c0_225, %c0_226], %440 {strides = array<i32>} : memref<2x3x256x256xf32, #tpu.memory_space<vmem>>, vector<1x1x256x256xf32>,
    %441 = vector.extract_strided_slice %436 {offsets = [0, 256], sizes = [256, 256], strides = [1, 1]} : vector<256x1536xf32> to vector<256x256xf32>
    %c0_227 = arith.constant 0 : index
    %c1_228 = arith.constant 1 : index
    %c0_229 = arith.constant 0 : index
    %c0_230 = arith.constant 0 : index
    %442 = vector.load %arg41[%c0_227, %c1_228, %c0_229, %c0_230] : memref<2x3x256x256xf32, #tpu.memory_space<vmem>>, vector<1x1x256x256xf32>
    %443 = vector.shape_cast %442 : vector<1x1x256x256xf32> to vector<256x256xf32>
    %444 = vector.shape_cast %441 : vector<256x256xf32> to vector<1x1x256x256xf32>
    tpu.vector_store %arg41[%c0_227, %c1_228, %c0_229, %c0_230], %444 {strides = array<i32>} : memref<2x3x256x256xf32, #tpu.memory_space<vmem>>, vector<1x1x256x256xf32>,
    %445 = vector.extract_strided_slice %436 {offsets = [0, 512], sizes = [256, 256], strides = [1, 1]} : vector<256x1536xf32> to vector<256x256xf32>
    %c0_231 = arith.constant 0 : index
    %c2_232 = arith.constant 2 : index
    %c0_233 = arith.constant 0 : index
    %c0_234 = arith.constant 0 : index
    %446 = vector.load %arg41[%c0_231, %c2_232, %c0_233, %c0_234] : memref<2x3x256x256xf32, #tpu.memory_space<vmem>>, vector<1x1x256x256xf32>
    %447 = vector.shape_cast %446 : vector<1x1x256x256xf32> to vector<256x256xf32>
    %448 = vector.shape_cast %445 : vector<256x256xf32> to vector<1x1x256x256xf32>
    tpu.vector_store %arg41[%c0_231, %c2_232, %c0_233, %c0_234], %448 {strides = array<i32>} : memref<2x3x256x256xf32, #tpu.memory_space<vmem>>, vector<1x1x256x256xf32>,
    %449 = vector.extract_strided_slice %436 {offsets = [0, 768], sizes = [256, 256], strides = [1, 1]} : vector<256x1536xf32> to vector<256x256xf32>
    %c1_235 = arith.constant 1 : index
    %c0_236 = arith.constant 0 : index
    %c0_237 = arith.constant 0 : index
    %c0_238 = arith.constant 0 : index
    %450 = vector.load %arg41[%c1_235, %c0_236, %c0_237, %c0_238] : memref<2x3x256x256xf32, #tpu.memory_space<vmem>>, vector<1x1x256x256xf32>
    %451 = vector.shape_cast %450 : vector<1x1x256x256xf32> to vector<256x256xf32>
    %452 = vector.shape_cast %449 : vector<256x256xf32> to vector<1x1x256x256xf32>
    tpu.vector_store %arg41[%c1_235, %c0_236, %c0_237, %c0_238], %452 {strides = array<i32>} : memref<2x3x256x256xf32, #tpu.memory_space<vmem>>, vector<1x1x256x256xf32>,
    %453 = vector.extract_strided_slice %436 {offsets = [0, 1024], sizes = [256, 256], strides = [1, 1]} : vector<256x1536xf32> to vector<256x256xf32>
    %c1_239 = arith.constant 1 : index
    %c1_240 = arith.constant 1 : index
    %c0_241 = arith.constant 0 : index
    %c0_242 = arith.constant 0 : index
    %454 = vector.load %arg41[%c1_239, %c1_240, %c0_241, %c0_242] : memref<2x3x256x256xf32, #tpu.memory_space<vmem>>, vector<1x1x256x256xf32>
    %455 = vector.shape_cast %454 : vector<1x1x256x256xf32> to vector<256x256xf32>
    %456 = vector.shape_cast %453 : vector<256x256xf32> to vector<1x1x256x256xf32>
    tpu.vector_store %arg41[%c1_239, %c1_240, %c0_241, %c0_242], %456 {strides = array<i32>} : memref<2x3x256x256xf32, #tpu.memory_space<vmem>>, vector<1x1x256x256xf32>,
    %457 = vector.extract_strided_slice %436 {offsets = [0, 1280], sizes = [256, 256], strides = [1, 1]} : vector<256x1536xf32> to vector<256x256xf32>
    %c1_243 = arith.constant 1 : index
    %c2_244 = arith.constant 2 : index
    %c0_245 = arith.constant 0 : index
    %c0_246 = arith.constant 0 : index
    %458 = vector.load %arg41[%c1_243, %c2_244, %c0_245, %c0_246] : memref<2x3x256x256xf32, #tpu.memory_space<vmem>>, vector<1x1x256x256xf32>
    %459 = vector.shape_cast %458 : vector<1x1x256x256xf32> to vector<256x256xf32>
    %460 = vector.shape_cast %457 : vector<256x256xf32> to vector<1x1x256x256xf32>
    tpu.vector_store %arg41[%c1_243, %c2_244, %c0_245, %c0_246], %460 {strides = array<i32>} : memref<2x3x256x256xf32, #tpu.memory_space<vmem>>, vector<1x1x256x256xf32>,
    return
  }
}

</mosaic_0001>

<llo_original>
// kernel: test_prod_server_model.1
$region0: #{test_prod_server_model.1}
  #allocation0 [shape = 'u32[]', space=smem, size = 0x4, offset = 0x4, fixed_abs, tag = 'smem constant byte address 0x4 - core index']
  #allocation1 [shape = 'u32[144,128]{1,0:T(1,128)}', space=vmem, size = 0x12000, scoped, tag = 'internal scratch']
  %s0 = inlined_call_operand.smem [shape: u32[42], index: -1, kind: input, shape index: {}]
  %s1 = sld [smem:[%s0]]
  %s2 = scalar_lea.smem %s0, 1
  %s3 = sld [smem:[%s2]]
  %s4 = scalar_lea.smem %s0, 2
  %s5 = sld [smem:[%s4]]
  %s6 = scalar_lea.smem %s0, 3
  %s7 = sld [smem:[%s6]]
  %s8 = scalar_lea.smem %s0, 4
  %s9 = sld [smem:[%s8]]
  %s10 = scalar_lea.smem %s0, 5
  %s11 = sld [smem:[%s10]]
  %s12 = scalar_lea.smem %s0, 6
  %s13 = sld [smem:[%s12]]
  %s14 = scalar_lea.smem %s0, 7
  %s15 = sld [smem:[%s14]]
  %s16 = scalar_lea.smem %s0, 8
  %s17 = sld [smem:[%s16]]
  %s18 = scalar_lea.smem %s0, 9
  %s19 = sld [smem:[%s18]]
  %s20 = scalar_lea.smem %s0, 10
  %s21 = sld [smem:[%s20]]
  %s22 = scalar_lea.smem %s0, 11
  %s23 = sld [smem:[%s22]]
  %s24 = scalar_lea.smem %s0, 12
  %s25 = sld [smem:[%s24]]
  %s26 = scalar_lea.smem %s0, 13
  %s27 = sld [smem:[%s26]]
  %s28 = scalar_lea.smem %s0, 14
  %s29 = sld [smem:[%s28]]
  %s30 = scalar_lea.smem %s0, 15
  %s31 = sld [smem:[%s30]]
  %s32 = scalar_lea.smem %s0, 16
  %s33 = sld [smem:[%s32]]
  %s34 = scalar_lea.smem %s0, 17
  %s35 = sld [smem:[%s34]]
  %s36 = scalar_lea.smem %s0, 18
  %s37 = sld [smem:[%s36]]
  %s38 = scalar_lea.smem %s0, 19
  %s39 = sld [smem:[%s38]]
  %s40 = scalar_lea.smem %s0, 20
  %s41 = sld [smem:[%s40]]
  %s42 = scalar_lea.smem %s0, 21
  %s43 = sld [smem:[%s42]]
  %s44 = scalar_lea.smem %s0, 22
  %s45 = sld [smem:[%s44]]
  %s46 = scalar_lea.smem %s0, 23
  %s47 = sld [smem:[%s46]]
  %s48 = scalar_lea.smem %s0, 24
  %s49 = sld [smem:[%s48]]
  %s50 = scalar_lea.smem %s0, 25
  %s51 = sld [smem:[%s50]]
  %s52 = scalar_lea.smem %s0, 26
  %s53 = sld [smem:[%s52]]
  %s54 = scalar_lea.smem %s0, 27
  %s55 = sld [smem:[%s54]]
  %s56 = scalar_lea.smem %s0, 28
  %s57 = sld [smem:[%s56]]
  %s58 = scalar_lea.smem %s0, 29
  %s59 = sld [smem:[%s58]]
  %s60 = scalar_lea.smem %s0, 30
  %s61 = sld [smem:[%s60]]
  %s62 = scalar_lea.smem %s0, 31
  %s63 = sld [smem:[%s62]]
  %s64 = scalar_lea.smem %s0, 32
  %s65 = sld [smem:[%s64]]
  %s66 = scalar_lea.smem %s0, 33
  %s67 = sld [smem:[%s66]]
  %s68 = scalar_lea.smem %s0, 34
  %s69 = sld [smem:[%s68]]
  %s70 = scalar_lea.smem %s0, 35
  %s71 = sld [smem:[%s70]]
  %s72 = scalar_lea.smem %s0, 36
  %s73 = sld [smem:[%s72]]
  %s74 = scalar_lea.smem %s0, 37
  %s75 = sld [smem:[%s74]]
  %s76 = scalar_lea.smem %s0, 38
  %s77 = sld [smem:[%s76]]
  %s78 = scalar_lea.smem %s0, 39
  %s79 = sld [smem:[%s78]]
  %s80 = scalar_lea.smem %s0, 40
  %s81 = sld [smem:[%s80]]
  %s82 = scalar_lea.smem %s0, 41
  %s83 = sld [smem:[%s82]]
  %s84 = sld [smem:[#allocation0]]
  $region274: #{test_prod_server_model.1} parent=0
    _
  %s86 = ssub.s32 1, %s84
  %s87 = scalar_select 0, %s86, %s84
  $region1: #{test_prod_server_model.1} parent=0
    #allocation2 [shape = 'u8[32768]{0}', space=vmem, size = 0x8000, scoped, tag = 'input window, operand 2, single buffered']
    #allocation3 [shape = 's32[1]{0}', space=sflag, size = 0x4, scoped, tag = 'scoped memory for test_prod_server_model.1']
    #allocation4 [shape = 's32[1]{0}', space=sflag, size = 0x4, scoped, tag = 'scoped memory for test_prod_server_model.1']
    #allocation5 [shape = 'u8[16384]{0}', space=vmem, size = 0x4000, scoped, tag = 'input window, operand 4, single buffered']
    #allocation6 [shape = 's32[1]{0}', space=sflag, size = 0x4, scoped, tag = 'scoped memory for test_prod_server_model.1']
    #allocation7 [shape = 'u8[57344]{0}', space=vmem, size = 0xe000, scoped, tag = 'input window, operand 6, single buffered']
    #allocation8 [shape = 'u8[16384]{0}', space=vmem, size = 0x4000, scoped, tag = 'input window, operand 9, single buffered']
    #allocation9 [shape = 's32[1]{0}', space=sflag, size = 0x4, scoped, tag = 'scoped memory for test_prod_server_model.1']
    #allocation10 [shape = 'u8[262144]{0}', space=vmem, size = 0x40000, scoped, tag = 'input window, operand 10, single buffered']
    #allocation11 [shape = 'u8[16384]{0}', space=vmem, size = 0x4000, scoped, tag = 'input window, operand 12, single buffered']
    #allocation12 [shape = 's32[1]{0}', space=sflag, size = 0x4, scoped, tag = 'scoped memory for test_prod_server_model.1']
    #allocation13 [shape = 'u8[8192]{0}', space=vmem, size = 0x2000, scoped, tag = 'input window, operand 14, single buffered']
    #allocation14 [shape = 'u8[131072]{0}', space=vmem, size = 0x20000, scoped, tag = 'input window, operand 15, single buffered']
    #allocation15 [shape = 's32[1]{0}', space=sflag, size = 0x4, scoped, tag = 'scoped memory for test_prod_server_model.1']
    #allocation16 [shape = 'u8[8192]{0}', space=vmem, size = 0x2000, scoped, tag = 'input window, operand 17, single buffered']
    #allocation17 [shape = 'u8[8192]{0}', space=vmem, size = 0x2000, scoped, tag = 'input window, operand 19, single buffered']
    #allocation18 [shape = 's32[1]{0}', space=sflag, size = 0x4, scoped, tag = 'scoped memory for test_prod_server_model.1']
    #allocation19 [shape = 'u8[4096]{0}', space=vmem, size = 0x1000, scoped, tag = 'input window, operand 20, single buffered']
    #allocation20 [shape = 'u8[8192]{0}', space=vmem, size = 0x2000, scoped, tag = 'input window, operand 22, single buffered']
    #allocation21 [shape = 's32[1]{0}', space=sflag, size = 0x4, scoped, tag = 'scoped memory for test_prod_server_model.1']
    #allocation22 [shape = 'u8[8192]{0}', space=vmem, size = 0x2000, scoped, tag = 'input window, operand 24, single buffered']
    #allocation23 [shape = 'u8[4096]{0}', space=vmem, size = 0x1000, scoped, tag = 'input window, operand 25, single buffered']
    #allocation24 [shape = 's32[1]{0}', space=sflag, size = 0x4, scoped, tag = 'scoped memory for test_prod_server_model.1']
    #allocation25 [shape = 'u8[4096]{0}', space=vmem, size = 0x1000, scoped, tag = 'input window, operand 26, single buffered']
    #allocation26 [shape = 'u8[4096]{0}', space=vmem, size = 0x1000, scoped, tag = 'input window, operand 27, single buffered']
    #allocation27 [shape = 's32[1]{0}', space=sflag, size = 0x4, scoped, tag = 'scoped memory for test_prod_server_model.1']
    #allocation28 [shape = 'u8[32768]{0}', space=vmem, size = 0x8000, scoped, tag = 'input window, operand 29, single buffered']
    #allocation29 [shape = 'u8[16384]{0}', space=vmem, size = 0x4000, scoped, tag = 'input window, operand 30, single buffered']
    #allocation30 [shape = 's32[1]{0}', space=sflag, size = 0x4, scoped, tag = 'scoped memory for test_prod_server_model.1']
    #allocation31 [shape = 'u8[2048]{0}', space=vmem, size = 0x800, scoped, tag = 'input window, operand 31, single buffered']
    #allocation32 [shape = 'u8[4096]{0}', space=vmem, size = 0x1000, scoped, tag = 'input window, operand 32, single buffered']
    #allocation33 [shape = 's32[1]{0}', space=sflag, size = 0x4, scoped, tag = 'scoped memory for test_prod_server_model.1']
    #allocation34 [shape = 'u8[32768]{0}', space=vmem, size = 0x8000, scoped, tag = 'input window, operand 34, single buffered']
    #allocation35 [shape = 'u8[16384]{0}', space=vmem, size = 0x4000, scoped, tag = 'input window, operand 35, single buffered']
    #allocation36 [shape = 's32[1]{0}', space=sflag, size = 0x4, scoped, tag = 'scoped memory for test_prod_server_model.1']
    #allocation37 [shape = 'u8[2048]{0}', space=vmem, size = 0x800, scoped, tag = 'input window, operand 36, single buffered']
    #allocation38 [shape = 'u8[32768]{0}', space=vmem, size = 0x8000, scoped, tag = 'input window, operand 38, single buffered']
    #allocation39 [shape = 's32[1]{0}', space=sflag, size = 0x4, scoped, tag = 'scoped memory for test_prod_server_model.1']
    #allocation40 [shape = 'u8[131072]{0}', space=vmem, size = 0x20000, scoped, tag = 'input window, operand 39, single buffered']
    #allocation41 [shape = 'u8[1572864]{0}', space=vmem, size = 0x180000, scoped, tag = 'output window, operand 0, single buffered']
    %88 = vsyncpa [#allocation3], 0
    %89 = vsyncpa [#allocation6], 0
    %90 = vsyncpa [#allocation9], 0
    %91 = vsyncpa [#allocation12], 0
    %92 = vsyncpa [#allocation15], 0
    %93 = vsyncpa [#allocation18], 0
    %94 = vsyncpa [#allocation21], 0
    %95 = vsyncpa [#allocation24], 0
    %96 = vsyncpa [#allocation27], 0
    %97 = vsyncpa [#allocation30], 0
    %98 = vsyncpa [#allocation33], 0
    %99 = vsyncpa [#allocation36], 0
    %100 = vsyncpa [#allocation39], 0
    %101 = vsyncpa [#allocation4], 0
    // Predicated region
    $region2: #{test_prod_server_model.1} parent=1 // pred_check
      _
    $region3: #{test_prod_server_model.1} parent=1 // pred_check_branch
      %103 = sbr.rel (0) target = $region5
    $region4: #{test_prod_server_model.1} parent=1 // pred_region
      _
    $region5: #{test_prod_server_model.1} parent=1 // pred_fallthru
      _
    // Predicated region
    $region6: #{test_prod_server_model.1} parent=1 // pred_check
      _
    $region7: #{test_prod_server_model.1} parent=1 // pred_check_branch
      %105 = sbr.rel (0) target = $region9
    $region8: #{test_prod_server_model.1} parent=1 // pred_region
      _
    $region9: #{test_prod_server_model.1} parent=1 // pred_fallthru
      _
    // Predicated region
    $region10: #{test_prod_server_model.1} parent=1 // pred_check
      _
    $region11: #{test_prod_server_model.1} parent=1 // pred_check_branch
      %107 = sbr.rel (0) target = $region13
    $region12: #{test_prod_server_model.1} parent=1 // pred_region
      %s109 = ssub.s32 1024, 1024
      %110 = vsyncadd [#allocation3], %s109
      %s111 = sshll.u32 [#allocation2], 4
      %s112 = int_to_ptr.vmem [resolvable:$true] %s111
      %117 = dma.hbm_to_vmem [thread:$0]  %s5, 1024, %s112, [#allocation3], 128, 128, 8
    $region13: #{test_prod_server_model.1} parent=1 // pred_fallthru
      _
    // Predicated region
    $region14: #{test_prod_server_model.1} parent=1 // pred_check
      _
    $region15: #{test_prod_server_model.1} parent=1 // pred_check_branch
      %119 = sbr.rel (0) target = $region17
    $region16: #{test_prod_server_model.1} parent=1 // pred_region
      _
    $region17: #{test_prod_server_model.1} parent=1 // pred_fallthru
      _
    // Predicated region
    $region18: #{test_prod_server_model.1} parent=1 // pred_check
      _
    $region19: #{test_prod_server_model.1} parent=1 // pred_check_branch
      %121 = sbr.rel (0) target = $region21
    $region20: #{test_prod_server_model.1} parent=1 // pred_region
      %s123 = ssub.s32 512, 512
      %124 = vsyncadd [#allocation6], %s123
      %s125 = sshll.u32 [#allocation5], 4
      %s126 = int_to_ptr.vmem [resolvable:$true] %s125
      %131 = dma.hbm_to_vmem [thread:$0]  %s9, 512, %s126, [#allocation6], 128, 128, 8
    $region21: #{test_prod_server_model.1} parent=1 // pred_fallthru
      _
    // Predicated region
    $region22: #{test_prod_server_model.1} parent=1 // pred_check
      _
    $region23: #{test_prod_server_model.1} parent=1 // pred_check_branch
      %133 = sbr.rel (0) target = $region25
    $region24: #{test_prod_server_model.1} parent=1 // pred_region
      _
    $region25: #{test_prod_server_model.1} parent=1 // pred_fallthru
      _
    // Predicated region
    $region26: #{test_prod_server_model.1} parent=1 // pred_check
      _
    $region27: #{test_prod_server_model.1} parent=1 // pred_check_branch
      %135 = sbr.rel (0) target = $region29
    $region28: #{test_prod_server_model.1} parent=1 // pred_region
      %s137 = ssub.s32 1792, 1792
      %138 = vsyncadd [#allocation6], %s137
      %s139 = sshll.u32 [#allocation7], 4
      %s140 = int_to_ptr.vmem [resolvable:$true] %s139
      %145 = dma.hbm_to_vmem [thread:$0]  %s13, 1792, %s140, [#allocation6], 128, 128, 8
    $region29: #{test_prod_server_model.1} parent=1 // pred_fallthru
      _
    // Predicated region
    $region30: #{test_prod_server_model.1} parent=1 // pred_check
      _
    $region31: #{test_prod_server_model.1} parent=1 // pred_check_branch
      %147 = sbr.rel (0) target = $region33
    $region32: #{test_prod_server_model.1} parent=1 // pred_region
      _
    $region33: #{test_prod_server_model.1} parent=1 // pred_fallthru
      _
    // Predicated region
    $region34: #{test_prod_server_model.1} parent=1 // pred_check
      _
    $region35: #{test_prod_server_model.1} parent=1 // pred_check_branch
      %149 = sbr.rel (0) target = $region37
    $region36: #{test_prod_server_model.1} parent=1 // pred_region
      _
    $region37: #{test_prod_server_model.1} parent=1 // pred_fallthru
      _
    // Predicated region
    $region38: #{test_prod_server_model.1} parent=1 // pred_check
      _
    $region39: #{test_prod_server_model.1} parent=1 // pred_check_branch
      %151 = sbr.rel (0) target = $region41
    $region40: #{test_prod_server_model.1} parent=1 // pred_region
      %s153 = ssub.s32 512, 512
      %154 = vsyncadd [#allocation9], %s153
      %s155 = sshll.u32 [#allocation8], 4
      %s156 = int_to_ptr.vmem [resolvable:$true] %s155
      %161 = dma.hbm_to_vmem [thread:$0]  %s19, 512, %s156, [#allocation9], 128, 128, 8
    $region41: #{test_prod_server_model.1} parent=1 // pred_fallthru
      _
    // Predicated region
    $region42: #{test_prod_server_model.1} parent=1 // pred_check
      _
    $region43: #{test_prod_server_model.1} parent=1 // pred_check_branch
      %163 = sbr.rel (0) target = $region45
    $region44: #{test_prod_server_model.1} parent=1 // pred_region
      %s165 = ssub.s32 8192, 8192
      %166 = vsyncadd [#allocation9], %s165
      %s167 = sshll.u32 [#allocation10], 4
      %s168 = int_to_ptr.vmem [resolvable:$true] %s167
      %173 = dma.hbm_to_vmem [thread:$0]  %s21, 8192, %s168, [#allocation9], 512, 512, 32
    $region45: #{test_prod_server_model.1} parent=1 // pred_fallthru
      _
    // Predicated region
    $region46: #{test_prod_server_model.1} parent=1 // pred_check
      _
    $region47: #{test_prod_server_model.1} parent=1 // pred_check_branch
      %175 = sbr.rel (0) target = $region49
    $region48: #{test_prod_server_model.1} parent=1 // pred_region
      _
    $region49: #{test_prod_server_model.1} parent=1 // pred_fallthru
      _
    // Predicated region
    $region50: #{test_prod_server_model.1} parent=1 // pred_check
      _
    $region51: #{test_prod_server_model.1} parent=1 // pred_check_branch
      %177 = sbr.rel (0) target = $region53
    $region52: #{test_prod_server_model.1} parent=1 // pred_region
      %s179 = ssub.s32 512, 512
      %180 = vsyncadd [#allocation12], %s179
      %s181 = sshll.u32 [#allocation11], 4
      %s182 = int_to_ptr.vmem [resolvable:$true] %s181
      %187 = dma.hbm_to_vmem [thread:$0]  %s25, 512, %s182, [#allocation12], 128, 128, 8
    $region53: #{test_prod_server_model.1} parent=1 // pred_fallthru
      _
    // Predicated region
    $region54: #{test_prod_server_model.1} parent=1 // pred_check
      _
    $region55: #{test_prod_server_model.1} parent=1 // pred_check_branch
      %189 = sbr.rel (0) target = $region57
    $region56: #{test_prod_server_model.1} parent=1 // pred_region
      _
    $region57: #{test_prod_server_model.1} parent=1 // pred_fallthru
      _
    // Predicated region
    $region58: #{test_prod_server_model.1} parent=1 // pred_check
      _
    $region59: #{test_prod_server_model.1} parent=1 // pred_check_branch
      %191 = sbr.rel (0) target = $region61
    $region60: #{test_prod_server_model.1} parent=1 // pred_region
      %s193 = ssub.s32 256, 256
      %194 = vsyncadd [#allocation12], %s193
      %s195 = sshll.u32 [#allocation13], 4
      %s196 = int_to_ptr.vmem [resolvable:$true] %s195
      %201 = dma.hbm_to_vmem [thread:$0]  %s29, 256, %s196, [#allocation12], 128, 128, 8
    $region61: #{test_prod_server_model.1} parent=1 // pred_fallthru
      _
    // Predicated region
    $region62: #{test_prod_server_model.1} parent=1 // pred_check
      _
    $region63: #{test_prod_server_model.1} parent=1 // pred_check_branch
      %203 = sbr.rel (0) target = $region65
    $region64: #{test_prod_server_model.1} parent=1 // pred_region
      %s205 = ssub.s32 4096, 4096
      %206 = vsyncadd [#allocation15], %s205
      %s207 = sshll.u32 [#allocation14], 4
      %s208 = int_to_ptr.vmem [resolvable:$true] %s207
      %213 = dma.hbm_to_vmem [thread:$0]  %s31, 4096, %s208, [#allocation15], 128, 128, 8
    $region65: #{test_prod_server_model.1} parent=1 // pred_fallthru
      _
    // Predicated region
    $region66: #{test_prod_server_model.1} parent=1 // pred_check
      _
    $region67: #{test_prod_server_model.1} parent=1 // pred_check_branch
      %215 = sbr.rel (0) target = $region69
    $region68: #{test_prod_server_model.1} parent=1 // pred_region
      _
    $region69: #{test_prod_server_model.1} parent=1 // pred_fallthru
      _
    // Predicated region
    $region70: #{test_prod_server_model.1} parent=1 // pred_check
      _
    $region71: #{test_prod_server_model.1} parent=1 // pred_check_branch
      %217 = sbr.rel (0) target = $region73
    $region72: #{test_prod_server_model.1} parent=1 // pred_region
      %s219 = ssub.s32 256, 256
      %220 = vsyncadd [#allocation15], %s219
      %s221 = sshll.u32 [#allocation16], 4
      %s222 = int_to_ptr.vmem [resolvable:$true] %s221
      %227 = dma.hbm_to_vmem [thread:$0]  %s35, 256, %s222, [#allocation15], 128, 128, 8
    $region73: #{test_prod_server_model.1} parent=1 // pred_fallthru
      _
    // Predicated region
    $region74: #{test_prod_server_model.1} parent=1 // pred_check
      _
    $region75: #{test_prod_server_model.1} parent=1 // pred_check_branch
      %229 = sbr.rel (0) target = $region77
    $region76: #{test_prod_server_model.1} parent=1 // pred_region
      _
    $region77: #{test_prod_server_model.1} parent=1 // pred_fallthru
      _
    // Predicated region
    $region78: #{test_prod_server_model.1} parent=1 // pred_check
      _
    $region79: #{test_prod_server_model.1} parent=1 // pred_check_branch
      %231 = sbr.rel (0) target = $region81
    $region80: #{test_prod_server_model.1} parent=1 // pred_region
      %s233 = ssub.s32 256, 256
      %234 = vsyncadd [#allocation18], %s233
      %s235 = sshll.u32 [#allocation17], 4
      %s236 = int_to_ptr.vmem [resolvable:$true] %s235
      %241 = dma.hbm_to_vmem [thread:$0]  %s39, 256, %s236, [#allocation18], 128, 128, 8
    $region81: #{test_prod_server_model.1} parent=1 // pred_fallthru
      _
    // Predicated region
    $region82: #{test_prod_server_model.1} parent=1 // pred_check
      _
    $region83: #{test_prod_server_model.1} parent=1 // pred_check_branch
      %243 = sbr.rel (0) target = $region85
    $region84: #{test_prod_server_model.1} parent=1 // pred_region
      %s245 = ssub.s32 128, 128
      %246 = vsyncadd [#allocation18], %s245
      %s248 = sshll.u32 [#allocation19], 4
      %s249 = int_to_ptr.vmem [resolvable:$true] %s248
      %251 = dma.hbm_to_vmem [thread:$0]  %s41, 128, %s249, [#allocation18]
    $region85: #{test_prod_server_model.1} parent=1 // pred_fallthru
      _
    // Predicated region
    $region86: #{test_prod_server_model.1} parent=1 // pred_check
      _
    $region87: #{test_prod_server_model.1} parent=1 // pred_check_branch
      %253 = sbr.rel (0) target = $region89
    $region88: #{test_prod_server_model.1} parent=1 // pred_region
      _
    $region89: #{test_prod_server_model.1} parent=1 // pred_fallthru
      _
    // Predicated region
    $region90: #{test_prod_server_model.1} parent=1 // pred_check
      _
    $region91: #{test_prod_server_model.1} parent=1 // pred_check_branch
      %255 = sbr.rel (0) target = $region93
    $region92: #{test_prod_server_model.1} parent=1 // pred_region
      %s257 = ssub.s32 256, 256
      %258 = vsyncadd [#allocation21], %s257
      %s259 = sshll.u32 [#allocation20], 4
      %s260 = int_to_ptr.vmem [resolvable:$true] %s259
      %265 = dma.hbm_to_vmem [thread:$0]  %s45, 256, %s260, [#allocation21], 128, 128, 8
    $region93: #{test_prod_server_model.1} parent=1 // pred_fallthru
      _
    // Predicated region
    $region94: #{test_prod_server_model.1} parent=1 // pred_check
      _
    $region95: #{test_prod_server_model.1} parent=1 // pred_check_branch
      %267 = sbr.rel (0) target = $region97
    $region96: #{test_prod_server_model.1} parent=1 // pred_region
      _
    $region97: #{test_prod_server_model.1} parent=1 // pred_fallthru
      _
    // Predicated region
    $region98: #{test_prod_server_model.1} parent=1 // pred_check
      _
    $region99: #{test_prod_server_model.1} parent=1 // pred_check_branch
      %269 = sbr.rel (0) target = $region101
    $region100: #{test_prod_server_model.1} parent=1 // pred_region
      %s271 = ssub.s32 256, 256
      %272 = vsyncadd [#allocation21], %s271
      %s273 = sshll.u32 [#allocation22], 4
      %s274 = int_to_ptr.vmem [resolvable:$true] %s273
      %279 = dma.hbm_to_vmem [thread:$0]  %s49, 256, %s274, [#allocation21], 128, 128, 8
    $region101: #{test_prod_server_model.1} parent=1 // pred_fallthru
      _
    // Predicated region
    $region102: #{test_prod_server_model.1} parent=1 // pred_check
      _
    $region103: #{test_prod_server_model.1} parent=1 // pred_check_branch
      %281 = sbr.rel (0) target = $region105
    $region104: #{test_prod_server_model.1} parent=1 // pred_region
      %s283 = ssub.s32 128, 128
      %284 = vsyncadd [#allocation24], %s283
      %s286 = sshll.u32 [#allocation23], 4
      %s287 = int_to_ptr.vmem [resolvable:$true] %s286
      %289 = dma.hbm_to_vmem [thread:$0]  %s51, 128, %s287, [#allocation24]
    $region105: #{test_prod_server_model.1} parent=1 // pred_fallthru
      _
    // Predicated region
    $region106: #{test_prod_server_model.1} parent=1 // pred_check
      _
    $region107: #{test_prod_server_model.1} parent=1 // pred_check_branch
      %291 = sbr.rel (0) target = $region109
    $region108: #{test_prod_server_model.1} parent=1 // pred_region
      %s293 = ssub.s32 128, 128
      %294 = vsyncadd [#allocation24], %s293
      %s296 = sshll.u32 [#allocation25], 4
      %s297 = int_to_ptr.vmem [resolvable:$true] %s296
      %299 = dma.hbm_to_vmem [thread:$0]  %s53, 128, %s297, [#allocation24]
    $region109: #{test_prod_server_model.1} parent=1 // pred_fallthru
      _
    // Predicated region
    $region110: #{test_prod_server_model.1} parent=1 // pred_check
      _
    $region111: #{test_prod_server_model.1} parent=1 // pred_check_branch
      %301 = sbr.rel (0) target = $region113
    $region112: #{test_prod_server_model.1} parent=1 // pred_region
      %s303 = ssub.s32 128, 128
      %304 = vsyncadd [#allocation27], %s303
      %s306 = sshll.u32 [#allocation26], 4
      %s307 = int_to_ptr.vmem [resolvable:$true] %s306
      %309 = dma.hbm_to_vmem [thread:$0]  %s55, 128, %s307, [#allocation27]
    $region113: #{test_prod_server_model.1} parent=1 // pred_fallthru
      _
    // Predicated region
    $region114: #{test_prod_server_model.1} parent=1 // pred_check
      _
    $region115: #{test_prod_server_model.1} parent=1 // pred_check_branch
      %311 = sbr.rel (0) target = $region117
    $region116: #{test_prod_server_model.1} parent=1 // pred_region
      _
    $region117: #{test_prod_server_model.1} parent=1 // pred_fallthru
      _
    // Predicated region
    $region118: #{test_prod_server_model.1} parent=1 // pred_check
      _
    $region119: #{test_prod_server_model.1} parent=1 // pred_check_branch
      %313 = sbr.rel (0) target = $region121
    $region120: #{test_prod_server_model.1} parent=1 // pred_region
      %s315 = ssub.s32 1024, 1024
      %316 = vsyncadd [#allocation27], %s315
      %s317 = sshll.u32 [#allocation28], 4
      %s318 = int_to_ptr.vmem [resolvable:$true] %s317
      %323 = dma.hbm_to_vmem [thread:$0]  %s59, 1024, %s318, [#allocation27], 512, 512, 32
    $region121: #{test_prod_server_model.1} parent=1 // pred_fallthru
      _
    // Predicated region
    $region122: #{test_prod_server_model.1} parent=1 // pred_check
      _
    $region123: #{test_prod_server_model.1} parent=1 // pred_check_branch
      %325 = sbr.rel (0) target = $region125
    $region124: #{test_prod_server_model.1} parent=1 // pred_region
      %s327 = ssub.s32 512, 512
      %328 = vsyncadd [#allocation30], %s327
      %s330 = sshll.u32 [#allocation29], 4
      %s331 = int_to_ptr.vmem [resolvable:$true] %s330
      %333 = dma.hbm_to_vmem [thread:$0]  %s61, 512, %s331, [#allocation30]
    $region125: #{test_prod_server_model.1} parent=1 // pred_fallthru
      _
    // Predicated region
    $region126: #{test_prod_server_model.1} parent=1 // pred_check
      _
    $region127: #{test_prod_server_model.1} parent=1 // pred_check_branch
      %335 = sbr.rel (0) target = $region129
    $region128: #{test_prod_server_model.1} parent=1 // pred_region
      %s337 = ssub.s32 64, 64
      %338 = vsyncadd [#allocation30], %s337
      %s340 = sshll.u32 [#allocation31], 4
      %s341 = int_to_ptr.vmem [resolvable:$true] %s340
      %343 = dma.hbm_to_vmem [thread:$0]  %s63, 64, %s341, [#allocation30]
    $region129: #{test_prod_server_model.1} parent=1 // pred_fallthru
      _
    // Predicated region
    $region130: #{test_prod_server_model.1} parent=1 // pred_check
      _
    $region131: #{test_prod_server_model.1} parent=1 // pred_check_branch
      %345 = sbr.rel (0) target = $region133
    $region132: #{test_prod_server_model.1} parent=1 // pred_region
      %s347 = ssub.s32 128, 128
      %348 = vsyncadd [#allocation33], %s347
      %s350 = sshll.u32 [#allocation32], 4
      %s351 = int_to_ptr.vmem [resolvable:$true] %s350
      %353 = dma.hbm_to_vmem [thread:$0]  %s65, 128, %s351, [#allocation33]
    $region133: #{test_prod_server_model.1} parent=1 // pred_fallthru
      _
    // Predicated region
    $region134: #{test_prod_server_model.1} parent=1 // pred_check
      _
    $region135: #{test_prod_server_model.1} parent=1 // pred_check_branch
      %355 = sbr.rel (0) target = $region137
    $region136: #{test_prod_server_model.1} parent=1 // pred_region
      _
    $region137: #{test_prod_server_model.1} parent=1 // pred_fallthru
      _
    // Predicated region
    $region138: #{test_prod_server_model.1} parent=1 // pred_check
      _
    $region139: #{test_prod_server_model.1} parent=1 // pred_check_branch
      %357 = sbr.rel (0) target = $region141
    $region140: #{test_prod_server_model.1} parent=1 // pred_region
      %s359 = ssub.s32 1024, 1024
      %360 = vsyncadd [#allocation33], %s359
      %s361 = sshll.u32 [#allocation34], 4
      %s362 = int_to_ptr.vmem [resolvable:$true] %s361
      %367 = dma.hbm_to_vmem [thread:$0]  %s69, 1024, %s362, [#allocation33], 512, 512, 32
    $region141: #{test_prod_server_model.1} parent=1 // pred_fallthru
      _
    // Predicated region
    $region142: #{test_prod_server_model.1} parent=1 // pred_check
      _
    $region143: #{test_prod_server_model.1} parent=1 // pred_check_branch
      %369 = sbr.rel (0) target = $region145
    $region144: #{test_prod_server_model.1} parent=1 // pred_region
      %s371 = ssub.s32 512, 512
      %372 = vsyncadd [#allocation36], %s371
      %s374 = sshll.u32 [#allocation35], 4
      %s375 = int_to_ptr.vmem [resolvable:$true] %s374
      %377 = dma.hbm_to_vmem [thread:$0]  %s71, 512, %s375, [#allocation36]
    $region145: #{test_prod_server_model.1} parent=1 // pred_fallthru
      _
    // Predicated region
    $region146: #{test_prod_server_model.1} parent=1 // pred_check
      _
    $region147: #{test_prod_server_model.1} parent=1 // pred_check_branch
      %379 = sbr.rel (0) target = $region149
    $region148: #{test_prod_server_model.1} parent=1 // pred_region
      %s381 = ssub.s32 64, 64
      %382 = vsyncadd [#allocation36], %s381
      %s384 = sshll.u32 [#allocation37], 4
      %s385 = int_to_ptr.vmem [resolvable:$true] %s384
      %387 = dma.hbm_to_vmem [thread:$0]  %s73, 64, %s385, [#allocation36]
    $region149: #{test_prod_server_model.1} parent=1 // pred_fallthru
      _
    // Predicated region
    $region150: #{test_prod_server_model.1} parent=1 // pred_check
      _
    $region151: #{test_prod_server_model.1} parent=1 // pred_check_branch
      %389 = sbr.rel (0) target = $region153
    $region152: #{test_prod_server_model.1} parent=1 // pred_region
      _
    $region153: #{test_prod_server_model.1} parent=1 // pred_fallthru
      _
    // Predicated region
    $region154: #{test_prod_server_model.1} parent=1 // pred_check
      _
    $region155: #{test_prod_server_model.1} parent=1 // pred_check_branch
      %391 = sbr.rel (0) target = $region157
    $region156: #{test_prod_server_model.1} parent=1 // pred_region
      %s393 = ssub.s32 1024, 1024
      %394 = vsyncadd [#allocation39], %s393
      %s395 = sshll.u32 [#allocation38], 4
      %s396 = int_to_ptr.vmem [resolvable:$true] %s395
      %401 = dma.hbm_to_vmem [thread:$0]  %s77, 1024, %s396, [#allocation39], 512, 512, 32
    $region157: #{test_prod_server_model.1} parent=1 // pred_fallthru
      _
    // Predicated region
    $region158: #{test_prod_server_model.1} parent=1 // pred_check
      _
    $region159: #{test_prod_server_model.1} parent=1 // pred_check_branch
      %403 = sbr.rel (0) target = $region161
    $region160: #{test_prod_server_model.1} parent=1 // pred_region
      %s405 = ssub.s32 4096, 4096
      %406 = vsyncadd [#allocation39], %s405
      %s407 = sshll.u32 [#allocation40], 4
      %s408 = int_to_ptr.vmem [resolvable:$true] %s407
      %413 = dma.hbm_to_vmem [thread:$0]  %s79, 4096, %s408, [#allocation39], 128, 128, 8
    $region161: #{test_prod_server_model.1} parent=1 // pred_fallthru
      _
    // Predicated region
    $region162: #{test_prod_server_model.1} parent=1 // pred_check
      _
    $region163: #{test_prod_server_model.1} parent=1 // pred_check_branch
      %415 = sbr.rel (0) target = $region165
    $region164: #{test_prod_server_model.1} parent=1 // pred_region
      _
    $region165: #{test_prod_server_model.1} parent=1 // pred_fallthru
      _
    // Predicated region
    $region166: #{test_prod_server_model.1} parent=1 // pred_check
      _
    $region167: #{test_prod_server_model.1} parent=1 // pred_check_branch
      %417 = sbr.rel (0) target = $region169
    $region168: #{test_prod_server_model.1} parent=1 // pred_region
      %418 = dma.done [#allocation3], 1024
    $region169: #{test_prod_server_model.1} parent=1 // pred_fallthru
      _
    // Predicated region
    $region170: #{test_prod_server_model.1} parent=1 // pred_check
      _
    $region171: #{test_prod_server_model.1} parent=1 // pred_check_branch
      %420 = sbr.rel (0) target = $region173
    $region172: #{test_prod_server_model.1} parent=1 // pred_region
      %421 = dma.done [#allocation6], 512
    $region173: #{test_prod_server_model.1} parent=1 // pred_fallthru
      _
    // Predicated region
    $region174: #{test_prod_server_model.1} parent=1 // pred_check
      _
    $region175: #{test_prod_server_model.1} parent=1 // pred_check_branch
      %423 = sbr.rel (0) target = $region177
    $region176: #{test_prod_server_model.1} parent=1 // pred_region
      %424 = dma.done [#allocation6], 1792
    $region177: #{test_prod_server_model.1} parent=1 // pred_fallthru
      _
    // Predicated region
    $region178: #{test_prod_server_model.1} parent=1 // pred_check
      _
    $region179: #{test_prod_server_model.1} parent=1 // pred_check_branch
      %426 = sbr.rel (0) target = $region181
    $region180: #{test_prod_server_model.1} parent=1 // pred_region
      %427 = dma.done [#allocation9], 512
    $region181: #{test_prod_server_model.1} parent=1 // pred_fallthru
      _
    // Predicated region
    $region182: #{test_prod_server_model.1} parent=1 // pred_check
      _
    $region183: #{test_prod_server_model.1} parent=1 // pred_check_branch
      %429 = sbr.rel (0) target = $region185
    $region184: #{test_prod_server_model.1} parent=1 // pred_region
      %430 = dma.done [#allocation9], 8192
    $region185: #{test_prod_server_model.1} parent=1 // pred_fallthru
      _
    // Predicated region
    $region186: #{test_prod_server_model.1} parent=1 // pred_check
      _
    $region187: #{test_prod_server_model.1} parent=1 // pred_check_branch
      %432 = sbr.rel (0) target = $region189
    $region188: #{test_prod_server_model.1} parent=1 // pred_region
      %433 = dma.done [#allocation12], 512
    $region189: #{test_prod_server_model.1} parent=1 // pred_fallthru
      _
    // Predicated region
    $region190: #{test_prod_server_model.1} parent=1 // pred_check
      _
    $region191: #{test_prod_server_model.1} parent=1 // pred_check_branch
      %435 = sbr.rel (0) target = $region193
    $region192: #{test_prod_server_model.1} parent=1 // pred_region
      %436 = dma.done [#allocation12], 256
    $region193: #{test_prod_server_model.1} parent=1 // pred_fallthru
      _
    // Predicated region
    $region194: #{test_prod_server_model.1} parent=1 // pred_check
      _
    $region195: #{test_prod_server_model.1} parent=1 // pred_check_branch
      %438 = sbr.rel (0) target = $region197
    $region196: #{test_prod_server_model.1} parent=1 // pred_region
      %439 = dma.done [#allocation15], 4096
    $region197: #{test_prod_server_model.1} parent=1 // pred_fallthru
      _
    // Predicated region
    $region198: #{test_prod_server_model.1} parent=1 // pred_check
      _
    $region199: #{test_prod_server_model.1} parent=1 // pred_check_branch
      %441 = sbr.rel (0) target = $region201
    $region200: #{test_prod_server_model.1} parent=1 // pred_region
      %442 = dma.done [#allocation15], 256
    $region201: #{test_prod_server_model.1} parent=1 // pred_fallthru
      _
    // Predicated region
    $region202: #{test_prod_server_model.1} parent=1 // pred_check
      _
    $region203: #{test_prod_server_model.1} parent=1 // pred_check_branch
      %444 = sbr.rel (0) target = $region205
    $region204: #{test_prod_server_model.1} parent=1 // pred_region
      %445 = dma.done [#allocation18], 256
    $region205: #{test_prod_server_model.1} parent=1 // pred_fallthru
      _
    // Predicated region
    $region206: #{test_prod_server_model.1} parent=1 // pred_check
      _
    $region207: #{test_prod_server_model.1} parent=1 // pred_check_branch
      %447 = sbr.rel (0) target = $region209
    $region208: #{test_prod_server_model.1} parent=1 // pred_region
      %448 = dma.done [#allocation18], 128
    $region209: #{test_prod_server_model.1} parent=1 // pred_fallthru
      _
    // Predicated region
    $region210: #{test_prod_server_model.1} parent=1 // pred_check
      _
    $region211: #{test_prod_server_model.1} parent=1 // pred_check_branch
      %450 = sbr.rel (0) target = $region213
    $region212: #{test_prod_server_model.1} parent=1 // pred_region
      %451 = dma.done [#allocation21], 256
    $region213: #{test_prod_server_model.1} parent=1 // pred_fallthru
      _
    // Predicated region
    $region214: #{test_prod_server_model.1} parent=1 // pred_check
      _
    $region215: #{test_prod_server_model.1} parent=1 // pred_check_branch
      %453 = sbr.rel (0) target = $region217
    $region216: #{test_prod_server_model.1} parent=1 // pred_region
      %454 = dma.done [#allocation21], 256
    $region217: #{test_prod_server_model.1} parent=1 // pred_fallthru
      _
    // Predicated region
    $region218: #{test_prod_server_model.1} parent=1 // pred_check
      _
    $region219: #{test_prod_server_model.1} parent=1 // pred_check_branch
      %456 = sbr.rel (0) target = $region221
    $region220: #{test_prod_server_model.1} parent=1 // pred_region
      %457 = dma.done [#allocation24], 128
    $region221: #{test_prod_server_model.1} parent=1 // pred_fallthru
      _
    // Predicated region
    $region222: #{test_prod_server_model.1} parent=1 // pred_check
      _
    $region223: #{test_prod_server_model.1} parent=1 // pred_check_branch
      %459 = sbr.rel (0) target = $region225
    $region224: #{test_prod_server_model.1} parent=1 // pred_region
      %460 = dma.done [#allocation24], 128
    $region225: #{test_prod_server_model.1} parent=1 // pred_fallthru
      _
    // Predicated region
    $region226: #{test_prod_server_model.1} parent=1 // pred_check
      _
    $region227: #{test_prod_server_model.1} parent=1 // pred_check_branch
      %462 = sbr.rel (0) target = $region229
    $region228: #{test_prod_server_model.1} parent=1 // pred_region
      %463 = dma.done [#allocation27], 128
    $region229: #{test_prod_server_model.1} parent=1 // pred_fallthru
      _
    // Predicated region
    $region230: #{test_prod_server_model.1} parent=1 // pred_check
      _
    $region231: #{test_prod_server_model.1} parent=1 // pred_check_branch
      %465 = sbr.rel (0) target = $region233
    $region232: #{test_prod_server_model.1} parent=1 // pred_region
      %466 = dma.done [#allocation27], 1024
    $region233: #{test_prod_server_model.1} parent=1 // pred_fallthru
      _
    // Predicated region
    $region234: #{test_prod_server_model.1} parent=1 // pred_check
      _
    $region235: #{test_prod_server_model.1} parent=1 // pred_check_branch
      %468 = sbr.rel (0) target = $region237
    $region236: #{test_prod_server_model.1} parent=1 // pred_region
      %469 = dma.done [#allocation30], 512
    $region237: #{test_prod_server_model.1} parent=1 // pred_fallthru
      _
    // Predicated region
    $region238: #{test_prod_server_model.1} parent=1 // pred_check
      _
    $region239: #{test_prod_server_model.1} parent=1 // pred_check_branch
      %471 = sbr.rel (0) target = $region241
    $region240: #{test_prod_server_model.1} parent=1 // pred_region
      %472 = dma.done [#allocation30], 64
    $region241: #{test_prod_server_model.1} parent=1 // pred_fallthru
      _
    // Predicated region
    $region242: #{test_prod_server_model.1} parent=1 // pred_check
      _
    $region243: #{test_prod_server_model.1} parent=1 // pred_check_branch
      %474 = sbr.rel (0) target = $region245
    $region244: #{test_prod_server_model.1} parent=1 // pred_region
      %475 = dma.done [#allocation33], 128
    $region245: #{test_prod_server_model.1} parent=1 // pred_fallthru
      _
    // Predicated region
    $region246: #{test_prod_server_model.1} parent=1 // pred_check
      _
    $region247: #{test_prod_server_model.1} parent=1 // pred_check_branch
      %477 = sbr.rel (0) target = $region249
    $region248: #{test_prod_server_model.1} parent=1 // pred_region
      %478 = dma.done [#allocation33], 1024
    $region249: #{test_prod_server_model.1} parent=1 // pred_fallthru
      _
    // Predicated region
    $region250: #{test_prod_server_model.1} parent=1 // pred_check
      _
    $region251: #{test_prod_server_model.1} parent=1 // pred_check_branch
      %480 = sbr.rel (0) target = $region253
    $region252: #{test_prod_server_model.1} parent=1 // pred_region
      %481 = dma.done [#allocation36], 512
    $region253: #{test_prod_server_model.1} parent=1 // pred_fallthru
      _
    // Predicated region
    $region254: #{test_prod_server_model.1} parent=1 // pred_check
      _
    $region255: #{test_prod_server_model.1} parent=1 // pred_check_branch
      %483 = sbr.rel (0) target = $region257
    $region256: #{test_prod_server_model.1} parent=1 // pred_region
      %484 = dma.done [#allocation36], 64
    $region257: #{test_prod_server_model.1} parent=1 // pred_fallthru
      _
    // Predicated region
    $region258: #{test_prod_server_model.1} parent=1 // pred_check
      _
    $region259: #{test_prod_server_model.1} parent=1 // pred_check_branch
      %486 = sbr.rel (0) target = $region261
    $region260: #{test_prod_server_model.1} parent=1 // pred_region
      %487 = dma.done [#allocation39], 1024
    $region261: #{test_prod_server_model.1} parent=1 // pred_fallthru
      _
    // Predicated region
    $region262: #{test_prod_server_model.1} parent=1 // pred_check
      _
    $region263: #{test_prod_server_model.1} parent=1 // pred_check_branch
      %489 = sbr.rel (0) target = $region265
    $region264: #{test_prod_server_model.1} parent=1 // pred_region
      %490 = dma.done [#allocation39], 4096
    $region265: #{test_prod_server_model.1} parent=1 // pred_fallthru
      _
    %v492 = vld [vmem:[%s3] sm:$0xff]
    %v493 = vld [vmem:[%s3 + $0x8] sm:$0xff]
    %v494 = vld [vmem:[%s3 + $0x10] sm:$0xff]
    %v495 = vld [vmem:[%s3 + $0x18] sm:$0xff]
    %v496 = vld [vmem:[#allocation2] sm:$0xff]
    %v497 = vld [vmem:[#allocation2 + $0x8] sm:$0xff]
    %v498 = vld [vmem:[#allocation2 + $0x10] sm:$0xff]
    %v499 = vld [vmem:[#allocation2 + $0x18] sm:$0xff]
    %v500 = vld [vmem:[#allocation2 + $0x20] sm:$0xff]
    %v501 = vld [vmem:[#allocation2 + $0x28] sm:$0xff]
    %v502 = vld [vmem:[#allocation2 + $0x30] sm:$0xff]
    %v503 = vld [vmem:[#allocation2 + $0x38] sm:$0xff]
    %v504 = vld [vmem:[%s7] sm:$0xff]
    %v505 = vld [vmem:[%s7 + $0x8] sm:$0xff]
    %v506 = vld [vmem:[%s7 + $0x10] sm:$0xff]
    %v507 = vld [vmem:[%s7 + $0x18] sm:$0xff]
    %v508 = vld [vmem:[%s7 + $0x20] sm:$0xff]
    %v509 = vld [vmem:[%s7 + $0x28] sm:$0xff]
    %v510 = vld [vmem:[%s7 + $0x30] sm:$0xff]
    %v511 = vld [vmem:[%s7 + $0x38] sm:$0xff]
    %513 = vset.pattern.permute.xlu0 0
    %514 = vperm.xlu0 %513, %v504
    %v515 = vpop.permute.xlu0 %514
    %518 = vset.pattern.permute.xlu0 0
    %519 = vperm.xlu0 %518, %v505
    %v520 = vpop.permute.xlu0 %519
    %523 = vset.pattern.permute.xlu0 0
    %524 = vperm.xlu0 %523, %v506
    %v525 = vpop.permute.xlu0 %524
    %528 = vset.pattern.permute.xlu0 0
    %529 = vperm.xlu0 %528, %v507
    %v530 = vpop.permute.xlu0 %529
    %533 = vset.pattern.permute.xlu0 0
    %534 = vperm.xlu0 %533, %v508
    %v535 = vpop.permute.xlu0 %534
    %538 = vset.pattern.permute.xlu0 0
    %539 = vperm.xlu0 %538, %v509
    %v540 = vpop.permute.xlu0 %539
    %543 = vset.pattern.permute.xlu0 0
    %544 = vperm.xlu0 %543, %v510
    %v545 = vpop.permute.xlu0 %544
    %548 = vset.pattern.permute.xlu0 0
    %549 = vperm.xlu0 %548, %v511
    %v550 = vpop.permute.xlu0 %549
    %vm552 = vcmask 261120
    %v554 = vsel %vm552, %v496, 0
    %v557 = vsel %vm552, %v497, 0
    %v560 = vsel %vm552, %v498, 0
    %v563 = vsel %vm552, %v499, 0
    %v566 = vsel %vm552, %v500, 0
    %v569 = vsel %vm552, %v501, 0
    %v572 = vsel %vm552, %v502, 0
    %v575 = vsel %vm552, %v503, 0
    %577 = vmatprep.subr.mxu0 0.0
    %578 = vmatpush1.msra.mxu0 %v492
    %579 = vmatprep.subr.mxu0 0.0
    %580 = vmatpush1.msra.mxu0 %v493
    %581 = vmatprep.subr.mxu0 0.0
    %582 = vmatpush1.msra.mxu0 %v494
    %583 = vmatprep.subr.mxu0 0.0
    %584 = vmatpush1.msra.mxu0 %v495
    %585 = vmatprep.subr.mxu0 0.0
    %586 = vmatpush1.msra.mxu0 0.0
    %587 = vmatprep.subr.mxu0 0.0
    %588 = vmatpush1.msra.mxu0 0.0
    %589 = vmatprep.subr.mxu0 0.0
    %590 = vmatpush1.msra.mxu0 0.0
    %591 = vmatprep.subr.mxu0 0.0
    %592 = vmatpush1.msra.mxu0 0.0
    %593 = vmatprep.subr.mxu0 0.0
    %594 = vmatpush1.msra.mxu0 0.0
    %595 = vmatprep.subr.mxu0 0.0
    %596 = vmatpush1.msra.mxu0 0.0
    %597 = vmatprep.subr.mxu0 0.0
    %598 = vmatpush1.msra.mxu0 0.0
    %599 = vmatprep.subr.mxu0 0.0
    %600 = vmatpush1.msra.mxu0 0.0
    %601 = vmatprep.subr.mxu0 0.0
    %602 = vmatpush1.msra.mxu0 0.0
    %603 = vmatprep.subr.mxu0 0.0
    %604 = vmatpush1.msra.mxu0 0.0
    %605 = vmatprep.subr.mxu0 0.0
    %606 = vmatpush1.msra.mxu0 0.0
    %607 = vmatprep.subr.mxu0 0.0
    %608 = vmatpush1.msra.mxu0 0.0
    %609 = vmatprep.subr.mxu0 0.0
    %610 = vmatpush1.msra.mxu0 0.0
    %611 = vmatprep.subr.mxu0 0.0
    %612 = vmatpush1.msra.mxu0 0.0
    %613 = vmatprep.subr.mxu0 0.0
    %614 = vmatpush1.msra.mxu0 0.0
    %615 = vmatprep.subr.mxu0 0.0
    %616 = vmatpush1.msra.mxu0 0.0
    %617 = vmatprep.subr.mxu0 0.0
    %618 = vmatpush1.msra.mxu0 0.0
    %619 = vmatprep.subr.mxu0 0.0
    %620 = vmatpush1.msra.mxu0 0.0
    %621 = vmatprep.subr.mxu0 0.0
    %622 = vmatpush1.msra.mxu0 0.0
    %623 = vmatprep.subr.mxu0 0.0
    %624 = vmatpush1.msra.mxu0 0.0
    %625 = vmatprep.subr.mxu0 0.0
    %626 = vmatpush1.msra.mxu0 0.0
    %627 = vmatprep.subr.mxu0 0.0
    %628 = vmatpush1.msra.mxu0 0.0
    %629 = vmatprep.subr.mxu0 0.0
    %630 = vmatpush1.msra.mxu0 0.0
    %631 = vmatprep.subr.mxu0 0.0
    %632 = vmatpush1.msra.mxu0 0.0
    %633 = vmatprep.subr.mxu0 0.0
    %634 = vmatpush1.msra.mxu0 0.0
    %635 = vmatprep.subr.mxu0 0.0
    %636 = vmatpush1.msra.mxu0 0.0
    %637 = vmatprep.subr.mxu0 0.0
    %638 = vmatpush1.msra.mxu0 0.0
    %639 = vmatprep.subr.mxu0 0.0
    %640 = vmatpush1.msra.mxu0 0.0
    %641 = vmatprep.mubr.f32.mxu0 0.0
    %642 = vmatmul.mubr.f32.gmra.mrb[0].mxu0 %v554
    %v643 = vpop.f32.mrb[0].mxu0
    %v644 = vadd.f32 %v515, %v643
    %v645 = vpop.f32.mrb[0].mxu0
    %646 = vmatprep.mubr.f32.mxu0 0.0
    %647 = vmatmul.mubr.f32.gmra.mrb[0].mxu0 %v557
    %v648 = vpop.f32.mrb[0].mxu0
    %v649 = vadd.f32 %v520, %v648
    %v650 = vpop.f32.mrb[0].mxu0
    %651 = vmatprep.mubr.f32.mxu0 0.0
    %652 = vmatmul.mubr.f32.gmra.mrb[0].mxu0 %v560
    %v653 = vpop.f32.mrb[0].mxu0
    %v654 = vadd.f32 %v525, %v653
    %v655 = vpop.f32.mrb[0].mxu0
    %656 = vmatprep.mubr.f32.mxu0 0.0
    %657 = vmatmul.mubr.f32.gmra.mrb[0].mxu0 %v563
    %v658 = vpop.f32.mrb[0].mxu0
    %v659 = vadd.f32 %v530, %v658
    %v660 = vpop.f32.mrb[0].mxu0
    %661 = vmatprep.mubr.f32.mxu0 0.0
    %662 = vmatmul.mubr.f32.gmra.mrb[0].mxu0 %v566
    %v663 = vpop.f32.mrb[0].mxu0
    %v664 = vadd.f32 %v535, %v663
    %v665 = vpop.f32.mrb[0].mxu0
    %666 = vmatprep.mubr.f32.mxu0 0.0
    %667 = vmatmul.mubr.f32.gmra.mrb[0].mxu0 %v569
    %v668 = vpop.f32.mrb[0].mxu0
    %v669 = vadd.f32 %v540, %v668
    %v670 = vpop.f32.mrb[0].mxu0
    %671 = vmatprep.mubr.f32.mxu0 0.0
    %672 = vmatmul.mubr.f32.gmra.mrb[0].mxu0 %v572
    %v673 = vpop.f32.mrb[0].mxu0
    %v674 = vadd.f32 %v545, %v673
    %v675 = vpop.f32.mrb[0].mxu0
    %676 = vmatprep.mubr.f32.mxu0 0.0
    %677 = vmatmul.mubr.f32.gmra.mrb[0].mxu0 %v575
    %v678 = vpop.f32.mrb[0].mxu0
    %v679 = vadd.f32 %v550, %v678
    %v680 = vpop.f32.mrb[0].mxu0
    %681 = vdwg.mxu0
    %vm682 = vcmp.ge.f32.partialorder %v644, 0.0
    %vm683 = vcmp.ge.f32.partialorder %v649, 0.0
    %vm684 = vcmp.ge.f32.partialorder %v654, 0.0
    %vm685 = vcmp.ge.f32.partialorder %v659, 0.0
    %vm686 = vcmp.ge.f32.partialorder %v664, 0.0
    %vm687 = vcmp.ge.f32.partialorder %v669, 0.0
    %vm688 = vcmp.ge.f32.partialorder %v674, 0.0
    %vm689 = vcmp.ge.f32.partialorder %v679, 0.0
    %v690 = vmul.f32 %v644, 0.2
    %v691 = vmul.f32 %v649, 0.2
    %v692 = vmul.f32 %v654, 0.2
    %v693 = vmul.f32 %v659, 0.2
    %v694 = vmul.f32 %v664, 0.2
    %v695 = vmul.f32 %v669, 0.2
    %v696 = vmul.f32 %v674, 0.2
    %v697 = vmul.f32 %v679, 0.2
    %v698 = vsel %vm682, %v644, %v690
    %v699 = vsel %vm683, %v649, %v691
    %v700 = vsel %vm684, %v654, %v692
    %v701 = vsel %vm685, %v659, %v693
    %v702 = vsel %vm686, %v664, %v694
    %v703 = vsel %vm687, %v669, %v695
    %v704 = vsel %vm688, %v674, %v696
    %v705 = vsel %vm689, %v679, %v697
    %v706 = vmul.f32 %v698, 1.4142135
    %v707 = vmul.f32 %v699, 1.4142135
    %v708 = vmul.f32 %v700, 1.4142135
    %v709 = vmul.f32 %v701, 1.4142135
    %v710 = vmul.f32 %v702, 1.4142135
    %v711 = vmul.f32 %v703, 1.4142135
    %v712 = vmul.f32 %v704, 1.4142135
    %v713 = vmul.f32 %v705, 1.4142135
    %v714 = vld [vmem:[#allocation5] sm:$0xff]
    %v715 = vld [vmem:[#allocation5 + $0x8] sm:$0xff]
    %v716 = vld [vmem:[#allocation5 + $0x10] sm:$0xff]
    %v717 = vld [vmem:[#allocation5 + $0x18] sm:$0xff]
    %v718 = vld [vmem:[%s11] sm:$0xff]
    %v719 = vld [vmem:[%s11 + $0x8] sm:$0xff]
    %v720 = vld [vmem:[%s11 + $0x10] sm:$0xff]
    %v721 = vld [vmem:[%s11 + $0x18] sm:$0xff]
    %723 = vset.pattern.permute.xlu0 0
    %724 = vperm.xlu0 %723, %v718
    %v725 = vpop.permute.xlu0 %724
    %728 = vset.pattern.permute.xlu0 0
    %729 = vperm.xlu0 %728, %v719
    %v730 = vpop.permute.xlu0 %729
    %733 = vset.pattern.permute.xlu0 0
    %734 = vperm.xlu0 %733, %v720
    %v735 = vpop.permute.xlu0 %734
    %738 = vset.pattern.permute.xlu0 0
    %739 = vperm.xlu0 %738, %v721
    %v740 = vpop.permute.xlu0 %739
    %vm742 = vcmask 523264
    %v744 = vsel %vm742, %v714, 0
    %v747 = vsel %vm742, %v715, 0
    %v750 = vsel %vm742, %v716, 0
    %v753 = vsel %vm742, %v717, 0
    %755 = vmatprep.subr.mxu0 0.0
    %756 = vmatpush1.msra.mxu0 %v706
    %757 = vmatprep.subr.mxu0 0.0
    %758 = vmatpush1.msra.mxu0 %v707
    %759 = vmatprep.subr.mxu0 0.0
    %760 = vmatpush1.msra.mxu0 %v708
    %761 = vmatprep.subr.mxu0 0.0
    %762 = vmatpush1.msra.mxu0 %v709
    %763 = vmatprep.subr.mxu0 0.0
    %764 = vmatpush1.msra.mxu0 %v710
    %765 = vmatprep.subr.mxu0 0.0
    %766 = vmatpush1.msra.mxu0 %v711
    %767 = vmatprep.subr.mxu0 0.0
    %768 = vmatpush1.msra.mxu0 %v712
    %769 = vmatprep.subr.mxu0 0.0
    %770 = vmatpush1.msra.mxu0 %v713
    %771 = vmatprep.subr.mxu0 0.0
    %772 = vmatpush1.msra.mxu0 0.0
    %773 = vmatprep.subr.mxu0 0.0
    %774 = vmatpush1.msra.mxu0 0.0
    %775 = vmatprep.subr.mxu0 0.0
    %776 = vmatpush1.msra.mxu0 0.0
    %777 = vmatprep.subr.mxu0 0.0
    %778 = vmatpush1.msra.mxu0 0.0
    %779 = vmatprep.subr.mxu0 0.0
    %780 = vmatpush1.msra.mxu0 0.0
    %781 = vmatprep.subr.mxu0 0.0
    %782 = vmatpush1.msra.mxu0 0.0
    %783 = vmatprep.subr.mxu0 0.0
    %784 = vmatpush1.msra.mxu0 0.0
    %785 = vmatprep.subr.mxu0 0.0
    %786 = vmatpush1.msra.mxu0 0.0
    %787 = vmatprep.subr.mxu0 0.0
    %788 = vmatpush1.msra.mxu0 0.0
    %789 = vmatprep.subr.mxu0 0.0
    %790 = vmatpush1.msra.mxu0 0.0
    %791 = vmatprep.subr.mxu0 0.0
    %792 = vmatpush1.msra.mxu0 0.0
    %793 = vmatprep.subr.mxu0 0.0
    %794 = vmatpush1.msra.mxu0 0.0
    %795 = vmatprep.subr.mxu0 0.0
    %796 = vmatpush1.msra.mxu0 0.0
    %797 = vmatprep.subr.mxu0 0.0
    %798 = vmatpush1.msra.mxu0 0.0
    %799 = vmatprep.subr.mxu0 0.0
    %800 = vmatpush1.msra.mxu0 0.0
    %801 = vmatprep.subr.mxu0 0.0
    %802 = vmatpush1.msra.mxu0 0.0
    %803 = vmatprep.subr.mxu0 0.0
    %804 = vmatpush1.msra.mxu0 0.0
    %805 = vmatprep.subr.mxu0 0.0
    %806 = vmatpush1.msra.mxu0 0.0
    %807 = vmatprep.subr.mxu0 0.0
    %808 = vmatpush1.msra.mxu0 0.0
    %809 = vmatprep.subr.mxu0 0.0
    %810 = vmatpush1.msra.mxu0 0.0
    %811 = vmatprep.subr.mxu0 0.0
    %812 = vmatpush1.msra.mxu0 0.0
    %813 = vmatprep.subr.mxu0 0.0
    %814 = vmatpush1.msra.mxu0 0.0
    %815 = vmatprep.subr.mxu0 0.0
    %816 = vmatpush1.msra.mxu0 0.0
    %817 = vmatprep.subr.mxu0 0.0
    %818 = vmatpush1.msra.mxu0 0.0
    %819 = vmatprep.mubr.f32.mxu0 0.0
    %820 = vmatmul.mubr.f32.gmra.mrb[0].mxu0 %v744
    %v821 = vpop.f32.mrb[0].mxu0
    %v822 = vadd.f32 %v725, %v821
    %v823 = vpop.f32.mrb[0].mxu0
    %824 = vmatprep.mubr.f32.mxu0 0.0
    %825 = vmatmul.mubr.f32.gmra.mrb[0].mxu0 %v747
    %v826 = vpop.f32.mrb[0].mxu0
    %v827 = vadd.f32 %v730, %v826
    %v828 = vpop.f32.mrb[0].mxu0
    %829 = vmatprep.mubr.f32.mxu0 0.0
    %830 = vmatmul.mubr.f32.gmra.mrb[0].mxu0 %v750
    %v831 = vpop.f32.mrb[0].mxu0
    %v832 = vadd.f32 %v735, %v831
    %v833 = vpop.f32.mrb[0].mxu0
    %834 = vmatprep.mubr.f32.mxu0 0.0
    %835 = vmatmul.mubr.f32.gmra.mrb[0].mxu0 %v753
    %v836 = vpop.f32.mrb[0].mxu0
    %v837 = vadd.f32 %v740, %v836
    %v838 = vpop.f32.mrb[0].mxu0
    %839 = vdwg.mxu0
    %v840 = vtanh.pop %v822
    %v841 = vtanh.pop %v827
    %v842 = vtanh.pop %v832
    %v843 = vtanh.pop %v837
    %v844 = vld [vmem:[%s1] sm:$0x1]
    %v846 = vlaneseq
    %v847 = vshrl.u32 %v846, 7
    %v848 = vsub.s32 0, %v847
    %v849 = vrot.slane %v844, %v848
    %v851 = vmul.f32 %v849, %v840
    %v852 = vmul.f32 %v849, %v841
    %v853 = vmul.f32 %v849, %v842
    %v854 = vmul.f32 %v849, %v843
    %v855 = vadd.f32 %v492, %v851
    %v856 = vadd.f32 %v493, %v852
    %v857 = vadd.f32 %v494, %v853
    %v858 = vadd.f32 %v495, %v854
    %v859 = vld [vmem:[#allocation7] sm:$0xff]
    %v860 = vld [vmem:[#allocation7 + $0x8] sm:$0xff]
    %v861 = vld [vmem:[#allocation7 + $0x10] sm:$0xff]
    %v862 = vld [vmem:[#allocation7 + $0x18] sm:$0xff]
    %v863 = vld [vmem:[#allocation7 + $0x20] sm:$0xff]
    %v864 = vld [vmem:[#allocation7 + $0x28] sm:$0xff]
    %v865 = vld [vmem:[#allocation7 + $0x30] sm:$0xff]
    %v866 = vld [vmem:[#allocation7 + $0x38] sm:$0xff]
    %v867 = vld [vmem:[#allocation7 + $0x40] sm:$0xff]
    %v868 = vld [vmem:[#allocation7 + $0x48] sm:$0xff]
    %v869 = vld [vmem:[#allocation7 + $0x50] sm:$0xff]
    %v870 = vld [vmem:[#allocation7 + $0x58] sm:$0xff]
    %v871 = vld [vmem:[#allocation7 + $0x60] sm:$0xff]
    %v872 = vld [vmem:[#allocation7 + $0x68] sm:$0xff]
    %v873 = vld [vmem:[%s15] sm:$0xff]
    %v874 = vld [vmem:[%s15 + $0x8] sm:$0xff]
    %v875 = vld [vmem:[%s15 + $0x10] sm:$0xff]
    %v876 = vld [vmem:[%s15 + $0x18] sm:$0xff]
    %v877 = vld [vmem:[%s15 + $0x20] sm:$0xff]
    %v878 = vld [vmem:[%s15 + $0x28] sm:$0xff]
    %v879 = vld [vmem:[%s15 + $0x30] sm:$0xff]
    %v880 = vld [vmem:[%s15 + $0x38] sm:$0xff]
    %v881 = vld [vmem:[%s15 + $0x40] sm:$0xff]
    %v882 = vld [vmem:[%s15 + $0x48] sm:$0xff]
    %v883 = vld [vmem:[%s15 + $0x50] sm:$0xff]
    %v884 = vld [vmem:[%s15 + $0x58] sm:$0xff]
    %v885 = vld [vmem:[%s15 + $0x60] sm:$0xff]
    %v886 = vld [vmem:[%s15 + $0x68] sm:$0xff]
    %888 = vset.pattern.permute.xlu0 0
    %889 = vperm.xlu0 %888, %v873
    %v890 = vpop.permute.xlu0 %889
    %893 = vset.pattern.permute.xlu0 0
    %894 = vperm.xlu0 %893, %v874
    %v895 = vpop.permute.xlu0 %894
    %898 = vset.pattern.permute.xlu0 0
    %899 = vperm.xlu0 %898, %v875
    %v900 = vpop.permute.xlu0 %899
    %903 = vset.pattern.permute.xlu0 0
    %904 = vperm.xlu0 %903, %v876
    %v905 = vpop.permute.xlu0 %904
    %908 = vset.pattern.permute.xlu0 0
    %909 = vperm.xlu0 %908, %v877
    %v910 = vpop.permute.xlu0 %909
    %913 = vset.pattern.permute.xlu0 0
    %914 = vperm.xlu0 %913, %v878
    %v915 = vpop.permute.xlu0 %914
    %918 = vset.pattern.permute.xlu0 0
    %919 = vperm.xlu0 %918, %v879
    %v920 = vpop.permute.xlu0 %919
    %923 = vset.pattern.permute.xlu0 0
    %924 = vperm.xlu0 %923, %v880
    %v925 = vpop.permute.xlu0 %924
    %928 = vset.pattern.permute.xlu0 0
    %929 = vperm.xlu0 %928, %v881
    %v930 = vpop.permute.xlu0 %929
    %933 = vset.pattern.permute.xlu0 0
    %934 = vperm.xlu0 %933, %v882
    %v935 = vpop.permute.xlu0 %934
    %938 = vset.pattern.permute.xlu0 0
    %939 = vperm.xlu0 %938, %v883
    %v940 = vpop.permute.xlu0 %939
    %943 = vset.pattern.permute.xlu0 0
    %944 = vperm.xlu0 %943, %v884
    %v945 = vpop.permute.xlu0 %944
    %948 = vset.pattern.permute.xlu0 0
    %949 = vperm.xlu0 %948, %v885
    %v950 = vpop.permute.xlu0 %949
    %953 = vset.pattern.permute.xlu0 0
    %954 = vperm.xlu0 %953, %v886
    %v955 = vpop.permute.xlu0 %954
    %v958 = vsel %vm552, %v859, 0
    %v961 = vsel %vm552, %v860, 0
    %v964 = vsel %vm552, %v861, 0
    %v967 = vsel %vm552, %v862, 0
    %v970 = vsel %vm552, %v863, 0
    %v973 = vsel %vm552, %v864, 0
    %v976 = vsel %vm552, %v865, 0
    %v979 = vsel %vm552, %v866, 0
    %v982 = vsel %vm552, %v867, 0
    %v985 = vsel %vm552, %v868, 0
    %v988 = vsel %vm552, %v869, 0
    %v991 = vsel %vm552, %v870, 0
    %v994 = vsel %vm552, %v871, 0
    %v997 = vsel %vm552, %v872, 0
    %999 = vmatprep.subr.mxu0 0.0
    %1000 = vmatpush1.msra.mxu0 %v855
    %1001 = vmatprep.subr.mxu0 0.0
    %1002 = vmatpush1.msra.mxu0 %v856
    %1003 = vmatprep.subr.mxu0 0.0
    %1004 = vmatpush1.msra.mxu0 %v857
    %1005 = vmatprep.subr.mxu0 0.0
    %1006 = vmatpush1.msra.mxu0 %v858
    %1007 = vmatprep.subr.mxu0 0.0
    %1008 = vmatpush1.msra.mxu0 0.0
    %1009 = vmatprep.subr.mxu0 0.0
    %1010 = vmatpush1.msra.mxu0 0.0
    %1011 = vmatprep.subr.mxu0 0.0
    %1012 = vmatpush1.msra.mxu0 0.0
    %1013 = vmatprep.subr.mxu0 0.0
    %1014 = vmatpush1.msra.mxu0 0.0
    %1015 = vmatprep.subr.mxu0 0.0
    %1016 = vmatpush1.msra.mxu0 0.0
    %1017 = vmatprep.subr.mxu0 0.0
    %1018 = vmatpush1.msra.mxu0 0.0
    %1019 = vmatprep.subr.mxu0 0.0
    %1020 = vmatpush1.msra.mxu0 0.0
    %1021 = vmatprep.subr.mxu0 0.0
    %1022 = vmatpush1.msra.mxu0 0.0
    %1023 = vmatprep.subr.mxu0 0.0
    %1024 = vmatpush1.msra.mxu0 0.0
    %1025 = vmatprep.subr.mxu0 0.0
    %1026 = vmatpush1.msra.mxu0 0.0
    %1027 = vmatprep.subr.mxu0 0.0
    %1028 = vmatpush1.msra.mxu0 0.0
    %1029 = vmatprep.subr.mxu0 0.0
    %1030 = vmatpush1.msra.mxu0 0.0
    %1031 = vmatprep.subr.mxu0 0.0
    %1032 = vmatpush1.msra.mxu0 0.0
    %1033 = vmatprep.subr.mxu0 0.0
    %1034 = vmatpush1.msra.mxu0 0.0
    %1035 = vmatprep.subr.mxu0 0.0
    %1036 = vmatpush1.msra.mxu0 0.0
    %1037 = vmatprep.subr.mxu0 0.0
    %1038 = vmatpush1.msra.mxu0 0.0
    %1039 = vmatprep.subr.mxu0 0.0
    %1040 = vmatpush1.msra.mxu0 0.0
    %1041 = vmatprep.subr.mxu0 0.0
    %1042 = vmatpush1.msra.mxu0 0.0
    %1043 = vmatprep.subr.mxu0 0.0
    %1044 = vmatpush1.msra.mxu0 0.0
    %1045 = vmatprep.subr.mxu0 0.0
    %1046 = vmatpush1.msra.mxu0 0.0
    %1047 = vmatprep.subr.mxu0 0.0
    %1048 = vmatpush1.msra.mxu0 0.0
    %1049 = vmatprep.subr.mxu0 0.0
    %1050 = vmatpush1.msra.mxu0 0.0
    %1051 = vmatprep.subr.mxu0 0.0
    %1052 = vmatpush1.msra.mxu0 0.0
    %1053 = vmatprep.subr.mxu0 0.0
    %1054 = vmatpush1.msra.mxu0 0.0
    %1055 = vmatprep.subr.mxu0 0.0
    %1056 = vmatpush1.msra.mxu0 0.0
    %1057 = vmatprep.subr.mxu0 0.0
    %1058 = vmatpush1.msra.mxu0 0.0
    %1059 = vmatprep.subr.mxu0 0.0
    %1060 = vmatpush1.msra.mxu0 0.0
    %1061 = vmatprep.subr.mxu0 0.0
    %1062 = vmatpush1.msra.mxu0 0.0
    %1063 = vmatprep.mubr.f32.mxu0 0.0
    %1064 = vmatmul.mubr.f32.gmra.mrb[0].mxu0 %v958
    %v1065 = vpop.f32.mrb[0].mxu0
    %v1066 = vadd.f32 %v890, %v1065
    %v1067 = vpop.f32.mrb[0].mxu0
    %1068 = vmatprep.mubr.f32.mxu0 0.0
    %1069 = vmatmul.mubr.f32.gmra.mrb[0].mxu0 %v961
    %v1070 = vpop.f32.mrb[0].mxu0
    %v1071 = vadd.f32 %v895, %v1070
    %v1072 = vpop.f32.mrb[0].mxu0
    %1073 = vmatprep.mubr.f32.mxu0 0.0
    %1074 = vmatmul.mubr.f32.gmra.mrb[0].mxu0 %v964
    %v1075 = vpop.f32.mrb[0].mxu0
    %v1076 = vadd.f32 %v900, %v1075
    %v1077 = vpop.f32.mrb[0].mxu0
    %1078 = vmatprep.mubr.f32.mxu0 0.0
    %1079 = vmatmul.mubr.f32.gmra.mrb[0].mxu0 %v967
    %v1080 = vpop.f32.mrb[0].mxu0
    %v1081 = vadd.f32 %v905, %v1080
    %v1082 = vpop.f32.mrb[0].mxu0
    %1083 = vmatprep.mubr.f32.mxu0 0.0
    %1084 = vmatmul.mubr.f32.gmra.mrb[0].mxu0 %v970
    %v1085 = vpop.f32.mrb[0].mxu0
    %v1086 = vadd.f32 %v910, %v1085
    %v1087 = vpop.f32.mrb[0].mxu0
    %1088 = vmatprep.mubr.f32.mxu0 0.0
    %1089 = vmatmul.mubr.f32.gmra.mrb[0].mxu0 %v973
    %v1090 = vpop.f32.mrb[0].mxu0
    %v1091 = vadd.f32 %v915, %v1090
    %v1092 = vpop.f32.mrb[0].mxu0
    %1093 = vmatprep.mubr.f32.mxu0 0.0
    %1094 = vmatmul.mubr.f32.gmra.mrb[0].mxu0 %v976
    %v1095 = vpop.f32.mrb[0].mxu0
    %v1096 = vadd.f32 %v920, %v1095
    %v1097 = vpop.f32.mrb[0].mxu0
    %1098 = vmatprep.mubr.f32.mxu0 0.0
    %1099 = vmatmul.mubr.f32.gmra.mrb[0].mxu0 %v979
    %v1100 = vpop.f32.mrb[0].mxu0
    %v1101 = vadd.f32 %v925, %v1100
    %v1102 = vpop.f32.mrb[0].mxu0
    %1103 = vmatprep.mubr.f32.mxu0 0.0
    %1104 = vmatmul.mubr.f32.gmra.mrb[0].mxu0 %v982
    %v1105 = vpop.f32.mrb[0].mxu0
    %v1106 = vadd.f32 %v930, %v1105
    %v1107 = vpop.f32.mrb[0].mxu0
    %1108 = vmatprep.mubr.f32.mxu0 0.0
    %1109 = vmatmul.mubr.f32.gmra.mrb[0].mxu0 %v985
    %v1110 = vpop.f32.mrb[0].mxu0
    %v1111 = vadd.f32 %v935, %v1110
    %v1112 = vpop.f32.mrb[0].mxu0
    %1113 = vmatprep.mubr.f32.mxu0 0.0
    %1114 = vmatmul.mubr.f32.gmra.mrb[0].mxu0 %v988
    %v1115 = vpop.f32.mrb[0].mxu0
    %v1116 = vadd.f32 %v940, %v1115
    %v1117 = vpop.f32.mrb[0].mxu0
    %1118 = vmatprep.mubr.f32.mxu0 0.0
    %1119 = vmatmul.mubr.f32.gmra.mrb[0].mxu0 %v991
    %v1120 = vpop.f32.mrb[0].mxu0
    %v1121 = vadd.f32 %v945, %v1120
    %v1122 = vpop.f32.mrb[0].mxu0
    %1123 = vmatprep.mubr.f32.mxu0 0.0
    %1124 = vmatmul.mubr.f32.gmra.mrb[0].mxu0 %v994
    %v1125 = vpop.f32.mrb[0].mxu0
    %v1126 = vadd.f32 %v950, %v1125
    %v1127 = vpop.f32.mrb[0].mxu0
    %1128 = vmatprep.mubr.f32.mxu0 0.0
    %1129 = vmatmul.mubr.f32.gmra.mrb[0].mxu0 %v997
    %v1130 = vpop.f32.mrb[0].mxu0
    %v1131 = vadd.f32 %v955, %v1130
    %v1132 = vpop.f32.mrb[0].mxu0
    %1133 = vdwg.mxu0
    %v1134 = vld [vmem:[%s17] sm:$0xff]
    %v1135 = vld [vmem:[%s17 + $0x8] sm:$0xff]
    %v1136 = vld [vmem:[%s17 + $0x10] sm:$0xff]
    %v1137 = vld [vmem:[%s17 + $0x18] sm:$0xff]
    %v1138 = vld [vmem:[#allocation13] sm:$0xff]
    %v1139 = vld [vmem:[#allocation13 + $0x8] sm:$0xff]
    %vm1140 = vcmask 130048
    %v1142 = vsel %vm1140, %v1066, 0
    %v1145 = vsel %vm1140, %v1071, 0
    %v1148 = vsel %vm1140, %v1076, 0
    %v1151 = vsel %vm1140, %v1081, 0
    %1153 = vmatprep.subr.mxu0 0.0
    %1154 = vmatpush1.msra.mxu0 %v1138
    %1155 = vmatprep.subr.mxu0 0.0
    %1156 = vmatpush1.msra.mxu0 %v1139
    %1157 = vmatprep.subr.mxu0 0.0
    %1158 = vmatpush1.msra.mxu0 0.0
    %1159 = vmatprep.subr.mxu0 0.0
    %1160 = vmatpush1.msra.mxu0 0.0
    %1161 = vmatprep.subr.mxu0 0.0
    %1162 = vmatpush1.msra.mxu0 0.0
    %1163 = vmatprep.subr.mxu0 0.0
    %1164 = vmatpush1.msra.mxu0 0.0
    %1165 = vmatprep.subr.mxu0 0.0
    %1166 = vmatpush1.msra.mxu0 0.0
    %1167 = vmatprep.subr.mxu0 0.0
    %1168 = vmatpush1.msra.mxu0 0.0
    %1169 = vmatprep.subr.mxu0 0.0
    %1170 = vmatpush1.msra.mxu0 0.0
    %1171 = vmatprep.subr.mxu0 0.0
    %1172 = vmatpush1.msra.mxu0 0.0
    %1173 = vmatprep.subr.mxu0 0.0
    %1174 = vmatpush1.msra.mxu0 0.0
    %1175 = vmatprep.subr.mxu0 0.0
    %1176 = vmatpush1.msra.mxu0 0.0
    %1177 = vmatprep.subr.mxu0 0.0
    %1178 = vmatpush1.msra.mxu0 0.0
    %1179 = vmatprep.subr.mxu0 0.0
    %1180 = vmatpush1.msra.mxu0 0.0
    %1181 = vmatprep.subr.mxu0 0.0
    %1182 = vmatpush1.msra.mxu0 0.0
    %1183 = vmatprep.subr.mxu0 0.0
    %1184 = vmatpush1.msra.mxu0 0.0
    %1185 = vmatprep.subr.mxu0 0.0
    %1186 = vmatpush1.msra.mxu0 0.0
    %1187 = vmatprep.subr.mxu0 0.0
    %1188 = vmatpush1.msra.mxu0 0.0
    %1189 = vmatprep.subr.mxu0 0.0
    %1190 = vmatpush1.msra.mxu0 0.0
    %1191 = vmatprep.subr.mxu0 0.0
    %1192 = vmatpush1.msra.mxu0 0.0
    %1193 = vmatprep.subr.mxu0 0.0
    %1194 = vmatpush1.msra.mxu0 0.0
    %1195 = vmatprep.subr.mxu0 0.0
    %1196 = vmatpush1.msra.mxu0 0.0
    %1197 = vmatprep.subr.mxu0 0.0
    %1198 = vmatpush1.msra.mxu0 0.0
    %1199 = vmatprep.subr.mxu0 0.0
    %1200 = vmatpush1.msra.mxu0 0.0
    %1201 = vmatprep.subr.mxu0 0.0
    %1202 = vmatpush1.msra.mxu0 0.0
    %1203 = vmatprep.subr.mxu0 0.0
    %1204 = vmatpush1.msra.mxu0 0.0
    %1205 = vmatprep.subr.mxu0 0.0
    %1206 = vmatpush1.msra.mxu0 0.0
    %1207 = vmatprep.subr.mxu0 0.0
    %1208 = vmatpush1.msra.mxu0 0.0
    %1209 = vmatprep.subr.mxu0 0.0
    %1210 = vmatpush1.msra.mxu0 0.0
    %1211 = vmatprep.subr.mxu0 0.0
    %1212 = vmatpush1.msra.mxu0 0.0
    %1213 = vmatprep.subr.mxu0 0.0
    %1214 = vmatpush1.msra.mxu0 0.0
    %1215 = vmatprep.subr.mxu0 0.0
    %1216 = vmatpush1.msra.mxu0 0.0
    %1217 = vmatprep.mubr.f32.mxu0 0.0
    %1218 = vmatmul.mubr.f32.gmra.mrb[0].mxu0 %v1142
    %v1219 = vpop.f32.mrb[0].mxu0
    %v1220 = vadd.f32 0.0, %v1219
    %v1221 = vpop.f32.mrb[0].mxu0
    %1222 = vmatprep.mubr.f32.mxu0 0.0
    %1223 = vmatmul.mubr.f32.gmra.mrb[0].mxu0 %v1145
    %v1224 = vpop.f32.mrb[0].mxu0
    %v1225 = vadd.f32 0.0, %v1224
    %v1226 = vpop.f32.mrb[0].mxu0
    %1227 = vmatprep.mubr.f32.mxu0 0.0
    %1228 = vmatmul.mubr.f32.gmra.mrb[0].mxu0 %v1148
    %v1229 = vpop.f32.mrb[0].mxu0
    %v1230 = vadd.f32 0.0, %v1229
    %v1231 = vpop.f32.mrb[0].mxu0
    %1232 = vmatprep.mubr.f32.mxu0 0.0
    %1233 = vmatmul.mubr.f32.gmra.mrb[0].mxu0 %v1151
    %v1234 = vpop.f32.mrb[0].mxu0
    %v1235 = vadd.f32 0.0, %v1234
    %v1236 = vpop.f32.mrb[0].mxu0
    %1237 = vdwg.mxu0
    %v1238 = vmul.f32 %v1134, %v1220
    %v1239 = vmul.f32 %v1135, %v1225
    %v1240 = vmul.f32 %v1136, %v1230
    %v1241 = vmul.f32 %v1137, %v1235
    %v1242 = vld [vmem:[#allocation11] sm:$0xff]
    %v1243 = vld [vmem:[#allocation11 + $0x8] sm:$0xff]
    %v1244 = vld [vmem:[#allocation11 + $0x10] sm:$0xff]
    %v1245 = vld [vmem:[#allocation11 + $0x18] sm:$0xff]
    %v1246 = vmul.f32 %v1220, %v1220
    %v1247 = vmul.f32 %v1225, %v1225
    %v1248 = vmul.f32 %v1230, %v1230
    %v1249 = vmul.f32 %v1235, %v1235
    %v1251 = vsel %vm552, %v1242, 0
    %v1254 = vsel %vm552, %v1243, 0
    %v1257 = vsel %vm552, %v1244, 0
    %v1260 = vsel %vm552, %v1245, 0
    %1262 = vmatprep.subr.mxu0 0.0
    %1263 = vmatpush1.msra.mxu0 %v1246
    %1264 = vmatprep.subr.mxu0 0.0
    %1265 = vmatpush1.msra.mxu0 %v1247
    %1266 = vmatprep.subr.mxu0 0.0
    %1267 = vmatpush1.msra.mxu0 %v1248
    %1268 = vmatprep.subr.mxu0 0.0
    %1269 = vmatpush1.msra.mxu0 %v1249
    %1270 = vmatprep.subr.mxu0 0.0
    %1271 = vmatpush1.msra.mxu0 0.0
    %1272 = vmatprep.subr.mxu0 0.0
    %1273 = vmatpush1.msra.mxu0 0.0
    %1274 = vmatprep.subr.mxu0 0.0
    %1275 = vmatpush1.msra.mxu0 0.0
    %1276 = vmatprep.subr.mxu0 0.0
    %1277 = vmatpush1.msra.mxu0 0.0
    %1278 = vmatprep.subr.mxu0 0.0
    %1279 = vmatpush1.msra.mxu0 0.0
    %1280 = vmatprep.subr.mxu0 0.0
    %1281 = vmatpush1.msra.mxu0 0.0
    %1282 = vmatprep.subr.mxu0 0.0
    %1283 = vmatpush1.msra.mxu0 0.0
    %1284 = vmatprep.subr.mxu0 0.0
    %1285 = vmatpush1.msra.mxu0 0.0
    %1286 = vmatprep.subr.mxu0 0.0
    %1287 = vmatpush1.msra.mxu0 0.0
    %1288 = vmatprep.subr.mxu0 0.0
    %1289 = vmatpush1.msra.mxu0 0.0
    %1290 = vmatprep.subr.mxu0 0.0
    %1291 = vmatpush1.msra.mxu0 0.0
    %1292 = vmatprep.subr.mxu0 0.0
    %1293 = vmatpush1.msra.mxu0 0.0
    %1294 = vmatprep.subr.mxu0 0.0
    %1295 = vmatpush1.msra.mxu0 0.0
    %1296 = vmatprep.subr.mxu0 0.0
    %1297 = vmatpush1.msra.mxu0 0.0
    %1298 = vmatprep.subr.mxu0 0.0
    %1299 = vmatpush1.msra.mxu0 0.0
    %1300 = vmatprep.subr.mxu0 0.0
    %1301 = vmatpush1.msra.mxu0 0.0
    %1302 = vmatprep.subr.mxu0 0.0
    %1303 = vmatpush1.msra.mxu0 0.0
    %1304 = vmatprep.subr.mxu0 0.0
    %1305 = vmatpush1.msra.mxu0 0.0
    %1306 = vmatprep.subr.mxu0 0.0
    %1307 = vmatpush1.msra.mxu0 0.0
    %1308 = vmatprep.subr.mxu0 0.0
    %1309 = vmatpush1.msra.mxu0 0.0
    %1310 = vmatprep.subr.mxu0 0.0
    %1311 = vmatpush1.msra.mxu0 0.0
    %1312 = vmatprep.subr.mxu0 0.0
    %1313 = vmatpush1.msra.mxu0 0.0
    %1314 = vmatprep.subr.mxu0 0.0
    %1315 = vmatpush1.msra.mxu0 0.0
    %1316 = vmatprep.subr.mxu0 0.0
    %1317 = vmatpush1.msra.mxu0 0.0
    %1318 = vmatprep.subr.mxu0 0.0
    %1319 = vmatpush1.msra.mxu0 0.0
    %1320 = vmatprep.subr.mxu0 0.0
    %1321 = vmatpush1.msra.mxu0 0.0
    %1322 = vmatprep.subr.mxu0 0.0
    %1323 = vmatpush1.msra.mxu0 0.0
    %1324 = vmatprep.subr.mxu0 0.0
    %1325 = vmatpush1.msra.mxu0 0.0
    %1326 = vmatprep.mubr.f32.mxu0 0.0
    %1327 = vmatmul.mubr.f32.gmra.mrb[0].mxu0 %v1251
    %v1328 = vpop.f32.mrb[0].mxu0
    %v1329 = vadd.f32 1e-08, %v1328
    %v1330 = vpop.f32.mrb[0].mxu0
    %1331 = vmatprep.mubr.f32.mxu0 0.0
    %1332 = vmatmul.mubr.f32.gmra.mrb[0].mxu0 %v1254
    %v1333 = vpop.f32.mrb[0].mxu0
    %v1334 = vadd.f32 1e-08, %v1333
    %v1335 = vpop.f32.mrb[0].mxu0
    %1336 = vmatprep.mubr.f32.mxu0 0.0
    %1337 = vmatmul.mubr.f32.gmra.mrb[0].mxu0 %v1257
    %v1338 = vpop.f32.mrb[0].mxu0
    %v1339 = vadd.f32 1e-08, %v1338
    %v1340 = vpop.f32.mrb[0].mxu0
    %1341 = vmatprep.mubr.f32.mxu0 0.0
    %1342 = vmatmul.mubr.f32.gmra.mrb[0].mxu0 %v1260
    %v1343 = vpop.f32.mrb[0].mxu0
    %v1344 = vadd.f32 1e-08, %v1343
    %v1345 = vpop.f32.mrb[0].mxu0
    %1346 = vdwg.mxu0
    %v1347 = vrsqrt.pop %v1329
    %v1348 = vrsqrt.pop %v1334
    %v1349 = vrsqrt.pop %v1339
    %v1350 = vrsqrt.pop %v1344
    %v1351 = vld [vmem:[#allocation14] sm:$0xff]
    %v1352 = vld [vmem:[#allocation14 + $0x8] sm:$0xff]
    %v1353 = vld [vmem:[#allocation14 + $0x10] sm:$0xff]
    %v1354 = vld [vmem:[#allocation14 + $0x18] sm:$0xff]
    %v1356 = vsel %vm552, %v1238, 0
    %v1359 = vsel %vm552, %v1239, 0
    %v1362 = vsel %vm552, %v1240, 0
    %v1365 = vsel %vm552, %v1241, 0
    %1367 = vmatprep.subr.mxu0 0.0
    %1368 = vmatpush1.msra.mxu0 %v1351
    %1369 = vmatprep.subr.mxu0 0.0
    %1370 = vmatpush1.msra.mxu0 %v1352
    %1371 = vmatprep.subr.mxu0 0.0
    %1372 = vmatpush1.msra.mxu0 %v1353
    %1373 = vmatprep.subr.mxu0 0.0
    %1374 = vmatpush1.msra.mxu0 %v1354
    %1375 = vmatprep.subr.mxu0 0.0
    %1376 = vmatpush1.msra.mxu0 0.0
    %1377 = vmatprep.subr.mxu0 0.0
    %1378 = vmatpush1.msra.mxu0 0.0
    %1379 = vmatprep.subr.mxu0 0.0
    %1380 = vmatpush1.msra.mxu0 0.0
    %1381 = vmatprep.subr.mxu0 0.0
    %1382 = vmatpush1.msra.mxu0 0.0
    %1383 = vmatprep.subr.mxu0 0.0
    %1384 = vmatpush1.msra.mxu0 0.0
    %1385 = vmatprep.subr.mxu0 0.0
    %1386 = vmatpush1.msra.mxu0 0.0
    %1387 = vmatprep.subr.mxu0 0.0
    %1388 = vmatpush1.msra.mxu0 0.0
    %1389 = vmatprep.subr.mxu0 0.0
    %1390 = vmatpush1.msra.mxu0 0.0
    %1391 = vmatprep.subr.mxu0 0.0
    %1392 = vmatpush1.msra.mxu0 0.0
    %1393 = vmatprep.subr.mxu0 0.0
    %1394 = vmatpush1.msra.mxu0 0.0
    %1395 = vmatprep.subr.mxu0 0.0
    %1396 = vmatpush1.msra.mxu0 0.0
    %1397 = vmatprep.subr.mxu0 0.0
    %1398 = vmatpush1.msra.mxu0 0.0
    %1399 = vmatprep.subr.mxu0 0.0
    %1400 = vmatpush1.msra.mxu0 0.0
    %1401 = vmatprep.subr.mxu0 0.0
    %1402 = vmatpush1.msra.mxu0 0.0
    %1403 = vmatprep.subr.mxu0 0.0
    %1404 = vmatpush1.msra.mxu0 0.0
    %1405 = vmatprep.subr.mxu0 0.0
    %1406 = vmatpush1.msra.mxu0 0.0
    %1407 = vmatprep.subr.mxu0 0.0
    %1408 = vmatpush1.msra.mxu0 0.0
    %1409 = vmatprep.subr.mxu0 0.0
    %1410 = vmatpush1.msra.mxu0 0.0
    %1411 = vmatprep.subr.mxu0 0.0
    %1412 = vmatpush1.msra.mxu0 0.0
    %1413 = vmatprep.subr.mxu0 0.0
    %1414 = vmatpush1.msra.mxu0 0.0
    %1415 = vmatprep.subr.mxu0 0.0
    %1416 = vmatpush1.msra.mxu0 0.0
    %1417 = vmatprep.subr.mxu0 0.0
    %1418 = vmatpush1.msra.mxu0 0.0
    %1419 = vmatprep.subr.mxu0 0.0
    %1420 = vmatpush1.msra.mxu0 0.0
    %1421 = vmatprep.subr.mxu0 0.0
    %1422 = vmatpush1.msra.mxu0 0.0
    %1423 = vmatprep.subr.mxu0 0.0
    %1424 = vmatpush1.msra.mxu0 0.0
    %1425 = vmatprep.subr.mxu0 0.0
    %1426 = vmatpush1.msra.mxu0 0.0
    %1427 = vmatprep.subr.mxu0 0.0
    %1428 = vmatpush1.msra.mxu0 0.0
    %1429 = vmatprep.subr.mxu0 0.0
    %1430 = vmatpush1.msra.mxu0 0.0
    %1431 = vmatprep.mubr.f32.mxu0 0.0
    %1432 = vmatmul.mubr.f32.gmra.mrb[0].mxu0 %v1356
    %v1433 = vpop.f32.mrb[0].mxu0
    %v1434 = vadd.f32 0.0, %v1433
    %v1435 = vpop.f32.mrb[0].mxu0
    %1436 = vmatprep.mubr.f32.mxu0 0.0
    %1437 = vmatmul.mubr.f32.gmra.mrb[0].mxu0 %v1359
    %v1438 = vpop.f32.mrb[0].mxu0
    %v1439 = vadd.f32 0.0, %v1438
    %v1440 = vpop.f32.mrb[0].mxu0
    %1441 = vmatprep.mubr.f32.mxu0 0.0
    %1442 = vmatmul.mubr.f32.gmra.mrb[0].mxu0 %v1362
    %v1443 = vpop.f32.mrb[0].mxu0
    %v1444 = vadd.f32 0.0, %v1443
    %v1445 = vpop.f32.mrb[0].mxu0
    %1446 = vmatprep.mubr.f32.mxu0 0.0
    %1447 = vmatmul.mubr.f32.gmra.mrb[0].mxu0 %v1365
    %v1448 = vpop.f32.mrb[0].mxu0
    %v1449 = vadd.f32 0.0, %v1448
    %v1450 = vpop.f32.mrb[0].mxu0
    %1451 = vdwg.mxu0
    %s1452 = scalar_lea.vmem [#allocation14], 32
    %v1453 = vld [vmem:[%s1452] sm:$0xff]
    %v1454 = vld [vmem:[%s1452 + $0x8] sm:$0xff]
    %v1455 = vld [vmem:[%s1452 + $0x10] sm:$0xff]
    %v1456 = vld [vmem:[%s1452 + $0x18] sm:$0xff]
    %1457 = vmatprep.subr.mxu0 0.0
    %1458 = vmatpush1.msra.mxu0 %v1453
    %1459 = vmatprep.subr.mxu0 0.0
    %1460 = vmatpush1.msra.mxu0 %v1454
    %1461 = vmatprep.subr.mxu0 0.0
    %1462 = vmatpush1.msra.mxu0 %v1455
    %1463 = vmatprep.subr.mxu0 0.0
    %1464 = vmatpush1.msra.mxu0 %v1456
    %1465 = vmatprep.subr.mxu0 0.0
    %1466 = vmatpush1.msra.mxu0 0.0
    %1467 = vmatprep.subr.mxu0 0.0
    %1468 = vmatpush1.msra.mxu0 0.0
    %1469 = vmatprep.subr.mxu0 0.0
    %1470 = vmatpush1.msra.mxu0 0.0
    %1471 = vmatprep.subr.mxu0 0.0
    %1472 = vmatpush1.msra.mxu0 0.0
    %1473 = vmatprep.subr.mxu0 0.0
    %1474 = vmatpush1.msra.mxu0 0.0
    %1475 = vmatprep.subr.mxu0 0.0
    %1476 = vmatpush1.msra.mxu0 0.0
    %1477 = vmatprep.subr.mxu0 0.0
    %1478 = vmatpush1.msra.mxu0 0.0
    %1479 = vmatprep.subr.mxu0 0.0
    %1480 = vmatpush1.msra.mxu0 0.0
    %1481 = vmatprep.subr.mxu0 0.0
    %1482 = vmatpush1.msra.mxu0 0.0
    %1483 = vmatprep.subr.mxu0 0.0
    %1484 = vmatpush1.msra.mxu0 0.0
    %1485 = vmatprep.subr.mxu0 0.0
    %1486 = vmatpush1.msra.mxu0 0.0
    %1487 = vmatprep.subr.mxu0 0.0
    %1488 = vmatpush1.msra.mxu0 0.0
    %1489 = vmatprep.subr.mxu0 0.0
    %1490 = vmatpush1.msra.mxu0 0.0
    %1491 = vmatprep.subr.mxu0 0.0
    %1492 = vmatpush1.msra.mxu0 0.0
    %1493 = vmatprep.subr.mxu0 0.0
    %1494 = vmatpush1.msra.mxu0 0.0
    %1495 = vmatprep.subr.mxu0 0.0
    %1496 = vmatpush1.msra.mxu0 0.0
    %1497 = vmatprep.subr.mxu0 0.0
    %1498 = vmatpush1.msra.mxu0 0.0
    %1499 = vmatprep.subr.mxu0 0.0
    %1500 = vmatpush1.msra.mxu0 0.0
    %1501 = vmatprep.subr.mxu0 0.0
    %1502 = vmatpush1.msra.mxu0 0.0
    %1503 = vmatprep.subr.mxu0 0.0
    %1504 = vmatpush1.msra.mxu0 0.0
    %1505 = vmatprep.subr.mxu0 0.0
    %1506 = vmatpush1.msra.mxu0 0.0
    %1507 = vmatprep.subr.mxu0 0.0
    %1508 = vmatpush1.msra.mxu0 0.0
    %1509 = vmatprep.subr.mxu0 0.0
    %1510 = vmatpush1.msra.mxu0 0.0
    %1511 = vmatprep.subr.mxu0 0.0
    %1512 = vmatpush1.msra.mxu0 0.0
    %1513 = vmatprep.subr.mxu0 0.0
    %1514 = vmatpush1.msra.mxu0 0.0
    %1515 = vmatprep.subr.mxu0 0.0
    %1516 = vmatpush1.msra.mxu0 0.0
    %1517 = vmatprep.subr.mxu0 0.0
    %1518 = vmatpush1.msra.mxu0 0.0
    %1519 = vmatprep.subr.mxu0 0.0
    %1520 = vmatpush1.msra.mxu0 0.0
    %1521 = vmatprep.mubr.f32.mxu0 0.0
    %1522 = vmatmul.mubr.f32.gmra.mrb[0].mxu0 %v1356
    %v1523 = vpop.f32.mrb[0].mxu0
    %v1524 = vadd.f32 0.0, %v1523
    %v1525 = vpop.f32.mrb[0].mxu0
    %1526 = vmatprep.mubr.f32.mxu0 0.0
    %1527 = vmatmul.mubr.f32.gmra.mrb[0].mxu0 %v1359
    %v1528 = vpop.f32.mrb[0].mxu0
    %v1529 = vadd.f32 0.0, %v1528
    %v1530 = vpop.f32.mrb[0].mxu0
    %1531 = vmatprep.mubr.f32.mxu0 0.0
    %1532 = vmatmul.mubr.f32.gmra.mrb[0].mxu0 %v1362
    %v1533 = vpop.f32.mrb[0].mxu0
    %v1534 = vadd.f32 0.0, %v1533
    %v1535 = vpop.f32.mrb[0].mxu0
    %1536 = vmatprep.mubr.f32.mxu0 0.0
    %1537 = vmatmul.mubr.f32.gmra.mrb[0].mxu0 %v1365
    %v1538 = vpop.f32.mrb[0].mxu0
    %v1539 = vadd.f32 0.0, %v1538
    %v1540 = vpop.f32.mrb[0].mxu0
    %1541 = vdwg.mxu0
    %s1542 = scalar_lea.vmem [#allocation14], 64
    %v1543 = vld [vmem:[%s1542] sm:$0xff]
    %v1544 = vld [vmem:[%s1542 + $0x8] sm:$0xff]
    %v1545 = vld [vmem:[%s1542 + $0x10] sm:$0xff]
    %v1546 = vld [vmem:[%s1542 + $0x18] sm:$0xff]
    %1547 = vmatprep.subr.mxu0 0.0
    %1548 = vmatpush1.msra.mxu0 %v1543
    %1549 = vmatprep.subr.mxu0 0.0
    %1550 = vmatpush1.msra.mxu0 %v1544
    %1551 = vmatprep.subr.mxu0 0.0
    %1552 = vmatpush1.msra.mxu0 %v1545
    %1553 = vmatprep.subr.mxu0 0.0
    %1554 = vmatpush1.msra.mxu0 %v1546
    %1555 = vmatprep.subr.mxu0 0.0
    %1556 = vmatpush1.msra.mxu0 0.0
    %1557 = vmatprep.subr.mxu0 0.0
    %1558 = vmatpush1.msra.mxu0 0.0
    %1559 = vmatprep.subr.mxu0 0.0
    %1560 = vmatpush1.msra.mxu0 0.0
    %1561 = vmatprep.subr.mxu0 0.0
    %1562 = vmatpush1.msra.mxu0 0.0
    %1563 = vmatprep.subr.mxu0 0.0
    %1564 = vmatpush1.msra.mxu0 0.0
    %1565 = vmatprep.subr.mxu0 0.0
    %1566 = vmatpush1.msra.mxu0 0.0
    %1567 = vmatprep.subr.mxu0 0.0
    %1568 = vmatpush1.msra.mxu0 0.0
    %1569 = vmatprep.subr.mxu0 0.0
    %1570 = vmatpush1.msra.mxu0 0.0
    %1571 = vmatprep.subr.mxu0 0.0
    %1572 = vmatpush1.msra.mxu0 0.0
    %1573 = vmatprep.subr.mxu0 0.0
    %1574 = vmatpush1.msra.mxu0 0.0
    %1575 = vmatprep.subr.mxu0 0.0
    %1576 = vmatpush1.msra.mxu0 0.0
    %1577 = vmatprep.subr.mxu0 0.0
    %1578 = vmatpush1.msra.mxu0 0.0
    %1579 = vmatprep.subr.mxu0 0.0
    %1580 = vmatpush1.msra.mxu0 0.0
    %1581 = vmatprep.subr.mxu0 0.0
    %1582 = vmatpush1.msra.mxu0 0.0
    %1583 = vmatprep.subr.mxu0 0.0
    %1584 = vmatpush1.msra.mxu0 0.0
    %1585 = vmatprep.subr.mxu0 0.0
    %1586 = vmatpush1.msra.mxu0 0.0
    %1587 = vmatprep.subr.mxu0 0.0
    %1588 = vmatpush1.msra.mxu0 0.0
    %1589 = vmatprep.subr.mxu0 0.0
    %1590 = vmatpush1.msra.mxu0 0.0
    %1591 = vmatprep.subr.mxu0 0.0
    %1592 = vmatpush1.msra.mxu0 0.0
    %1593 = vmatprep.subr.mxu0 0.0
    %1594 = vmatpush1.msra.mxu0 0.0
    %1595 = vmatprep.subr.mxu0 0.0
    %1596 = vmatpush1.msra.mxu0 0.0
    %1597 = vmatprep.subr.mxu0 0.0
    %1598 = vmatpush1.msra.mxu0 0.0
    %1599 = vmatprep.subr.mxu0 0.0
    %1600 = vmatpush1.msra.mxu0 0.0
    %1601 = vmatprep.subr.mxu0 0.0
    %1602 = vmatpush1.msra.mxu0 0.0
    %1603 = vmatprep.subr.mxu0 0.0
    %1604 = vmatpush1.msra.mxu0 0.0
    %1605 = vmatprep.subr.mxu0 0.0
    %1606 = vmatpush1.msra.mxu0 0.0
    %1607 = vmatprep.subr.mxu0 0.0
    %1608 = vmatpush1.msra.mxu0 0.0
    %1609 = vmatprep.subr.mxu0 0.0
    %1610 = vmatpush1.msra.mxu0 0.0
    %1611 = vmatprep.mubr.f32.mxu0 0.0
    %1612 = vmatmul.mubr.f32.gmra.mrb[0].mxu0 %v1356
    %v1613 = vpop.f32.mrb[0].mxu0
    %v1614 = vadd.f32 0.0, %v1613
    %v1615 = vpop.f32.mrb[0].mxu0
    %1616 = vmatprep.mubr.f32.mxu0 0.0
    %1617 = vmatmul.mubr.f32.gmra.mrb[0].mxu0 %v1359
    %v1618 = vpop.f32.mrb[0].mxu0
    %v1619 = vadd.f32 0.0, %v1618
    %v1620 = vpop.f32.mrb[0].mxu0
    %1621 = vmatprep.mubr.f32.mxu0 0.0
    %1622 = vmatmul.mubr.f32.gmra.mrb[0].mxu0 %v1362
    %v1623 = vpop.f32.mrb[0].mxu0
    %v1624 = vadd.f32 0.0, %v1623
    %v1625 = vpop.f32.mrb[0].mxu0
    %1626 = vmatprep.mubr.f32.mxu0 0.0
    %1627 = vmatmul.mubr.f32.gmra.mrb[0].mxu0 %v1365
    %v1628 = vpop.f32.mrb[0].mxu0
    %v1629 = vadd.f32 0.0, %v1628
    %v1630 = vpop.f32.mrb[0].mxu0
    %1631 = vdwg.mxu0
    %s1632 = scalar_lea.vmem [#allocation14], 96
    %v1633 = vld [vmem:[%s1632] sm:$0xff]
    %v1634 = vld [vmem:[%s1632 + $0x8] sm:$0xff]
    %v1635 = vld [vmem:[%s1632 + $0x10] sm:$0xff]
    %v1636 = vld [vmem:[%s1632 + $0x18] sm:$0xff]
    %1637 = vmatprep.subr.mxu0 0.0
    %1638 = vmatpush1.msra.mxu0 %v1633
    %1639 = vmatprep.subr.mxu0 0.0
    %1640 = vmatpush1.msra.mxu0 %v1634
    %1641 = vmatprep.subr.mxu0 0.0
    %1642 = vmatpush1.msra.mxu0 %v1635
    %1643 = vmatprep.subr.mxu0 0.0
    %1644 = vmatpush1.msra.mxu0 %v1636
    %1645 = vmatprep.subr.mxu0 0.0
    %1646 = vmatpush1.msra.mxu0 0.0
    %1647 = vmatprep.subr.mxu0 0.0
    %1648 = vmatpush1.msra.mxu0 0.0
    %1649 = vmatprep.subr.mxu0 0.0
    %1650 = vmatpush1.msra.mxu0 0.0
    %1651 = vmatprep.subr.mxu0 0.0
    %1652 = vmatpush1.msra.mxu0 0.0
    %1653 = vmatprep.subr.mxu0 0.0
    %1654 = vmatpush1.msra.mxu0 0.0
    %1655 = vmatprep.subr.mxu0 0.0
    %1656 = vmatpush1.msra.mxu0 0.0
    %1657 = vmatprep.subr.mxu0 0.0
    %1658 = vmatpush1.msra.mxu0 0.0
    %1659 = vmatprep.subr.mxu0 0.0
    %1660 = vmatpush1.msra.mxu0 0.0
    %1661 = vmatprep.subr.mxu0 0.0
    %1662 = vmatpush1.msra.mxu0 0.0
    %1663 = vmatprep.subr.mxu0 0.0
    %1664 = vmatpush1.msra.mxu0 0.0
    %1665 = vmatprep.subr.mxu0 0.0
    %1666 = vmatpush1.msra.mxu0 0.0
    %1667 = vmatprep.subr.mxu0 0.0
    %1668 = vmatpush1.msra.mxu0 0.0
    %1669 = vmatprep.subr.mxu0 0.0
    %1670 = vmatpush1.msra.mxu0 0.0
    %1671 = vmatprep.subr.mxu0 0.0
    %1672 = vmatpush1.msra.mxu0 0.0
    %1673 = vmatprep.subr.mxu0 0.0
    %1674 = vmatpush1.msra.mxu0 0.0
    %1675 = vmatprep.subr.mxu0 0.0
    %1676 = vmatpush1.msra.mxu0 0.0
    %1677 = vmatprep.subr.mxu0 0.0
    %1678 = vmatpush1.msra.mxu0 0.0
    %1679 = vmatprep.subr.mxu0 0.0
    %1680 = vmatpush1.msra.mxu0 0.0
    %1681 = vmatprep.subr.mxu0 0.0
    %1682 = vmatpush1.msra.mxu0 0.0
    %1683 = vmatprep.subr.mxu0 0.0
    %1684 = vmatpush1.msra.mxu0 0.0
    %1685 = vmatprep.subr.mxu0 0.0
    %1686 = vmatpush1.msra.mxu0 0.0
    %1687 = vmatprep.subr.mxu0 0.0
    %1688 = vmatpush1.msra.mxu0 0.0
    %1689 = vmatprep.subr.mxu0 0.0
    %1690 = vmatpush1.msra.mxu0 0.0
    %1691 = vmatprep.subr.mxu0 0.0
    %1692 = vmatpush1.msra.mxu0 0.0
    %1693 = vmatprep.subr.mxu0 0.0
    %1694 = vmatpush1.msra.mxu0 0.0
    %1695 = vmatprep.subr.mxu0 0.0
    %1696 = vmatpush1.msra.mxu0 0.0
    %1697 = vmatprep.subr.mxu0 0.0
    %1698 = vmatpush1.msra.mxu0 0.0
    %1699 = vmatprep.subr.mxu0 0.0
    %1700 = vmatpush1.msra.mxu0 0.0
    %1701 = vmatprep.mubr.f32.mxu0 0.0
    %1702 = vmatmul.mubr.f32.gmra.mrb[0].mxu0 %v1356
    %v1703 = vpop.f32.mrb[0].mxu0
    %v1704 = vadd.f32 0.0, %v1703
    %v1705 = vpop.f32.mrb[0].mxu0
    %1706 = vmatprep.mubr.f32.mxu0 0.0
    %1707 = vmatmul.mubr.f32.gmra.mrb[0].mxu0 %v1359
    %v1708 = vpop.f32.mrb[0].mxu0
    %v1709 = vadd.f32 0.0, %v1708
    %v1710 = vpop.f32.mrb[0].mxu0
    %1711 = vmatprep.mubr.f32.mxu0 0.0
    %1712 = vmatmul.mubr.f32.gmra.mrb[0].mxu0 %v1362
    %v1713 = vpop.f32.mrb[0].mxu0
    %v1714 = vadd.f32 0.0, %v1713
    %v1715 = vpop.f32.mrb[0].mxu0
    %1716 = vmatprep.mubr.f32.mxu0 0.0
    %1717 = vmatmul.mubr.f32.gmra.mrb[0].mxu0 %v1365
    %v1718 = vpop.f32.mrb[0].mxu0
    %v1719 = vadd.f32 0.0, %v1718
    %v1720 = vpop.f32.mrb[0].mxu0
    %1721 = vdwg.mxu0
    %s1722 = scalar_lea.vmem [#allocation14], 128
    %v1723 = vld [vmem:[%s1722] sm:$0xff]
    %v1724 = vld [vmem:[%s1722 + $0x8] sm:$0xff]
    %v1725 = vld [vmem:[%s1722 + $0x10] sm:$0xff]
    %v1726 = vld [vmem:[%s1722 + $0x18] sm:$0xff]
    %1727 = vmatprep.subr.mxu0 0.0
    %1728 = vmatpush1.msra.mxu0 %v1723
    %1729 = vmatprep.subr.mxu0 0.0
    %1730 = vmatpush1.msra.mxu0 %v1724
    %1731 = vmatprep.subr.mxu0 0.0
    %1732 = vmatpush1.msra.mxu0 %v1725
    %1733 = vmatprep.subr.mxu0 0.0
    %1734 = vmatpush1.msra.mxu0 %v1726
    %1735 = vmatprep.subr.mxu0 0.0
    %1736 = vmatpush1.msra.mxu0 0.0
    %1737 = vmatprep.subr.mxu0 0.0
    %1738 = vmatpush1.msra.mxu0 0.0
    %1739 = vmatprep.subr.mxu0 0.0
    %1740 = vmatpush1.msra.mxu0 0.0
    %1741 = vmatprep.subr.mxu0 0.0
    %1742 = vmatpush1.msra.mxu0 0.0
    %1743 = vmatprep.subr.mxu0 0.0
    %1744 = vmatpush1.msra.mxu0 0.0
    %1745 = vmatprep.subr.mxu0 0.0
    %1746 = vmatpush1.msra.mxu0 0.0
    %1747 = vmatprep.subr.mxu0 0.0
    %1748 = vmatpush1.msra.mxu0 0.0
    %1749 = vmatprep.subr.mxu0 0.0
    %1750 = vmatpush1.msra.mxu0 0.0
    %1751 = vmatprep.subr.mxu0 0.0
    %1752 = vmatpush1.msra.mxu0 0.0
    %1753 = vmatprep.subr.mxu0 0.0
    %1754 = vmatpush1.msra.mxu0 0.0
    %1755 = vmatprep.subr.mxu0 0.0
    %1756 = vmatpush1.msra.mxu0 0.0
    %1757 = vmatprep.subr.mxu0 0.0
    %1758 = vmatpush1.msra.mxu0 0.0
    %1759 = vmatprep.subr.mxu0 0.0
    %1760 = vmatpush1.msra.mxu0 0.0
    %1761 = vmatprep.subr.mxu0 0.0
    %1762 = vmatpush1.msra.mxu0 0.0
    %1763 = vmatprep.subr.mxu0 0.0
    %1764 = vmatpush1.msra.mxu0 0.0
    %1765 = vmatprep.subr.mxu0 0.0
    %1766 = vmatpush1.msra.mxu0 0.0
    %1767 = vmatprep.subr.mxu0 0.0
    %1768 = vmatpush1.msra.mxu0 0.0
    %1769 = vmatprep.subr.mxu0 0.0
    %1770 = vmatpush1.msra.mxu0 0.0
    %1771 = vmatprep.subr.mxu0 0.0
    %1772 = vmatpush1.msra.mxu0 0.0
    %1773 = vmatprep.subr.mxu0 0.0
    %1774 = vmatpush1.msra.mxu0 0.0
    %1775 = vmatprep.subr.mxu0 0.0
    %1776 = vmatpush1.msra.mxu0 0.0
    %1777 = vmatprep.subr.mxu0 0.0
    %1778 = vmatpush1.msra.mxu0 0.0
    %1779 = vmatprep.subr.mxu0 0.0
    %1780 = vmatpush1.msra.mxu0 0.0
    %1781 = vmatprep.subr.mxu0 0.0
    %1782 = vmatpush1.msra.mxu0 0.0
    %1783 = vmatprep.subr.mxu0 0.0
    %1784 = vmatpush1.msra.mxu0 0.0
    %1785 = vmatprep.subr.mxu0 0.0
    %1786 = vmatpush1.msra.mxu0 0.0
    %1787 = vmatprep.subr.mxu0 0.0
    %1788 = vmatpush1.msra.mxu0 0.0
    %1789 = vmatprep.subr.mxu0 0.0
    %1790 = vmatpush1.msra.mxu0 0.0
    %1791 = vmatprep.mubr.f32.mxu0 0.0
    %1792 = vmatmul.mubr.f32.gmra.mrb[0].mxu0 %v1356
    %v1793 = vpop.f32.mrb[0].mxu0
    %v1794 = vadd.f32 0.0, %v1793
    %v1795 = vpop.f32.mrb[0].mxu0
    %1796 = vmatprep.mubr.f32.mxu0 0.0
    %1797 = vmatmul.mubr.f32.gmra.mrb[0].mxu0 %v1359
    %v1798 = vpop.f32.mrb[0].mxu0
    %v1799 = vadd.f32 0.0, %v1798
    %v1800 = vpop.f32.mrb[0].mxu0
    %1801 = vmatprep.mubr.f32.mxu0 0.0
    %1802 = vmatmul.mubr.f32.gmra.mrb[0].mxu0 %v1362
    %v1803 = vpop.f32.mrb[0].mxu0
    %v1804 = vadd.f32 0.0, %v1803
    %v1805 = vpop.f32.mrb[0].mxu0
    %1806 = vmatprep.mubr.f32.mxu0 0.0
    %1807 = vmatmul.mubr.f32.gmra.mrb[0].mxu0 %v1365
    %v1808 = vpop.f32.mrb[0].mxu0
    %v1809 = vadd.f32 0.0, %v1808
    %v1810 = vpop.f32.mrb[0].mxu0
    %1811 = vdwg.mxu0
    %s1812 = scalar_lea.vmem [#allocation14], 160
    %v1813 = vld [vmem:[%s1812] sm:$0xff]
    %v1814 = vld [vmem:[%s1812 + $0x8] sm:$0xff]
    %v1815 = vld [vmem:[%s1812 + $0x10] sm:$0xff]
    %v1816 = vld [vmem:[%s1812 + $0x18] sm:$0xff]
    %1817 = vmatprep.subr.mxu0 0.0
    %1818 = vmatpush1.msra.mxu0 %v1813
    %1819 = vmatprep.subr.mxu0 0.0
    %1820 = vmatpush1.msra.mxu0 %v1814
    %1821 = vmatprep.subr.mxu0 0.0
    %1822 = vmatpush1.msra.mxu0 %v1815
    %1823 = vmatprep.subr.mxu0 0.0
    %1824 = vmatpush1.msra.mxu0 %v1816
    %1825 = vmatprep.subr.mxu0 0.0
    %1826 = vmatpush1.msra.mxu0 0.0
    %1827 = vmatprep.subr.mxu0 0.0
    %1828 = vmatpush1.msra.mxu0 0.0
    %1829 = vmatprep.subr.mxu0 0.0
    %1830 = vmatpush1.msra.mxu0 0.0
    %1831 = vmatprep.subr.mxu0 0.0
    %1832 = vmatpush1.msra.mxu0 0.0
    %1833 = vmatprep.subr.mxu0 0.0
    %1834 = vmatpush1.msra.mxu0 0.0
    %1835 = vmatprep.subr.mxu0 0.0
    %1836 = vmatpush1.msra.mxu0 0.0
    %1837 = vmatprep.subr.mxu0 0.0
    %1838 = vmatpush1.msra.mxu0 0.0
    %1839 = vmatprep.subr.mxu0 0.0
    %1840 = vmatpush1.msra.mxu0 0.0
    %1841 = vmatprep.subr.mxu0 0.0
    %1842 = vmatpush1.msra.mxu0 0.0
    %1843 = vmatprep.subr.mxu0 0.0
    %1844 = vmatpush1.msra.mxu0 0.0
    %1845 = vmatprep.subr.mxu0 0.0
    %1846 = vmatpush1.msra.mxu0 0.0
    %1847 = vmatprep.subr.mxu0 0.0
    %1848 = vmatpush1.msra.mxu0 0.0
    %1849 = vmatprep.subr.mxu0 0.0
    %1850 = vmatpush1.msra.mxu0 0.0
    %1851 = vmatprep.subr.mxu0 0.0
    %1852 = vmatpush1.msra.mxu0 0.0
    %1853 = vmatprep.subr.mxu0 0.0
    %1854 = vmatpush1.msra.mxu0 0.0
    %1855 = vmatprep.subr.mxu0 0.0
    %1856 = vmatpush1.msra.mxu0 0.0
    %1857 = vmatprep.subr.mxu0 0.0
    %1858 = vmatpush1.msra.mxu0 0.0
    %1859 = vmatprep.subr.mxu0 0.0
    %1860 = vmatpush1.msra.mxu0 0.0
    %1861 = vmatprep.subr.mxu0 0.0
    %1862 = vmatpush1.msra.mxu0 0.0
    %1863 = vmatprep.subr.mxu0 0.0
    %1864 = vmatpush1.msra.mxu0 0.0
    %1865 = vmatprep.subr.mxu0 0.0
    %1866 = vmatpush1.msra.mxu0 0.0
    %1867 = vmatprep.subr.mxu0 0.0
    %1868 = vmatpush1.msra.mxu0 0.0
    %1869 = vmatprep.subr.mxu0 0.0
    %1870 = vmatpush1.msra.mxu0 0.0
    %1871 = vmatprep.subr.mxu0 0.0
    %1872 = vmatpush1.msra.mxu0 0.0
    %1873 = vmatprep.subr.mxu0 0.0
    %1874 = vmatpush1.msra.mxu0 0.0
    %1875 = vmatprep.subr.mxu0 0.0
    %1876 = vmatpush1.msra.mxu0 0.0
    %1877 = vmatprep.subr.mxu0 0.0
    %1878 = vmatpush1.msra.mxu0 0.0
    %1879 = vmatprep.subr.mxu0 0.0
    %1880 = vmatpush1.msra.mxu0 0.0
    %1881 = vmatprep.mubr.f32.mxu0 0.0
    %1882 = vmatmul.mubr.f32.gmra.mrb[0].mxu0 %v1356
    %v1883 = vpop.f32.mrb[0].mxu0
    %v1884 = vadd.f32 0.0, %v1883
    %v1885 = vpop.f32.mrb[0].mxu0
    %1886 = vmatprep.mubr.f32.mxu0 0.0
    %1887 = vmatmul.mubr.f32.gmra.mrb[0].mxu0 %v1359
    %v1888 = vpop.f32.mrb[0].mxu0
    %v1889 = vadd.f32 0.0, %v1888
    %v1890 = vpop.f32.mrb[0].mxu0
    %1891 = vmatprep.mubr.f32.mxu0 0.0
    %1892 = vmatmul.mubr.f32.gmra.mrb[0].mxu0 %v1362
    %v1893 = vpop.f32.mrb[0].mxu0
    %v1894 = vadd.f32 0.0, %v1893
    %v1895 = vpop.f32.mrb[0].mxu0
    %1896 = vmatprep.mubr.f32.mxu0 0.0
    %1897 = vmatmul.mubr.f32.gmra.mrb[0].mxu0 %v1365
    %v1898 = vpop.f32.mrb[0].mxu0
    %v1899 = vadd.f32 0.0, %v1898
    %v1900 = vpop.f32.mrb[0].mxu0
    %1901 = vdwg.mxu0
    %s1902 = scalar_lea.vmem [#allocation14], 192
    %v1903 = vld [vmem:[%s1902] sm:$0xff]
    %v1904 = vld [vmem:[%s1902 + $0x8] sm:$0xff]
    %v1905 = vld [vmem:[%s1902 + $0x10] sm:$0xff]
    %v1906 = vld [vmem:[%s1902 + $0x18] sm:$0xff]
    %1907 = vmatprep.subr.mxu0 0.0
    %1908 = vmatpush1.msra.mxu0 %v1903
    %1909 = vmatprep.subr.mxu0 0.0
    %1910 = vmatpush1.msra.mxu0 %v1904
    %1911 = vmatprep.subr.mxu0 0.0
    %1912 = vmatpush1.msra.mxu0 %v1905
    %1913 = vmatprep.subr.mxu0 0.0
    %1914 = vmatpush1.msra.mxu0 %v1906
    %1915 = vmatprep.subr.mxu0 0.0
    %1916 = vmatpush1.msra.mxu0 0.0
    %1917 = vmatprep.subr.mxu0 0.0
    %1918 = vmatpush1.msra.mxu0 0.0
    %1919 = vmatprep.subr.mxu0 0.0
    %1920 = vmatpush1.msra.mxu0 0.0
    %1921 = vmatprep.subr.mxu0 0.0
    %1922 = vmatpush1.msra.mxu0 0.0
    %1923 = vmatprep.subr.mxu0 0.0
    %1924 = vmatpush1.msra.mxu0 0.0
    %1925 = vmatprep.subr.mxu0 0.0
    %1926 = vmatpush1.msra.mxu0 0.0
    %1927 = vmatprep.subr.mxu0 0.0
    %1928 = vmatpush1.msra.mxu0 0.0
    %1929 = vmatprep.subr.mxu0 0.0
    %1930 = vmatpush1.msra.mxu0 0.0
    %1931 = vmatprep.subr.mxu0 0.0
    %1932 = vmatpush1.msra.mxu0 0.0
    %1933 = vmatprep.subr.mxu0 0.0
    %1934 = vmatpush1.msra.mxu0 0.0
    %1935 = vmatprep.subr.mxu0 0.0
    %1936 = vmatpush1.msra.mxu0 0.0
    %1937 = vmatprep.subr.mxu0 0.0
    %1938 = vmatpush1.msra.mxu0 0.0
    %1939 = vmatprep.subr.mxu0 0.0
    %1940 = vmatpush1.msra.mxu0 0.0
    %1941 = vmatprep.subr.mxu0 0.0
    %1942 = vmatpush1.msra.mxu0 0.0
    %1943 = vmatprep.subr.mxu0 0.0
    %1944 = vmatpush1.msra.mxu0 0.0
    %1945 = vmatprep.subr.mxu0 0.0
    %1946 = vmatpush1.msra.mxu0 0.0
    %1947 = vmatprep.subr.mxu0 0.0
    %1948 = vmatpush1.msra.mxu0 0.0
    %1949 = vmatprep.subr.mxu0 0.0
    %1950 = vmatpush1.msra.mxu0 0.0
    %1951 = vmatprep.subr.mxu0 0.0
    %1952 = vmatpush1.msra.mxu0 0.0
    %1953 = vmatprep.subr.mxu0 0.0
    %1954 = vmatpush1.msra.mxu0 0.0
    %1955 = vmatprep.subr.mxu0 0.0
    %1956 = vmatpush1.msra.mxu0 0.0
    %1957 = vmatprep.subr.mxu0 0.0
    %1958 = vmatpush1.msra.mxu0 0.0
    %1959 = vmatprep.subr.mxu0 0.0
    %1960 = vmatpush1.msra.mxu0 0.0
    %1961 = vmatprep.subr.mxu0 0.0
    %1962 = vmatpush1.msra.mxu0 0.0
    %1963 = vmatprep.subr.mxu0 0.0
    %1964 = vmatpush1.msra.mxu0 0.0
    %1965 = vmatprep.subr.mxu0 0.0
    %1966 = vmatpush1.msra.mxu0 0.0
    %1967 = vmatprep.subr.mxu0 0.0
    %1968 = vmatpush1.msra.mxu0 0.0
    %1969 = vmatprep.subr.mxu0 0.0
    %1970 = vmatpush1.msra.mxu0 0.0
    %1971 = vmatprep.mubr.f32.mxu0 0.0
    %1972 = vmatmul.mubr.f32.gmra.mrb[0].mxu0 %v1356
    %v1973 = vpop.f32.mrb[0].mxu0
    %v1974 = vadd.f32 0.0, %v1973
    %v1975 = vpop.f32.mrb[0].mxu0
    %1976 = vmatprep.mubr.f32.mxu0 0.0
    %1977 = vmatmul.mubr.f32.gmra.mrb[0].mxu0 %v1359
    %v1978 = vpop.f32.mrb[0].mxu0
    %v1979 = vadd.f32 0.0, %v1978
    %v1980 = vpop.f32.mrb[0].mxu0
    %1981 = vmatprep.mubr.f32.mxu0 0.0
    %1982 = vmatmul.mubr.f32.gmra.mrb[0].mxu0 %v1362
    %v1983 = vpop.f32.mrb[0].mxu0
    %v1984 = vadd.f32 0.0, %v1983
    %v1985 = vpop.f32.mrb[0].mxu0
    %1986 = vmatprep.mubr.f32.mxu0 0.0
    %1987 = vmatmul.mubr.f32.gmra.mrb[0].mxu0 %v1365
    %v1988 = vpop.f32.mrb[0].mxu0
    %v1989 = vadd.f32 0.0, %v1988
    %v1990 = vpop.f32.mrb[0].mxu0
    %1991 = vdwg.mxu0
    %s1992 = scalar_lea.vmem [#allocation14], 224
    %v1993 = vld [vmem:[%s1992] sm:$0xff]
    %v1994 = vld [vmem:[%s1992 + $0x8] sm:$0xff]
    %v1995 = vld [vmem:[%s1992 + $0x10] sm:$0xff]
    %v1996 = vld [vmem:[%s1992 + $0x18] sm:$0xff]
    %1997 = vmatprep.subr.mxu0 0.0
    %1998 = vmatpush1.msra.mxu0 %v1993
    %1999 = vmatprep.subr.mxu0 0.0
    %2000 = vmatpush1.msra.mxu0 %v1994
    %2001 = vmatprep.subr.mxu0 0.0
    %2002 = vmatpush1.msra.mxu0 %v1995
    %2003 = vmatprep.subr.mxu0 0.0
    %2004 = vmatpush1.msra.mxu0 %v1996
    %2005 = vmatprep.subr.mxu0 0.0
    %2006 = vmatpush1.msra.mxu0 0.0
    %2007 = vmatprep.subr.mxu0 0.0
    %2008 = vmatpush1.msra.mxu0 0.0
    %2009 = vmatprep.subr.mxu0 0.0
    %2010 = vmatpush1.msra.mxu0 0.0
    %2011 = vmatprep.subr.mxu0 0.0
    %2012 = vmatpush1.msra.mxu0 0.0
    %2013 = vmatprep.subr.mxu0 0.0
    %2014 = vmatpush1.msra.mxu0 0.0
    %2015 = vmatprep.subr.mxu0 0.0
    %2016 = vmatpush1.msra.mxu0 0.0
    %2017 = vmatprep.subr.mxu0 0.0
    %2018 = vmatpush1.msra.mxu0 0.0
    %2019 = vmatprep.subr.mxu0 0.0
    %2020 = vmatpush1.msra.mxu0 0.0
    %2021 = vmatprep.subr.mxu0 0.0
    %2022 = vmatpush1.msra.mxu0 0.0
    %2023 = vmatprep.subr.mxu0 0.0
    %2024 = vmatpush1.msra.mxu0 0.0
    %2025 = vmatprep.subr.mxu0 0.0
    %2026 = vmatpush1.msra.mxu0 0.0
    %2027 = vmatprep.subr.mxu0 0.0
    %2028 = vmatpush1.msra.mxu0 0.0
    %2029 = vmatprep.subr.mxu0 0.0
    %2030 = vmatpush1.msra.mxu0 0.0
    %2031 = vmatprep.subr.mxu0 0.0
    %2032 = vmatpush1.msra.mxu0 0.0
    %2033 = vmatprep.subr.mxu0 0.0
    %2034 = vmatpush1.msra.mxu0 0.0
    %2035 = vmatprep.subr.mxu0 0.0
    %2036 = vmatpush1.msra.mxu0 0.0
    %2037 = vmatprep.subr.mxu0 0.0
    %2038 = vmatpush1.msra.mxu0 0.0
    %2039 = vmatprep.subr.mxu0 0.0
    %2040 = vmatpush1.msra.mxu0 0.0
    %2041 = vmatprep.subr.mxu0 0.0
    %2042 = vmatpush1.msra.mxu0 0.0
    %2043 = vmatprep.subr.mxu0 0.0
    %2044 = vmatpush1.msra.mxu0 0.0
    %2045 = vmatprep.subr.mxu0 0.0
    %2046 = vmatpush1.msra.mxu0 0.0
    %2047 = vmatprep.subr.mxu0 0.0
    %2048 = vmatpush1.msra.mxu0 0.0
    %2049 = vmatprep.subr.mxu0 0.0
    %2050 = vmatpush1.msra.mxu0 0.0
    %2051 = vmatprep.subr.mxu0 0.0
    %2052 = vmatpush1.msra.mxu0 0.0
    %2053 = vmatprep.subr.mxu0 0.0
    %2054 = vmatpush1.msra.mxu0 0.0
    %2055 = vmatprep.subr.mxu0 0.0
    %2056 = vmatpush1.msra.mxu0 0.0
    %2057 = vmatprep.subr.mxu0 0.0
    %2058 = vmatpush1.msra.mxu0 0.0
    %2059 = vmatprep.subr.mxu0 0.0
    %2060 = vmatpush1.msra.mxu0 0.0
    %2061 = vmatprep.mubr.f32.mxu0 0.0
    %2062 = vmatmul.mubr.f32.gmra.mrb[0].mxu0 %v1356
    %v2063 = vpop.f32.mrb[0].mxu0
    %v2064 = vadd.f32 0.0, %v2063
    %v2065 = vpop.f32.mrb[0].mxu0
    %2066 = vmatprep.mubr.f32.mxu0 0.0
    %2067 = vmatmul.mubr.f32.gmra.mrb[0].mxu0 %v1359
    %v2068 = vpop.f32.mrb[0].mxu0
    %v2069 = vadd.f32 0.0, %v2068
    %v2070 = vpop.f32.mrb[0].mxu0
    %2071 = vmatprep.mubr.f32.mxu0 0.0
    %2072 = vmatmul.mubr.f32.gmra.mrb[0].mxu0 %v1362
    %v2073 = vpop.f32.mrb[0].mxu0
    %v2074 = vadd.f32 0.0, %v2073
    %v2075 = vpop.f32.mrb[0].mxu0
    %2076 = vmatprep.mubr.f32.mxu0 0.0
    %2077 = vmatmul.mubr.f32.gmra.mrb[0].mxu0 %v1365
    %v2078 = vpop.f32.mrb[0].mxu0
    %v2079 = vadd.f32 0.0, %v2078
    %v2080 = vpop.f32.mrb[0].mxu0
    %2081 = vdwg.mxu0
    %v2082 = vld [vmem:[%s23] sm:$0xff]
    %v2083 = vld [vmem:[%s23 + $0x8] sm:$0xf]
    %v2084 = vld [vmem:[%s23 + $0xc] sm:$0xff]
    %v2085 = vld [vmem:[%s23 + $0x14] sm:$0xf]
    %v2086 = vld [vmem:[%s23 + $0x18] sm:$0xff]
    %v2087 = vld [vmem:[%s23 + $0x20] sm:$0xf]
    %v2088 = vld [vmem:[%s23 + $0x24] sm:$0xff]
    %v2089 = vld [vmem:[%s23 + $0x2c] sm:$0xf]
    %v2090 = vpack.c.bf16 %v1439, %v1434
    %v2091 = vpack.c.bf16 %v1449, %v1444
    %v2092 = vpack.c.bf16 %v1529, %v1524
    %v2093 = vpack.c.bf16 %v1539, %v1534
    %v2094 = vpack.c.bf16 %v1619, %v1614
    %v2095 = vpack.c.bf16 %v1629, %v1624
    %v2096 = vpack.c.bf16 %v1709, %v1704
    %v2097 = vpack.c.bf16 %v1719, %v1714
    %v2098 = vpack.c.bf16 %v1239, %v1238
    %v2099 = vpack.c.bf16 %v1241, %v1240
    %v2100 = vpack.c.bf16 %v1799, %v1794
    %v2101 = vpack.c.bf16 %v1809, %v1804
    %v2102 = vpack.c.bf16 %v1889, %v1884
    %v2103 = vpack.c.bf16 %v1899, %v1894
    %v2104 = vpack.c.bf16 %v1979, %v1974
    %v2105 = vpack.c.bf16 %v1989, %v1984
    %v2106 = vpack.c.bf16 %v2069, %v2064
    %v2107 = vpack.c.bf16 %v2079, %v2074
    %v2116 = vunpack.c.l.b16 %v2082
    %v2117 = vunpack.c.h.b16 %v2082
    %v2118 = vunpack.c.l.b16 %v2083
    %v2119 = vunpack.c.l.b16 %v2084
    %v2120 = vunpack.c.h.b16 %v2084
    %v2121 = vunpack.c.l.b16 %v2085
    %v2122 = vunpack.c.l.b16 %v2086
    %v2123 = vunpack.c.h.b16 %v2086
    %v2124 = vunpack.c.l.b16 %v2087
    %v2125 = vunpack.c.l.b16 %v2088
    %v2126 = vunpack.c.h.b16 %v2088
    %v2127 = vunpack.c.l.b16 %v2089
    %v2128 = vpack.c.b16 %v2119, %v2116
    %v2129 = vpack.c.b16 %v2120, %v2117
    %v2130 = vpack.c.b16 %v2121, %v2118
    %v2131 = vpack.c.b16 %v2125, %v2122
    %v2132 = vpack.c.b16 %v2126, %v2123
    %v2133 = vpack.c.b16 %v2127, %v2124
    %v2139 = vsel %vm552, %v2130, 0
    %v2142 = vsel %vm552, %v2133, 0
    %2144 = vmatprep.subr.bf16.mxu0 0
    %2145 = vmatpush1.bf16.msra.mxu0 %v2090
    %2146 = vmatprep.subr.bf16.mxu0 0
    %2147 = vmatpush1.bf16.msra.mxu0 %v2091
    %2148 = vmatprep.subr.bf16.mxu0 0
    %2149 = vmatpush1.bf16.msra.mxu0 %v2092
    %2150 = vmatprep.subr.bf16.mxu0 0
    %2151 = vmatpush1.bf16.msra.mxu0 %v2093
    %2152 = vmatprep.subr.bf16.mxu0 0
    %2153 = vmatpush1.bf16.msra.mxu0 %v2094
    %2154 = vmatprep.subr.bf16.mxu0 0
    %2155 = vmatpush1.bf16.msra.mxu0 %v2095
    %2156 = vmatprep.subr.bf16.mxu0 0
    %2157 = vmatpush1.bf16.msra.mxu0 %v2096
    %2158 = vmatprep.subr.bf16.mxu0 0
    %2159 = vmatpush1.bf16.msra.mxu0 %v2097
    %2160 = vmatprep.subr.bf16.mxu0 0
    %2161 = vmatpush1.bf16.msra.mxu0 %v2098
    %2162 = vmatprep.subr.bf16.mxu0 0
    %2163 = vmatpush1.bf16.msra.mxu0 %v2099
    %2164 = vmatprep.subr.bf16.mxu0 0
    %2165 = vmatpush1.bf16.msra.mxu0 %v2100
    %2166 = vmatprep.subr.bf16.mxu0 0
    %2167 = vmatpush1.bf16.msra.mxu0 %v2101
    %2168 = vmatprep.subr.bf16.mxu0 0
    %2169 = vmatpush1.bf16.msra.mxu0 %v2102
    %2170 = vmatprep.subr.bf16.mxu0 0
    %2171 = vmatpush1.bf16.msra.mxu0 %v2103
    %2172 = vmatprep.subr.bf16.mxu0 0
    %2173 = vmatpush1.bf16.msra.mxu0 %v2104
    %2174 = vmatprep.subr.bf16.mxu0 0
    %2175 = vmatpush1.bf16.msra.mxu0 %v2105
    %2176 = vmatprep.mubr.bf16.mxu0 %v2129
    %2177 = vmatmul.mubr.bf16.gmra.mrb[0].mxu0 %v2128
    %v2178 = vpop.f32.mrb[0].mxu0
    %v2179 = vadd.f32 0.0, %v2178
    %v2180 = vpop.f32.mrb[0].mxu0
    %v2181 = vpop.f32.mrb[0].mxu0
    %v2182 = vadd.f32 0.0, %v2181
    %v2183 = vpop.f32.mrb[0].mxu0
    %2184 = vmatprep.mubr.bf16.mxu0 %v2132
    %2185 = vmatmul.mubr.bf16.gmra.mrb[0].mxu0 %v2131
    %v2186 = vpop.f32.mrb[0].mxu0
    %v2187 = vadd.f32 0.0, %v2186
    %v2188 = vpop.f32.mrb[0].mxu0
    %v2189 = vpop.f32.mrb[0].mxu0
    %v2190 = vadd.f32 0.0, %v2189
    %v2191 = vpop.f32.mrb[0].mxu0
    %2192 = vdwg.mxu0
    %2193 = vmatprep.subr.bf16.mxu0 0
    %2194 = vmatpush1.bf16.msra.mxu0 %v2106
    %2195 = vmatprep.subr.bf16.mxu0 0
    %2196 = vmatpush1.bf16.msra.mxu0 %v2107
    %2197 = vmatprep.subr.bf16.mxu0 0
    %2198 = vmatpush1.bf16.msra.mxu0 0
    %2199 = vmatprep.subr.bf16.mxu0 0
    %2200 = vmatpush1.bf16.msra.mxu0 0
    %2201 = vmatprep.subr.bf16.mxu0 0
    %2202 = vmatpush1.bf16.msra.mxu0 0
    %2203 = vmatprep.subr.bf16.mxu0 0
    %2204 = vmatpush1.bf16.msra.mxu0 0
    %2205 = vmatprep.subr.bf16.mxu0 0
    %2206 = vmatpush1.bf16.msra.mxu0 0
    %2207 = vmatprep.subr.bf16.mxu0 0
    %2208 = vmatpush1.bf16.msra.mxu0 0
    %2209 = vmatprep.subr.bf16.mxu0 0
    %2210 = vmatpush1.bf16.msra.mxu0 0
    %2211 = vmatprep.subr.bf16.mxu0 0
    %2212 = vmatpush1.bf16.msra.mxu0 0
    %2213 = vmatprep.subr.bf16.mxu0 0
    %2214 = vmatpush1.bf16.msra.mxu0 0
    %2215 = vmatprep.subr.bf16.mxu0 0
    %2216 = vmatpush1.bf16.msra.mxu0 0
    %2217 = vmatprep.subr.bf16.mxu0 0
    %2218 = vmatpush1.bf16.msra.mxu0 0
    %2219 = vmatprep.subr.bf16.mxu0 0
    %2220 = vmatpush1.bf16.msra.mxu0 0
    %2221 = vmatprep.subr.bf16.mxu0 0
    %2222 = vmatpush1.bf16.msra.mxu0 0
    %2223 = vmatprep.subr.bf16.mxu0 0
    %2224 = vmatpush1.bf16.msra.mxu0 0
    %2225 = vmatprep.mubr.bf16.mxu0 0
    %2226 = vmatmul.mubr.bf16.gmra.mrb[0].mxu0 %v2139
    %v2227 = vpop.f32.mrb[0].mxu0
    %v2228 = vadd.f32 %v2179, %v2227
    %v2229 = vpop.f32.mrb[0].mxu0
    %v2230 = vpop.f32.mrb[0].mxu0
    %v2231 = vadd.f32 %v2182, %v2230
    %v2232 = vpop.f32.mrb[0].mxu0
    %2233 = vmatprep.mubr.bf16.mxu0 0
    %2234 = vmatmul.mubr.bf16.gmra.mrb[0].mxu0 %v2142
    %v2235 = vpop.f32.mrb[0].mxu0
    %v2236 = vadd.f32 %v2187, %v2235
    %v2237 = vpop.f32.mrb[0].mxu0
    %v2238 = vpop.f32.mrb[0].mxu0
    %v2239 = vadd.f32 %v2190, %v2238
    %v2240 = vpop.f32.mrb[0].mxu0
    %2241 = vdwg.mxu0
    %v2242 = vmul.f32 %v1347, %v2228
    %v2243 = vmul.f32 %v1348, %v2231
    %v2244 = vmul.f32 %v1349, %v2236
    %v2245 = vmul.f32 %v1350, %v2239
    %v2246 = vld [vmem:[%s27] sm:$0xff]
    %v2247 = vld [vmem:[%s27 + $0x8] sm:$0xff]
    %v2248 = vld [vmem:[%s27 + $0x10] sm:$0xff]
    %v2249 = vld [vmem:[%s27 + $0x18] sm:$0xff]
    %2251 = vset.pattern.permute.xlu0 0
    %2252 = vperm.xlu0 %2251, %v2246
    %v2253 = vpop.permute.xlu0 %2252
    %2256 = vset.pattern.permute.xlu0 0
    %2257 = vperm.xlu0 %2256, %v2247
    %v2258 = vpop.permute.xlu0 %2257
    %2261 = vset.pattern.permute.xlu0 0
    %2262 = vperm.xlu0 %2261, %v2248
    %v2263 = vpop.permute.xlu0 %2262
    %2266 = vset.pattern.permute.xlu0 0
    %2267 = vperm.xlu0 %2266, %v2249
    %v2268 = vpop.permute.xlu0 %2267
    %v2270 = vadd.f32 %v2242, %v2253
    %v2271 = vadd.f32 %v2243, %v2258
    %v2272 = vadd.f32 %v2244, %v2263
    %v2273 = vadd.f32 %v2245, %v2268
    %vm2274 = vcmp.ge.f32.partialorder %v2270, 0.0
    %vm2275 = vcmp.ge.f32.partialorder %v2271, 0.0
    %vm2276 = vcmp.ge.f32.partialorder %v2272, 0.0
    %vm2277 = vcmp.ge.f32.partialorder %v2273, 0.0
    %v2278 = vmul.f32 %v2270, 0.2
    %v2279 = vmul.f32 %v2271, 0.2
    %v2280 = vmul.f32 %v2272, 0.2
    %v2281 = vmul.f32 %v2273, 0.2
    %v2282 = vsel %vm2274, %v2270, %v2278
    %v2283 = vsel %vm2275, %v2271, %v2279
    %v2284 = vsel %vm2276, %v2272, %v2280
    %v2285 = vsel %vm2277, %v2273, %v2281
    %v2286 = vmul.f32 %v2282, 1.4142135
    %v2287 = vmul.f32 %v2283, 1.4142135
    %v2288 = vmul.f32 %v2284, 1.4142135
    %v2289 = vmul.f32 %v2285, 1.4142135
    %v2290 = vld [vmem:[#allocation8] sm:$0xff]
    %v2291 = vld [vmem:[#allocation8 + $0x8] sm:$0xff]
    %v2292 = vld [vmem:[#allocation8 + $0x10] sm:$0xff]
    %v2293 = vld [vmem:[#allocation8 + $0x18] sm:$0xff]
    %v2295 = vsel %vm552, %v2286, 0
    %v2298 = vsel %vm552, %v2287, 0
    %v2301 = vsel %vm552, %v2288, 0
    %v2304 = vsel %vm552, %v2289, 0
    %2306 = vmatprep.subr.mxu0 0.0
    %2307 = vmatpush1.msra.mxu0 %v2290
    %2308 = vmatprep.subr.mxu0 0.0
    %2309 = vmatpush1.msra.mxu0 %v2291
    %2310 = vmatprep.subr.mxu0 0.0
    %2311 = vmatpush1.msra.mxu0 %v2292
    %2312 = vmatprep.subr.mxu0 0.0
    %2313 = vmatpush1.msra.mxu0 %v2293
    %2314 = vmatprep.subr.mxu0 0.0
    %2315 = vmatpush1.msra.mxu0 0.0
    %2316 = vmatprep.subr.mxu0 0.0
    %2317 = vmatpush1.msra.mxu0 0.0
    %2318 = vmatprep.subr.mxu0 0.0
    %2319 = vmatpush1.msra.mxu0 0.0
    %2320 = vmatprep.subr.mxu0 0.0
    %2321 = vmatpush1.msra.mxu0 0.0
    %2322 = vmatprep.subr.mxu0 0.0
    %2323 = vmatpush1.msra.mxu0 0.0
    %2324 = vmatprep.subr.mxu0 0.0
    %2325 = vmatpush1.msra.mxu0 0.0
    %2326 = vmatprep.subr.mxu0 0.0
    %2327 = vmatpush1.msra.mxu0 0.0
    %2328 = vmatprep.subr.mxu0 0.0
    %2329 = vmatpush1.msra.mxu0 0.0
    %2330 = vmatprep.subr.mxu0 0.0
    %2331 = vmatpush1.msra.mxu0 0.0
    %2332 = vmatprep.subr.mxu0 0.0
    %2333 = vmatpush1.msra.mxu0 0.0
    %2334 = vmatprep.subr.mxu0 0.0
    %2335 = vmatpush1.msra.mxu0 0.0
    %2336 = vmatprep.subr.mxu0 0.0
    %2337 = vmatpush1.msra.mxu0 0.0
    %2338 = vmatprep.subr.mxu0 0.0
    %2339 = vmatpush1.msra.mxu0 0.0
    %2340 = vmatprep.subr.mxu0 0.0
    %2341 = vmatpush1.msra.mxu0 0.0
    %2342 = vmatprep.subr.mxu0 0.0
    %2343 = vmatpush1.msra.mxu0 0.0
    %2344 = vmatprep.subr.mxu0 0.0
    %2345 = vmatpush1.msra.mxu0 0.0
    %2346 = vmatprep.subr.mxu0 0.0
    %2347 = vmatpush1.msra.mxu0 0.0
    %2348 = vmatprep.subr.mxu0 0.0
    %2349 = vmatpush1.msra.mxu0 0.0
    %2350 = vmatprep.subr.mxu0 0.0
    %2351 = vmatpush1.msra.mxu0 0.0
    %2352 = vmatprep.subr.mxu0 0.0
    %2353 = vmatpush1.msra.mxu0 0.0
    %2354 = vmatprep.subr.mxu0 0.0
    %2355 = vmatpush1.msra.mxu0 0.0
    %2356 = vmatprep.subr.mxu0 0.0
    %2357 = vmatpush1.msra.mxu0 0.0
    %2358 = vmatprep.subr.mxu0 0.0
    %2359 = vmatpush1.msra.mxu0 0.0
    %2360 = vmatprep.subr.mxu0 0.0
    %2361 = vmatpush1.msra.mxu0 0.0
    %2362 = vmatprep.subr.mxu0 0.0
    %2363 = vmatpush1.msra.mxu0 0.0
    %2364 = vmatprep.subr.mxu0 0.0
    %2365 = vmatpush1.msra.mxu0 0.0
    %2366 = vmatprep.subr.mxu0 0.0
    %2367 = vmatpush1.msra.mxu0 0.0
    %2368 = vmatprep.subr.mxu0 0.0
    %2369 = vmatpush1.msra.mxu0 0.0
    %2370 = vmatprep.mubr.f32.mxu0 0.0
    %2371 = vmatmul.mubr.f32.gmra.mrb[0].mxu0 %v2295
    %v2372 = vpop.f32.mrb[0].mxu0
    %v2373 = vadd.f32 0.0, %v2372
    %v2374 = vpop.f32.mrb[0].mxu0
    %2375 = vmatprep.mubr.f32.mxu0 0.0
    %2376 = vmatmul.mubr.f32.gmra.mrb[0].mxu0 %v2298
    %v2377 = vpop.f32.mrb[0].mxu0
    %v2378 = vadd.f32 0.0, %v2377
    %v2379 = vpop.f32.mrb[0].mxu0
    %2380 = vmatprep.mubr.f32.mxu0 0.0
    %2381 = vmatmul.mubr.f32.gmra.mrb[0].mxu0 %v2301
    %v2382 = vpop.f32.mrb[0].mxu0
    %v2383 = vadd.f32 0.0, %v2382
    %v2384 = vpop.f32.mrb[0].mxu0
    %2385 = vmatprep.mubr.f32.mxu0 0.0
    %2386 = vmatmul.mubr.f32.gmra.mrb[0].mxu0 %v2304
    %v2387 = vpop.f32.mrb[0].mxu0
    %v2388 = vadd.f32 0.0, %v2387
    %v2389 = vpop.f32.mrb[0].mxu0
    %2390 = vdwg.mxu0
    %v2391 = vld [vmem:[#allocation17] sm:$0xff]
    %v2392 = vld [vmem:[#allocation17 + $0x8] sm:$0xff]
    %v2394 = vsel %vm1140, %v1086, 0
    %v2397 = vsel %vm1140, %v1091, 0
    %v2400 = vsel %vm1140, %v1096, 0
    %v2403 = vsel %vm1140, %v1101, 0
    %2405 = vmatprep.subr.mxu0 0.0
    %2406 = vmatpush1.msra.mxu0 %v2391
    %2407 = vmatprep.subr.mxu0 0.0
    %2408 = vmatpush1.msra.mxu0 %v2392
    %2409 = vmatprep.subr.mxu0 0.0
    %2410 = vmatpush1.msra.mxu0 0.0
    %2411 = vmatprep.subr.mxu0 0.0
    %2412 = vmatpush1.msra.mxu0 0.0
    %2413 = vmatprep.subr.mxu0 0.0
    %2414 = vmatpush1.msra.mxu0 0.0
    %2415 = vmatprep.subr.mxu0 0.0
    %2416 = vmatpush1.msra.mxu0 0.0
    %2417 = vmatprep.subr.mxu0 0.0
    %2418 = vmatpush1.msra.mxu0 0.0
    %2419 = vmatprep.subr.mxu0 0.0
    %2420 = vmatpush1.msra.mxu0 0.0
    %2421 = vmatprep.subr.mxu0 0.0
    %2422 = vmatpush1.msra.mxu0 0.0
    %2423 = vmatprep.subr.mxu0 0.0
    %2424 = vmatpush1.msra.mxu0 0.0
    %2425 = vmatprep.subr.mxu0 0.0
    %2426 = vmatpush1.msra.mxu0 0.0
    %2427 = vmatprep.subr.mxu0 0.0
    %2428 = vmatpush1.msra.mxu0 0.0
    %2429 = vmatprep.subr.mxu0 0.0
    %2430 = vmatpush1.msra.mxu0 0.0
    %2431 = vmatprep.subr.mxu0 0.0
    %2432 = vmatpush1.msra.mxu0 0.0
    %2433 = vmatprep.subr.mxu0 0.0
    %2434 = vmatpush1.msra.mxu0 0.0
    %2435 = vmatprep.subr.mxu0 0.0
    %2436 = vmatpush1.msra.mxu0 0.0
    %2437 = vmatprep.subr.mxu0 0.0
    %2438 = vmatpush1.msra.mxu0 0.0
    %2439 = vmatprep.subr.mxu0 0.0
    %2440 = vmatpush1.msra.mxu0 0.0
    %2441 = vmatprep.subr.mxu0 0.0
    %2442 = vmatpush1.msra.mxu0 0.0
    %2443 = vmatprep.subr.mxu0 0.0
    %2444 = vmatpush1.msra.mxu0 0.0
    %2445 = vmatprep.subr.mxu0 0.0
    %2446 = vmatpush1.msra.mxu0 0.0
    %2447 = vmatprep.subr.mxu0 0.0
    %2448 = vmatpush1.msra.mxu0 0.0
    %2449 = vmatprep.subr.mxu0 0.0
    %2450 = vmatpush1.msra.mxu0 0.0
    %2451 = vmatprep.subr.mxu0 0.0
    %2452 = vmatpush1.msra.mxu0 0.0
    %2453 = vmatprep.subr.mxu0 0.0
    %2454 = vmatpush1.msra.mxu0 0.0
    %2455 = vmatprep.subr.mxu0 0.0
    %2456 = vmatpush1.msra.mxu0 0.0
    %2457 = vmatprep.subr.mxu0 0.0
    %2458 = vmatpush1.msra.mxu0 0.0
    %2459 = vmatprep.subr.mxu0 0.0
    %2460 = vmatpush1.msra.mxu0 0.0
    %2461 = vmatprep.subr.mxu0 0.0
    %2462 = vmatpush1.msra.mxu0 0.0
    %2463 = vmatprep.subr.mxu0 0.0
    %2464 = vmatpush1.msra.mxu0 0.0
    %2465 = vmatprep.subr.mxu0 0.0
    %2466 = vmatpush1.msra.mxu0 0.0
    %2467 = vmatprep.subr.mxu0 0.0
    %2468 = vmatpush1.msra.mxu0 0.0
    %2469 = vmatprep.mubr.f32.mxu0 0.0
    %2470 = vmatmul.mubr.f32.gmra.mrb[0].mxu0 %v2394
    %v2471 = vpop.f32.mrb[0].mxu0
    %v2472 = vadd.f32 0.0, %v2471
    %v2473 = vpop.f32.mrb[0].mxu0
    %2474 = vmatprep.mubr.f32.mxu0 0.0
    %2475 = vmatmul.mubr.f32.gmra.mrb[0].mxu0 %v2397
    %v2476 = vpop.f32.mrb[0].mxu0
    %v2477 = vadd.f32 0.0, %v2476
    %v2478 = vpop.f32.mrb[0].mxu0
    %2479 = vmatprep.mubr.f32.mxu0 0.0
    %2480 = vmatmul.mubr.f32.gmra.mrb[0].mxu0 %v2400
    %v2481 = vpop.f32.mrb[0].mxu0
    %v2482 = vadd.f32 0.0, %v2481
    %v2483 = vpop.f32.mrb[0].mxu0
    %2484 = vmatprep.mubr.f32.mxu0 0.0
    %2485 = vmatmul.mubr.f32.gmra.mrb[0].mxu0 %v2403
    %v2486 = vpop.f32.mrb[0].mxu0
    %v2487 = vadd.f32 0.0, %v2486
    %v2488 = vpop.f32.mrb[0].mxu0
    %2489 = vdwg.mxu0
    %v2490 = vmul.f32 %v2373, %v2472
    %v2491 = vmul.f32 %v2378, %v2477
    %v2492 = vmul.f32 %v2383, %v2482
    %v2493 = vmul.f32 %v2388, %v2487
    %v2494 = vld [vmem:[#allocation16] sm:$0xff]
    %v2495 = vld [vmem:[#allocation16 + $0x8] sm:$0xff]
    %v2496 = vmul.f32 %v2472, %v2472
    %v2497 = vmul.f32 %v2477, %v2477
    %v2498 = vmul.f32 %v2482, %v2482
    %v2499 = vmul.f32 %v2487, %v2487
    %v2501 = vsel %vm552, %v2494, 0
    %v2504 = vsel %vm552, %v2495, 0
    %2506 = vmatprep.subr.mxu0 0.0
    %2507 = vmatpush1.msra.mxu0 %v2496
    %2508 = vmatprep.subr.mxu0 0.0
    %2509 = vmatpush1.msra.mxu0 %v2497
    %2510 = vmatprep.subr.mxu0 0.0
    %2511 = vmatpush1.msra.mxu0 %v2498
    %2512 = vmatprep.subr.mxu0 0.0
    %2513 = vmatpush1.msra.mxu0 %v2499
    %2514 = vmatprep.subr.mxu0 0.0
    %2515 = vmatpush1.msra.mxu0 0.0
    %2516 = vmatprep.subr.mxu0 0.0
    %2517 = vmatpush1.msra.mxu0 0.0
    %2518 = vmatprep.subr.mxu0 0.0
    %2519 = vmatpush1.msra.mxu0 0.0
    %2520 = vmatprep.subr.mxu0 0.0
    %2521 = vmatpush1.msra.mxu0 0.0
    %2522 = vmatprep.subr.mxu0 0.0
    %2523 = vmatpush1.msra.mxu0 0.0
    %2524 = vmatprep.subr.mxu0 0.0
    %2525 = vmatpush1.msra.mxu0 0.0
    %2526 = vmatprep.subr.mxu0 0.0
    %2527 = vmatpush1.msra.mxu0 0.0
    %2528 = vmatprep.subr.mxu0 0.0
    %2529 = vmatpush1.msra.mxu0 0.0
    %2530 = vmatprep.subr.mxu0 0.0
    %2531 = vmatpush1.msra.mxu0 0.0
    %2532 = vmatprep.subr.mxu0 0.0
    %2533 = vmatpush1.msra.mxu0 0.0
    %2534 = vmatprep.subr.mxu0 0.0
    %2535 = vmatpush1.msra.mxu0 0.0
    %2536 = vmatprep.subr.mxu0 0.0
    %2537 = vmatpush1.msra.mxu0 0.0
    %2538 = vmatprep.subr.mxu0 0.0
    %2539 = vmatpush1.msra.mxu0 0.0
    %2540 = vmatprep.subr.mxu0 0.0
    %2541 = vmatpush1.msra.mxu0 0.0
    %2542 = vmatprep.subr.mxu0 0.0
    %2543 = vmatpush1.msra.mxu0 0.0
    %2544 = vmatprep.subr.mxu0 0.0
    %2545 = vmatpush1.msra.mxu0 0.0
    %2546 = vmatprep.subr.mxu0 0.0
    %2547 = vmatpush1.msra.mxu0 0.0
    %2548 = vmatprep.subr.mxu0 0.0
    %2549 = vmatpush1.msra.mxu0 0.0
    %2550 = vmatprep.subr.mxu0 0.0
    %2551 = vmatpush1.msra.mxu0 0.0
    %2552 = vmatprep.subr.mxu0 0.0
    %2553 = vmatpush1.msra.mxu0 0.0
    %2554 = vmatprep.subr.mxu0 0.0
    %2555 = vmatpush1.msra.mxu0 0.0
    %2556 = vmatprep.subr.mxu0 0.0
    %2557 = vmatpush1.msra.mxu0 0.0
    %2558 = vmatprep.subr.mxu0 0.0
    %2559 = vmatpush1.msra.mxu0 0.0
    %2560 = vmatprep.subr.mxu0 0.0
    %2561 = vmatpush1.msra.mxu0 0.0
    %2562 = vmatprep.subr.mxu0 0.0
    %2563 = vmatpush1.msra.mxu0 0.0
    %2564 = vmatprep.subr.mxu0 0.0
    %2565 = vmatpush1.msra.mxu0 0.0
    %2566 = vmatprep.subr.mxu0 0.0
    %2567 = vmatpush1.msra.mxu0 0.0
    %2568 = vmatprep.subr.mxu0 0.0
    %2569 = vmatpush1.msra.mxu0 0.0
    %2570 = vmatprep.mubr.f32.mxu0 0.0
    %2571 = vmatmul.mubr.f32.gmra.mrb[0].mxu0 %v2501
    %v2572 = vpop.f32.mrb[0].mxu0
    %v2573 = vadd.f32 1e-08, %v2572
    %v2574 = vpop.f32.mrb[0].mxu0
    %2575 = vmatprep.mubr.f32.mxu0 0.0
    %2576 = vmatmul.mubr.f32.gmra.mrb[0].mxu0 %v2504
    %v2577 = vpop.f32.mrb[0].mxu0
    %v2578 = vadd.f32 1e-08, %v2577
    %v2579 = vpop.f32.mrb[0].mxu0
    %2580 = vdwg.mxu0
    %v2581 = vrsqrt.pop %v2573
    %v2582 = vrsqrt.pop %v2578
    %2583 = vrot.lane.b32.xlu0 %v2490, 9
    %v2584 = vpop.permute.xlu0 %2583
    %2585 = vrot.lane.b32.xlu0 %v2491, 9
    %v2586 = vpop.permute.xlu0 %2585
    %2587 = vrot.lane.b32.xlu0 %v2492, 9
    %v2588 = vpop.permute.xlu0 %2587
    %2589 = vrot.lane.b32.xlu0 %v2493, 9
    %v2590 = vpop.permute.xlu0 %2589
    %v2591 = vld [vmem:[#allocation19] sm:$0x1]
    %v2592 = vlaneseq
    %v2593 = vshrl.u32 %v2592, 7
    %v2594 = vsub.s32 0, %v2593
    %v2595 = vrot.slane %v2591, %v2594
    %v2596 = vmul.f32 %v2584, %v2595
    %v2597 = vmul.f32 %v2586, %v2595
    %v2598 = vmul.f32 %v2588, %v2595
    %v2599 = vmul.f32 %v2590, %v2595
    %2600 = vrot.lane.b32.xlu0 %v2490, 8
    %v2601 = vpop.permute.xlu0 %2600
    %2602 = vrot.lane.b32.xlu0 %v2491, 8
    %v2603 = vpop.permute.xlu0 %2602
    %2604 = vrot.lane.b32.xlu0 %v2492, 8
    %v2605 = vpop.permute.xlu0 %2604
    %2606 = vrot.lane.b32.xlu0 %v2493, 8
    %v2607 = vpop.permute.xlu0 %2606
    %v2608 = vld [vmem:[#allocation19 + $0x1] sm:$0x1]
    %v2609 = vlaneseq
    %v2610 = vshrl.u32 %v2609, 7
    %v2611 = vsub.s32 0, %v2610
    %v2612 = vrot.slane %v2608, %v2611
    %v2613 = vmul.f32 %v2601, %v2612
    %v2614 = vmul.f32 %v2603, %v2612
    %v2615 = vmul.f32 %v2605, %v2612
    %v2616 = vmul.f32 %v2607, %v2612
    %2617 = vrot.lane.b32.xlu0 %v2490, 7
    %v2618 = vpop.permute.xlu0 %2617
    %2619 = vrot.lane.b32.xlu0 %v2491, 7
    %v2620 = vpop.permute.xlu0 %2619
    %2621 = vrot.lane.b32.xlu0 %v2492, 7
    %v2622 = vpop.permute.xlu0 %2621
    %2623 = vrot.lane.b32.xlu0 %v2493, 7
    %v2624 = vpop.permute.xlu0 %2623
    %v2625 = vld [vmem:[#allocation19 + $0x2] sm:$0x1]
    %v2626 = vlaneseq
    %v2627 = vshrl.u32 %v2626, 7
    %v2628 = vsub.s32 0, %v2627
    %v2629 = vrot.slane %v2625, %v2628
    %v2630 = vmul.f32 %v2618, %v2629
    %v2631 = vmul.f32 %v2620, %v2629
    %v2632 = vmul.f32 %v2622, %v2629
    %v2633 = vmul.f32 %v2624, %v2629
    %2634 = vrot.lane.b32.xlu0 %v2490, 1
    %v2635 = vpop.permute.xlu0 %2634
    %2636 = vrot.lane.b32.xlu0 %v2491, 1
    %v2637 = vpop.permute.xlu0 %2636
    %2638 = vrot.lane.b32.xlu0 %v2492, 1
    %v2639 = vpop.permute.xlu0 %2638
    %2640 = vrot.lane.b32.xlu0 %v2493, 1
    %v2641 = vpop.permute.xlu0 %2640
    %v2642 = vld [vmem:[#allocation19 + $0x3] sm:$0x1]
    %v2643 = vlaneseq
    %v2644 = vshrl.u32 %v2643, 7
    %v2645 = vsub.s32 0, %v2644
    %v2646 = vrot.slane %v2642, %v2645
    %v2647 = vmul.f32 %v2635, %v2646
    %v2648 = vmul.f32 %v2637, %v2646
    %v2649 = vmul.f32 %v2639, %v2646
    %v2650 = vmul.f32 %v2641, %v2646
    %2651 = vrot.lane.b32.xlu0 %v2490, 127
    %v2652 = vpop.permute.xlu0 %2651
    %2653 = vrot.lane.b32.xlu0 %v2491, 127
    %v2654 = vpop.permute.xlu0 %2653
    %2655 = vrot.lane.b32.xlu0 %v2492, 127
    %v2656 = vpop.permute.xlu0 %2655
    %2657 = vrot.lane.b32.xlu0 %v2493, 127
    %v2658 = vpop.permute.xlu0 %2657
    %v2659 = vld [vmem:[#allocation19 + $0x4] sm:$0x1]
    %v2660 = vlaneseq
    %v2661 = vshrl.u32 %v2660, 7
    %v2662 = vsub.s32 0, %v2661
    %v2663 = vrot.slane %v2659, %v2662
    %v2664 = vmul.f32 %v2652, %v2663
    %v2665 = vmul.f32 %v2654, %v2663
    %v2666 = vmul.f32 %v2656, %v2663
    %v2667 = vmul.f32 %v2658, %v2663
    %2668 = vrot.lane.b32.xlu0 %v2490, 121
    %v2669 = vpop.permute.xlu0 %2668
    %2670 = vrot.lane.b32.xlu0 %v2491, 121
    %v2671 = vpop.permute.xlu0 %2670
    %2672 = vrot.lane.b32.xlu0 %v2492, 121
    %v2673 = vpop.permute.xlu0 %2672
    %2674 = vrot.lane.b32.xlu0 %v2493, 121
    %v2675 = vpop.permute.xlu0 %2674
    %v2676 = vld [vmem:[#allocation19 + $0x5] sm:$0x1]
    %v2677 = vlaneseq
    %v2678 = vshrl.u32 %v2677, 7
    %v2679 = vsub.s32 0, %v2678
    %v2680 = vrot.slane %v2676, %v2679
    %v2681 = vmul.f32 %v2669, %v2680
    %v2682 = vmul.f32 %v2671, %v2680
    %v2683 = vmul.f32 %v2673, %v2680
    %v2684 = vmul.f32 %v2675, %v2680
    %2685 = vrot.lane.b32.xlu0 %v2490, 120
    %v2686 = vpop.permute.xlu0 %2685
    %2687 = vrot.lane.b32.xlu0 %v2491, 120
    %v2688 = vpop.permute.xlu0 %2687
    %2689 = vrot.lane.b32.xlu0 %v2492, 120
    %v2690 = vpop.permute.xlu0 %2689
    %2691 = vrot.lane.b32.xlu0 %v2493, 120
    %v2692 = vpop.permute.xlu0 %2691
    %v2693 = vld [vmem:[#allocation19 + $0x6] sm:$0x1]
    %v2694 = vlaneseq
    %v2695 = vshrl.u32 %v2694, 7
    %v2696 = vsub.s32 0, %v2695
    %v2697 = vrot.slane %v2693, %v2696
    %v2698 = vmul.f32 %v2686, %v2697
    %v2699 = vmul.f32 %v2688, %v2697
    %v2700 = vmul.f32 %v2690, %v2697
    %v2701 = vmul.f32 %v2692, %v2697
    %2702 = vrot.lane.b32.xlu0 %v2490, 119
    %v2703 = vpop.permute.xlu0 %2702
    %2704 = vrot.lane.b32.xlu0 %v2491, 119
    %v2705 = vpop.permute.xlu0 %2704
    %2706 = vrot.lane.b32.xlu0 %v2492, 119
    %v2707 = vpop.permute.xlu0 %2706
    %2708 = vrot.lane.b32.xlu0 %v2493, 119
    %v2709 = vpop.permute.xlu0 %2708
    %v2710 = vld [vmem:[#allocation19 + $0x7] sm:$0x1]
    %v2711 = vlaneseq
    %v2712 = vshrl.u32 %v2711, 7
    %v2713 = vsub.s32 0, %v2712
    %v2714 = vrot.slane %v2710, %v2713
    %v2715 = vmul.f32 %v2703, %v2714
    %v2716 = vmul.f32 %v2705, %v2714
    %v2717 = vmul.f32 %v2707, %v2714
    %v2718 = vmul.f32 %v2709, %v2714
    %v2719 = vld [vmem:[%s33] sm:$0xff]
    %v2720 = vld [vmem:[%s33 + $0x8] sm:$0xf]
    %v2721 = vld [vmem:[%s33 + $0xc] sm:$0xff]
    %v2722 = vld [vmem:[%s33 + $0x14] sm:$0xf]
    %v2723 = vpack.c.bf16 %v2597, %v2596
    %v2724 = vpack.c.bf16 %v2599, %v2598
    %v2725 = vpack.c.bf16 %v2614, %v2613
    %v2726 = vpack.c.bf16 %v2616, %v2615
    %v2727 = vpack.c.bf16 %v2631, %v2630
    %v2728 = vpack.c.bf16 %v2633, %v2632
    %v2729 = vpack.c.bf16 %v2648, %v2647
    %v2730 = vpack.c.bf16 %v2650, %v2649
    %v2731 = vpack.c.bf16 %v2491, %v2490
    %v2732 = vpack.c.bf16 %v2493, %v2492
    %v2733 = vpack.c.bf16 %v2665, %v2664
    %v2734 = vpack.c.bf16 %v2667, %v2666
    %v2735 = vpack.c.bf16 %v2682, %v2681
    %v2736 = vpack.c.bf16 %v2684, %v2683
    %v2737 = vpack.c.bf16 %v2699, %v2698
    %v2738 = vpack.c.bf16 %v2701, %v2700
    %v2739 = vpack.c.bf16 %v2716, %v2715
    %v2740 = vpack.c.bf16 %v2718, %v2717
    %v2745 = vunpack.c.l.b16 %v2719
    %v2746 = vunpack.c.h.b16 %v2719
    %v2747 = vunpack.c.l.b16 %v2720
    %v2748 = vunpack.c.l.b16 %v2721
    %v2749 = vunpack.c.h.b16 %v2721
    %v2750 = vunpack.c.l.b16 %v2722
    %v2751 = vpack.c.b16 %v2748, %v2745
    %v2752 = vpack.c.b16 %v2749, %v2746
    %v2753 = vpack.c.b16 %v2750, %v2747
    %v2757 = vsel %vm552, %v2753, 0
    %2759 = vmatprep.subr.bf16.mxu0 0
    %2760 = vmatpush1.bf16.msra.mxu0 %v2723
    %2761 = vmatprep.subr.bf16.mxu0 0
    %2762 = vmatpush1.bf16.msra.mxu0 %v2724
    %2763 = vmatprep.subr.bf16.mxu0 0
    %2764 = vmatpush1.bf16.msra.mxu0 %v2725
    %2765 = vmatprep.subr.bf16.mxu0 0
    %2766 = vmatpush1.bf16.msra.mxu0 %v2726
    %2767 = vmatprep.subr.bf16.mxu0 0
    %2768 = vmatpush1.bf16.msra.mxu0 %v2727
    %2769 = vmatprep.subr.bf16.mxu0 0
    %2770 = vmatpush1.bf16.msra.mxu0 %v2728
    %2771 = vmatprep.subr.bf16.mxu0 0
    %2772 = vmatpush1.bf16.msra.mxu0 %v2729
    %2773 = vmatprep.subr.bf16.mxu0 0
    %2774 = vmatpush1.bf16.msra.mxu0 %v2730
    %2775 = vmatprep.subr.bf16.mxu0 0
    %2776 = vmatpush1.bf16.msra.mxu0 %v2731
    %2777 = vmatprep.subr.bf16.mxu0 0
    %2778 = vmatpush1.bf16.msra.mxu0 %v2732
    %2779 = vmatprep.subr.bf16.mxu0 0
    %2780 = vmatpush1.bf16.msra.mxu0 %v2733
    %2781 = vmatprep.subr.bf16.mxu0 0
    %2782 = vmatpush1.bf16.msra.mxu0 %v2734
    %2783 = vmatprep.subr.bf16.mxu0 0
    %2784 = vmatpush1.bf16.msra.mxu0 %v2735
    %2785 = vmatprep.subr.bf16.mxu0 0
    %2786 = vmatpush1.bf16.msra.mxu0 %v2736
    %2787 = vmatprep.subr.bf16.mxu0 0
    %2788 = vmatpush1.bf16.msra.mxu0 %v2737
    %2789 = vmatprep.subr.bf16.mxu0 0
    %2790 = vmatpush1.bf16.msra.mxu0 %v2738
    %2791 = vmatprep.mubr.bf16.mxu0 %v2752
    %2792 = vmatmul.mubr.bf16.gmra.mrb[0].mxu0 %v2751
    %v2793 = vpop.f32.mrb[0].mxu0
    %v2794 = vadd.f32 0.0, %v2793
    %v2795 = vpop.f32.mrb[0].mxu0
    %v2796 = vpop.f32.mrb[0].mxu0
    %v2797 = vadd.f32 0.0, %v2796
    %v2798 = vpop.f32.mrb[0].mxu0
    %2799 = vdwg.mxu0
    %2800 = vmatprep.subr.bf16.mxu0 0
    %2801 = vmatpush1.bf16.msra.mxu0 %v2739
    %2802 = vmatprep.subr.bf16.mxu0 0
    %2803 = vmatpush1.bf16.msra.mxu0 %v2740
    %2804 = vmatprep.subr.bf16.mxu0 0
    %2805 = vmatpush1.bf16.msra.mxu0 0
    %2806 = vmatprep.subr.bf16.mxu0 0
    %2807 = vmatpush1.bf16.msra.mxu0 0
    %2808 = vmatprep.subr.bf16.mxu0 0
    %2809 = vmatpush1.bf16.msra.mxu0 0
    %2810 = vmatprep.subr.bf16.mxu0 0
    %2811 = vmatpush1.bf16.msra.mxu0 0
    %2812 = vmatprep.subr.bf16.mxu0 0
    %2813 = vmatpush1.bf16.msra.mxu0 0
    %2814 = vmatprep.subr.bf16.mxu0 0
    %2815 = vmatpush1.bf16.msra.mxu0 0
    %2816 = vmatprep.subr.bf16.mxu0 0
    %2817 = vmatpush1.bf16.msra.mxu0 0
    %2818 = vmatprep.subr.bf16.mxu0 0
    %2819 = vmatpush1.bf16.msra.mxu0 0
    %2820 = vmatprep.subr.bf16.mxu0 0
    %2821 = vmatpush1.bf16.msra.mxu0 0
    %2822 = vmatprep.subr.bf16.mxu0 0
    %2823 = vmatpush1.bf16.msra.mxu0 0
    %2824 = vmatprep.subr.bf16.mxu0 0
    %2825 = vmatpush1.bf16.msra.mxu0 0
    %2826 = vmatprep.subr.bf16.mxu0 0
    %2827 = vmatpush1.bf16.msra.mxu0 0
    %2828 = vmatprep.subr.bf16.mxu0 0
    %2829 = vmatpush1.bf16.msra.mxu0 0
    %2830 = vmatprep.subr.bf16.mxu0 0
    %2831 = vmatpush1.bf16.msra.mxu0 0
    %2832 = vmatprep.mubr.bf16.mxu0 0
    %2833 = vmatmul.mubr.bf16.gmra.mrb[0].mxu0 %v2757
    %v2834 = vpop.f32.mrb[0].mxu0
    %v2835 = vadd.f32 %v2794, %v2834
    %v2836 = vpop.f32.mrb[0].mxu0
    %v2837 = vpop.f32.mrb[0].mxu0
    %v2838 = vadd.f32 %v2797, %v2837
    %v2839 = vpop.f32.mrb[0].mxu0
    %2840 = vdwg.mxu0
    %v2841 = vmul.f32 %v2581, %v2835
    %v2842 = vmul.f32 %v2582, %v2838
    %v2843 = vld [vmem:[%s37] sm:$0xff]
    %v2844 = vld [vmem:[%s37 + $0x8] sm:$0xff]
    %2846 = vset.pattern.permute.xlu0 0
    %2847 = vperm.xlu0 %2846, %v2843
    %v2848 = vpop.permute.xlu0 %2847
    %2851 = vset.pattern.permute.xlu0 0
    %2852 = vperm.xlu0 %2851, %v2844
    %v2853 = vpop.permute.xlu0 %2852
    %v2855 = vadd.f32 %v2841, %v2848
    %v2856 = vadd.f32 %v2842, %v2853
    %vm2857 = vcmp.ge.f32.partialorder %v2855, 0.0
    %vm2858 = vcmp.ge.f32.partialorder %v2856, 0.0
    %v2859 = vmul.f32 %v2855, 0.2
    %v2860 = vmul.f32 %v2856, 0.2
    %v2861 = vsel %vm2857, %v2855, %v2859
    %v2862 = vsel %vm2858, %v2856, %v2860
    %v2863 = vmul.f32 %v2861, 1.4142135
    %v2864 = vmul.f32 %v2862, 1.4142135
    %v2865 = vld [vmem:[#allocation22] sm:$0xff]
    %v2866 = vld [vmem:[#allocation22 + $0x8] sm:$0xff]
    %v2868 = vsel %vm1140, %v1106, 0
    %v2871 = vsel %vm1140, %v1111, 0
    %2873 = vmatprep.subr.mxu0 0.0
    %2874 = vmatpush1.msra.mxu0 %v2865
    %2875 = vmatprep.subr.mxu0 0.0
    %2876 = vmatpush1.msra.mxu0 %v2866
    %2877 = vmatprep.subr.mxu0 0.0
    %2878 = vmatpush1.msra.mxu0 0.0
    %2879 = vmatprep.subr.mxu0 0.0
    %2880 = vmatpush1.msra.mxu0 0.0
    %2881 = vmatprep.subr.mxu0 0.0
    %2882 = vmatpush1.msra.mxu0 0.0
    %2883 = vmatprep.subr.mxu0 0.0
    %2884 = vmatpush1.msra.mxu0 0.0
    %2885 = vmatprep.subr.mxu0 0.0
    %2886 = vmatpush1.msra.mxu0 0.0
    %2887 = vmatprep.subr.mxu0 0.0
    %2888 = vmatpush1.msra.mxu0 0.0
    %2889 = vmatprep.subr.mxu0 0.0
    %2890 = vmatpush1.msra.mxu0 0.0
    %2891 = vmatprep.subr.mxu0 0.0
    %2892 = vmatpush1.msra.mxu0 0.0
    %2893 = vmatprep.subr.mxu0 0.0
    %2894 = vmatpush1.msra.mxu0 0.0
    %2895 = vmatprep.subr.mxu0 0.0
    %2896 = vmatpush1.msra.mxu0 0.0
    %2897 = vmatprep.subr.mxu0 0.0
    %2898 = vmatpush1.msra.mxu0 0.0
    %2899 = vmatprep.subr.mxu0 0.0
    %2900 = vmatpush1.msra.mxu0 0.0
    %2901 = vmatprep.subr.mxu0 0.0
    %2902 = vmatpush1.msra.mxu0 0.0
    %2903 = vmatprep.subr.mxu0 0.0
    %2904 = vmatpush1.msra.mxu0 0.0
    %2905 = vmatprep.subr.mxu0 0.0
    %2906 = vmatpush1.msra.mxu0 0.0
    %2907 = vmatprep.subr.mxu0 0.0
    %2908 = vmatpush1.msra.mxu0 0.0
    %2909 = vmatprep.subr.mxu0 0.0
    %2910 = vmatpush1.msra.mxu0 0.0
    %2911 = vmatprep.subr.mxu0 0.0
    %2912 = vmatpush1.msra.mxu0 0.0
    %2913 = vmatprep.subr.mxu0 0.0
    %2914 = vmatpush1.msra.mxu0 0.0
    %2915 = vmatprep.subr.mxu0 0.0
    %2916 = vmatpush1.msra.mxu0 0.0
    %2917 = vmatprep.subr.mxu0 0.0
    %2918 = vmatpush1.msra.mxu0 0.0
    %2919 = vmatprep.subr.mxu0 0.0
    %2920 = vmatpush1.msra.mxu0 0.0
    %2921 = vmatprep.subr.mxu0 0.0
    %2922 = vmatpush1.msra.mxu0 0.0
    %2923 = vmatprep.subr.mxu0 0.0
    %2924 = vmatpush1.msra.mxu0 0.0
    %2925 = vmatprep.subr.mxu0 0.0
    %2926 = vmatpush1.msra.mxu0 0.0
    %2927 = vmatprep.subr.mxu0 0.0
    %2928 = vmatpush1.msra.mxu0 0.0
    %2929 = vmatprep.subr.mxu0 0.0
    %2930 = vmatpush1.msra.mxu0 0.0
    %2931 = vmatprep.subr.mxu0 0.0
    %2932 = vmatpush1.msra.mxu0 0.0
    %2933 = vmatprep.subr.mxu0 0.0
    %2934 = vmatpush1.msra.mxu0 0.0
    %2935 = vmatprep.subr.mxu0 0.0
    %2936 = vmatpush1.msra.mxu0 0.0
    %2937 = vmatprep.mubr.f32.mxu0 0.0
    %2938 = vmatmul.mubr.f32.gmra.mrb[0].mxu0 %v2868
    %v2939 = vpop.f32.mrb[0].mxu0
    %v2940 = vadd.f32 0.0, %v2939
    %v2941 = vpop.f32.mrb[0].mxu0
    %2942 = vmatprep.mubr.f32.mxu0 0.0
    %2943 = vmatmul.mubr.f32.gmra.mrb[0].mxu0 %v2871
    %v2944 = vpop.f32.mrb[0].mxu0
    %v2945 = vadd.f32 0.0, %v2944
    %v2946 = vpop.f32.mrb[0].mxu0
    %2947 = vdwg.mxu0
    %v2948 = vmul.f32 %v2863, %v2940
    %v2949 = vmul.f32 %v2864, %v2945
    %v2950 = vld [vmem:[#allocation20] sm:$0xff]
    %v2951 = vld [vmem:[#allocation20 + $0x8] sm:$0xff]
    %v2952 = vmul.f32 %v2940, %v2940
    %v2953 = vmul.f32 %v2945, %v2945
    %v2955 = vsel %vm1140, %v2950, 0
    %v2958 = vsel %vm1140, %v2951, 0
    %2960 = vmatprep.subr.mxu0 0.0
    %2961 = vmatpush1.msra.mxu0 %v2952
    %2962 = vmatprep.subr.mxu0 0.0
    %2963 = vmatpush1.msra.mxu0 %v2953
    %2964 = vmatprep.subr.mxu0 0.0
    %2965 = vmatpush1.msra.mxu0 0.0
    %2966 = vmatprep.subr.mxu0 0.0
    %2967 = vmatpush1.msra.mxu0 0.0
    %2968 = vmatprep.subr.mxu0 0.0
    %2969 = vmatpush1.msra.mxu0 0.0
    %2970 = vmatprep.subr.mxu0 0.0
    %2971 = vmatpush1.msra.mxu0 0.0
    %2972 = vmatprep.subr.mxu0 0.0
    %2973 = vmatpush1.msra.mxu0 0.0
    %2974 = vmatprep.subr.mxu0 0.0
    %2975 = vmatpush1.msra.mxu0 0.0
    %2976 = vmatprep.subr.mxu0 0.0
    %2977 = vmatpush1.msra.mxu0 0.0
    %2978 = vmatprep.subr.mxu0 0.0
    %2979 = vmatpush1.msra.mxu0 0.0
    %2980 = vmatprep.subr.mxu0 0.0
    %2981 = vmatpush1.msra.mxu0 0.0
    %2982 = vmatprep.subr.mxu0 0.0
    %2983 = vmatpush1.msra.mxu0 0.0
    %2984 = vmatprep.subr.mxu0 0.0
    %2985 = vmatpush1.msra.mxu0 0.0
    %2986 = vmatprep.subr.mxu0 0.0
    %2987 = vmatpush1.msra.mxu0 0.0
    %2988 = vmatprep.subr.mxu0 0.0
    %2989 = vmatpush1.msra.mxu0 0.0
    %2990 = vmatprep.subr.mxu0 0.0
    %2991 = vmatpush1.msra.mxu0 0.0
    %2992 = vmatprep.subr.mxu0 0.0
    %2993 = vmatpush1.msra.mxu0 0.0
    %2994 = vmatprep.subr.mxu0 0.0
    %2995 = vmatpush1.msra.mxu0 0.0
    %2996 = vmatprep.subr.mxu0 0.0
    %2997 = vmatpush1.msra.mxu0 0.0
    %2998 = vmatprep.subr.mxu0 0.0
    %2999 = vmatpush1.msra.mxu0 0.0
    %3000 = vmatprep.subr.mxu0 0.0
    %3001 = vmatpush1.msra.mxu0 0.0
    %3002 = vmatprep.subr.mxu0 0.0
    %3003 = vmatpush1.msra.mxu0 0.0
    %3004 = vmatprep.subr.mxu0 0.0
    %3005 = vmatpush1.msra.mxu0 0.0
    %3006 = vmatprep.subr.mxu0 0.0
    %3007 = vmatpush1.msra.mxu0 0.0
    %3008 = vmatprep.subr.mxu0 0.0
    %3009 = vmatpush1.msra.mxu0 0.0
    %3010 = vmatprep.subr.mxu0 0.0
    %3011 = vmatpush1.msra.mxu0 0.0
    %3012 = vmatprep.subr.mxu0 0.0
    %3013 = vmatpush1.msra.mxu0 0.0
    %3014 = vmatprep.subr.mxu0 0.0
    %3015 = vmatpush1.msra.mxu0 0.0
    %3016 = vmatprep.subr.mxu0 0.0
    %3017 = vmatpush1.msra.mxu0 0.0
    %3018 = vmatprep.subr.mxu0 0.0
    %3019 = vmatpush1.msra.mxu0 0.0
    %3020 = vmatprep.subr.mxu0 0.0
    %3021 = vmatpush1.msra.mxu0 0.0
    %3022 = vmatprep.subr.mxu0 0.0
    %3023 = vmatpush1.msra.mxu0 0.0
    %3024 = vmatprep.mubr.f32.mxu0 0.0
    %3025 = vmatmul.mubr.f32.gmra.mrb[0].mxu0 %v2955
    %v3026 = vpop.f32.mrb[0].mxu0
    %v3027 = vadd.f32 1e-08, %v3026
    %v3028 = vpop.f32.mrb[0].mxu0
    %3029 = vmatprep.mubr.f32.mxu0 0.0
    %3030 = vmatmul.mubr.f32.gmra.mrb[0].mxu0 %v2958
    %v3031 = vpop.f32.mrb[0].mxu0
    %v3032 = vadd.f32 1e-08, %v3031
    %v3033 = vpop.f32.mrb[0].mxu0
    %3034 = vdwg.mxu0
    %v3035 = vrsqrt.pop %v3027
    %v3036 = vrsqrt.pop %v3032
    %3037 = vrot.lane.b32.xlu0 %v2948, 9
    %v3038 = vpop.permute.xlu0 %3037
    %3039 = vrot.lane.b32.xlu0 %v2949, 9
    %v3040 = vpop.permute.xlu0 %3039
    %v3041 = vld [vmem:[#allocation23] sm:$0x1]
    %v3042 = vlaneseq
    %v3043 = vshrl.u32 %v3042, 7
    %v3044 = vsub.s32 0, %v3043
    %v3045 = vrot.slane %v3041, %v3044
    %v3046 = vmul.f32 %v3038, %v3045
    %v3047 = vmul.f32 %v3040, %v3045
    %3048 = vrot.lane.b32.xlu0 %v2948, 8
    %v3049 = vpop.permute.xlu0 %3048
    %3050 = vrot.lane.b32.xlu0 %v2949, 8
    %v3051 = vpop.permute.xlu0 %3050
    %v3052 = vld [vmem:[#allocation23 + $0x1] sm:$0x1]
    %v3053 = vlaneseq
    %v3054 = vshrl.u32 %v3053, 7
    %v3055 = vsub.s32 0, %v3054
    %v3056 = vrot.slane %v3052, %v3055
    %v3057 = vmul.f32 %v3049, %v3056
    %v3058 = vmul.f32 %v3051, %v3056
    %3059 = vrot.lane.b32.xlu0 %v2948, 7
    %v3060 = vpop.permute.xlu0 %3059
    %3061 = vrot.lane.b32.xlu0 %v2949, 7
    %v3062 = vpop.permute.xlu0 %3061
    %v3063 = vld [vmem:[#allocation23 + $0x2] sm:$0x1]
    %v3064 = vlaneseq
    %v3065 = vshrl.u32 %v3064, 7
    %v3066 = vsub.s32 0, %v3065
    %v3067 = vrot.slane %v3063, %v3066
    %v3068 = vmul.f32 %v3060, %v3067
    %v3069 = vmul.f32 %v3062, %v3067
    %3070 = vrot.lane.b32.xlu0 %v2948, 1
    %v3071 = vpop.permute.xlu0 %3070
    %3072 = vrot.lane.b32.xlu0 %v2949, 1
    %v3073 = vpop.permute.xlu0 %3072
    %v3074 = vld [vmem:[#allocation23 + $0x3] sm:$0x1]
    %v3075 = vlaneseq
    %v3076 = vshrl.u32 %v3075, 7
    %v3077 = vsub.s32 0, %v3076
    %v3078 = vrot.slane %v3074, %v3077
    %v3079 = vmul.f32 %v3071, %v3078
    %v3080 = vmul.f32 %v3073, %v3078
    %3081 = vrot.lane.b32.xlu0 %v2948, 127
    %v3082 = vpop.permute.xlu0 %3081
    %3083 = vrot.lane.b32.xlu0 %v2949, 127
    %v3084 = vpop.permute.xlu0 %3083
    %v3085 = vld [vmem:[#allocation23 + $0x4] sm:$0x1]
    %v3086 = vlaneseq
    %v3087 = vshrl.u32 %v3086, 7
    %v3088 = vsub.s32 0, %v3087
    %v3089 = vrot.slane %v3085, %v3088
    %v3090 = vmul.f32 %v3082, %v3089
    %v3091 = vmul.f32 %v3084, %v3089
    %3092 = vrot.lane.b32.xlu0 %v2948, 121
    %v3093 = vpop.permute.xlu0 %3092
    %3094 = vrot.lane.b32.xlu0 %v2949, 121
    %v3095 = vpop.permute.xlu0 %3094
    %v3096 = vld [vmem:[#allocation23 + $0x5] sm:$0x1]
    %v3097 = vlaneseq
    %v3098 = vshrl.u32 %v3097, 7
    %v3099 = vsub.s32 0, %v3098
    %v3100 = vrot.slane %v3096, %v3099
    %v3101 = vmul.f32 %v3093, %v3100
    %v3102 = vmul.f32 %v3095, %v3100
    %3103 = vrot.lane.b32.xlu0 %v2948, 120
    %v3104 = vpop.permute.xlu0 %3103
    %3105 = vrot.lane.b32.xlu0 %v2949, 120
    %v3106 = vpop.permute.xlu0 %3105
    %v3107 = vld [vmem:[#allocation23 + $0x6] sm:$0x1]
    %v3108 = vlaneseq
    %v3109 = vshrl.u32 %v3108, 7
    %v3110 = vsub.s32 0, %v3109
    %v3111 = vrot.slane %v3107, %v3110
    %v3112 = vmul.f32 %v3104, %v3111
    %v3113 = vmul.f32 %v3106, %v3111
    %3114 = vrot.lane.b32.xlu0 %v2948, 119
    %v3115 = vpop.permute.xlu0 %3114
    %3116 = vrot.lane.b32.xlu0 %v2949, 119
    %v3117 = vpop.permute.xlu0 %3116
    %v3118 = vld [vmem:[#allocation23 + $0x7] sm:$0x1]
    %v3119 = vlaneseq
    %v3120 = vshrl.u32 %v3119, 7
    %v3121 = vsub.s32 0, %v3120
    %v3122 = vrot.slane %v3118, %v3121
    %v3123 = vmul.f32 %v3115, %v3122
    %v3124 = vmul.f32 %v3117, %v3122
    %v3125 = vld [vmem:[%s43] sm:$0xff]
    %v3126 = vld [vmem:[%s43 + $0x8] sm:$0xff]
    %v3127 = vpack.c.bf16 %v3047, %v3046
    %v3128 = vpack.c.bf16 %v3058, %v3057
    %v3129 = vpack.c.bf16 %v3069, %v3068
    %v3130 = vpack.c.bf16 %v3080, %v3079
    %v3131 = vpack.c.bf16 %v2949, %v2948
    %v3132 = vpack.c.bf16 %v3091, %v3090
    %v3133 = vpack.c.bf16 %v3102, %v3101
    %v3134 = vpack.c.bf16 %v3113, %v3112
    %v3135 = vpack.c.bf16 %v3124, %v3123
    %v3138 = vunpack.c.l.b16 %v3125
    %v3139 = vunpack.c.h.b16 %v3125
    %v3140 = vunpack.c.l.b16 %v3126
    %v3141 = vunpack.c.h.b16 %v3126
    %v3142 = vpack.c.b16 %v3140, %v3138
    %v3143 = vpack.c.b16 %v3141, %v3139
    %v3146 = vsel %vm1140, %v3143, 0
    %3148 = vmatprep.subr.bf16.mxu0 0
    %3149 = vmatpush1.bf16.msra.mxu0 %v3127
    %3150 = vmatprep.subr.bf16.mxu0 0
    %3151 = vmatpush1.bf16.msra.mxu0 %v3128
    %3152 = vmatprep.subr.bf16.mxu0 0
    %3153 = vmatpush1.bf16.msra.mxu0 %v3129
    %3154 = vmatprep.subr.bf16.mxu0 0
    %3155 = vmatpush1.bf16.msra.mxu0 %v3130
    %3156 = vmatprep.subr.bf16.mxu0 0
    %3157 = vmatpush1.bf16.msra.mxu0 %v3131
    %3158 = vmatprep.subr.bf16.mxu0 0
    %3159 = vmatpush1.bf16.msra.mxu0 %v3132
    %3160 = vmatprep.subr.bf16.mxu0 0
    %3161 = vmatpush1.bf16.msra.mxu0 %v3133
    %3162 = vmatprep.subr.bf16.mxu0 0
    %3163 = vmatpush1.bf16.msra.mxu0 %v3134
    %3164 = vmatprep.subr.bf16.mxu0 0
    %3165 = vmatpush1.bf16.msra.mxu0 %v3135
    %3166 = vmatprep.subr.bf16.mxu0 0
    %3167 = vmatpush1.bf16.msra.mxu0 0
    %3168 = vmatprep.subr.bf16.mxu0 0
    %3169 = vmatpush1.bf16.msra.mxu0 0
    %3170 = vmatprep.subr.bf16.mxu0 0
    %3171 = vmatpush1.bf16.msra.mxu0 0
    %3172 = vmatprep.subr.bf16.mxu0 0
    %3173 = vmatpush1.bf16.msra.mxu0 0
    %3174 = vmatprep.subr.bf16.mxu0 0
    %3175 = vmatpush1.bf16.msra.mxu0 0
    %3176 = vmatprep.subr.bf16.mxu0 0
    %3177 = vmatpush1.bf16.msra.mxu0 0
    %3178 = vmatprep.subr.bf16.mxu0 0
    %3179 = vmatpush1.bf16.msra.mxu0 0
    %3180 = vmatprep.mubr.bf16.mxu0 %v3146
    %3181 = vmatmul.mubr.bf16.gmra.mrb[0].mxu0 %v3142
    %v3182 = vpop.f32.mrb[0].mxu0
    %v3183 = vadd.f32 0.0, %v3182
    %v3184 = vpop.f32.mrb[0].mxu0
    %v3185 = vpop.f32.mrb[0].mxu0
    %v3186 = vadd.f32 0.0, %v3185
    %v3187 = vpop.f32.mrb[0].mxu0
    %3188 = vdwg.mxu0
    %v3189 = vmul.f32 %v3035, %v3183
    %v3190 = vmul.f32 %v3036, %v3186
    %v3191 = vld [vmem:[%s47] sm:$0xff]
    %v3192 = vld [vmem:[%s47 + $0x8] sm:$0xff]
    %3194 = vset.pattern.permute.xlu0 0
    %3195 = vperm.xlu0 %3194, %v3191
    %v3196 = vpop.permute.xlu0 %3195
    %3199 = vset.pattern.permute.xlu0 0
    %3200 = vperm.xlu0 %3199, %v3192
    %v3201 = vpop.permute.xlu0 %3200
    %v3203 = vadd.f32 %v3189, %v3196
    %v3204 = vadd.f32 %v3190, %v3201
    %vm3205 = vcmp.ge.f32.partialorder %v3203, 0.0
    %vm3206 = vcmp.ge.f32.partialorder %v3204, 0.0
    %v3207 = vmul.f32 %v3203, 0.2
    %v3208 = vmul.f32 %v3204, 0.2
    %v3209 = vsel %vm3205, %v3203, %v3207
    %v3210 = vsel %vm3206, %v3204, %v3208
    %v3211 = vmul.f32 %v3209, 1.4142135
    %v3212 = vmul.f32 %v3210, 1.4142135
    %v3213 = vld [vmem:[#allocation10] sm:$0xff]
    %v3214 = vld [vmem:[#allocation10 + $0x8] sm:$0xff]
    %v3215 = vld [vmem:[#allocation10 + $0x10] sm:$0xff]
    %v3216 = vld [vmem:[#allocation10 + $0x18] sm:$0xff]
    %v3217 = vld [vmem:[#allocation10 + $0x20] sm:$0xff]
    %v3218 = vld [vmem:[#allocation10 + $0x28] sm:$0xff]
    %v3219 = vld [vmem:[#allocation10 + $0x30] sm:$0xff]
    %v3220 = vld [vmem:[#allocation10 + $0x38] sm:$0xff]
    %v3221 = vld [vmem:[#allocation10 + $0x40] sm:$0xff]
    %v3222 = vld [vmem:[#allocation10 + $0x48] sm:$0xff]
    %v3223 = vld [vmem:[#allocation10 + $0x50] sm:$0xff]
    %v3224 = vld [vmem:[#allocation10 + $0x58] sm:$0xff]
    %v3225 = vld [vmem:[#allocation10 + $0x60] sm:$0xff]
    %v3226 = vld [vmem:[#allocation10 + $0x68] sm:$0xff]
    %v3227 = vld [vmem:[#allocation10 + $0x70] sm:$0xff]
    %v3228 = vld [vmem:[#allocation10 + $0x78] sm:$0xff]
    %v3229 = vld [vmem:[#allocation10 + $0x80] sm:$0xff]
    %v3230 = vld [vmem:[#allocation10 + $0x88] sm:$0xff]
    %v3231 = vld [vmem:[#allocation10 + $0x90] sm:$0xff]
    %v3232 = vld [vmem:[#allocation10 + $0x98] sm:$0xff]
    %v3233 = vld [vmem:[#allocation10 + $0xa0] sm:$0xff]
    %v3234 = vld [vmem:[#allocation10 + $0xa8] sm:$0xff]
    %v3235 = vld [vmem:[#allocation10 + $0xb0] sm:$0xff]
    %v3236 = vld [vmem:[#allocation10 + $0xb8] sm:$0xff]
    %v3237 = vld [vmem:[#allocation10 + $0xc0] sm:$0xff]
    %v3238 = vld [vmem:[#allocation10 + $0xc8] sm:$0xff]
    %v3239 = vld [vmem:[#allocation10 + $0xd0] sm:$0xff]
    %v3240 = vld [vmem:[#allocation10 + $0xd8] sm:$0xff]
    %v3241 = vld [vmem:[#allocation10 + $0xe0] sm:$0xff]
    %v3242 = vld [vmem:[#allocation10 + $0xe8] sm:$0xff]
    %v3243 = vld [vmem:[#allocation10 + $0xf0] sm:$0xff]
    %v3244 = vld [vmem:[#allocation10 + $0xf8] sm:$0xff]
    %v3245 = vld [vmem:[#allocation10 + $0x100] sm:$0xff]
    %v3246 = vld [vmem:[#allocation10 + $0x108] sm:$0xff]
    %v3247 = vld [vmem:[#allocation10 + $0x110] sm:$0xff]
    %v3248 = vld [vmem:[#allocation10 + $0x118] sm:$0xff]
    %v3249 = vld [vmem:[#allocation10 + $0x120] sm:$0xff]
    %v3250 = vld [vmem:[#allocation10 + $0x128] sm:$0xff]
    %v3251 = vld [vmem:[#allocation10 + $0x130] sm:$0xff]
    %v3252 = vld [vmem:[#allocation10 + $0x138] sm:$0xff]
    %v3253 = vld [vmem:[#allocation10 + $0x140] sm:$0xff]
    %v3254 = vld [vmem:[#allocation10 + $0x148] sm:$0xff]
    %v3255 = vld [vmem:[#allocation10 + $0x150] sm:$0xff]
    %v3256 = vld [vmem:[#allocation10 + $0x158] sm:$0xff]
    %v3257 = vld [vmem:[#allocation10 + $0x160] sm:$0xff]
    %v3258 = vld [vmem:[#allocation10 + $0x168] sm:$0xff]
    %v3259 = vld [vmem:[#allocation10 + $0x170] sm:$0xff]
    %v3260 = vld [vmem:[#allocation10 + $0x178] sm:$0xff]
    %v3261 = vld [vmem:[#allocation10 + $0x180] sm:$0xff]
    %v3262 = vld [vmem:[#allocation10 + $0x188] sm:$0xff]
    %v3263 = vld [vmem:[#allocation10 + $0x190] sm:$0xff]
    %v3264 = vld [vmem:[#allocation10 + $0x198] sm:$0xff]
    %v3265 = vld [vmem:[#allocation10 + $0x1a0] sm:$0xff]
    %v3266 = vld [vmem:[#allocation10 + $0x1a8] sm:$0xff]
    %v3267 = vld [vmem:[#allocation10 + $0x1b0] sm:$0xff]
    %v3268 = vld [vmem:[#allocation10 + $0x1b8] sm:$0xff]
    %v3269 = vld [vmem:[#allocation10 + $0x1c0] sm:$0xff]
    %v3270 = vld [vmem:[#allocation10 + $0x1c8] sm:$0xff]
    %v3271 = vld [vmem:[#allocation10 + $0x1d0] sm:$0xff]
    %v3272 = vld [vmem:[#allocation10 + $0x1d8] sm:$0xff]
    %v3273 = vld [vmem:[#allocation10 + $0x1e0] sm:$0xff]
    %v3274 = vld [vmem:[#allocation10 + $0x1e8] sm:$0xff]
    %v3275 = vld [vmem:[#allocation10 + $0x1f0] sm:$0xff]
    %v3276 = vld [vmem:[#allocation10 + $0x1f8] sm:$0xff]
    %3277 = vmatprep.subr.mxu0 %v3214
    %3278 = vmatpush1.msra.mxu0 %v3213
    %3279 = vmatprep.subr.mxu0 %v3218
    %3280 = vmatpush1.msra.mxu0 %v3217
    %3281 = vmatprep.subr.mxu0 %v3222
    %3282 = vmatpush1.msra.mxu0 %v3221
    %3283 = vmatprep.subr.mxu0 %v3226
    %3284 = vmatpush1.msra.mxu0 %v3225
    %3285 = vmatprep.subr.mxu0 %v3230
    %3286 = vmatpush1.msra.mxu0 %v3229
    %3287 = vmatprep.subr.mxu0 %v3234
    %3288 = vmatpush1.msra.mxu0 %v3233
    %3289 = vmatprep.subr.mxu0 %v3238
    %3290 = vmatpush1.msra.mxu0 %v3237
    %3291 = vmatprep.subr.mxu0 %v3242
    %3292 = vmatpush1.msra.mxu0 %v3241
    %3293 = vmatprep.subr.mxu0 %v3246
    %3294 = vmatpush1.msra.mxu0 %v3245
    %3295 = vmatprep.subr.mxu0 %v3250
    %3296 = vmatpush1.msra.mxu0 %v3249
    %3297 = vmatprep.subr.mxu0 %v3254
    %3298 = vmatpush1.msra.mxu0 %v3253
    %3299 = vmatprep.subr.mxu0 %v3258
    %3300 = vmatpush1.msra.mxu0 %v3257
    %3301 = vmatprep.subr.mxu0 %v3262
    %3302 = vmatpush1.msra.mxu0 %v3261
    %3303 = vmatprep.subr.mxu0 %v3266
    %3304 = vmatpush1.msra.mxu0 %v3265
    %3305 = vmatprep.subr.mxu0 %v3270
    %3306 = vmatpush1.msra.mxu0 %v3269
    %3307 = vmatprep.subr.mxu0 %v3274
    %3308 = vmatpush1.msra.mxu0 %v3273
    %3309 = vmatprep.subr.mxu0 0.0
    %3310 = vmatpush1.msra.mxu0 0.0
    %3311 = vmatprep.subr.mxu0 0.0
    %3312 = vmatpush1.msra.mxu0 0.0
    %3313 = vmatprep.subr.mxu0 0.0
    %3314 = vmatpush1.msra.mxu0 0.0
    %3315 = vmatprep.subr.mxu0 0.0
    %3316 = vmatpush1.msra.mxu0 0.0
    %3317 = vmatprep.subr.mxu0 0.0
    %3318 = vmatpush1.msra.mxu0 0.0
    %3319 = vmatprep.subr.mxu0 0.0
    %3320 = vmatpush1.msra.mxu0 0.0
    %3321 = vmatprep.subr.mxu0 0.0
    %3322 = vmatpush1.msra.mxu0 0.0
    %3323 = vmatprep.subr.mxu0 0.0
    %3324 = vmatpush1.msra.mxu0 0.0
    %3325 = vmatprep.subr.mxu0 0.0
    %3326 = vmatpush1.msra.mxu0 0.0
    %3327 = vmatprep.subr.mxu0 0.0
    %3328 = vmatpush1.msra.mxu0 0.0
    %3329 = vmatprep.subr.mxu0 0.0
    %3330 = vmatpush1.msra.mxu0 0.0
    %3331 = vmatprep.subr.mxu0 0.0
    %3332 = vmatpush1.msra.mxu0 0.0
    %3333 = vmatprep.subr.mxu0 0.0
    %3334 = vmatpush1.msra.mxu0 0.0
    %3335 = vmatprep.subr.mxu0 0.0
    %3336 = vmatpush1.msra.mxu0 0.0
    %3337 = vmatprep.subr.mxu0 0.0
    %3338 = vmatpush1.msra.mxu0 0.0
    %3339 = vmatprep.subr.mxu0 0.0
    %3340 = vmatpush1.msra.mxu0 0.0
    %3341 = vmatprep.mubr.f32.mxu0 0.0
    %3342 = vmatmul.mubr.f32.gmra.mrb[0].mxu0 %v3211
    %v3343 = vpop.f32.mrb[0].mxu0
    %v3344 = vadd.f32 0.0, %v3343
    %v3345 = vpop.f32.mrb[0].mxu0
    %v3346 = vadd.f32 0.0, %v3345
    %3347 = vmatprep.mubr.f32.mxu0 0.0
    %3348 = vmatmul.mubr.f32.gmra.mrb[0].mxu0 %v3212
    %v3349 = vpop.f32.mrb[0].mxu0
    %v3350 = vadd.f32 0.0, %v3349
    %v3351 = vpop.f32.mrb[0].mxu0
    %v3352 = vadd.f32 0.0, %v3351
    %3353 = vdwg.mxu0
    %3354 = vmatprep.subr.mxu0 %v3216
    %3355 = vmatpush1.msra.mxu0 %v3215
    %3356 = vmatprep.subr.mxu0 %v3220
    %3357 = vmatpush1.msra.mxu0 %v3219
    %3358 = vmatprep.subr.mxu0 %v3224
    %3359 = vmatpush1.msra.mxu0 %v3223
    %3360 = vmatprep.subr.mxu0 %v3228
    %3361 = vmatpush1.msra.mxu0 %v3227
    %3362 = vmatprep.subr.mxu0 %v3232
    %3363 = vmatpush1.msra.mxu0 %v3231
    %3364 = vmatprep.subr.mxu0 %v3236
    %3365 = vmatpush1.msra.mxu0 %v3235
    %3366 = vmatprep.subr.mxu0 %v3240
    %3367 = vmatpush1.msra.mxu0 %v3239
    %3368 = vmatprep.subr.mxu0 %v3244
    %3369 = vmatpush1.msra.mxu0 %v3243
    %3370 = vmatprep.subr.mxu0 %v3248
    %3371 = vmatpush1.msra.mxu0 %v3247
    %3372 = vmatprep.subr.mxu0 %v3252
    %3373 = vmatpush1.msra.mxu0 %v3251
    %3374 = vmatprep.subr.mxu0 %v3256
    %3375 = vmatpush1.msra.mxu0 %v3255
    %3376 = vmatprep.subr.mxu0 %v3260
    %3377 = vmatpush1.msra.mxu0 %v3259
    %3378 = vmatprep.subr.mxu0 %v3264
    %3379 = vmatpush1.msra.mxu0 %v3263
    %3380 = vmatprep.subr.mxu0 %v3268
    %3381 = vmatpush1.msra.mxu0 %v3267
    %3382 = vmatprep.subr.mxu0 %v3272
    %3383 = vmatpush1.msra.mxu0 %v3271
    %3384 = vmatprep.subr.mxu0 %v3276
    %3385 = vmatpush1.msra.mxu0 %v3275
    %3386 = vmatprep.subr.mxu0 0.0
    %3387 = vmatpush1.msra.mxu0 0.0
    %3388 = vmatprep.subr.mxu0 0.0
    %3389 = vmatpush1.msra.mxu0 0.0
    %3390 = vmatprep.subr.mxu0 0.0
    %3391 = vmatpush1.msra.mxu0 0.0
    %3392 = vmatprep.subr.mxu0 0.0
    %3393 = vmatpush1.msra.mxu0 0.0
    %3394 = vmatprep.subr.mxu0 0.0
    %3395 = vmatpush1.msra.mxu0 0.0
    %3396 = vmatprep.subr.mxu0 0.0
    %3397 = vmatpush1.msra.mxu0 0.0
    %3398 = vmatprep.subr.mxu0 0.0
    %3399 = vmatpush1.msra.mxu0 0.0
    %3400 = vmatprep.subr.mxu0 0.0
    %3401 = vmatpush1.msra.mxu0 0.0
    %3402 = vmatprep.subr.mxu0 0.0
    %3403 = vmatpush1.msra.mxu0 0.0
    %3404 = vmatprep.subr.mxu0 0.0
    %3405 = vmatpush1.msra.mxu0 0.0
    %3406 = vmatprep.subr.mxu0 0.0
    %3407 = vmatpush1.msra.mxu0 0.0
    %3408 = vmatprep.subr.mxu0 0.0
    %3409 = vmatpush1.msra.mxu0 0.0
    %3410 = vmatprep.subr.mxu0 0.0
    %3411 = vmatpush1.msra.mxu0 0.0
    %3412 = vmatprep.subr.mxu0 0.0
    %3413 = vmatpush1.msra.mxu0 0.0
    %3414 = vmatprep.subr.mxu0 0.0
    %3415 = vmatpush1.msra.mxu0 0.0
    %3416 = vmatprep.subr.mxu0 0.0
    %3417 = vmatpush1.msra.mxu0 0.0
    %3418 = vmatprep.mubr.f32.mxu0 0.0
    %3419 = vmatmul.mubr.f32.gmra.mrb[0].mxu0 %v3211
    %v3420 = vpop.f32.mrb[0].mxu0
    %v3421 = vadd.f32 0.0, %v3420
    %v3422 = vpop.f32.mrb[0].mxu0
    %v3423 = vadd.f32 0.0, %v3422
    %3424 = vmatprep.mubr.f32.mxu0 0.0
    %3425 = vmatmul.mubr.f32.gmra.mrb[0].mxu0 %v3212
    %v3426 = vpop.f32.mrb[0].mxu0
    %v3427 = vadd.f32 0.0, %v3426
    %v3428 = vpop.f32.mrb[0].mxu0
    %v3429 = vadd.f32 0.0, %v3428
    %3430 = vdwg.mxu0
    %v3431 = vld [vmem:[#allocation28] sm:$0xff]
    %v3432 = vld [vmem:[#allocation28 + $0x8] sm:$0xff]
    %v3433 = vld [vmem:[#allocation28 + $0x10] sm:$0xff]
    %v3434 = vld [vmem:[#allocation28 + $0x18] sm:$0xff]
    %v3435 = vld [vmem:[#allocation28 + $0x20] sm:$0xff]
    %v3436 = vld [vmem:[#allocation28 + $0x28] sm:$0xff]
    %v3437 = vld [vmem:[#allocation28 + $0x30] sm:$0xff]
    %v3438 = vld [vmem:[#allocation28 + $0x38] sm:$0xff]
    %v3440 = vsel %vm1140, %v1116, 0
    %v3443 = vsel %vm1140, %v1121, 0
    %3445 = vmatprep.subr.mxu0 %v3432
    %3446 = vmatpush1.msra.mxu0 %v3431
    %3447 = vmatprep.subr.mxu0 %v3436
    %3448 = vmatpush1.msra.mxu0 %v3435
    %3449 = vmatprep.subr.mxu0 0.0
    %3450 = vmatpush1.msra.mxu0 0.0
    %3451 = vmatprep.subr.mxu0 0.0
    %3452 = vmatpush1.msra.mxu0 0.0
    %3453 = vmatprep.subr.mxu0 0.0
    %3454 = vmatpush1.msra.mxu0 0.0
    %3455 = vmatprep.subr.mxu0 0.0
    %3456 = vmatpush1.msra.mxu0 0.0
    %3457 = vmatprep.subr.mxu0 0.0
    %3458 = vmatpush1.msra.mxu0 0.0
    %3459 = vmatprep.subr.mxu0 0.0
    %3460 = vmatpush1.msra.mxu0 0.0
    %3461 = vmatprep.subr.mxu0 0.0
    %3462 = vmatpush1.msra.mxu0 0.0
    %3463 = vmatprep.subr.mxu0 0.0
    %3464 = vmatpush1.msra.mxu0 0.0
    %3465 = vmatprep.subr.mxu0 0.0
    %3466 = vmatpush1.msra.mxu0 0.0
    %3467 = vmatprep.subr.mxu0 0.0
    %3468 = vmatpush1.msra.mxu0 0.0
    %3469 = vmatprep.subr.mxu0 0.0
    %3470 = vmatpush1.msra.mxu0 0.0
    %3471 = vmatprep.subr.mxu0 0.0
    %3472 = vmatpush1.msra.mxu0 0.0
    %3473 = vmatprep.subr.mxu0 0.0
    %3474 = vmatpush1.msra.mxu0 0.0
    %3475 = vmatprep.subr.mxu0 0.0
    %3476 = vmatpush1.msra.mxu0 0.0
    %3477 = vmatprep.subr.mxu0 0.0
    %3478 = vmatpush1.msra.mxu0 0.0
    %3479 = vmatprep.subr.mxu0 0.0
    %3480 = vmatpush1.msra.mxu0 0.0
    %3481 = vmatprep.subr.mxu0 0.0
    %3482 = vmatpush1.msra.mxu0 0.0
    %3483 = vmatprep.subr.mxu0 0.0
    %3484 = vmatpush1.msra.mxu0 0.0
    %3485 = vmatprep.subr.mxu0 0.0
    %3486 = vmatpush1.msra.mxu0 0.0
    %3487 = vmatprep.subr.mxu0 0.0
    %3488 = vmatpush1.msra.mxu0 0.0
    %3489 = vmatprep.subr.mxu0 0.0
    %3490 = vmatpush1.msra.mxu0 0.0
    %3491 = vmatprep.subr.mxu0 0.0
    %3492 = vmatpush1.msra.mxu0 0.0
    %3493 = vmatprep.subr.mxu0 0.0
    %3494 = vmatpush1.msra.mxu0 0.0
    %3495 = vmatprep.subr.mxu0 0.0
    %3496 = vmatpush1.msra.mxu0 0.0
    %3497 = vmatprep.subr.mxu0 0.0
    %3498 = vmatpush1.msra.mxu0 0.0
    %3499 = vmatprep.subr.mxu0 0.0
    %3500 = vmatpush1.msra.mxu0 0.0
    %3501 = vmatprep.subr.mxu0 0.0
    %3502 = vmatpush1.msra.mxu0 0.0
    %3503 = vmatprep.subr.mxu0 0.0
    %3504 = vmatpush1.msra.mxu0 0.0
    %3505 = vmatprep.subr.mxu0 0.0
    %3506 = vmatpush1.msra.mxu0 0.0
    %3507 = vmatprep.subr.mxu0 0.0
    %3508 = vmatpush1.msra.mxu0 0.0
    %3509 = vmatprep.mubr.f32.mxu0 0.0
    %3510 = vmatmul.mubr.f32.gmra.mrb[0].mxu0 %v3440
    %v3511 = vpop.f32.mrb[0].mxu0
    %v3512 = vadd.f32 0.0, %v3511
    %v3513 = vpop.f32.mrb[0].mxu0
    %v3514 = vadd.f32 0.0, %v3513
    %3515 = vmatprep.mubr.f32.mxu0 0.0
    %3516 = vmatmul.mubr.f32.gmra.mrb[0].mxu0 %v3443
    %v3517 = vpop.f32.mrb[0].mxu0
    %v3518 = vadd.f32 0.0, %v3517
    %v3519 = vpop.f32.mrb[0].mxu0
    %v3520 = vadd.f32 0.0, %v3519
    %3521 = vdwg.mxu0
    %3522 = vmatprep.subr.mxu0 %v3434
    %3523 = vmatpush1.msra.mxu0 %v3433
    %3524 = vmatprep.subr.mxu0 %v3438
    %3525 = vmatpush1.msra.mxu0 %v3437
    %3526 = vmatprep.subr.mxu0 0.0
    %3527 = vmatpush1.msra.mxu0 0.0
    %3528 = vmatprep.subr.mxu0 0.0
    %3529 = vmatpush1.msra.mxu0 0.0
    %3530 = vmatprep.subr.mxu0 0.0
    %3531 = vmatpush1.msra.mxu0 0.0
    %3532 = vmatprep.subr.mxu0 0.0
    %3533 = vmatpush1.msra.mxu0 0.0
    %3534 = vmatprep.subr.mxu0 0.0
    %3535 = vmatpush1.msra.mxu0 0.0
    %3536 = vmatprep.subr.mxu0 0.0
    %3537 = vmatpush1.msra.mxu0 0.0
    %3538 = vmatprep.subr.mxu0 0.0
    %3539 = vmatpush1.msra.mxu0 0.0
    %3540 = vmatprep.subr.mxu0 0.0
    %3541 = vmatpush1.msra.mxu0 0.0
    %3542 = vmatprep.subr.mxu0 0.0
    %3543 = vmatpush1.msra.mxu0 0.0
    %3544 = vmatprep.subr.mxu0 0.0
    %3545 = vmatpush1.msra.mxu0 0.0
    %3546 = vmatprep.subr.mxu0 0.0
    %3547 = vmatpush1.msra.mxu0 0.0
    %3548 = vmatprep.subr.mxu0 0.0
    %3549 = vmatpush1.msra.mxu0 0.0
    %3550 = vmatprep.subr.mxu0 0.0
    %3551 = vmatpush1.msra.mxu0 0.0
    %3552 = vmatprep.subr.mxu0 0.0
    %3553 = vmatpush1.msra.mxu0 0.0
    %3554 = vmatprep.subr.mxu0 0.0
    %3555 = vmatpush1.msra.mxu0 0.0
    %3556 = vmatprep.subr.mxu0 0.0
    %3557 = vmatpush1.msra.mxu0 0.0
    %3558 = vmatprep.subr.mxu0 0.0
    %3559 = vmatpush1.msra.mxu0 0.0
    %3560 = vmatprep.subr.mxu0 0.0
    %3561 = vmatpush1.msra.mxu0 0.0
    %3562 = vmatprep.subr.mxu0 0.0
    %3563 = vmatpush1.msra.mxu0 0.0
    %3564 = vmatprep.subr.mxu0 0.0
    %3565 = vmatpush1.msra.mxu0 0.0
    %3566 = vmatprep.subr.mxu0 0.0
    %3567 = vmatpush1.msra.mxu0 0.0
    %3568 = vmatprep.subr.mxu0 0.0
    %3569 = vmatpush1.msra.mxu0 0.0
    %3570 = vmatprep.subr.mxu0 0.0
    %3571 = vmatpush1.msra.mxu0 0.0
    %3572 = vmatprep.subr.mxu0 0.0
    %3573 = vmatpush1.msra.mxu0 0.0
    %3574 = vmatprep.subr.mxu0 0.0
    %3575 = vmatpush1.msra.mxu0 0.0
    %3576 = vmatprep.subr.mxu0 0.0
    %3577 = vmatpush1.msra.mxu0 0.0
    %3578 = vmatprep.subr.mxu0 0.0
    %3579 = vmatpush1.msra.mxu0 0.0
    %3580 = vmatprep.subr.mxu0 0.0
    %3581 = vmatpush1.msra.mxu0 0.0
    %3582 = vmatprep.subr.mxu0 0.0
    %3583 = vmatpush1.msra.mxu0 0.0
    %3584 = vmatprep.subr.mxu0 0.0
    %3585 = vmatpush1.msra.mxu0 0.0
    %3586 = vmatprep.mubr.f32.mxu0 0.0
    %3587 = vmatmul.mubr.f32.gmra.mrb[0].mxu0 %v3440
    %v3588 = vpop.f32.mrb[0].mxu0
    %v3589 = vadd.f32 0.0, %v3588
    %v3590 = vpop.f32.mrb[0].mxu0
    %v3591 = vadd.f32 0.0, %v3590
    %3592 = vmatprep.mubr.f32.mxu0 0.0
    %3593 = vmatmul.mubr.f32.gmra.mrb[0].mxu0 %v3443
    %v3594 = vpop.f32.mrb[0].mxu0
    %v3595 = vadd.f32 0.0, %v3594
    %v3596 = vpop.f32.mrb[0].mxu0
    %v3597 = vadd.f32 0.0, %v3596
    %3598 = vdwg.mxu0
    %v3599 = vmul.f32 %v3344, %v3512
    %v3600 = vmul.f32 %v3346, %v3514
    %v3601 = vmul.f32 %v3421, %v3589
    %v3602 = vmul.f32 %v3423, %v3591
    %v3603 = vmul.f32 %v3350, %v3518
    %v3604 = vmul.f32 %v3352, %v3520
    %v3605 = vmul.f32 %v3427, %v3595
    %v3606 = vmul.f32 %v3429, %v3597
    %v3607 = vld [vmem:[#allocation26] sm:$0xff]
    %v3608 = vmul.f32 %v3512, %v3512
    %v3609 = vmul.f32 %v3514, %v3514
    %v3610 = vmul.f32 %v3589, %v3589
    %v3611 = vmul.f32 %v3591, %v3591
    %v3612 = vmul.f32 %v3518, %v3518
    %v3613 = vmul.f32 %v3520, %v3520
    %v3614 = vmul.f32 %v3595, %v3595
    %v3615 = vmul.f32 %v3597, %v3597
    %v3617 = vsel %vm1140, %v3607, 0
    %3619 = vmatprep.subr.mxu0 %v3609
    %3620 = vmatpush1.msra.mxu0 %v3608
    %3621 = vmatprep.subr.mxu0 %v3613
    %3622 = vmatpush1.msra.mxu0 %v3612
    %3623 = vmatprep.subr.mxu0 0.0
    %3624 = vmatpush1.msra.mxu0 0.0
    %3625 = vmatprep.subr.mxu0 0.0
    %3626 = vmatpush1.msra.mxu0 0.0
    %3627 = vmatprep.subr.mxu0 0.0
    %3628 = vmatpush1.msra.mxu0 0.0
    %3629 = vmatprep.subr.mxu0 0.0
    %3630 = vmatpush1.msra.mxu0 0.0
    %3631 = vmatprep.subr.mxu0 0.0
    %3632 = vmatpush1.msra.mxu0 0.0
    %3633 = vmatprep.subr.mxu0 0.0
    %3634 = vmatpush1.msra.mxu0 0.0
    %3635 = vmatprep.subr.mxu0 0.0
    %3636 = vmatpush1.msra.mxu0 0.0
    %3637 = vmatprep.subr.mxu0 0.0
    %3638 = vmatpush1.msra.mxu0 0.0
    %3639 = vmatprep.subr.mxu0 0.0
    %3640 = vmatpush1.msra.mxu0 0.0
    %3641 = vmatprep.subr.mxu0 0.0
    %3642 = vmatpush1.msra.mxu0 0.0
    %3643 = vmatprep.subr.mxu0 0.0
    %3644 = vmatpush1.msra.mxu0 0.0
    %3645 = vmatprep.subr.mxu0 0.0
    %3646 = vmatpush1.msra.mxu0 0.0
    %3647 = vmatprep.subr.mxu0 0.0
    %3648 = vmatpush1.msra.mxu0 0.0
    %3649 = vmatprep.subr.mxu0 0.0
    %3650 = vmatpush1.msra.mxu0 0.0
    %3651 = vmatprep.subr.mxu0 0.0
    %3652 = vmatpush1.msra.mxu0 0.0
    %3653 = vmatprep.subr.mxu0 0.0
    %3654 = vmatpush1.msra.mxu0 0.0
    %3655 = vmatprep.subr.mxu0 0.0
    %3656 = vmatpush1.msra.mxu0 0.0
    %3657 = vmatprep.subr.mxu0 0.0
    %3658 = vmatpush1.msra.mxu0 0.0
    %3659 = vmatprep.subr.mxu0 0.0
    %3660 = vmatpush1.msra.mxu0 0.0
    %3661 = vmatprep.subr.mxu0 0.0
    %3662 = vmatpush1.msra.mxu0 0.0
    %3663 = vmatprep.subr.mxu0 0.0
    %3664 = vmatpush1.msra.mxu0 0.0
    %3665 = vmatprep.subr.mxu0 0.0
    %3666 = vmatpush1.msra.mxu0 0.0
    %3667 = vmatprep.subr.mxu0 0.0
    %3668 = vmatpush1.msra.mxu0 0.0
    %3669 = vmatprep.subr.mxu0 0.0
    %3670 = vmatpush1.msra.mxu0 0.0
    %3671 = vmatprep.subr.mxu0 0.0
    %3672 = vmatpush1.msra.mxu0 0.0
    %3673 = vmatprep.subr.mxu0 0.0
    %3674 = vmatpush1.msra.mxu0 0.0
    %3675 = vmatprep.subr.mxu0 0.0
    %3676 = vmatpush1.msra.mxu0 0.0
    %3677 = vmatprep.subr.mxu0 0.0
    %3678 = vmatpush1.msra.mxu0 0.0
    %3679 = vmatprep.subr.mxu0 0.0
    %3680 = vmatpush1.msra.mxu0 0.0
    %3681 = vmatprep.subr.mxu0 0.0
    %3682 = vmatpush1.msra.mxu0 0.0
    %3683 = vmatprep.mubr.f32.mxu0 0.0
    %3684 = vmatmul.mubr.f32.gmra.mrb[0].mxu0 %v3617
    %v3685 = vpop.f32.mrb[0].mxu0
    %v3686 = vadd.f32 1e-08, %v3685
    %v3687 = vpop.f32.mrb[0].mxu0
    %v3688 = vadd.f32 1e-08, %v3687
    %3689 = vdwg.mxu0
    %3690 = vmatprep.subr.mxu0 %v3611
    %3691 = vmatpush1.msra.mxu0 %v3610
    %3692 = vmatprep.subr.mxu0 %v3615
    %3693 = vmatpush1.msra.mxu0 %v3614
    %3694 = vmatprep.subr.mxu0 0.0
    %3695 = vmatpush1.msra.mxu0 0.0
    %3696 = vmatprep.subr.mxu0 0.0
    %3697 = vmatpush1.msra.mxu0 0.0
    %3698 = vmatprep.subr.mxu0 0.0
    %3699 = vmatpush1.msra.mxu0 0.0
    %3700 = vmatprep.subr.mxu0 0.0
    %3701 = vmatpush1.msra.mxu0 0.0
    %3702 = vmatprep.subr.mxu0 0.0
    %3703 = vmatpush1.msra.mxu0 0.0
    %3704 = vmatprep.subr.mxu0 0.0
    %3705 = vmatpush1.msra.mxu0 0.0
    %3706 = vmatprep.subr.mxu0 0.0
    %3707 = vmatpush1.msra.mxu0 0.0
    %3708 = vmatprep.subr.mxu0 0.0
    %3709 = vmatpush1.msra.mxu0 0.0
    %3710 = vmatprep.subr.mxu0 0.0
    %3711 = vmatpush1.msra.mxu0 0.0
    %3712 = vmatprep.subr.mxu0 0.0
    %3713 = vmatpush1.msra.mxu0 0.0
    %3714 = vmatprep.subr.mxu0 0.0
    %3715 = vmatpush1.msra.mxu0 0.0
    %3716 = vmatprep.subr.mxu0 0.0
    %3717 = vmatpush1.msra.mxu0 0.0
    %3718 = vmatprep.subr.mxu0 0.0
    %3719 = vmatpush1.msra.mxu0 0.0
    %3720 = vmatprep.subr.mxu0 0.0
    %3721 = vmatpush1.msra.mxu0 0.0
    %3722 = vmatprep.subr.mxu0 0.0
    %3723 = vmatpush1.msra.mxu0 0.0
    %3724 = vmatprep.subr.mxu0 0.0
    %3725 = vmatpush1.msra.mxu0 0.0
    %3726 = vmatprep.subr.mxu0 0.0
    %3727 = vmatpush1.msra.mxu0 0.0
    %3728 = vmatprep.subr.mxu0 0.0
    %3729 = vmatpush1.msra.mxu0 0.0
    %3730 = vmatprep.subr.mxu0 0.0
    %3731 = vmatpush1.msra.mxu0 0.0
    %3732 = vmatprep.subr.mxu0 0.0
    %3733 = vmatpush1.msra.mxu0 0.0
    %3734 = vmatprep.subr.mxu0 0.0
    %3735 = vmatpush1.msra.mxu0 0.0
    %3736 = vmatprep.subr.mxu0 0.0
    %3737 = vmatpush1.msra.mxu0 0.0
    %3738 = vmatprep.subr.mxu0 0.0
    %3739 = vmatpush1.msra.mxu0 0.0
    %3740 = vmatprep.subr.mxu0 0.0
    %3741 = vmatpush1.msra.mxu0 0.0
    %3742 = vmatprep.subr.mxu0 0.0
    %3743 = vmatpush1.msra.mxu0 0.0
    %3744 = vmatprep.subr.mxu0 0.0
    %3745 = vmatpush1.msra.mxu0 0.0
    %3746 = vmatprep.subr.mxu0 0.0
    %3747 = vmatpush1.msra.mxu0 0.0
    %3748 = vmatprep.subr.mxu0 0.0
    %3749 = vmatpush1.msra.mxu0 0.0
    %3750 = vmatprep.subr.mxu0 0.0
    %3751 = vmatpush1.msra.mxu0 0.0
    %3752 = vmatprep.subr.mxu0 0.0
    %3753 = vmatpush1.msra.mxu0 0.0
    %3754 = vmatprep.mubr.f32.mxu0 0.0
    %3755 = vmatmul.mubr.f32.gmra.mrb[0].mxu0 %v3617
    %v3756 = vpop.f32.mrb[0].mxu0
    %v3757 = vadd.f32 1e-08, %v3756
    %v3758 = vpop.f32.mrb[0].mxu0
    %v3759 = vadd.f32 1e-08, %v3758
    %3760 = vdwg.mxu0
    %v3761 = vrsqrt.pop %v3686
    %v3762 = vrsqrt.pop %v3688
    %v3763 = vrsqrt.pop %v3757
    %v3764 = vrsqrt.pop %v3759
    %3765 = vrot.lane.b32.xlu0 %v3599, 17
    %v3766 = vpop.permute.xlu0 %3765
    %3767 = vrot.lane.b32.xlu0 %v3603, 17
    %v3768 = vpop.permute.xlu0 %3767
    %3769 = vrot.lane.b32.xlu0 %v3600, 17
    %v3770 = vpop.permute.xlu0 %3769
    %3771 = vrot.lane.b32.xlu0 %v3604, 17
    %v3772 = vpop.permute.xlu0 %3771
    %3773 = vrot.lane.b32.xlu0 %v3601, 17
    %v3774 = vpop.permute.xlu0 %3773
    %3775 = vrot.lane.b32.xlu0 %v3605, 17
    %v3776 = vpop.permute.xlu0 %3775
    %3777 = vrot.lane.b32.xlu0 %v3602, 17
    %v3778 = vpop.permute.xlu0 %3777
    %3779 = vrot.lane.b32.xlu0 %v3606, 17
    %v3780 = vpop.permute.xlu0 %3779
    %v3781 = vlaneseq
    %v3782 = vand.u32 %v3781, 127
    %vm3783 = vcmp.lt.s32.totalorder %v3782, 17
    %v3784 = vsel %vm3783, %v3774, %v3778
    %v3785 = vsel %vm3783, %v3776, %v3780
    %v3786 = vsel %vm3783, %v3770, %v3774
    %v3787 = vsel %vm3783, %v3772, %v3776
    %v3788 = vsel %vm3783, %v3766, %v3770
    %v3789 = vsel %vm3783, %v3768, %v3772
    %v3790 = vsel %vm3783, %v3778, %v3766
    %v3791 = vsel %vm3783, %v3780, %v3768
    %v3792 = vld [vmem:[#allocation29] ss:$8 sm:$0xf]
    %v3794 = vlaneseq
    %v3795 = vshrl.u32 %v3794, 7
    %v3796 = vsub.s32 0, %v3795
    %v3797 = vrot.slane %v3792, %v3796
    %v3798 = vlaneseq
    %v3799 = vshrl.u32 %v3798, 7
    %v3800 = vsub.s32 1, %v3799
    %v3801 = vrot.slane %v3792, %v3800
    %v3802 = vlaneseq
    %v3803 = vshrl.u32 %v3802, 7
    %v3804 = vsub.s32 2, %v3803
    %v3805 = vrot.slane %v3792, %v3804
    %v3806 = vlaneseq
    %v3807 = vshrl.u32 %v3806, 7
    %v3808 = vsub.s32 3, %v3807
    %v3809 = vrot.slane %v3792, %v3808
    %v3814 = vmul.f32 %v3790, %v3797
    %v3815 = vmul.f32 %v3788, %v3801
    %v3816 = vmul.f32 %v3786, %v3805
    %v3817 = vmul.f32 %v3784, %v3809
    %v3818 = vmul.f32 %v3791, %v3797
    %v3819 = vmul.f32 %v3789, %v3801
    %v3820 = vmul.f32 %v3787, %v3805
    %v3821 = vmul.f32 %v3785, %v3809
    %3822 = vrot.lane.b32.xlu0 %v3599, 16
    %v3823 = vpop.permute.xlu0 %3822
    %3824 = vrot.lane.b32.xlu0 %v3603, 16
    %v3825 = vpop.permute.xlu0 %3824
    %3826 = vrot.lane.b32.xlu0 %v3600, 16
    %v3827 = vpop.permute.xlu0 %3826
    %3828 = vrot.lane.b32.xlu0 %v3604, 16
    %v3829 = vpop.permute.xlu0 %3828
    %3830 = vrot.lane.b32.xlu0 %v3601, 16
    %v3831 = vpop.permute.xlu0 %3830
    %3832 = vrot.lane.b32.xlu0 %v3605, 16
    %v3833 = vpop.permute.xlu0 %3832
    %3834 = vrot.lane.b32.xlu0 %v3602, 16
    %v3835 = vpop.permute.xlu0 %3834
    %3836 = vrot.lane.b32.xlu0 %v3606, 16
    %v3837 = vpop.permute.xlu0 %3836
    %vm3838 = vcmp.lt.s32.totalorder %v3782, 16
    %v3839 = vsel %vm3838, %v3831, %v3835
    %v3840 = vsel %vm3838, %v3833, %v3837
    %v3841 = vsel %vm3838, %v3827, %v3831
    %v3842 = vsel %vm3838, %v3829, %v3833
    %v3843 = vsel %vm3838, %v3823, %v3827
    %v3844 = vsel %vm3838, %v3825, %v3829
    %v3845 = vsel %vm3838, %v3835, %v3823
    %v3846 = vsel %vm3838, %v3837, %v3825
    %s3847 = scalar_lea.vmem [#allocation29], 1
    %v3848 = vld [vmem:[%s3847] ss:$8 sm:$0xf]
    %v3850 = vlaneseq
    %v3851 = vshrl.u32 %v3850, 7
    %v3852 = vsub.s32 0, %v3851
    %v3853 = vrot.slane %v3848, %v3852
    %v3854 = vlaneseq
    %v3855 = vshrl.u32 %v3854, 7
    %v3856 = vsub.s32 1, %v3855
    %v3857 = vrot.slane %v3848, %v3856
    %v3858 = vlaneseq
    %v3859 = vshrl.u32 %v3858, 7
    %v3860 = vsub.s32 2, %v3859
    %v3861 = vrot.slane %v3848, %v3860
    %v3862 = vlaneseq
    %v3863 = vshrl.u32 %v3862, 7
    %v3864 = vsub.s32 3, %v3863
    %v3865 = vrot.slane %v3848, %v3864
    %v3870 = vmul.f32 %v3845, %v3853
    %v3871 = vmul.f32 %v3843, %v3857
    %v3872 = vmul.f32 %v3841, %v3861
    %v3873 = vmul.f32 %v3839, %v3865
    %v3874 = vmul.f32 %v3846, %v3853
    %v3875 = vmul.f32 %v3844, %v3857
    %v3876 = vmul.f32 %v3842, %v3861
    %v3877 = vmul.f32 %v3840, %v3865
    %3878 = vrot.lane.b32.xlu0 %v3599, 15
    %v3879 = vpop.permute.xlu0 %3878
    %3880 = vrot.lane.b32.xlu0 %v3603, 15
    %v3881 = vpop.permute.xlu0 %3880
    %3882 = vrot.lane.b32.xlu0 %v3600, 15
    %v3883 = vpop.permute.xlu0 %3882
    %3884 = vrot.lane.b32.xlu0 %v3604, 15
    %v3885 = vpop.permute.xlu0 %3884
    %3886 = vrot.lane.b32.xlu0 %v3601, 15
    %v3887 = vpop.permute.xlu0 %3886
    %3888 = vrot.lane.b32.xlu0 %v3605, 15
    %v3889 = vpop.permute.xlu0 %3888
    %3890 = vrot.lane.b32.xlu0 %v3602, 15
    %v3891 = vpop.permute.xlu0 %3890
    %3892 = vrot.lane.b32.xlu0 %v3606, 15
    %v3893 = vpop.permute.xlu0 %3892
    %vm3894 = vcmp.lt.s32.totalorder %v3782, 15
    %v3895 = vsel %vm3894, %v3887, %v3891
    %v3896 = vsel %vm3894, %v3889, %v3893
    %v3897 = vsel %vm3894, %v3883, %v3887
    %v3898 = vsel %vm3894, %v3885, %v3889
    %v3899 = vsel %vm3894, %v3879, %v3883
    %v3900 = vsel %vm3894, %v3881, %v3885
    %v3901 = vsel %vm3894, %v3891, %v3879
    %v3902 = vsel %vm3894, %v3893, %v3881
    %s3903 = scalar_lea.vmem [#allocation29], 2
    %v3904 = vld [vmem:[%s3903] ss:$8 sm:$0xf]
    %v3906 = vlaneseq
    %v3907 = vshrl.u32 %v3906, 7
    %v3908 = vsub.s32 0, %v3907
    %v3909 = vrot.slane %v3904, %v3908
    %v3910 = vlaneseq
    %v3911 = vshrl.u32 %v3910, 7
    %v3912 = vsub.s32 1, %v3911
    %v3913 = vrot.slane %v3904, %v3912
    %v3914 = vlaneseq
    %v3915 = vshrl.u32 %v3914, 7
    %v3916 = vsub.s32 2, %v3915
    %v3917 = vrot.slane %v3904, %v3916
    %v3918 = vlaneseq
    %v3919 = vshrl.u32 %v3918, 7
    %v3920 = vsub.s32 3, %v3919
    %v3921 = vrot.slane %v3904, %v3920
    %v3926 = vmul.f32 %v3901, %v3909
    %v3927 = vmul.f32 %v3899, %v3913
    %v3928 = vmul.f32 %v3897, %v3917
    %v3929 = vmul.f32 %v3895, %v3921
    %v3930 = vmul.f32 %v3902, %v3909
    %v3931 = vmul.f32 %v3900, %v3913
    %v3932 = vmul.f32 %v3898, %v3917
    %v3933 = vmul.f32 %v3896, %v3921
    %3934 = vrot.lane.b32.xlu0 %v3599, 1
    %v3935 = vpop.permute.xlu0 %3934
    %3936 = vrot.lane.b32.xlu0 %v3603, 1
    %v3937 = vpop.permute.xlu0 %3936
    %3938 = vrot.lane.b32.xlu0 %v3600, 1
    %v3939 = vpop.permute.xlu0 %3938
    %3940 = vrot.lane.b32.xlu0 %v3604, 1
    %v3941 = vpop.permute.xlu0 %3940
    %3942 = vrot.lane.b32.xlu0 %v3601, 1
    %v3943 = vpop.permute.xlu0 %3942
    %3944 = vrot.lane.b32.xlu0 %v3605, 1
    %v3945 = vpop.permute.xlu0 %3944
    %3946 = vrot.lane.b32.xlu0 %v3602, 1
    %v3947 = vpop.permute.xlu0 %3946
    %3948 = vrot.lane.b32.xlu0 %v3606, 1
    %v3949 = vpop.permute.xlu0 %3948
    %vm3950 = vcmp.lt.s32.totalorder %v3782, 1
    %v3951 = vsel %vm3950, %v3943, %v3947
    %v3952 = vsel %vm3950, %v3945, %v3949
    %v3953 = vsel %vm3950, %v3939, %v3943
    %v3954 = vsel %vm3950, %v3941, %v3945
    %v3955 = vsel %vm3950, %v3935, %v3939
    %v3956 = vsel %vm3950, %v3937, %v3941
    %v3957 = vsel %vm3950, %v3947, %v3935
    %v3958 = vsel %vm3950, %v3949, %v3937
    %s3959 = scalar_lea.vmem [#allocation29], 3
    %v3960 = vld [vmem:[%s3959] ss:$8 sm:$0xf]
    %v3962 = vlaneseq
    %v3963 = vshrl.u32 %v3962, 7
    %v3964 = vsub.s32 0, %v3963
    %v3965 = vrot.slane %v3960, %v3964
    %v3966 = vlaneseq
    %v3967 = vshrl.u32 %v3966, 7
    %v3968 = vsub.s32 1, %v3967
    %v3969 = vrot.slane %v3960, %v3968
    %v3970 = vlaneseq
    %v3971 = vshrl.u32 %v3970, 7
    %v3972 = vsub.s32 2, %v3971
    %v3973 = vrot.slane %v3960, %v3972
    %v3974 = vlaneseq
    %v3975 = vshrl.u32 %v3974, 7
    %v3976 = vsub.s32 3, %v3975
    %v3977 = vrot.slane %v3960, %v3976
    %v3982 = vmul.f32 %v3957, %v3965
    %v3983 = vmul.f32 %v3955, %v3969
    %v3984 = vmul.f32 %v3953, %v3973
    %v3985 = vmul.f32 %v3951, %v3977
    %v3986 = vmul.f32 %v3958, %v3965
    %v3987 = vmul.f32 %v3956, %v3969
    %v3988 = vmul.f32 %v3954, %v3973
    %v3989 = vmul.f32 %v3952, %v3977
    %3990 = vrot.lane.b32.xlu0 %v3599, 127
    %v3991 = vpop.permute.xlu0 %3990
    %3992 = vrot.lane.b32.xlu0 %v3603, 127
    %v3993 = vpop.permute.xlu0 %3992
    %3994 = vrot.lane.b32.xlu0 %v3600, 127
    %v3995 = vpop.permute.xlu0 %3994
    %3996 = vrot.lane.b32.xlu0 %v3604, 127
    %v3997 = vpop.permute.xlu0 %3996
    %3998 = vrot.lane.b32.xlu0 %v3601, 127
    %v3999 = vpop.permute.xlu0 %3998
    %4000 = vrot.lane.b32.xlu0 %v3605, 127
    %v4001 = vpop.permute.xlu0 %4000
    %4002 = vrot.lane.b32.xlu0 %v3602, 127
    %v4003 = vpop.permute.xlu0 %4002
    %4004 = vrot.lane.b32.xlu0 %v3606, 127
    %v4005 = vpop.permute.xlu0 %4004
    %vm4006 = vcmp.lt.s32.totalorder %v3782, 127
    %v4007 = vsel %vm4006, %v3999, %v4003
    %v4008 = vsel %vm4006, %v4001, %v4005
    %v4009 = vsel %vm4006, %v3995, %v3999
    %v4010 = vsel %vm4006, %v3997, %v4001
    %v4011 = vsel %vm4006, %v3991, %v3995
    %v4012 = vsel %vm4006, %v3993, %v3997
    %v4013 = vsel %vm4006, %v4003, %v3991
    %v4014 = vsel %vm4006, %v4005, %v3993
    %s4015 = scalar_lea.vmem [#allocation29], 4
    %v4016 = vld [vmem:[%s4015] ss:$8 sm:$0xf]
    %v4018 = vlaneseq
    %v4019 = vshrl.u32 %v4018, 7
    %v4020 = vsub.s32 0, %v4019
    %v4021 = vrot.slane %v4016, %v4020
    %v4022 = vlaneseq
    %v4023 = vshrl.u32 %v4022, 7
    %v4024 = vsub.s32 1, %v4023
    %v4025 = vrot.slane %v4016, %v4024
    %v4026 = vlaneseq
    %v4027 = vshrl.u32 %v4026, 7
    %v4028 = vsub.s32 2, %v4027
    %v4029 = vrot.slane %v4016, %v4028
    %v4030 = vlaneseq
    %v4031 = vshrl.u32 %v4030, 7
    %v4032 = vsub.s32 3, %v4031
    %v4033 = vrot.slane %v4016, %v4032
    %v4038 = vmul.f32 %v4011, %v4021
    %v4039 = vmul.f32 %v4009, %v4025
    %v4040 = vmul.f32 %v4007, %v4029
    %v4041 = vmul.f32 %v4013, %v4033
    %v4042 = vmul.f32 %v4012, %v4021
    %v4043 = vmul.f32 %v4010, %v4025
    %v4044 = vmul.f32 %v4008, %v4029
    %v4045 = vmul.f32 %v4014, %v4033
    %4046 = vrot.lane.b32.xlu0 %v3599, 113
    %v4047 = vpop.permute.xlu0 %4046
    %4048 = vrot.lane.b32.xlu0 %v3603, 113
    %v4049 = vpop.permute.xlu0 %4048
    %4050 = vrot.lane.b32.xlu0 %v3600, 113
    %v4051 = vpop.permute.xlu0 %4050
    %4052 = vrot.lane.b32.xlu0 %v3604, 113
    %v4053 = vpop.permute.xlu0 %4052
    %4054 = vrot.lane.b32.xlu0 %v3601, 113
    %v4055 = vpop.permute.xlu0 %4054
    %4056 = vrot.lane.b32.xlu0 %v3605, 113
    %v4057 = vpop.permute.xlu0 %4056
    %4058 = vrot.lane.b32.xlu0 %v3602, 113
    %v4059 = vpop.permute.xlu0 %4058
    %4060 = vrot.lane.b32.xlu0 %v3606, 113
    %v4061 = vpop.permute.xlu0 %4060
    %vm4062 = vcmp.lt.s32.totalorder %v3782, 113
    %v4063 = vsel %vm4062, %v4055, %v4059
    %v4064 = vsel %vm4062, %v4057, %v4061
    %v4065 = vsel %vm4062, %v4051, %v4055
    %v4066 = vsel %vm4062, %v4053, %v4057
    %v4067 = vsel %vm4062, %v4047, %v4051
    %v4068 = vsel %vm4062, %v4049, %v4053
    %v4069 = vsel %vm4062, %v4059, %v4047
    %v4070 = vsel %vm4062, %v4061, %v4049
    %s4071 = scalar_lea.vmem [#allocation29], 5
    %v4072 = vld [vmem:[%s4071] ss:$8 sm:$0xf]
    %v4074 = vlaneseq
    %v4075 = vshrl.u32 %v4074, 7
    %v4076 = vsub.s32 0, %v4075
    %v4077 = vrot.slane %v4072, %v4076
    %v4078 = vlaneseq
    %v4079 = vshrl.u32 %v4078, 7
    %v4080 = vsub.s32 1, %v4079
    %v4081 = vrot.slane %v4072, %v4080
    %v4082 = vlaneseq
    %v4083 = vshrl.u32 %v4082, 7
    %v4084 = vsub.s32 2, %v4083
    %v4085 = vrot.slane %v4072, %v4084
    %v4086 = vlaneseq
    %v4087 = vshrl.u32 %v4086, 7
    %v4088 = vsub.s32 3, %v4087
    %v4089 = vrot.slane %v4072, %v4088
    %v4094 = vmul.f32 %v4067, %v4077
    %v4095 = vmul.f32 %v4065, %v4081
    %v4096 = vmul.f32 %v4063, %v4085
    %v4097 = vmul.f32 %v4069, %v4089
    %v4098 = vmul.f32 %v4068, %v4077
    %v4099 = vmul.f32 %v4066, %v4081
    %v4100 = vmul.f32 %v4064, %v4085
    %v4101 = vmul.f32 %v4070, %v4089
    %4102 = vrot.lane.b32.xlu0 %v3599, 112
    %v4103 = vpop.permute.xlu0 %4102
    %4104 = vrot.lane.b32.xlu0 %v3603, 112
    %v4105 = vpop.permute.xlu0 %4104
    %4106 = vrot.lane.b32.xlu0 %v3600, 112
    %v4107 = vpop.permute.xlu0 %4106
    %4108 = vrot.lane.b32.xlu0 %v3604, 112
    %v4109 = vpop.permute.xlu0 %4108
    %4110 = vrot.lane.b32.xlu0 %v3601, 112
    %v4111 = vpop.permute.xlu0 %4110
    %4112 = vrot.lane.b32.xlu0 %v3605, 112
    %v4113 = vpop.permute.xlu0 %4112
    %4114 = vrot.lane.b32.xlu0 %v3602, 112
    %v4115 = vpop.permute.xlu0 %4114
    %4116 = vrot.lane.b32.xlu0 %v3606, 112
    %v4117 = vpop.permute.xlu0 %4116
    %vm4118 = vcmp.lt.s32.totalorder %v3782, 112
    %v4119 = vsel %vm4118, %v4111, %v4115
    %v4120 = vsel %vm4118, %v4113, %v4117
    %v4121 = vsel %vm4118, %v4107, %v4111
    %v4122 = vsel %vm4118, %v4109, %v4113
    %v4123 = vsel %vm4118, %v4103, %v4107
    %v4124 = vsel %vm4118, %v4105, %v4109
    %v4125 = vsel %vm4118, %v4115, %v4103
    %v4126 = vsel %vm4118, %v4117, %v4105
    %s4127 = scalar_lea.vmem [#allocation29], 6
    %v4128 = vld [vmem:[%s4127] ss:$8 sm:$0xf]
    %v4130 = vlaneseq
    %v4131 = vshrl.u32 %v4130, 7
    %v4132 = vsub.s32 0, %v4131
    %v4133 = vrot.slane %v4128, %v4132
    %v4134 = vlaneseq
    %v4135 = vshrl.u32 %v4134, 7
    %v4136 = vsub.s32 1, %v4135
    %v4137 = vrot.slane %v4128, %v4136
    %v4138 = vlaneseq
    %v4139 = vshrl.u32 %v4138, 7
    %v4140 = vsub.s32 2, %v4139
    %v4141 = vrot.slane %v4128, %v4140
    %v4142 = vlaneseq
    %v4143 = vshrl.u32 %v4142, 7
    %v4144 = vsub.s32 3, %v4143
    %v4145 = vrot.slane %v4128, %v4144
    %v4150 = vmul.f32 %v4123, %v4133
    %v4151 = vmul.f32 %v4121, %v4137
    %v4152 = vmul.f32 %v4119, %v4141
    %v4153 = vmul.f32 %v4125, %v4145
    %v4154 = vmul.f32 %v4124, %v4133
    %v4155 = vmul.f32 %v4122, %v4137
    %v4156 = vmul.f32 %v4120, %v4141
    %v4157 = vmul.f32 %v4126, %v4145
    %4158 = vrot.lane.b32.xlu0 %v3599, 111
    %v4159 = vpop.permute.xlu0 %4158
    %4160 = vrot.lane.b32.xlu0 %v3603, 111
    %v4161 = vpop.permute.xlu0 %4160
    %4162 = vrot.lane.b32.xlu0 %v3600, 111
    %v4163 = vpop.permute.xlu0 %4162
    %4164 = vrot.lane.b32.xlu0 %v3604, 111
    %v4165 = vpop.permute.xlu0 %4164
    %4166 = vrot.lane.b32.xlu0 %v3601, 111
    %v4167 = vpop.permute.xlu0 %4166
    %4168 = vrot.lane.b32.xlu0 %v3605, 111
    %v4169 = vpop.permute.xlu0 %4168
    %4170 = vrot.lane.b32.xlu0 %v3602, 111
    %v4171 = vpop.permute.xlu0 %4170
    %4172 = vrot.lane.b32.xlu0 %v3606, 111
    %v4173 = vpop.permute.xlu0 %4172
    %vm4174 = vcmp.lt.s32.totalorder %v3782, 111
    %v4175 = vsel %vm4174, %v4167, %v4171
    %v4176 = vsel %vm4174, %v4169, %v4173
    %v4177 = vsel %vm4174, %v4163, %v4167
    %v4178 = vsel %vm4174, %v4165, %v4169
    %v4179 = vsel %vm4174, %v4159, %v4163
    %v4180 = vsel %vm4174, %v4161, %v4165
    %v4181 = vsel %vm4174, %v4171, %v4159
    %v4182 = vsel %vm4174, %v4173, %v4161
    %s4183 = scalar_lea.vmem [#allocation29], 7
    %v4184 = vld [vmem:[%s4183] ss:$8 sm:$0xf]
    %v4186 = vlaneseq
    %v4187 = vshrl.u32 %v4186, 7
    %v4188 = vsub.s32 0, %v4187
    %v4189 = vrot.slane %v4184, %v4188
    %v4190 = vlaneseq
    %v4191 = vshrl.u32 %v4190, 7
    %v4192 = vsub.s32 1, %v4191
    %v4193 = vrot.slane %v4184, %v4192
    %v4194 = vlaneseq
    %v4195 = vshrl.u32 %v4194, 7
    %v4196 = vsub.s32 2, %v4195
    %v4197 = vrot.slane %v4184, %v4196
    %v4198 = vlaneseq
    %v4199 = vshrl.u32 %v4198, 7
    %v4200 = vsub.s32 3, %v4199
    %v4201 = vrot.slane %v4184, %v4200
    %v4206 = vmul.f32 %v4179, %v4189
    %v4207 = vmul.f32 %v4177, %v4193
    %v4208 = vmul.f32 %v4175, %v4197
    %v4209 = vmul.f32 %v4181, %v4201
    %v4210 = vmul.f32 %v4180, %v4189
    %v4211 = vmul.f32 %v4178, %v4193
    %v4212 = vmul.f32 %v4176, %v4197
    %v4213 = vmul.f32 %v4182, %v4201
    %v4214 = vld [vmem:[#allocation25] sm:$0xff]
    %v4215 = vpack.c.bf16 %v3818, %v3814
    %v4216 = vpack.c.bf16 %v3819, %v3815
    %v4217 = vpack.c.bf16 %v3820, %v3816
    %v4218 = vpack.c.bf16 %v3821, %v3817
    %v4219 = vpack.c.bf16 %v3874, %v3870
    %v4220 = vpack.c.bf16 %v3875, %v3871
    %v4221 = vpack.c.bf16 %v3876, %v3872
    %v4222 = vpack.c.bf16 %v3877, %v3873
    %v4223 = vpack.c.bf16 %v3930, %v3926
    %v4224 = vpack.c.bf16 %v3931, %v3927
    %v4225 = vpack.c.bf16 %v3932, %v3928
    %v4226 = vpack.c.bf16 %v3933, %v3929
    %v4227 = vpack.c.bf16 %v3986, %v3982
    %v4228 = vpack.c.bf16 %v3987, %v3983
    %v4229 = vpack.c.bf16 %v3988, %v3984
    %v4230 = vpack.c.bf16 %v3989, %v3985
    %v4231 = vpack.c.bf16 %v3603, %v3599
    %v4232 = vpack.c.bf16 %v3604, %v3600
    %v4233 = vpack.c.bf16 %v3605, %v3601
    %v4234 = vpack.c.bf16 %v3606, %v3602
    %v4235 = vpack.c.bf16 %v4042, %v4038
    %v4236 = vpack.c.bf16 %v4043, %v4039
    %v4237 = vpack.c.bf16 %v4044, %v4040
    %v4238 = vpack.c.bf16 %v4045, %v4041
    %v4239 = vpack.c.bf16 %v4098, %v4094
    %v4240 = vpack.c.bf16 %v4099, %v4095
    %v4241 = vpack.c.bf16 %v4100, %v4096
    %v4242 = vpack.c.bf16 %v4101, %v4097
    %v4243 = vpack.c.bf16 %v4154, %v4150
    %v4244 = vpack.c.bf16 %v4155, %v4151
    %v4245 = vpack.c.bf16 %v4156, %v4152
    %v4246 = vpack.c.bf16 %v4157, %v4153
    %v4247 = vpack.c.bf16 %v4210, %v4206
    %v4248 = vpack.c.bf16 %v4211, %v4207
    %v4249 = vpack.c.bf16 %v4212, %v4208
    %v4250 = vpack.c.bf16 %v4213, %v4209
    %v4252 = vunpack.c.l.b16 %v4214
    %v4253 = vunpack.c.h.b16 %v4214
    %v4254 = vpack.c.b16 %v4252, %v4252
    %v4255 = vpack.c.b16 %v4253, %v4253
    %v4258 = vsel %vm1140, %v4255, 0
    %4260 = vmatprep.subr.bf16.mxu0 %v4216
    %4261 = vmatpush1.bf16.msra.mxu0 %v4215
    %4262 = vmatprep.subr.bf16.mxu0 %v4220
    %4263 = vmatpush1.bf16.msra.mxu0 %v4219
    %4264 = vmatprep.subr.bf16.mxu0 %v4224
    %4265 = vmatpush1.bf16.msra.mxu0 %v4223
    %4266 = vmatprep.subr.bf16.mxu0 %v4228
    %4267 = vmatpush1.bf16.msra.mxu0 %v4227
    %4268 = vmatprep.subr.bf16.mxu0 %v4232
    %4269 = vmatpush1.bf16.msra.mxu0 %v4231
    %4270 = vmatprep.subr.bf16.mxu0 %v4236
    %4271 = vmatpush1.bf16.msra.mxu0 %v4235
    %4272 = vmatprep.subr.bf16.mxu0 %v4240
    %4273 = vmatpush1.bf16.msra.mxu0 %v4239
    %4274 = vmatprep.subr.bf16.mxu0 %v4244
    %4275 = vmatpush1.bf16.msra.mxu0 %v4243
    %4276 = vmatprep.subr.bf16.mxu0 %v4248
    %4277 = vmatpush1.bf16.msra.mxu0 %v4247
    %4278 = vmatprep.subr.bf16.mxu0 0
    %4279 = vmatpush1.bf16.msra.mxu0 0
    %4280 = vmatprep.subr.bf16.mxu0 0
    %4281 = vmatpush1.bf16.msra.mxu0 0
    %4282 = vmatprep.subr.bf16.mxu0 0
    %4283 = vmatpush1.bf16.msra.mxu0 0
    %4284 = vmatprep.subr.bf16.mxu0 0
    %4285 = vmatpush1.bf16.msra.mxu0 0
    %4286 = vmatprep.subr.bf16.mxu0 0
    %4287 = vmatpush1.bf16.msra.mxu0 0
    %4288 = vmatprep.subr.bf16.mxu0 0
    %4289 = vmatpush1.bf16.msra.mxu0 0
    %4290 = vmatprep.subr.bf16.mxu0 0
    %4291 = vmatpush1.bf16.msra.mxu0 0
    %4292 = vmatprep.mubr.bf16.mxu0 %v4258
    %4293 = vmatmul.mubr.bf16.gmra.mrb[0].mxu0 %v4254
    %v4294 = vpop.f32.mrb[0].mxu0
    %v4295 = vadd.f32 0.0, %v4294
    %v4296 = vpop.f32.mrb[0].mxu0
    %v4297 = vadd.f32 0.0, %v4296
    %v4298 = vpop.f32.mrb[0].mxu0
    %v4299 = vpop.f32.mrb[0].mxu0
    %4300 = vdwg.mxu0
    %4301 = vmatprep.subr.bf16.mxu0 %v4218
    %4302 = vmatpush1.bf16.msra.mxu0 %v4217
    %4303 = vmatprep.subr.bf16.mxu0 %v4222
    %4304 = vmatpush1.bf16.msra.mxu0 %v4221
    %4305 = vmatprep.subr.bf16.mxu0 %v4226
    %4306 = vmatpush1.bf16.msra.mxu0 %v4225
    %4307 = vmatprep.subr.bf16.mxu0 %v4230
    %4308 = vmatpush1.bf16.msra.mxu0 %v4229
    %4309 = vmatprep.subr.bf16.mxu0 %v4234
    %4310 = vmatpush1.bf16.msra.mxu0 %v4233
    %4311 = vmatprep.subr.bf16.mxu0 %v4238
    %4312 = vmatpush1.bf16.msra.mxu0 %v4237
    %4313 = vmatprep.subr.bf16.mxu0 %v4242
    %4314 = vmatpush1.bf16.msra.mxu0 %v4241
    %4315 = vmatprep.subr.bf16.mxu0 %v4246
    %4316 = vmatpush1.bf16.msra.mxu0 %v4245
    %4317 = vmatprep.subr.bf16.mxu0 %v4250
    %4318 = vmatpush1.bf16.msra.mxu0 %v4249
    %4319 = vmatprep.subr.bf16.mxu0 0
    %4320 = vmatpush1.bf16.msra.mxu0 0
    %4321 = vmatprep.subr.bf16.mxu0 0
    %4322 = vmatpush1.bf16.msra.mxu0 0
    %4323 = vmatprep.subr.bf16.mxu0 0
    %4324 = vmatpush1.bf16.msra.mxu0 0
    %4325 = vmatprep.subr.bf16.mxu0 0
    %4326 = vmatpush1.bf16.msra.mxu0 0
    %4327 = vmatprep.subr.bf16.mxu0 0
    %4328 = vmatpush1.bf16.msra.mxu0 0
    %4329 = vmatprep.subr.bf16.mxu0 0
    %4330 = vmatpush1.bf16.msra.mxu0 0
    %4331 = vmatprep.subr.bf16.mxu0 0
    %4332 = vmatpush1.bf16.msra.mxu0 0
    %4333 = vmatprep.mubr.bf16.mxu0 %v4258
    %4334 = vmatmul.mubr.bf16.gmra.mrb[0].mxu0 %v4254
    %v4335 = vpop.f32.mrb[0].mxu0
    %v4336 = vadd.f32 0.0, %v4335
    %v4337 = vpop.f32.mrb[0].mxu0
    %v4338 = vadd.f32 0.0, %v4337
    %v4339 = vpop.f32.mrb[0].mxu0
    %v4340 = vpop.f32.mrb[0].mxu0
    %4341 = vdwg.mxu0
    %v4342 = vmul.f32 %v3761, %v4295
    %v4343 = vmul.f32 %v3762, %v4297
    %v4344 = vmul.f32 %v3763, %v4336
    %v4345 = vmul.f32 %v3764, %v4338
    %v4346 = vld [vmem:[%s57] sm:$0xff]
    %4348 = vset.pattern.permute.xlu0 0
    %4349 = vperm.xlu0 %4348, %v4346
    %v4350 = vpop.permute.xlu0 %4349
    %v4352 = vadd.f32 %v4342, %v4350
    %v4353 = vadd.f32 %v4343, %v4350
    %v4354 = vadd.f32 %v4344, %v4350
    %v4355 = vadd.f32 %v4345, %v4350
    %vm4356 = vcmp.ge.f32.partialorder %v4352, 0.0
    %vm4357 = vcmp.ge.f32.partialorder %v4353, 0.0
    %vm4358 = vcmp.ge.f32.partialorder %v4354, 0.0
    %vm4359 = vcmp.ge.f32.partialorder %v4355, 0.0
    %v4360 = vmul.f32 %v4352, 0.2
    %v4361 = vmul.f32 %v4353, 0.2
    %v4362 = vmul.f32 %v4354, 0.2
    %v4363 = vmul.f32 %v4355, 0.2
    %v4364 = vsel %vm4356, %v4352, %v4360
    %v4365 = vsel %vm4357, %v4353, %v4361
    %v4366 = vsel %vm4358, %v4354, %v4362
    %v4367 = vsel %vm4359, %v4355, %v4363
    %v4368 = vmul.f32 %v4364, 1.4142135
    %v4369 = vmul.f32 %v4365, 1.4142135
    %v4370 = vmul.f32 %v4366, 1.4142135
    %v4371 = vmul.f32 %v4367, 1.4142135
    %v4372 = vld [vmem:[#allocation34] sm:$0xff]
    %v4373 = vld [vmem:[#allocation34 + $0x8] sm:$0xff]
    %v4374 = vld [vmem:[#allocation34 + $0x10] sm:$0xff]
    %v4375 = vld [vmem:[#allocation34 + $0x18] sm:$0xff]
    %v4376 = vld [vmem:[#allocation34 + $0x20] sm:$0xff]
    %v4377 = vld [vmem:[#allocation34 + $0x28] sm:$0xff]
    %v4378 = vld [vmem:[#allocation34 + $0x30] sm:$0xff]
    %v4379 = vld [vmem:[#allocation34 + $0x38] sm:$0xff]
    %v4381 = vsel %vm1140, %v1126, 0
    %4383 = vmatprep.subr.mxu0 %v4373
    %4384 = vmatpush1.msra.mxu0 %v4372
    %4385 = vmatprep.subr.mxu0 %v4377
    %4386 = vmatpush1.msra.mxu0 %v4376
    %4387 = vmatprep.subr.mxu0 0.0
    %4388 = vmatpush1.msra.mxu0 0.0
    %4389 = vmatprep.subr.mxu0 0.0
    %4390 = vmatpush1.msra.mxu0 0.0
    %4391 = vmatprep.subr.mxu0 0.0
    %4392 = vmatpush1.msra.mxu0 0.0
    %4393 = vmatprep.subr.mxu0 0.0
    %4394 = vmatpush1.msra.mxu0 0.0
    %4395 = vmatprep.subr.mxu0 0.0
    %4396 = vmatpush1.msra.mxu0 0.0
    %4397 = vmatprep.subr.mxu0 0.0
    %4398 = vmatpush1.msra.mxu0 0.0
    %4399 = vmatprep.subr.mxu0 0.0
    %4400 = vmatpush1.msra.mxu0 0.0
    %4401 = vmatprep.subr.mxu0 0.0
    %4402 = vmatpush1.msra.mxu0 0.0
    %4403 = vmatprep.subr.mxu0 0.0
    %4404 = vmatpush1.msra.mxu0 0.0
    %4405 = vmatprep.subr.mxu0 0.0
    %4406 = vmatpush1.msra.mxu0 0.0
    %4407 = vmatprep.subr.mxu0 0.0
    %4408 = vmatpush1.msra.mxu0 0.0
    %4409 = vmatprep.subr.mxu0 0.0
    %4410 = vmatpush1.msra.mxu0 0.0
    %4411 = vmatprep.subr.mxu0 0.0
    %4412 = vmatpush1.msra.mxu0 0.0
    %4413 = vmatprep.subr.mxu0 0.0
    %4414 = vmatpush1.msra.mxu0 0.0
    %4415 = vmatprep.subr.mxu0 0.0
    %4416 = vmatpush1.msra.mxu0 0.0
    %4417 = vmatprep.subr.mxu0 0.0
    %4418 = vmatpush1.msra.mxu0 0.0
    %4419 = vmatprep.subr.mxu0 0.0
    %4420 = vmatpush1.msra.mxu0 0.0
    %4421 = vmatprep.subr.mxu0 0.0
    %4422 = vmatpush1.msra.mxu0 0.0
    %4423 = vmatprep.subr.mxu0 0.0
    %4424 = vmatpush1.msra.mxu0 0.0
    %4425 = vmatprep.subr.mxu0 0.0
    %4426 = vmatpush1.msra.mxu0 0.0
    %4427 = vmatprep.subr.mxu0 0.0
    %4428 = vmatpush1.msra.mxu0 0.0
    %4429 = vmatprep.subr.mxu0 0.0
    %4430 = vmatpush1.msra.mxu0 0.0
    %4431 = vmatprep.subr.mxu0 0.0
    %4432 = vmatpush1.msra.mxu0 0.0
    %4433 = vmatprep.subr.mxu0 0.0
    %4434 = vmatpush1.msra.mxu0 0.0
    %4435 = vmatprep.subr.mxu0 0.0
    %4436 = vmatpush1.msra.mxu0 0.0
    %4437 = vmatprep.subr.mxu0 0.0
    %4438 = vmatpush1.msra.mxu0 0.0
    %4439 = vmatprep.subr.mxu0 0.0
    %4440 = vmatpush1.msra.mxu0 0.0
    %4441 = vmatprep.subr.mxu0 0.0
    %4442 = vmatpush1.msra.mxu0 0.0
    %4443 = vmatprep.subr.mxu0 0.0
    %4444 = vmatpush1.msra.mxu0 0.0
    %4445 = vmatprep.subr.mxu0 0.0
    %4446 = vmatpush1.msra.mxu0 0.0
    %4447 = vmatprep.mubr.f32.mxu0 0.0
    %4448 = vmatmul.mubr.f32.gmra.mrb[0].mxu0 %v4381
    %v4449 = vpop.f32.mrb[0].mxu0
    %v4450 = vadd.f32 0.0, %v4449
    %v4451 = vpop.f32.mrb[0].mxu0
    %v4452 = vadd.f32 0.0, %v4451
    %4453 = vdwg.mxu0
    %4454 = vmatprep.subr.mxu0 %v4375
    %4455 = vmatpush1.msra.mxu0 %v4374
    %4456 = vmatprep.subr.mxu0 %v4379
    %4457 = vmatpush1.msra.mxu0 %v4378
    %4458 = vmatprep.subr.mxu0 0.0
    %4459 = vmatpush1.msra.mxu0 0.0
    %4460 = vmatprep.subr.mxu0 0.0
    %4461 = vmatpush1.msra.mxu0 0.0
    %4462 = vmatprep.subr.mxu0 0.0
    %4463 = vmatpush1.msra.mxu0 0.0
    %4464 = vmatprep.subr.mxu0 0.0
    %4465 = vmatpush1.msra.mxu0 0.0
    %4466 = vmatprep.subr.mxu0 0.0
    %4467 = vmatpush1.msra.mxu0 0.0
    %4468 = vmatprep.subr.mxu0 0.0
    %4469 = vmatpush1.msra.mxu0 0.0
    %4470 = vmatprep.subr.mxu0 0.0
    %4471 = vmatpush1.msra.mxu0 0.0
    %4472 = vmatprep.subr.mxu0 0.0
    %4473 = vmatpush1.msra.mxu0 0.0
    %4474 = vmatprep.subr.mxu0 0.0
    %4475 = vmatpush1.msra.mxu0 0.0
    %4476 = vmatprep.subr.mxu0 0.0
    %4477 = vmatpush1.msra.mxu0 0.0
    %4478 = vmatprep.subr.mxu0 0.0
    %4479 = vmatpush1.msra.mxu0 0.0
    %4480 = vmatprep.subr.mxu0 0.0
    %4481 = vmatpush1.msra.mxu0 0.0
    %4482 = vmatprep.subr.mxu0 0.0
    %4483 = vmatpush1.msra.mxu0 0.0
    %4484 = vmatprep.subr.mxu0 0.0
    %4485 = vmatpush1.msra.mxu0 0.0
    %4486 = vmatprep.subr.mxu0 0.0
    %4487 = vmatpush1.msra.mxu0 0.0
    %4488 = vmatprep.subr.mxu0 0.0
    %4489 = vmatpush1.msra.mxu0 0.0
    %4490 = vmatprep.subr.mxu0 0.0
    %4491 = vmatpush1.msra.mxu0 0.0
    %4492 = vmatprep.subr.mxu0 0.0
    %4493 = vmatpush1.msra.mxu0 0.0
    %4494 = vmatprep.subr.mxu0 0.0
    %4495 = vmatpush1.msra.mxu0 0.0
    %4496 = vmatprep.subr.mxu0 0.0
    %4497 = vmatpush1.msra.mxu0 0.0
    %4498 = vmatprep.subr.mxu0 0.0
    %4499 = vmatpush1.msra.mxu0 0.0
    %4500 = vmatprep.subr.mxu0 0.0
    %4501 = vmatpush1.msra.mxu0 0.0
    %4502 = vmatprep.subr.mxu0 0.0
    %4503 = vmatpush1.msra.mxu0 0.0
    %4504 = vmatprep.subr.mxu0 0.0
    %4505 = vmatpush1.msra.mxu0 0.0
    %4506 = vmatprep.subr.mxu0 0.0
    %4507 = vmatpush1.msra.mxu0 0.0
    %4508 = vmatprep.subr.mxu0 0.0
    %4509 = vmatpush1.msra.mxu0 0.0
    %4510 = vmatprep.subr.mxu0 0.0
    %4511 = vmatpush1.msra.mxu0 0.0
    %4512 = vmatprep.subr.mxu0 0.0
    %4513 = vmatpush1.msra.mxu0 0.0
    %4514 = vmatprep.subr.mxu0 0.0
    %4515 = vmatpush1.msra.mxu0 0.0
    %4516 = vmatprep.subr.mxu0 0.0
    %4517 = vmatpush1.msra.mxu0 0.0
    %4518 = vmatprep.mubr.f32.mxu0 0.0
    %4519 = vmatmul.mubr.f32.gmra.mrb[0].mxu0 %v4381
    %v4520 = vpop.f32.mrb[0].mxu0
    %v4521 = vadd.f32 0.0, %v4520
    %v4522 = vpop.f32.mrb[0].mxu0
    %v4523 = vadd.f32 0.0, %v4522
    %4524 = vdwg.mxu0
    %v4525 = vmul.f32 %v4368, %v4450
    %v4526 = vmul.f32 %v4369, %v4452
    %v4527 = vmul.f32 %v4370, %v4521
    %v4528 = vmul.f32 %v4371, %v4523
    %v4529 = vld [vmem:[#allocation32] sm:$0xff]
    %v4530 = vmul.f32 %v4450, %v4450
    %v4531 = vmul.f32 %v4452, %v4452
    %v4532 = vmul.f32 %v4521, %v4521
    %v4533 = vmul.f32 %v4523, %v4523
    %vm4534 = vcmask 64512
    %v4536 = vsel %vm4534, %v4529, 0
    %4538 = vmatprep.subr.mxu0 %v4531
    %4539 = vmatpush1.msra.mxu0 %v4530
    %4540 = vmatprep.subr.mxu0 0.0
    %4541 = vmatpush1.msra.mxu0 0.0
    %4542 = vmatprep.subr.mxu0 0.0
    %4543 = vmatpush1.msra.mxu0 0.0
    %4544 = vmatprep.subr.mxu0 0.0
    %4545 = vmatpush1.msra.mxu0 0.0
    %4546 = vmatprep.subr.mxu0 0.0
    %4547 = vmatpush1.msra.mxu0 0.0
    %4548 = vmatprep.subr.mxu0 0.0
    %4549 = vmatpush1.msra.mxu0 0.0
    %4550 = vmatprep.subr.mxu0 0.0
    %4551 = vmatpush1.msra.mxu0 0.0
    %4552 = vmatprep.subr.mxu0 0.0
    %4553 = vmatpush1.msra.mxu0 0.0
    %4554 = vmatprep.subr.mxu0 0.0
    %4555 = vmatpush1.msra.mxu0 0.0
    %4556 = vmatprep.subr.mxu0 0.0
    %4557 = vmatpush1.msra.mxu0 0.0
    %4558 = vmatprep.subr.mxu0 0.0
    %4559 = vmatpush1.msra.mxu0 0.0
    %4560 = vmatprep.subr.mxu0 0.0
    %4561 = vmatpush1.msra.mxu0 0.0
    %4562 = vmatprep.subr.mxu0 0.0
    %4563 = vmatpush1.msra.mxu0 0.0
    %4564 = vmatprep.subr.mxu0 0.0
    %4565 = vmatpush1.msra.mxu0 0.0
    %4566 = vmatprep.subr.mxu0 0.0
    %4567 = vmatpush1.msra.mxu0 0.0
    %4568 = vmatprep.subr.mxu0 0.0
    %4569 = vmatpush1.msra.mxu0 0.0
    %4570 = vmatprep.subr.mxu0 0.0
    %4571 = vmatpush1.msra.mxu0 0.0
    %4572 = vmatprep.subr.mxu0 0.0
    %4573 = vmatpush1.msra.mxu0 0.0
    %4574 = vmatprep.subr.mxu0 0.0
    %4575 = vmatpush1.msra.mxu0 0.0
    %4576 = vmatprep.subr.mxu0 0.0
    %4577 = vmatpush1.msra.mxu0 0.0
    %4578 = vmatprep.subr.mxu0 0.0
    %4579 = vmatpush1.msra.mxu0 0.0
    %4580 = vmatprep.subr.mxu0 0.0
    %4581 = vmatpush1.msra.mxu0 0.0
    %4582 = vmatprep.subr.mxu0 0.0
    %4583 = vmatpush1.msra.mxu0 0.0
    %4584 = vmatprep.subr.mxu0 0.0
    %4585 = vmatpush1.msra.mxu0 0.0
    %4586 = vmatprep.subr.mxu0 0.0
    %4587 = vmatpush1.msra.mxu0 0.0
    %4588 = vmatprep.subr.mxu0 0.0
    %4589 = vmatpush1.msra.mxu0 0.0
    %4590 = vmatprep.subr.mxu0 0.0
    %4591 = vmatpush1.msra.mxu0 0.0
    %4592 = vmatprep.subr.mxu0 0.0
    %4593 = vmatpush1.msra.mxu0 0.0
    %4594 = vmatprep.subr.mxu0 0.0
    %4595 = vmatpush1.msra.mxu0 0.0
    %4596 = vmatprep.subr.mxu0 0.0
    %4597 = vmatpush1.msra.mxu0 0.0
    %4598 = vmatprep.subr.mxu0 0.0
    %4599 = vmatpush1.msra.mxu0 0.0
    %4600 = vmatprep.subr.mxu0 0.0
    %4601 = vmatpush1.msra.mxu0 0.0
    %4602 = vmatprep.mubr.f32.mxu0 0.0
    %4603 = vmatmul.mubr.f32.gmra.mrb[0].mxu0 %v4536
    %v4604 = vpop.f32.mrb[0].mxu0
    %v4605 = vadd.f32 1e-08, %v4604
    %v4606 = vpop.f32.mrb[0].mxu0
    %v4607 = vadd.f32 1e-08, %v4606
    %4608 = vdwg.mxu0
    %4609 = vmatprep.subr.mxu0 %v4533
    %4610 = vmatpush1.msra.mxu0 %v4532
    %4611 = vmatprep.subr.mxu0 0.0
    %4612 = vmatpush1.msra.mxu0 0.0
    %4613 = vmatprep.subr.mxu0 0.0
    %4614 = vmatpush1.msra.mxu0 0.0
    %4615 = vmatprep.subr.mxu0 0.0
    %4616 = vmatpush1.msra.mxu0 0.0
    %4617 = vmatprep.subr.mxu0 0.0
    %4618 = vmatpush1.msra.mxu0 0.0
    %4619 = vmatprep.subr.mxu0 0.0
    %4620 = vmatpush1.msra.mxu0 0.0
    %4621 = vmatprep.subr.mxu0 0.0
    %4622 = vmatpush1.msra.mxu0 0.0
    %4623 = vmatprep.subr.mxu0 0.0
    %4624 = vmatpush1.msra.mxu0 0.0
    %4625 = vmatprep.subr.mxu0 0.0
    %4626 = vmatpush1.msra.mxu0 0.0
    %4627 = vmatprep.subr.mxu0 0.0
    %4628 = vmatpush1.msra.mxu0 0.0
    %4629 = vmatprep.subr.mxu0 0.0
    %4630 = vmatpush1.msra.mxu0 0.0
    %4631 = vmatprep.subr.mxu0 0.0
    %4632 = vmatpush1.msra.mxu0 0.0
    %4633 = vmatprep.subr.mxu0 0.0
    %4634 = vmatpush1.msra.mxu0 0.0
    %4635 = vmatprep.subr.mxu0 0.0
    %4636 = vmatpush1.msra.mxu0 0.0
    %4637 = vmatprep.subr.mxu0 0.0
    %4638 = vmatpush1.msra.mxu0 0.0
    %4639 = vmatprep.subr.mxu0 0.0
    %4640 = vmatpush1.msra.mxu0 0.0
    %4641 = vmatprep.subr.mxu0 0.0
    %4642 = vmatpush1.msra.mxu0 0.0
    %4643 = vmatprep.subr.mxu0 0.0
    %4644 = vmatpush1.msra.mxu0 0.0
    %4645 = vmatprep.subr.mxu0 0.0
    %4646 = vmatpush1.msra.mxu0 0.0
    %4647 = vmatprep.subr.mxu0 0.0
    %4648 = vmatpush1.msra.mxu0 0.0
    %4649 = vmatprep.subr.mxu0 0.0
    %4650 = vmatpush1.msra.mxu0 0.0
    %4651 = vmatprep.subr.mxu0 0.0
    %4652 = vmatpush1.msra.mxu0 0.0
    %4653 = vmatprep.subr.mxu0 0.0
    %4654 = vmatpush1.msra.mxu0 0.0
    %4655 = vmatprep.subr.mxu0 0.0
    %4656 = vmatpush1.msra.mxu0 0.0
    %4657 = vmatprep.subr.mxu0 0.0
    %4658 = vmatpush1.msra.mxu0 0.0
    %4659 = vmatprep.subr.mxu0 0.0
    %4660 = vmatpush1.msra.mxu0 0.0
    %4661 = vmatprep.subr.mxu0 0.0
    %4662 = vmatpush1.msra.mxu0 0.0
    %4663 = vmatprep.subr.mxu0 0.0
    %4664 = vmatpush1.msra.mxu0 0.0
    %4665 = vmatprep.subr.mxu0 0.0
    %4666 = vmatpush1.msra.mxu0 0.0
    %4667 = vmatprep.subr.mxu0 0.0
    %4668 = vmatpush1.msra.mxu0 0.0
    %4669 = vmatprep.subr.mxu0 0.0
    %4670 = vmatpush1.msra.mxu0 0.0
    %4671 = vmatprep.subr.mxu0 0.0
    %4672 = vmatpush1.msra.mxu0 0.0
    %4673 = vmatprep.mubr.f32.mxu0 0.0
    %4674 = vmatmul.mubr.f32.gmra.mrb[0].mxu0 %v4536
    %v4675 = vpop.f32.mrb[0].mxu0
    %v4676 = vadd.f32 1e-08, %v4675
    %v4677 = vpop.f32.mrb[0].mxu0
    %v4678 = vadd.f32 1e-08, %v4677
    %4679 = vdwg.mxu0
    %v4680 = vrsqrt.pop %v4605
    %v4681 = vrsqrt.pop %v4607
    %v4682 = vrsqrt.pop %v4676
    %v4683 = vrsqrt.pop %v4678
    %4684 = vrot.lane.b32.xlu0 %v4525, 17
    %v4685 = vpop.permute.xlu0 %4684
    %4686 = vrot.lane.b32.xlu0 %v4526, 17
    %v4687 = vpop.permute.xlu0 %4686
    %4688 = vrot.lane.b32.xlu0 %v4527, 17
    %v4689 = vpop.permute.xlu0 %4688
    %4690 = vrot.lane.b32.xlu0 %v4528, 17
    %v4691 = vpop.permute.xlu0 %4690
    %v4692 = vsel %vm3783, %v4689, %v4691
    %v4693 = vsel %vm3783, %v4687, %v4689
    %v4694 = vsel %vm3783, %v4685, %v4687
    %v4695 = vsel %vm3783, %v4691, %v4685
    %v4696 = vld [vmem:[#allocation35] ss:$8 sm:$0xf]
    %v4698 = vlaneseq
    %v4699 = vshrl.u32 %v4698, 7
    %v4700 = vsub.s32 0, %v4699
    %v4701 = vrot.slane %v4696, %v4700
    %v4702 = vlaneseq
    %v4703 = vshrl.u32 %v4702, 7
    %v4704 = vsub.s32 1, %v4703
    %v4705 = vrot.slane %v4696, %v4704
    %v4706 = vlaneseq
    %v4707 = vshrl.u32 %v4706, 7
    %v4708 = vsub.s32 2, %v4707
    %v4709 = vrot.slane %v4696, %v4708
    %v4710 = vlaneseq
    %v4711 = vshrl.u32 %v4710, 7
    %v4712 = vsub.s32 3, %v4711
    %v4713 = vrot.slane %v4696, %v4712
    %v4718 = vmul.f32 %v4695, %v4701
    %v4719 = vmul.f32 %v4694, %v4705
    %v4720 = vmul.f32 %v4693, %v4709
    %v4721 = vmul.f32 %v4692, %v4713
    %4722 = vrot.lane.b32.xlu0 %v4525, 16
    %v4723 = vpop.permute.xlu0 %4722
    %4724 = vrot.lane.b32.xlu0 %v4526, 16
    %v4725 = vpop.permute.xlu0 %4724
    %4726 = vrot.lane.b32.xlu0 %v4527, 16
    %v4727 = vpop.permute.xlu0 %4726
    %4728 = vrot.lane.b32.xlu0 %v4528, 16
    %v4729 = vpop.permute.xlu0 %4728
    %v4730 = vsel %vm3838, %v4727, %v4729
    %v4731 = vsel %vm3838, %v4725, %v4727
    %v4732 = vsel %vm3838, %v4723, %v4725
    %v4733 = vsel %vm3838, %v4729, %v4723
    %s4734 = scalar_lea.vmem [#allocation35], 1
    %v4735 = vld [vmem:[%s4734] ss:$8 sm:$0xf]
    %v4737 = vlaneseq
    %v4738 = vshrl.u32 %v4737, 7
    %v4739 = vsub.s32 0, %v4738
    %v4740 = vrot.slane %v4735, %v4739
    %v4741 = vlaneseq
    %v4742 = vshrl.u32 %v4741, 7
    %v4743 = vsub.s32 1, %v4742
    %v4744 = vrot.slane %v4735, %v4743
    %v4745 = vlaneseq
    %v4746 = vshrl.u32 %v4745, 7
    %v4747 = vsub.s32 2, %v4746
    %v4748 = vrot.slane %v4735, %v4747
    %v4749 = vlaneseq
    %v4750 = vshrl.u32 %v4749, 7
    %v4751 = vsub.s32 3, %v4750
    %v4752 = vrot.slane %v4735, %v4751
    %v4757 = vmul.f32 %v4733, %v4740
    %v4758 = vmul.f32 %v4732, %v4744
    %v4759 = vmul.f32 %v4731, %v4748
    %v4760 = vmul.f32 %v4730, %v4752
    %4761 = vrot.lane.b32.xlu0 %v4525, 15
    %v4762 = vpop.permute.xlu0 %4761
    %4763 = vrot.lane.b32.xlu0 %v4526, 15
    %v4764 = vpop.permute.xlu0 %4763
    %4765 = vrot.lane.b32.xlu0 %v4527, 15
    %v4766 = vpop.permute.xlu0 %4765
    %4767 = vrot.lane.b32.xlu0 %v4528, 15
    %v4768 = vpop.permute.xlu0 %4767
    %v4769 = vsel %vm3894, %v4766, %v4768
    %v4770 = vsel %vm3894, %v4764, %v4766
    %v4771 = vsel %vm3894, %v4762, %v4764
    %v4772 = vsel %vm3894, %v4768, %v4762
    %s4773 = scalar_lea.vmem [#allocation35], 2
    %v4774 = vld [vmem:[%s4773] ss:$8 sm:$0xf]
    %v4776 = vlaneseq
    %v4777 = vshrl.u32 %v4776, 7
    %v4778 = vsub.s32 0, %v4777
    %v4779 = vrot.slane %v4774, %v4778
    %v4780 = vlaneseq
    %v4781 = vshrl.u32 %v4780, 7
    %v4782 = vsub.s32 1, %v4781
    %v4783 = vrot.slane %v4774, %v4782
    %v4784 = vlaneseq
    %v4785 = vshrl.u32 %v4784, 7
    %v4786 = vsub.s32 2, %v4785
    %v4787 = vrot.slane %v4774, %v4786
    %v4788 = vlaneseq
    %v4789 = vshrl.u32 %v4788, 7
    %v4790 = vsub.s32 3, %v4789
    %v4791 = vrot.slane %v4774, %v4790
    %v4796 = vmul.f32 %v4772, %v4779
    %v4797 = vmul.f32 %v4771, %v4783
    %v4798 = vmul.f32 %v4770, %v4787
    %v4799 = vmul.f32 %v4769, %v4791
    %4800 = vrot.lane.b32.xlu0 %v4525, 1
    %v4801 = vpop.permute.xlu0 %4800
    %4802 = vrot.lane.b32.xlu0 %v4526, 1
    %v4803 = vpop.permute.xlu0 %4802
    %4804 = vrot.lane.b32.xlu0 %v4527, 1
    %v4805 = vpop.permute.xlu0 %4804
    %4806 = vrot.lane.b32.xlu0 %v4528, 1
    %v4807 = vpop.permute.xlu0 %4806
    %v4808 = vsel %vm3950, %v4805, %v4807
    %v4809 = vsel %vm3950, %v4803, %v4805
    %v4810 = vsel %vm3950, %v4801, %v4803
    %v4811 = vsel %vm3950, %v4807, %v4801
    %s4812 = scalar_lea.vmem [#allocation35], 3
    %v4813 = vld [vmem:[%s4812] ss:$8 sm:$0xf]
    %v4815 = vlaneseq
    %v4816 = vshrl.u32 %v4815, 7
    %v4817 = vsub.s32 0, %v4816
    %v4818 = vrot.slane %v4813, %v4817
    %v4819 = vlaneseq
    %v4820 = vshrl.u32 %v4819, 7
    %v4821 = vsub.s32 1, %v4820
    %v4822 = vrot.slane %v4813, %v4821
    %v4823 = vlaneseq
    %v4824 = vshrl.u32 %v4823, 7
    %v4825 = vsub.s32 2, %v4824
    %v4826 = vrot.slane %v4813, %v4825
    %v4827 = vlaneseq
    %v4828 = vshrl.u32 %v4827, 7
    %v4829 = vsub.s32 3, %v4828
    %v4830 = vrot.slane %v4813, %v4829
    %v4835 = vmul.f32 %v4811, %v4818
    %v4836 = vmul.f32 %v4810, %v4822
    %v4837 = vmul.f32 %v4809, %v4826
    %v4838 = vmul.f32 %v4808, %v4830
    %4839 = vrot.lane.b32.xlu0 %v4525, 127
    %v4840 = vpop.permute.xlu0 %4839
    %4841 = vrot.lane.b32.xlu0 %v4526, 127
    %v4842 = vpop.permute.xlu0 %4841
    %4843 = vrot.lane.b32.xlu0 %v4527, 127
    %v4844 = vpop.permute.xlu0 %4843
    %4845 = vrot.lane.b32.xlu0 %v4528, 127
    %v4846 = vpop.permute.xlu0 %4845
    %v4847 = vsel %vm4006, %v4844, %v4846
    %v4848 = vsel %vm4006, %v4842, %v4844
    %v4849 = vsel %vm4006, %v4840, %v4842
    %v4850 = vsel %vm4006, %v4846, %v4840
    %s4851 = scalar_lea.vmem [#allocation35], 4
    %v4852 = vld [vmem:[%s4851] ss:$8 sm:$0xf]
    %v4854 = vlaneseq
    %v4855 = vshrl.u32 %v4854, 7
    %v4856 = vsub.s32 0, %v4855
    %v4857 = vrot.slane %v4852, %v4856
    %v4858 = vlaneseq
    %v4859 = vshrl.u32 %v4858, 7
    %v4860 = vsub.s32 1, %v4859
    %v4861 = vrot.slane %v4852, %v4860
    %v4862 = vlaneseq
    %v4863 = vshrl.u32 %v4862, 7
    %v4864 = vsub.s32 2, %v4863
    %v4865 = vrot.slane %v4852, %v4864
    %v4866 = vlaneseq
    %v4867 = vshrl.u32 %v4866, 7
    %v4868 = vsub.s32 3, %v4867
    %v4869 = vrot.slane %v4852, %v4868
    %v4874 = vmul.f32 %v4849, %v4857
    %v4875 = vmul.f32 %v4848, %v4861
    %v4876 = vmul.f32 %v4847, %v4865
    %v4877 = vmul.f32 %v4850, %v4869
    %4878 = vrot.lane.b32.xlu0 %v4525, 113
    %v4879 = vpop.permute.xlu0 %4878
    %4880 = vrot.lane.b32.xlu0 %v4526, 113
    %v4881 = vpop.permute.xlu0 %4880
    %4882 = vrot.lane.b32.xlu0 %v4527, 113
    %v4883 = vpop.permute.xlu0 %4882
    %4884 = vrot.lane.b32.xlu0 %v4528, 113
    %v4885 = vpop.permute.xlu0 %4884
    %v4886 = vsel %vm4062, %v4883, %v4885
    %v4887 = vsel %vm4062, %v4881, %v4883
    %v4888 = vsel %vm4062, %v4879, %v4881
    %v4889 = vsel %vm4062, %v4885, %v4879
    %s4890 = scalar_lea.vmem [#allocation35], 5
    %v4891 = vld [vmem:[%s4890] ss:$8 sm:$0xf]
    %v4893 = vlaneseq
    %v4894 = vshrl.u32 %v4893, 7
    %v4895 = vsub.s32 0, %v4894
    %v4896 = vrot.slane %v4891, %v4895
    %v4897 = vlaneseq
    %v4898 = vshrl.u32 %v4897, 7
    %v4899 = vsub.s32 1, %v4898
    %v4900 = vrot.slane %v4891, %v4899
    %v4901 = vlaneseq
    %v4902 = vshrl.u32 %v4901, 7
    %v4903 = vsub.s32 2, %v4902
    %v4904 = vrot.slane %v4891, %v4903
    %v4905 = vlaneseq
    %v4906 = vshrl.u32 %v4905, 7
    %v4907 = vsub.s32 3, %v4906
    %v4908 = vrot.slane %v4891, %v4907
    %v4913 = vmul.f32 %v4888, %v4896
    %v4914 = vmul.f32 %v4887, %v4900
    %v4915 = vmul.f32 %v4886, %v4904
    %v4916 = vmul.f32 %v4889, %v4908
    %4917 = vrot.lane.b32.xlu0 %v4525, 112
    %v4918 = vpop.permute.xlu0 %4917
    %4919 = vrot.lane.b32.xlu0 %v4526, 112
    %v4920 = vpop.permute.xlu0 %4919
    %4921 = vrot.lane.b32.xlu0 %v4527, 112
    %v4922 = vpop.permute.xlu0 %4921
    %4923 = vrot.lane.b32.xlu0 %v4528, 112
    %v4924 = vpop.permute.xlu0 %4923
    %v4925 = vsel %vm4118, %v4922, %v4924
    %v4926 = vsel %vm4118, %v4920, %v4922
    %v4927 = vsel %vm4118, %v4918, %v4920
    %v4928 = vsel %vm4118, %v4924, %v4918
    %s4929 = scalar_lea.vmem [#allocation35], 6
    %v4930 = vld [vmem:[%s4929] ss:$8 sm:$0xf]
    %v4932 = vlaneseq
    %v4933 = vshrl.u32 %v4932, 7
    %v4934 = vsub.s32 0, %v4933
    %v4935 = vrot.slane %v4930, %v4934
    %v4936 = vlaneseq
    %v4937 = vshrl.u32 %v4936, 7
    %v4938 = vsub.s32 1, %v4937
    %v4939 = vrot.slane %v4930, %v4938
    %v4940 = vlaneseq
    %v4941 = vshrl.u32 %v4940, 7
    %v4942 = vsub.s32 2, %v4941
    %v4943 = vrot.slane %v4930, %v4942
    %v4944 = vlaneseq
    %v4945 = vshrl.u32 %v4944, 7
    %v4946 = vsub.s32 3, %v4945
    %v4947 = vrot.slane %v4930, %v4946
    %v4952 = vmul.f32 %v4927, %v4935
    %v4953 = vmul.f32 %v4926, %v4939
    %v4954 = vmul.f32 %v4925, %v4943
    %v4955 = vmul.f32 %v4928, %v4947
    %4956 = vrot.lane.b32.xlu0 %v4525, 111
    %v4957 = vpop.permute.xlu0 %4956
    %4958 = vrot.lane.b32.xlu0 %v4526, 111
    %v4959 = vpop.permute.xlu0 %4958
    %4960 = vrot.lane.b32.xlu0 %v4527, 111
    %v4961 = vpop.permute.xlu0 %4960
    %4962 = vrot.lane.b32.xlu0 %v4528, 111
    %v4963 = vpop.permute.xlu0 %4962
    %v4964 = vsel %vm4174, %v4961, %v4963
    %v4965 = vsel %vm4174, %v4959, %v4961
    %v4966 = vsel %vm4174, %v4957, %v4959
    %v4967 = vsel %vm4174, %v4963, %v4957
    %s4968 = scalar_lea.vmem [#allocation35], 7
    %v4969 = vld [vmem:[%s4968] ss:$8 sm:$0xf]
    %v4971 = vlaneseq
    %v4972 = vshrl.u32 %v4971, 7
    %v4973 = vsub.s32 0, %v4972
    %v4974 = vrot.slane %v4969, %v4973
    %v4975 = vlaneseq
    %v4976 = vshrl.u32 %v4975, 7
    %v4977 = vsub.s32 1, %v4976
    %v4978 = vrot.slane %v4969, %v4977
    %v4979 = vlaneseq
    %v4980 = vshrl.u32 %v4979, 7
    %v4981 = vsub.s32 2, %v4980
    %v4982 = vrot.slane %v4969, %v4981
    %v4983 = vlaneseq
    %v4984 = vshrl.u32 %v4983, 7
    %v4985 = vsub.s32 3, %v4984
    %v4986 = vrot.slane %v4969, %v4985
    %v4991 = vmul.f32 %v4966, %v4974
    %v4992 = vmul.f32 %v4965, %v4978
    %v4993 = vmul.f32 %v4964, %v4982
    %v4994 = vmul.f32 %v4967, %v4986
    %v4995 = vld [vmem:[#allocation31] sm:$0xf]
    %v4996 = vpack.c.bf16 %v4757, %v4718
    %v4997 = vpack.c.bf16 %v4758, %v4719
    %v4998 = vpack.c.bf16 %v4759, %v4720
    %v4999 = vpack.c.bf16 %v4760, %v4721
    %v5000 = vpack.c.bf16 %v4835, %v4796
    %v5001 = vpack.c.bf16 %v4836, %v4797
    %v5002 = vpack.c.bf16 %v4837, %v4798
    %v5003 = vpack.c.bf16 %v4838, %v4799
    %v5004 = vpack.c.bf16 %v4874, %v4525
    %v5005 = vpack.c.bf16 %v4875, %v4526
    %v5006 = vpack.c.bf16 %v4876, %v4527
    %v5007 = vpack.c.bf16 %v4877, %v4528
    %v5008 = vpack.c.bf16 %v4952, %v4913
    %v5009 = vpack.c.bf16 %v4953, %v4914
    %v5010 = vpack.c.bf16 %v4954, %v4915
    %v5011 = vpack.c.bf16 %v4955, %v4916
    %v5012 = vpack.c.bf16 %v4991, %v4991
    %v5013 = vpack.c.bf16 %v4992, %v4992
    %v5014 = vpack.c.bf16 %v4993, %v4993
    %v5015 = vpack.c.bf16 %v4994, %v4994
    %vm5016 = vcmask 588800
    %v5018 = vsel %vm5016, %v4995, 0
    %vm5020 = vcmask 1043456
    %v5022 = vsel %vm5020, %v5012, 0
    %v5025 = vsel %vm5020, %v5013, 0
    %v5028 = vsel %vm5020, %v5014, 0
    %v5031 = vsel %vm5020, %v5015, 0
    %5033 = vmatprep.subr.bf16.mxu0 %v4997
    %5034 = vmatpush1.bf16.msra.mxu0 %v4996
    %5035 = vmatprep.subr.bf16.mxu0 %v5001
    %5036 = vmatpush1.bf16.msra.mxu0 %v5000
    %5037 = vmatprep.subr.bf16.mxu0 %v5005
    %5038 = vmatpush1.bf16.msra.mxu0 %v5004
    %5039 = vmatprep.subr.bf16.mxu0 %v5009
    %5040 = vmatpush1.bf16.msra.mxu0 %v5008
    %5041 = vmatprep.subr.bf16.mxu0 %v5025
    %5042 = vmatpush1.bf16.msra.mxu0 %v5022
    %5043 = vmatprep.subr.bf16.mxu0 0
    %5044 = vmatpush1.bf16.msra.mxu0 0
    %5045 = vmatprep.subr.bf16.mxu0 0
    %5046 = vmatpush1.bf16.msra.mxu0 0
    %5047 = vmatprep.subr.bf16.mxu0 0
    %5048 = vmatpush1.bf16.msra.mxu0 0
    %5049 = vmatprep.subr.bf16.mxu0 0
    %5050 = vmatpush1.bf16.msra.mxu0 0
    %5051 = vmatprep.subr.bf16.mxu0 0
    %5052 = vmatpush1.bf16.msra.mxu0 0
    %5053 = vmatprep.subr.bf16.mxu0 0
    %5054 = vmatpush1.bf16.msra.mxu0 0
    %5055 = vmatprep.subr.bf16.mxu0 0
    %5056 = vmatpush1.bf16.msra.mxu0 0
    %5057 = vmatprep.subr.bf16.mxu0 0
    %5058 = vmatpush1.bf16.msra.mxu0 0
    %5059 = vmatprep.subr.bf16.mxu0 0
    %5060 = vmatpush1.bf16.msra.mxu0 0
    %5061 = vmatprep.subr.bf16.mxu0 0
    %5062 = vmatpush1.bf16.msra.mxu0 0
    %5063 = vmatprep.subr.bf16.mxu0 0
    %5064 = vmatpush1.bf16.msra.mxu0 0
    %5065 = vmatprep.mubr.bf16.mxu0 0
    %5066 = vmatmul.mubr.bf16.gmra.mrb[0].mxu0 %v5018
    %v5067 = vpop.f32.mrb[0].mxu0
    %v5068 = vadd.f32 0.0, %v5067
    %v5069 = vpop.f32.mrb[0].mxu0
    %v5070 = vadd.f32 0.0, %v5069
    %v5071 = vpop.f32.mrb[0].mxu0
    %v5072 = vpop.f32.mrb[0].mxu0
    %5073 = vdwg.mxu0
    %5074 = vmatprep.subr.bf16.mxu0 %v4999
    %5075 = vmatpush1.bf16.msra.mxu0 %v4998
    %5076 = vmatprep.subr.bf16.mxu0 %v5003
    %5077 = vmatpush1.bf16.msra.mxu0 %v5002
    %5078 = vmatprep.subr.bf16.mxu0 %v5007
    %5079 = vmatpush1.bf16.msra.mxu0 %v5006
    %5080 = vmatprep.subr.bf16.mxu0 %v5011
    %5081 = vmatpush1.bf16.msra.mxu0 %v5010
    %5082 = vmatprep.subr.bf16.mxu0 %v5031
    %5083 = vmatpush1.bf16.msra.mxu0 %v5028
    %5084 = vmatprep.subr.bf16.mxu0 0
    %5085 = vmatpush1.bf16.msra.mxu0 0
    %5086 = vmatprep.subr.bf16.mxu0 0
    %5087 = vmatpush1.bf16.msra.mxu0 0
    %5088 = vmatprep.subr.bf16.mxu0 0
    %5089 = vmatpush1.bf16.msra.mxu0 0
    %5090 = vmatprep.subr.bf16.mxu0 0
    %5091 = vmatpush1.bf16.msra.mxu0 0
    %5092 = vmatprep.subr.bf16.mxu0 0
    %5093 = vmatpush1.bf16.msra.mxu0 0
    %5094 = vmatprep.subr.bf16.mxu0 0
    %5095 = vmatpush1.bf16.msra.mxu0 0
    %5096 = vmatprep.subr.bf16.mxu0 0
    %5097 = vmatpush1.bf16.msra.mxu0 0
    %5098 = vmatprep.subr.bf16.mxu0 0
    %5099 = vmatpush1.bf16.msra.mxu0 0
    %5100 = vmatprep.subr.bf16.mxu0 0
    %5101 = vmatpush1.bf16.msra.mxu0 0
    %5102 = vmatprep.subr.bf16.mxu0 0
    %5103 = vmatpush1.bf16.msra.mxu0 0
    %5104 = vmatprep.subr.bf16.mxu0 0
    %5105 = vmatpush1.bf16.msra.mxu0 0
    %5106 = vmatprep.mubr.bf16.mxu0 0
    %5107 = vmatmul.mubr.bf16.gmra.mrb[0].mxu0 %v5018
    %v5108 = vpop.f32.mrb[0].mxu0
    %v5109 = vadd.f32 0.0, %v5108
    %v5110 = vpop.f32.mrb[0].mxu0
    %v5111 = vadd.f32 0.0, %v5110
    %v5112 = vpop.f32.mrb[0].mxu0
    %v5113 = vpop.f32.mrb[0].mxu0
    %5114 = vdwg.mxu0
    %v5115 = vmul.f32 %v4680, %v5068
    %v5116 = vmul.f32 %v4681, %v5070
    %v5117 = vmul.f32 %v4682, %v5109
    %v5118 = vmul.f32 %v4683, %v5111
    %v5119 = vld [vmem:[%s67] sm:$0xff]
    %5121 = vset.pattern.permute.xlu0 0
    %5122 = vperm.xlu0 %5121, %v5119
    %v5123 = vpop.permute.xlu0 %5122
    %v5125 = vadd.f32 %v5115, %v5123
    %v5126 = vadd.f32 %v5116, %v5123
    %v5127 = vadd.f32 %v5117, %v5123
    %v5128 = vadd.f32 %v5118, %v5123
    %vm5129 = vcmp.ge.f32.partialorder %v5125, 0.0
    %vm5130 = vcmp.ge.f32.partialorder %v5126, 0.0
    %vm5131 = vcmp.ge.f32.partialorder %v5127, 0.0
    %vm5132 = vcmp.ge.f32.partialorder %v5128, 0.0
    %v5133 = vmul.f32 %v5125, 0.2
    %v5134 = vmul.f32 %v5126, 0.2
    %v5135 = vmul.f32 %v5127, 0.2
    %v5136 = vmul.f32 %v5128, 0.2
    %v5137 = vsel %vm5129, %v5125, %v5133
    %v5138 = vsel %vm5130, %v5126, %v5134
    %v5139 = vsel %vm5131, %v5127, %v5135
    %v5140 = vsel %vm5132, %v5128, %v5136
    %v5141 = vmul.f32 %v5137, 1.4142135
    %v5142 = vmul.f32 %v5138, 1.4142135
    %v5143 = vmul.f32 %v5139, 1.4142135
    %v5144 = vmul.f32 %v5140, 1.4142135
    %v5145 = vld [vmem:[#allocation38] sm:$0xff]
    %v5146 = vld [vmem:[#allocation38 + $0x8] sm:$0xff]
    %v5147 = vld [vmem:[#allocation38 + $0x10] sm:$0xff]
    %v5148 = vld [vmem:[#allocation38 + $0x18] sm:$0xff]
    %v5149 = vld [vmem:[#allocation38 + $0x20] sm:$0xff]
    %v5150 = vld [vmem:[#allocation38 + $0x28] sm:$0xff]
    %v5151 = vld [vmem:[#allocation38 + $0x30] sm:$0xff]
    %v5152 = vld [vmem:[#allocation38 + $0x38] sm:$0xff]
    %v5154 = vsel %vm1140, %v1131, 0
    %5156 = vmatprep.subr.mxu0 %v5146
    %5157 = vmatpush1.msra.mxu0 %v5145
    %5158 = vmatprep.subr.mxu0 %v5150
    %5159 = vmatpush1.msra.mxu0 %v5149
    %5160 = vmatprep.subr.mxu0 0.0
    %5161 = vmatpush1.msra.mxu0 0.0
    %5162 = vmatprep.subr.mxu0 0.0
    %5163 = vmatpush1.msra.mxu0 0.0
    %5164 = vmatprep.subr.mxu0 0.0
    %5165 = vmatpush1.msra.mxu0 0.0
    %5166 = vmatprep.subr.mxu0 0.0
    %5167 = vmatpush1.msra.mxu0 0.0
    %5168 = vmatprep.subr.mxu0 0.0
    %5169 = vmatpush1.msra.mxu0 0.0
    %5170 = vmatprep.subr.mxu0 0.0
    %5171 = vmatpush1.msra.mxu0 0.0
    %5172 = vmatprep.subr.mxu0 0.0
    %5173 = vmatpush1.msra.mxu0 0.0
    %5174 = vmatprep.subr.mxu0 0.0
    %5175 = vmatpush1.msra.mxu0 0.0
    %5176 = vmatprep.subr.mxu0 0.0
    %5177 = vmatpush1.msra.mxu0 0.0
    %5178 = vmatprep.subr.mxu0 0.0
    %5179 = vmatpush1.msra.mxu0 0.0
    %5180 = vmatprep.subr.mxu0 0.0
    %5181 = vmatpush1.msra.mxu0 0.0
    %5182 = vmatprep.subr.mxu0 0.0
    %5183 = vmatpush1.msra.mxu0 0.0
    %5184 = vmatprep.subr.mxu0 0.0
    %5185 = vmatpush1.msra.mxu0 0.0
    %5186 = vmatprep.subr.mxu0 0.0
    %5187 = vmatpush1.msra.mxu0 0.0
    %5188 = vmatprep.subr.mxu0 0.0
    %5189 = vmatpush1.msra.mxu0 0.0
    %5190 = vmatprep.subr.mxu0 0.0
    %5191 = vmatpush1.msra.mxu0 0.0
    %5192 = vmatprep.subr.mxu0 0.0
    %5193 = vmatpush1.msra.mxu0 0.0
    %5194 = vmatprep.subr.mxu0 0.0
    %5195 = vmatpush1.msra.mxu0 0.0
    %5196 = vmatprep.subr.mxu0 0.0
    %5197 = vmatpush1.msra.mxu0 0.0
    %5198 = vmatprep.subr.mxu0 0.0
    %5199 = vmatpush1.msra.mxu0 0.0
    %5200 = vmatprep.subr.mxu0 0.0
    %5201 = vmatpush1.msra.mxu0 0.0
    %5202 = vmatprep.subr.mxu0 0.0
    %5203 = vmatpush1.msra.mxu0 0.0
    %5204 = vmatprep.subr.mxu0 0.0
    %5205 = vmatpush1.msra.mxu0 0.0
    %5206 = vmatprep.subr.mxu0 0.0
    %5207 = vmatpush1.msra.mxu0 0.0
    %5208 = vmatprep.subr.mxu0 0.0
    %5209 = vmatpush1.msra.mxu0 0.0
    %5210 = vmatprep.subr.mxu0 0.0
    %5211 = vmatpush1.msra.mxu0 0.0
    %5212 = vmatprep.subr.mxu0 0.0
    %5213 = vmatpush1.msra.mxu0 0.0
    %5214 = vmatprep.subr.mxu0 0.0
    %5215 = vmatpush1.msra.mxu0 0.0
    %5216 = vmatprep.subr.mxu0 0.0
    %5217 = vmatpush1.msra.mxu0 0.0
    %5218 = vmatprep.subr.mxu0 0.0
    %5219 = vmatpush1.msra.mxu0 0.0
    %5220 = vmatprep.mubr.f32.mxu0 0.0
    %5221 = vmatmul.mubr.f32.gmra.mrb[0].mxu0 %v5154
    %v5222 = vpop.f32.mrb[0].mxu0
    %v5223 = vadd.f32 0.0, %v5222
    %v5224 = vpop.f32.mrb[0].mxu0
    %v5225 = vadd.f32 0.0, %v5224
    %5226 = vdwg.mxu0
    %5227 = vmatprep.subr.mxu0 %v5148
    %5228 = vmatpush1.msra.mxu0 %v5147
    %5229 = vmatprep.subr.mxu0 %v5152
    %5230 = vmatpush1.msra.mxu0 %v5151
    %5231 = vmatprep.subr.mxu0 0.0
    %5232 = vmatpush1.msra.mxu0 0.0
    %5233 = vmatprep.subr.mxu0 0.0
    %5234 = vmatpush1.msra.mxu0 0.0
    %5235 = vmatprep.subr.mxu0 0.0
    %5236 = vmatpush1.msra.mxu0 0.0
    %5237 = vmatprep.subr.mxu0 0.0
    %5238 = vmatpush1.msra.mxu0 0.0
    %5239 = vmatprep.subr.mxu0 0.0
    %5240 = vmatpush1.msra.mxu0 0.0
    %5241 = vmatprep.subr.mxu0 0.0
    %5242 = vmatpush1.msra.mxu0 0.0
    %5243 = vmatprep.subr.mxu0 0.0
    %5244 = vmatpush1.msra.mxu0 0.0
    %5245 = vmatprep.subr.mxu0 0.0
    %5246 = vmatpush1.msra.mxu0 0.0
    %5247 = vmatprep.subr.mxu0 0.0
    %5248 = vmatpush1.msra.mxu0 0.0
    %5249 = vmatprep.subr.mxu0 0.0
    %5250 = vmatpush1.msra.mxu0 0.0
    %5251 = vmatprep.subr.mxu0 0.0
    %5252 = vmatpush1.msra.mxu0 0.0
    %5253 = vmatprep.subr.mxu0 0.0
    %5254 = vmatpush1.msra.mxu0 0.0
    %5255 = vmatprep.subr.mxu0 0.0
    %5256 = vmatpush1.msra.mxu0 0.0
    %5257 = vmatprep.subr.mxu0 0.0
    %5258 = vmatpush1.msra.mxu0 0.0
    %5259 = vmatprep.subr.mxu0 0.0
    %5260 = vmatpush1.msra.mxu0 0.0
    %5261 = vmatprep.subr.mxu0 0.0
    %5262 = vmatpush1.msra.mxu0 0.0
    %5263 = vmatprep.subr.mxu0 0.0
    %5264 = vmatpush1.msra.mxu0 0.0
    %5265 = vmatprep.subr.mxu0 0.0
    %5266 = vmatpush1.msra.mxu0 0.0
    %5267 = vmatprep.subr.mxu0 0.0
    %5268 = vmatpush1.msra.mxu0 0.0
    %5269 = vmatprep.subr.mxu0 0.0
    %5270 = vmatpush1.msra.mxu0 0.0
    %5271 = vmatprep.subr.mxu0 0.0
    %5272 = vmatpush1.msra.mxu0 0.0
    %5273 = vmatprep.subr.mxu0 0.0
    %5274 = vmatpush1.msra.mxu0 0.0
    %5275 = vmatprep.subr.mxu0 0.0
    %5276 = vmatpush1.msra.mxu0 0.0
    %5277 = vmatprep.subr.mxu0 0.0
    %5278 = vmatpush1.msra.mxu0 0.0
    %5279 = vmatprep.subr.mxu0 0.0
    %5280 = vmatpush1.msra.mxu0 0.0
    %5281 = vmatprep.subr.mxu0 0.0
    %5282 = vmatpush1.msra.mxu0 0.0
    %5283 = vmatprep.subr.mxu0 0.0
    %5284 = vmatpush1.msra.mxu0 0.0
    %5285 = vmatprep.subr.mxu0 0.0
    %5286 = vmatpush1.msra.mxu0 0.0
    %5287 = vmatprep.subr.mxu0 0.0
    %5288 = vmatpush1.msra.mxu0 0.0
    %5289 = vmatprep.subr.mxu0 0.0
    %5290 = vmatpush1.msra.mxu0 0.0
    %5291 = vmatprep.mubr.f32.mxu0 0.0
    %5292 = vmatmul.mubr.f32.gmra.mrb[0].mxu0 %v5154
    %v5293 = vpop.f32.mrb[0].mxu0
    %v5294 = vadd.f32 0.0, %v5293
    %v5295 = vpop.f32.mrb[0].mxu0
    %v5296 = vadd.f32 0.0, %v5295
    %5297 = vdwg.mxu0
    %v5298 = vld [vmem:[#allocation37] sm:$0x7]
    %v5299 = vmul.f32 %v5141, %v5223
    %v5300 = vmul.f32 %v5142, %v5225
    %v5301 = vmul.f32 %v5143, %v5294
    %v5302 = vmul.f32 %v5144, %v5296
    %v5303 = vld [vmem:[%s75] sm:$0x7]
    %5305 = vset.pattern.permute.xlu0 0
    %5306 = vperm.xlu0 %5305, %v5303
    %v5307 = vpop.permute.xlu0 %5306
    %v5310 = vsel %vm4534, %v5298, 0
    %5312 = vmatprep.subr.mxu0 %v5300
    %5313 = vmatpush1.msra.mxu0 %v5299
    %5314 = vmatprep.subr.mxu0 0.0
    %5315 = vmatpush1.msra.mxu0 0.0
    %5316 = vmatprep.subr.mxu0 0.0
    %5317 = vmatpush1.msra.mxu0 0.0
    %5318 = vmatprep.subr.mxu0 0.0
    %5319 = vmatpush1.msra.mxu0 0.0
    %5320 = vmatprep.subr.mxu0 0.0
    %5321 = vmatpush1.msra.mxu0 0.0
    %5322 = vmatprep.subr.mxu0 0.0
    %5323 = vmatpush1.msra.mxu0 0.0
    %5324 = vmatprep.subr.mxu0 0.0
    %5325 = vmatpush1.msra.mxu0 0.0
    %5326 = vmatprep.subr.mxu0 0.0
    %5327 = vmatpush1.msra.mxu0 0.0
    %5328 = vmatprep.subr.mxu0 0.0
    %5329 = vmatpush1.msra.mxu0 0.0
    %5330 = vmatprep.subr.mxu0 0.0
    %5331 = vmatpush1.msra.mxu0 0.0
    %5332 = vmatprep.subr.mxu0 0.0
    %5333 = vmatpush1.msra.mxu0 0.0
    %5334 = vmatprep.subr.mxu0 0.0
    %5335 = vmatpush1.msra.mxu0 0.0
    %5336 = vmatprep.subr.mxu0 0.0
    %5337 = vmatpush1.msra.mxu0 0.0
    %5338 = vmatprep.subr.mxu0 0.0
    %5339 = vmatpush1.msra.mxu0 0.0
    %5340 = vmatprep.subr.mxu0 0.0
    %5341 = vmatpush1.msra.mxu0 0.0
    %5342 = vmatprep.subr.mxu0 0.0
    %5343 = vmatpush1.msra.mxu0 0.0
    %5344 = vmatprep.subr.mxu0 0.0
    %5345 = vmatpush1.msra.mxu0 0.0
    %5346 = vmatprep.subr.mxu0 0.0
    %5347 = vmatpush1.msra.mxu0 0.0
    %5348 = vmatprep.subr.mxu0 0.0
    %5349 = vmatpush1.msra.mxu0 0.0
    %5350 = vmatprep.subr.mxu0 0.0
    %5351 = vmatpush1.msra.mxu0 0.0
    %5352 = vmatprep.subr.mxu0 0.0
    %5353 = vmatpush1.msra.mxu0 0.0
    %5354 = vmatprep.subr.mxu0 0.0
    %5355 = vmatpush1.msra.mxu0 0.0
    %5356 = vmatprep.subr.mxu0 0.0
    %5357 = vmatpush1.msra.mxu0 0.0
    %5358 = vmatprep.subr.mxu0 0.0
    %5359 = vmatpush1.msra.mxu0 0.0
    %5360 = vmatprep.subr.mxu0 0.0
    %5361 = vmatpush1.msra.mxu0 0.0
    %5362 = vmatprep.subr.mxu0 0.0
    %5363 = vmatpush1.msra.mxu0 0.0
    %5364 = vmatprep.subr.mxu0 0.0
    %5365 = vmatpush1.msra.mxu0 0.0
    %5366 = vmatprep.subr.mxu0 0.0
    %5367 = vmatpush1.msra.mxu0 0.0
    %5368 = vmatprep.subr.mxu0 0.0
    %5369 = vmatpush1.msra.mxu0 0.0
    %5370 = vmatprep.subr.mxu0 0.0
    %5371 = vmatpush1.msra.mxu0 0.0
    %5372 = vmatprep.subr.mxu0 0.0
    %5373 = vmatpush1.msra.mxu0 0.0
    %5374 = vmatprep.subr.mxu0 0.0
    %5375 = vmatpush1.msra.mxu0 0.0
    %5376 = vmatprep.mubr.f32.mxu0 0.0
    %5377 = vmatmul.mubr.f32.gmra.mrb[0].mxu0 %v5310
    %v5378 = vpop.f32.mrb[0].mxu0
    %v5379 = vadd.f32 %v5307, %v5378
    %v5380 = vpop.f32.mrb[0].mxu0
    %v5381 = vadd.f32 %v5307, %v5380
    %5382 = vdwg.mxu0
    %5383 = vmatprep.subr.mxu0 %v5302
    %5384 = vmatpush1.msra.mxu0 %v5301
    %5385 = vmatprep.subr.mxu0 0.0
    %5386 = vmatpush1.msra.mxu0 0.0
    %5387 = vmatprep.subr.mxu0 0.0
    %5388 = vmatpush1.msra.mxu0 0.0
    %5389 = vmatprep.subr.mxu0 0.0
    %5390 = vmatpush1.msra.mxu0 0.0
    %5391 = vmatprep.subr.mxu0 0.0
    %5392 = vmatpush1.msra.mxu0 0.0
    %5393 = vmatprep.subr.mxu0 0.0
    %5394 = vmatpush1.msra.mxu0 0.0
    %5395 = vmatprep.subr.mxu0 0.0
    %5396 = vmatpush1.msra.mxu0 0.0
    %5397 = vmatprep.subr.mxu0 0.0
    %5398 = vmatpush1.msra.mxu0 0.0
    %5399 = vmatprep.subr.mxu0 0.0
    %5400 = vmatpush1.msra.mxu0 0.0
    %5401 = vmatprep.subr.mxu0 0.0
    %5402 = vmatpush1.msra.mxu0 0.0
    %5403 = vmatprep.subr.mxu0 0.0
    %5404 = vmatpush1.msra.mxu0 0.0
    %5405 = vmatprep.subr.mxu0 0.0
    %5406 = vmatpush1.msra.mxu0 0.0
    %5407 = vmatprep.subr.mxu0 0.0
    %5408 = vmatpush1.msra.mxu0 0.0
    %5409 = vmatprep.subr.mxu0 0.0
    %5410 = vmatpush1.msra.mxu0 0.0
    %5411 = vmatprep.subr.mxu0 0.0
    %5412 = vmatpush1.msra.mxu0 0.0
    %5413 = vmatprep.subr.mxu0 0.0
    %5414 = vmatpush1.msra.mxu0 0.0
    %5415 = vmatprep.subr.mxu0 0.0
    %5416 = vmatpush1.msra.mxu0 0.0
    %5417 = vmatprep.subr.mxu0 0.0
    %5418 = vmatpush1.msra.mxu0 0.0
    %5419 = vmatprep.subr.mxu0 0.0
    %5420 = vmatpush1.msra.mxu0 0.0
    %5421 = vmatprep.subr.mxu0 0.0
    %5422 = vmatpush1.msra.mxu0 0.0
    %5423 = vmatprep.subr.mxu0 0.0
    %5424 = vmatpush1.msra.mxu0 0.0
    %5425 = vmatprep.subr.mxu0 0.0
    %5426 = vmatpush1.msra.mxu0 0.0
    %5427 = vmatprep.subr.mxu0 0.0
    %5428 = vmatpush1.msra.mxu0 0.0
    %5429 = vmatprep.subr.mxu0 0.0
    %5430 = vmatpush1.msra.mxu0 0.0
    %5431 = vmatprep.subr.mxu0 0.0
    %5432 = vmatpush1.msra.mxu0 0.0
    %5433 = vmatprep.subr.mxu0 0.0
    %5434 = vmatpush1.msra.mxu0 0.0
    %5435 = vmatprep.subr.mxu0 0.0
    %5436 = vmatpush1.msra.mxu0 0.0
    %5437 = vmatprep.subr.mxu0 0.0
    %5438 = vmatpush1.msra.mxu0 0.0
    %5439 = vmatprep.subr.mxu0 0.0
    %5440 = vmatpush1.msra.mxu0 0.0
    %5441 = vmatprep.subr.mxu0 0.0
    %5442 = vmatpush1.msra.mxu0 0.0
    %5443 = vmatprep.subr.mxu0 0.0
    %5444 = vmatpush1.msra.mxu0 0.0
    %5445 = vmatprep.subr.mxu0 0.0
    %5446 = vmatpush1.msra.mxu0 0.0
    %5447 = vmatprep.mubr.f32.mxu0 0.0
    %5448 = vmatmul.mubr.f32.gmra.mrb[0].mxu0 %v5310
    %v5449 = vpop.f32.mrb[0].mxu0
    %v5450 = vadd.f32 %v5307, %v5449
    %v5451 = vpop.f32.mrb[0].mxu0
    %v5452 = vadd.f32 %v5307, %v5451
    %5453 = vdwg.mxu0
    %v5455 = vrot.slane %v5379, 1
    %5456 = vrot.lane.b32.xlu0 %v5455, 16
    %v5457 = vpop.permute.xlu0 %5456
    %v5459 = vrot.slane %v5379, 2
    %5460 = vrot.lane.b32.xlu0 %v5459, 32
    %v5461 = vpop.permute.xlu0 %5460
    %5464 = vrot.lane.b32.xlu0 %v5450, 48
    %v5465 = vpop.permute.xlu0 %5464
    %v5467 = vrot.slane %v5450, 1
    %5468 = vrot.lane.b32.xlu0 %v5467, 64
    %v5469 = vpop.permute.xlu0 %5468
    %v5471 = vrot.slane %v5450, 2
    %5472 = vrot.lane.b32.xlu0 %v5471, 80
    %v5473 = vpop.permute.xlu0 %5472
    %v5475 = vsel %vm1140, %v5379, %v5457
    %v5476 = vsel %vm552, %v5475, %v5461
    %vm5477 = vcmask 392192
    %v5478 = vsel %vm5477, %v5476, %v5465
    %v5479 = vsel %vm742, %v5478, %v5469
    %vm5480 = vcmask 654336
    %v5481 = vsel %vm5480, %v5479, %v5473
    %5482 = vrot.lane.b32.xlu0 %v5379, 112
    %v5483 = vpop.permute.xlu0 %5482
    %5486 = vrot.lane.b32.xlu0 %v5459, 16
    %v5487 = vpop.permute.xlu0 %5486
    %5489 = vrot.lane.b32.xlu0 %v5450, 32
    %v5490 = vpop.permute.xlu0 %5489
    %5492 = vrot.lane.b32.xlu0 %v5467, 48
    %v5493 = vpop.permute.xlu0 %5492
    %5495 = vrot.lane.b32.xlu0 %v5471, 64
    %v5496 = vpop.permute.xlu0 %5495
    %v5498 = vsel %vm1140, %v5483, %v5455
    %v5499 = vsel %vm552, %v5498, %v5487
    %v5500 = vsel %vm5477, %v5499, %v5490
    %v5501 = vsel %vm742, %v5500, %v5493
    %v5502 = vsel %vm5480, %v5501, %v5496
    %5503 = vrot.lane.b32.xlu0 %v5379, 96
    %v5504 = vpop.permute.xlu0 %5503
    %5506 = vrot.lane.b32.xlu0 %v5455, 112
    %v5507 = vpop.permute.xlu0 %5506
    %5510 = vrot.lane.b32.xlu0 %v5450, 16
    %v5511 = vpop.permute.xlu0 %5510
    %5513 = vrot.lane.b32.xlu0 %v5467, 32
    %v5514 = vpop.permute.xlu0 %5513
    %5516 = vrot.lane.b32.xlu0 %v5471, 48
    %v5517 = vpop.permute.xlu0 %5516
    %v5519 = vsel %vm1140, %v5504, %v5507
    %v5520 = vsel %vm552, %v5519, %v5459
    %v5521 = vsel %vm5477, %v5520, %v5511
    %v5522 = vsel %vm742, %v5521, %v5514
    %v5523 = vsel %vm5480, %v5522, %v5517
    %5524 = vrot.lane.b32.xlu0 %v5379, 80
    %v5525 = vpop.permute.xlu0 %5524
    %5527 = vrot.lane.b32.xlu0 %v5455, 96
    %v5528 = vpop.permute.xlu0 %5527
    %5530 = vrot.lane.b32.xlu0 %v5459, 112
    %v5531 = vpop.permute.xlu0 %5530
    %5533 = vrot.lane.b32.xlu0 %v5467, 16
    %v5534 = vpop.permute.xlu0 %5533
    %5536 = vrot.lane.b32.xlu0 %v5471, 32
    %v5537 = vpop.permute.xlu0 %5536
    %v5539 = vsel %vm1140, %v5525, %v5528
    %v5540 = vsel %vm552, %v5539, %v5531
    %v5541 = vsel %vm5477, %v5540, %v5450
    %v5542 = vsel %vm742, %v5541, %v5534
    %v5543 = vsel %vm5480, %v5542, %v5537
    %5544 = vrot.lane.b32.xlu0 %v5379, 64
    %v5545 = vpop.permute.xlu0 %5544
    %5547 = vrot.lane.b32.xlu0 %v5455, 80
    %v5548 = vpop.permute.xlu0 %5547
    %5550 = vrot.lane.b32.xlu0 %v5459, 96
    %v5551 = vpop.permute.xlu0 %5550
    %5553 = vrot.lane.b32.xlu0 %v5450, 112
    %v5554 = vpop.permute.xlu0 %5553
    %5557 = vrot.lane.b32.xlu0 %v5471, 16
    %v5558 = vpop.permute.xlu0 %5557
    %v5560 = vsel %vm1140, %v5545, %v5548
    %v5561 = vsel %vm552, %v5560, %v5551
    %v5562 = vsel %vm5477, %v5561, %v5554
    %v5563 = vsel %vm742, %v5562, %v5467
    %v5564 = vsel %vm5480, %v5563, %v5558
    %5565 = vrot.lane.b32.xlu0 %v5379, 48
    %v5566 = vpop.permute.xlu0 %5565
    %5568 = vrot.lane.b32.xlu0 %v5455, 64
    %v5569 = vpop.permute.xlu0 %5568
    %5571 = vrot.lane.b32.xlu0 %v5459, 80
    %v5572 = vpop.permute.xlu0 %5571
    %5574 = vrot.lane.b32.xlu0 %v5450, 96
    %v5575 = vpop.permute.xlu0 %5574
    %5577 = vrot.lane.b32.xlu0 %v5467, 112
    %v5578 = vpop.permute.xlu0 %5577
    %v5581 = vsel %vm1140, %v5566, %v5569
    %v5582 = vsel %vm552, %v5581, %v5572
    %v5583 = vsel %vm5477, %v5582, %v5575
    %v5584 = vsel %vm742, %v5583, %v5578
    %v5585 = vsel %vm5480, %v5584, %v5471
    %5586 = vrot.lane.b32.xlu0 %v5379, 32
    %v5587 = vpop.permute.xlu0 %5586
    %5589 = vrot.lane.b32.xlu0 %v5455, 48
    %v5590 = vpop.permute.xlu0 %5589
    %5592 = vrot.lane.b32.xlu0 %v5459, 64
    %v5593 = vpop.permute.xlu0 %5592
    %5595 = vrot.lane.b32.xlu0 %v5450, 80
    %v5596 = vpop.permute.xlu0 %5595
    %5598 = vrot.lane.b32.xlu0 %v5467, 96
    %v5599 = vpop.permute.xlu0 %5598
    %5601 = vrot.lane.b32.xlu0 %v5471, 112
    %v5602 = vpop.permute.xlu0 %5601
    %v5604 = vsel %vm1140, %v5587, %v5590
    %v5605 = vsel %vm552, %v5604, %v5593
    %v5606 = vsel %vm5477, %v5605, %v5596
    %v5607 = vsel %vm742, %v5606, %v5599
    %v5608 = vsel %vm5480, %v5607, %v5602
    %5609 = vrot.lane.b32.xlu0 %v5379, 16
    %v5610 = vpop.permute.xlu0 %5609
    %5612 = vrot.lane.b32.xlu0 %v5455, 32
    %v5613 = vpop.permute.xlu0 %5612
    %5615 = vrot.lane.b32.xlu0 %v5459, 48
    %v5616 = vpop.permute.xlu0 %5615
    %5618 = vrot.lane.b32.xlu0 %v5450, 64
    %v5619 = vpop.permute.xlu0 %5618
    %5621 = vrot.lane.b32.xlu0 %v5467, 80
    %v5622 = vpop.permute.xlu0 %5621
    %5624 = vrot.lane.b32.xlu0 %v5471, 96
    %v5625 = vpop.permute.xlu0 %5624
    %v5627 = vsel %vm1140, %v5610, %v5613
    %v5628 = vsel %vm552, %v5627, %v5616
    %v5629 = vsel %vm5477, %v5628, %v5619
    %v5630 = vsel %vm742, %v5629, %v5622
    %v5631 = vsel %vm5480, %v5630, %v5625
    %v5633 = vrot.slane %v5381, 1
    %5634 = vrot.lane.b32.xlu0 %v5633, 16
    %v5635 = vpop.permute.xlu0 %5634
    %v5637 = vrot.slane %v5381, 2
    %5638 = vrot.lane.b32.xlu0 %v5637, 32
    %v5639 = vpop.permute.xlu0 %5638
    %5642 = vrot.lane.b32.xlu0 %v5452, 48
    %v5643 = vpop.permute.xlu0 %5642
    %v5645 = vrot.slane %v5452, 1
    %5646 = vrot.lane.b32.xlu0 %v5645, 64
    %v5647 = vpop.permute.xlu0 %5646
    %v5649 = vrot.slane %v5452, 2
    %5650 = vrot.lane.b32.xlu0 %v5649, 80
    %v5651 = vpop.permute.xlu0 %5650
    %v5653 = vsel %vm1140, %v5381, %v5635
    %v5654 = vsel %vm552, %v5653, %v5639
    %v5655 = vsel %vm5477, %v5654, %v5643
    %v5656 = vsel %vm742, %v5655, %v5647
    %v5657 = vsel %vm5480, %v5656, %v5651
    %5658 = vrot.lane.b32.xlu0 %v5381, 112
    %v5659 = vpop.permute.xlu0 %5658
    %5662 = vrot.lane.b32.xlu0 %v5637, 16
    %v5663 = vpop.permute.xlu0 %5662
    %5665 = vrot.lane.b32.xlu0 %v5452, 32
    %v5666 = vpop.permute.xlu0 %5665
    %5668 = vrot.lane.b32.xlu0 %v5645, 48
    %v5669 = vpop.permute.xlu0 %5668
    %5671 = vrot.lane.b32.xlu0 %v5649, 64
    %v5672 = vpop.permute.xlu0 %5671
    %v5674 = vsel %vm1140, %v5659, %v5633
    %v5675 = vsel %vm552, %v5674, %v5663
    %v5676 = vsel %vm5477, %v5675, %v5666
    %v5677 = vsel %vm742, %v5676, %v5669
    %v5678 = vsel %vm5480, %v5677, %v5672
    %5679 = vrot.lane.b32.xlu0 %v5381, 96
    %v5680 = vpop.permute.xlu0 %5679
    %5682 = vrot.lane.b32.xlu0 %v5633, 112
    %v5683 = vpop.permute.xlu0 %5682
    %5686 = vrot.lane.b32.xlu0 %v5452, 16
    %v5687 = vpop.permute.xlu0 %5686
    %5689 = vrot.lane.b32.xlu0 %v5645, 32
    %v5690 = vpop.permute.xlu0 %5689
    %5692 = vrot.lane.b32.xlu0 %v5649, 48
    %v5693 = vpop.permute.xlu0 %5692
    %v5695 = vsel %vm1140, %v5680, %v5683
    %v5696 = vsel %vm552, %v5695, %v5637
    %v5697 = vsel %vm5477, %v5696, %v5687
    %v5698 = vsel %vm742, %v5697, %v5690
    %v5699 = vsel %vm5480, %v5698, %v5693
    %5700 = vrot.lane.b32.xlu0 %v5381, 80
    %v5701 = vpop.permute.xlu0 %5700
    %5703 = vrot.lane.b32.xlu0 %v5633, 96
    %v5704 = vpop.permute.xlu0 %5703
    %5706 = vrot.lane.b32.xlu0 %v5637, 112
    %v5707 = vpop.permute.xlu0 %5706
    %5709 = vrot.lane.b32.xlu0 %v5645, 16
    %v5710 = vpop.permute.xlu0 %5709
    %5712 = vrot.lane.b32.xlu0 %v5649, 32
    %v5713 = vpop.permute.xlu0 %5712
    %v5715 = vsel %vm1140, %v5701, %v5704
    %v5716 = vsel %vm552, %v5715, %v5707
    %v5717 = vsel %vm5477, %v5716, %v5452
    %v5718 = vsel %vm742, %v5717, %v5710
    %v5719 = vsel %vm5480, %v5718, %v5713
    %5720 = vrot.lane.b32.xlu0 %v5381, 64
    %v5721 = vpop.permute.xlu0 %5720
    %5723 = vrot.lane.b32.xlu0 %v5633, 80
    %v5724 = vpop.permute.xlu0 %5723
    %5726 = vrot.lane.b32.xlu0 %v5637, 96
    %v5727 = vpop.permute.xlu0 %5726
    %5729 = vrot.lane.b32.xlu0 %v5452, 112
    %v5730 = vpop.permute.xlu0 %5729
    %5733 = vrot.lane.b32.xlu0 %v5649, 16
    %v5734 = vpop.permute.xlu0 %5733
    %v5736 = vsel %vm1140, %v5721, %v5724
    %v5737 = vsel %vm552, %v5736, %v5727
    %v5738 = vsel %vm5477, %v5737, %v5730
    %v5739 = vsel %vm742, %v5738, %v5645
    %v5740 = vsel %vm5480, %v5739, %v5734
    %5741 = vrot.lane.b32.xlu0 %v5381, 48
    %v5742 = vpop.permute.xlu0 %5741
    %5744 = vrot.lane.b32.xlu0 %v5633, 64
    %v5745 = vpop.permute.xlu0 %5744
    %5747 = vrot.lane.b32.xlu0 %v5637, 80
    %v5748 = vpop.permute.xlu0 %5747
    %5750 = vrot.lane.b32.xlu0 %v5452, 96
    %v5751 = vpop.permute.xlu0 %5750
    %5753 = vrot.lane.b32.xlu0 %v5645, 112
    %v5754 = vpop.permute.xlu0 %5753
    %v5757 = vsel %vm1140, %v5742, %v5745
    %v5758 = vsel %vm552, %v5757, %v5748
    %v5759 = vsel %vm5477, %v5758, %v5751
    %v5760 = vsel %vm742, %v5759, %v5754
    %v5761 = vsel %vm5480, %v5760, %v5649
    %5762 = vrot.lane.b32.xlu0 %v5381, 32
    %v5763 = vpop.permute.xlu0 %5762
    %5765 = vrot.lane.b32.xlu0 %v5633, 48
    %v5766 = vpop.permute.xlu0 %5765
    %5768 = vrot.lane.b32.xlu0 %v5637, 64
    %v5769 = vpop.permute.xlu0 %5768
    %5771 = vrot.lane.b32.xlu0 %v5452, 80
    %v5772 = vpop.permute.xlu0 %5771
    %5774 = vrot.lane.b32.xlu0 %v5645, 96
    %v5775 = vpop.permute.xlu0 %5774
    %5777 = vrot.lane.b32.xlu0 %v5649, 112
    %v5778 = vpop.permute.xlu0 %5777
    %v5780 = vsel %vm1140, %v5763, %v5766
    %v5781 = vsel %vm552, %v5780, %v5769
    %v5782 = vsel %vm5477, %v5781, %v5772
    %v5783 = vsel %vm742, %v5782, %v5775
    %v5784 = vsel %vm5480, %v5783, %v5778
    %5785 = vrot.lane.b32.xlu0 %v5381, 16
    %v5786 = vpop.permute.xlu0 %5785
    %5788 = vrot.lane.b32.xlu0 %v5633, 32
    %v5789 = vpop.permute.xlu0 %5788
    %5791 = vrot.lane.b32.xlu0 %v5637, 48
    %v5792 = vpop.permute.xlu0 %5791
    %5794 = vrot.lane.b32.xlu0 %v5452, 64
    %v5795 = vpop.permute.xlu0 %5794
    %5797 = vrot.lane.b32.xlu0 %v5645, 80
    %v5798 = vpop.permute.xlu0 %5797
    %5800 = vrot.lane.b32.xlu0 %v5649, 96
    %v5801 = vpop.permute.xlu0 %5800
    %v5803 = vsel %vm1140, %v5786, %v5789
    %v5804 = vsel %vm552, %v5803, %v5792
    %v5805 = vsel %vm5477, %v5804, %v5795
    %v5806 = vsel %vm742, %v5805, %v5798
    %v5807 = vsel %vm5480, %v5806, %v5801
    %v5809 = vrot.slane %v5502, 7
    %v5812 = vrot.slane %v5523, 6
    %v5815 = vrot.slane %v5543, 5
    %v5818 = vrot.slane %v5564, 4
    %v5821 = vrot.slane %v5585, 3
    %v5824 = vrot.slane %v5608, 2
    %v5827 = vrot.slane %v5631, 1
    %v5830 = vrot.slane %v5678, 7
    %v5833 = vrot.slane %v5699, 6
    %v5836 = vrot.slane %v5719, 5
    %v5839 = vrot.slane %v5740, 4
    %v5842 = vrot.slane %v5761, 3
    %v5845 = vrot.slane %v5784, 2
    %v5848 = vrot.slane %v5807, 1
    %vm5850 = vcmask 1040384
    %v5851 = vsel %vm5850, %v5481, %v5809
    %vm5852 = vcmask 1041408
    %v5853 = vsel %vm5852, %v5851, %v5812
    %vm5854 = vcmask 1042432
    %v5855 = vsel %vm5854, %v5853, %v5815
    %v5856 = vsel %vm5020, %v5855, %v5818
    %vm5857 = vcmask 1044480
    %v5858 = vsel %vm5857, %v5856, %v5821
    %vm5859 = vcmask 1045504
    %v5860 = vsel %vm5859, %v5858, %v5824
    %vm5861 = vcmask 1046528
    %v5862 = vsel %vm5861, %v5860, %v5827
    %v5863 = vsel %vm5850, %v5657, %v5830
    %v5864 = vsel %vm5852, %v5863, %v5833
    %v5865 = vsel %vm5854, %v5864, %v5836
    %v5866 = vsel %vm5020, %v5865, %v5839
    %v5867 = vsel %vm5857, %v5866, %v5842
    %v5868 = vsel %vm5859, %v5867, %v5845
    %v5869 = vsel %vm5861, %v5868, %v5848
    %v5870 = vld [vmem:[#allocation40] sm:$0xff]
    %v5871 = vld [vmem:[#allocation40 + $0x8] sm:$0xff]
    %v5872 = vld [vmem:[#allocation40 + $0x10] sm:$0xff]
    %v5873 = vld [vmem:[#allocation40 + $0x18] sm:$0xff]
    %v5874 = vld [vmem:[#allocation40 + $0x20] sm:$0xff]
    %v5875 = vld [vmem:[#allocation40 + $0x28] sm:$0xff]
    %v5876 = vld [vmem:[#allocation40 + $0x30] sm:$0xff]
    %v5877 = vld [vmem:[#allocation40 + $0x38] sm:$0xff]
    %v5878 = vld [vmem:[#allocation40 + $0x40] sm:$0xff]
    %v5879 = vld [vmem:[#allocation40 + $0x48] sm:$0xff]
    %v5880 = vld [vmem:[#allocation40 + $0x50] sm:$0xff]
    %v5881 = vld [vmem:[#allocation40 + $0x58] sm:$0xff]
    %v5882 = vld [vmem:[#allocation40 + $0x60] sm:$0xff]
    %v5883 = vld [vmem:[#allocation40 + $0x68] sm:$0xff]
    %v5884 = vld [vmem:[#allocation40 + $0x70] sm:$0xff]
    %v5885 = vld [vmem:[#allocation40 + $0x78] sm:$0xff]
    %v5886 = vld [vmem:[#allocation40 + $0x80] sm:$0xff]
    %v5887 = vld [vmem:[#allocation40 + $0x88] sm:$0xff]
    %v5888 = vld [vmem:[#allocation40 + $0x90] sm:$0xff]
    %v5889 = vld [vmem:[#allocation40 + $0x98] sm:$0xff]
    %v5890 = vld [vmem:[#allocation40 + $0xa0] sm:$0xff]
    %v5891 = vld [vmem:[#allocation40 + $0xa8] sm:$0xff]
    %v5892 = vld [vmem:[#allocation40 + $0xb0] sm:$0xff]
    %v5893 = vld [vmem:[#allocation40 + $0xb8] sm:$0xff]
    %v5894 = vld [vmem:[#allocation40 + $0xc0] sm:$0xff]
    %v5895 = vld [vmem:[#allocation40 + $0xc8] sm:$0xff]
    %v5896 = vld [vmem:[#allocation40 + $0xd0] sm:$0xff]
    %v5897 = vld [vmem:[#allocation40 + $0xd8] sm:$0xff]
    %v5898 = vld [vmem:[#allocation40 + $0xe0] sm:$0xff]
    %v5899 = vld [vmem:[#allocation40 + $0xe8] sm:$0xff]
    %v5900 = vld [vmem:[#allocation40 + $0xf0] sm:$0xff]
    %v5901 = vld [vmem:[#allocation40 + $0xf8] sm:$0xff]
    %v5903 = vsel %vm1140, %v5870, 0
    %v5906 = vsel %vm1140, %v5871, 0
    %v5909 = vsel %vm1140, %v5872, 0
    %v5912 = vsel %vm1140, %v5873, 0
    %v5915 = vsel %vm1140, %v5874, 0
    %v5918 = vsel %vm1140, %v5875, 0
    %v5921 = vsel %vm1140, %v5876, 0
    %v5924 = vsel %vm1140, %v5877, 0
    %v5927 = vsel %vm1140, %v5878, 0
    %v5930 = vsel %vm1140, %v5879, 0
    %v5933 = vsel %vm1140, %v5880, 0
    %v5936 = vsel %vm1140, %v5881, 0
    %v5939 = vsel %vm1140, %v5882, 0
    %v5942 = vsel %vm1140, %v5883, 0
    %v5945 = vsel %vm1140, %v5884, 0
    %v5948 = vsel %vm1140, %v5885, 0
    %v5951 = vsel %vm1140, %v5886, 0
    %v5954 = vsel %vm1140, %v5887, 0
    %v5957 = vsel %vm1140, %v5888, 0
    %v5960 = vsel %vm1140, %v5889, 0
    %v5963 = vsel %vm1140, %v5890, 0
    %v5966 = vsel %vm1140, %v5891, 0
    %v5969 = vsel %vm1140, %v5892, 0
    %v5972 = vsel %vm1140, %v5893, 0
    %v5975 = vsel %vm1140, %v5894, 0
    %v5978 = vsel %vm1140, %v5895, 0
    %v5981 = vsel %vm1140, %v5896, 0
    %v5984 = vsel %vm1140, %v5897, 0
    %v5987 = vsel %vm1140, %v5898, 0
    %v5990 = vsel %vm1140, %v5899, 0
    %v5993 = vsel %vm1140, %v5900, 0
    %v5996 = vsel %vm1140, %v5901, 0
    %5998 = vmatprep.subr.mxu0 0.0
    %5999 = vmatpush1.msra.mxu0 %v5862
    %6000 = vmatprep.subr.mxu0 0.0
    %6001 = vmatpush1.msra.mxu0 %v5869
    %6002 = vmatprep.subr.mxu0 0.0
    %6003 = vmatpush1.msra.mxu0 0.0
    %6004 = vmatprep.subr.mxu0 0.0
    %6005 = vmatpush1.msra.mxu0 0.0
    %6006 = vmatprep.subr.mxu0 0.0
    %6007 = vmatpush1.msra.mxu0 0.0
    %6008 = vmatprep.subr.mxu0 0.0
    %6009 = vmatpush1.msra.mxu0 0.0
    %6010 = vmatprep.subr.mxu0 0.0
    %6011 = vmatpush1.msra.mxu0 0.0
    %6012 = vmatprep.subr.mxu0 0.0
    %6013 = vmatpush1.msra.mxu0 0.0
    %6014 = vmatprep.subr.mxu0 0.0
    %6015 = vmatpush1.msra.mxu0 0.0
    %6016 = vmatprep.subr.mxu0 0.0
    %6017 = vmatpush1.msra.mxu0 0.0
    %6018 = vmatprep.subr.mxu0 0.0
    %6019 = vmatpush1.msra.mxu0 0.0
    %6020 = vmatprep.subr.mxu0 0.0
    %6021 = vmatpush1.msra.mxu0 0.0
    %6022 = vmatprep.subr.mxu0 0.0
    %6023 = vmatpush1.msra.mxu0 0.0
    %6024 = vmatprep.subr.mxu0 0.0
    %6025 = vmatpush1.msra.mxu0 0.0
    %6026 = vmatprep.subr.mxu0 0.0
    %6027 = vmatpush1.msra.mxu0 0.0
    %6028 = vmatprep.subr.mxu0 0.0
    %6029 = vmatpush1.msra.mxu0 0.0
    %6030 = vmatprep.subr.mxu0 0.0
    %6031 = vmatpush1.msra.mxu0 0.0
    %6032 = vmatprep.subr.mxu0 0.0
    %6033 = vmatpush1.msra.mxu0 0.0
    %6034 = vmatprep.subr.mxu0 0.0
    %6035 = vmatpush1.msra.mxu0 0.0
    %6036 = vmatprep.subr.mxu0 0.0
    %6037 = vmatpush1.msra.mxu0 0.0
    %6038 = vmatprep.subr.mxu0 0.0
    %6039 = vmatpush1.msra.mxu0 0.0
    %6040 = vmatprep.subr.mxu0 0.0
    %6041 = vmatpush1.msra.mxu0 0.0
    %6042 = vmatprep.subr.mxu0 0.0
    %6043 = vmatpush1.msra.mxu0 0.0
    %6044 = vmatprep.subr.mxu0 0.0
    %6045 = vmatpush1.msra.mxu0 0.0
    %6046 = vmatprep.subr.mxu0 0.0
    %6047 = vmatpush1.msra.mxu0 0.0
    %6048 = vmatprep.subr.mxu0 0.0
    %6049 = vmatpush1.msra.mxu0 0.0
    %6050 = vmatprep.subr.mxu0 0.0
    %6051 = vmatpush1.msra.mxu0 0.0
    %6052 = vmatprep.subr.mxu0 0.0
    %6053 = vmatpush1.msra.mxu0 0.0
    %6054 = vmatprep.subr.mxu0 0.0
    %6055 = vmatpush1.msra.mxu0 0.0
    %6056 = vmatprep.subr.mxu0 0.0
    %6057 = vmatpush1.msra.mxu0 0.0
    %6058 = vmatprep.subr.mxu0 0.0
    %6059 = vmatpush1.msra.mxu0 0.0
    %6060 = vmatprep.subr.mxu0 0.0
    %6061 = vmatpush1.msra.mxu0 0.0
    %6062 = vmatprep.mubr.f32.mxu0 0.0
    %6063 = vmatmul.mubr.f32.gmra.mrb[0].mxu0 %v5903
    %v6064 = vpop.f32.mrb[0].mxu0
    %v6065 = vadd.f32 0.0, %v6064
    %v6066 = vpop.f32.mrb[0].mxu0
    %6067 = vmatprep.mubr.f32.mxu0 0.0
    %6068 = vmatmul.mubr.f32.gmra.mrb[0].mxu0 %v5906
    %v6069 = vpop.f32.mrb[0].mxu0
    %v6070 = vadd.f32 0.0, %v6069
    %v6071 = vpop.f32.mrb[0].mxu0
    %6072 = vmatprep.mubr.f32.mxu0 0.0
    %6073 = vmatmul.mubr.f32.gmra.mrb[0].mxu0 %v5909
    %v6074 = vpop.f32.mrb[0].mxu0
    %v6075 = vadd.f32 0.0, %v6074
    %v6076 = vpop.f32.mrb[0].mxu0
    %6077 = vmatprep.mubr.f32.mxu0 0.0
    %6078 = vmatmul.mubr.f32.gmra.mrb[0].mxu0 %v5912
    %v6079 = vpop.f32.mrb[0].mxu0
    %v6080 = vadd.f32 0.0, %v6079
    %v6081 = vpop.f32.mrb[0].mxu0
    %6082 = vmatprep.mubr.f32.mxu0 0.0
    %6083 = vmatmul.mubr.f32.gmra.mrb[0].mxu0 %v5915
    %v6084 = vpop.f32.mrb[0].mxu0
    %v6085 = vadd.f32 0.0, %v6084
    %v6086 = vpop.f32.mrb[0].mxu0
    %6087 = vmatprep.mubr.f32.mxu0 0.0
    %6088 = vmatmul.mubr.f32.gmra.mrb[0].mxu0 %v5918
    %v6089 = vpop.f32.mrb[0].mxu0
    %v6090 = vadd.f32 0.0, %v6089
    %v6091 = vpop.f32.mrb[0].mxu0
    %6092 = vmatprep.mubr.f32.mxu0 0.0
    %6093 = vmatmul.mubr.f32.gmra.mrb[0].mxu0 %v5921
    %v6094 = vpop.f32.mrb[0].mxu0
    %v6095 = vadd.f32 0.0, %v6094
    %v6096 = vpop.f32.mrb[0].mxu0
    %6097 = vmatprep.mubr.f32.mxu0 0.0
    %6098 = vmatmul.mubr.f32.gmra.mrb[0].mxu0 %v5924
    %v6099 = vpop.f32.mrb[0].mxu0
    %v6100 = vadd.f32 0.0, %v6099
    %v6101 = vpop.f32.mrb[0].mxu0
    %6102 = vmatprep.mubr.f32.mxu0 0.0
    %6103 = vmatmul.mubr.f32.gmra.mrb[0].mxu0 %v5927
    %v6104 = vpop.f32.mrb[0].mxu0
    %v6105 = vadd.f32 0.0, %v6104
    %v6106 = vpop.f32.mrb[0].mxu0
    %6107 = vmatprep.mubr.f32.mxu0 0.0
    %6108 = vmatmul.mubr.f32.gmra.mrb[0].mxu0 %v5930
    %v6109 = vpop.f32.mrb[0].mxu0
    %v6110 = vadd.f32 0.0, %v6109
    %v6111 = vpop.f32.mrb[0].mxu0
    %6112 = vmatprep.mubr.f32.mxu0 0.0
    %6113 = vmatmul.mubr.f32.gmra.mrb[0].mxu0 %v5933
    %v6114 = vpop.f32.mrb[0].mxu0
    %v6115 = vadd.f32 0.0, %v6114
    %v6116 = vpop.f32.mrb[0].mxu0
    %6117 = vmatprep.mubr.f32.mxu0 0.0
    %6118 = vmatmul.mubr.f32.gmra.mrb[0].mxu0 %v5936
    %v6119 = vpop.f32.mrb[0].mxu0
    %v6120 = vadd.f32 0.0, %v6119
    %v6121 = vpop.f32.mrb[0].mxu0
    %6122 = vmatprep.mubr.f32.mxu0 0.0
    %6123 = vmatmul.mubr.f32.gmra.mrb[0].mxu0 %v5939
    %v6124 = vpop.f32.mrb[0].mxu0
    %v6125 = vadd.f32 0.0, %v6124
    %v6126 = vpop.f32.mrb[0].mxu0
    %6127 = vmatprep.mubr.f32.mxu0 0.0
    %6128 = vmatmul.mubr.f32.gmra.mrb[0].mxu0 %v5942
    %v6129 = vpop.f32.mrb[0].mxu0
    %v6130 = vadd.f32 0.0, %v6129
    %v6131 = vpop.f32.mrb[0].mxu0
    %6132 = vmatprep.mubr.f32.mxu0 0.0
    %6133 = vmatmul.mubr.f32.gmra.mrb[0].mxu0 %v5945
    %v6134 = vpop.f32.mrb[0].mxu0
    %v6135 = vadd.f32 0.0, %v6134
    %v6136 = vpop.f32.mrb[0].mxu0
    %6137 = vmatprep.mubr.f32.mxu0 0.0
    %6138 = vmatmul.mubr.f32.gmra.mrb[0].mxu0 %v5948
    %v6139 = vpop.f32.mrb[0].mxu0
    %v6140 = vadd.f32 0.0, %v6139
    %v6141 = vpop.f32.mrb[0].mxu0
    %6142 = vmatprep.mubr.f32.mxu0 0.0
    %6143 = vmatmul.mubr.f32.gmra.mrb[0].mxu0 %v5951
    %v6144 = vpop.f32.mrb[0].mxu0
    %v6145 = vadd.f32 0.0, %v6144
    %v6146 = vpop.f32.mrb[0].mxu0
    %6147 = vmatprep.mubr.f32.mxu0 0.0
    %6148 = vmatmul.mubr.f32.gmra.mrb[0].mxu0 %v5954
    %v6149 = vpop.f32.mrb[0].mxu0
    %v6150 = vadd.f32 0.0, %v6149
    %v6151 = vpop.f32.mrb[0].mxu0
    %6152 = vmatprep.mubr.f32.mxu0 0.0
    %6153 = vmatmul.mubr.f32.gmra.mrb[0].mxu0 %v5957
    %v6154 = vpop.f32.mrb[0].mxu0
    %v6155 = vadd.f32 0.0, %v6154
    %v6156 = vpop.f32.mrb[0].mxu0
    %6157 = vmatprep.mubr.f32.mxu0 0.0
    %6158 = vmatmul.mubr.f32.gmra.mrb[0].mxu0 %v5960
    %v6159 = vpop.f32.mrb[0].mxu0
    %v6160 = vadd.f32 0.0, %v6159
    %v6161 = vpop.f32.mrb[0].mxu0
    %6162 = vmatprep.mubr.f32.mxu0 0.0
    %6163 = vmatmul.mubr.f32.gmra.mrb[0].mxu0 %v5963
    %v6164 = vpop.f32.mrb[0].mxu0
    %v6165 = vadd.f32 0.0, %v6164
    %v6166 = vpop.f32.mrb[0].mxu0
    %6167 = vmatprep.mubr.f32.mxu0 0.0
    %6168 = vmatmul.mubr.f32.gmra.mrb[0].mxu0 %v5966
    %v6169 = vpop.f32.mrb[0].mxu0
    %v6170 = vadd.f32 0.0, %v6169
    %v6171 = vpop.f32.mrb[0].mxu0
    %6172 = vmatprep.mubr.f32.mxu0 0.0
    %6173 = vmatmul.mubr.f32.gmra.mrb[0].mxu0 %v5969
    %v6174 = vpop.f32.mrb[0].mxu0
    %v6175 = vadd.f32 0.0, %v6174
    %v6176 = vpop.f32.mrb[0].mxu0
    %6177 = vmatprep.mubr.f32.mxu0 0.0
    %6178 = vmatmul.mubr.f32.gmra.mrb[0].mxu0 %v5972
    %v6179 = vpop.f32.mrb[0].mxu0
    %v6180 = vadd.f32 0.0, %v6179
    %v6181 = vpop.f32.mrb[0].mxu0
    %6182 = vmatprep.mubr.f32.mxu0 0.0
    %6183 = vmatmul.mubr.f32.gmra.mrb[0].mxu0 %v5975
    %v6184 = vpop.f32.mrb[0].mxu0
    %v6185 = vadd.f32 0.0, %v6184
    %v6186 = vpop.f32.mrb[0].mxu0
    %6187 = vmatprep.mubr.f32.mxu0 0.0
    %6188 = vmatmul.mubr.f32.gmra.mrb[0].mxu0 %v5978
    %v6189 = vpop.f32.mrb[0].mxu0
    %v6190 = vadd.f32 0.0, %v6189
    %v6191 = vpop.f32.mrb[0].mxu0
    %6192 = vmatprep.mubr.f32.mxu0 0.0
    %6193 = vmatmul.mubr.f32.gmra.mrb[0].mxu0 %v5981
    %v6194 = vpop.f32.mrb[0].mxu0
    %v6195 = vadd.f32 0.0, %v6194
    %v6196 = vpop.f32.mrb[0].mxu0
    %6197 = vmatprep.mubr.f32.mxu0 0.0
    %6198 = vmatmul.mubr.f32.gmra.mrb[0].mxu0 %v5984
    %v6199 = vpop.f32.mrb[0].mxu0
    %v6200 = vadd.f32 0.0, %v6199
    %v6201 = vpop.f32.mrb[0].mxu0
    %6202 = vmatprep.mubr.f32.mxu0 0.0
    %6203 = vmatmul.mubr.f32.gmra.mrb[0].mxu0 %v5987
    %v6204 = vpop.f32.mrb[0].mxu0
    %v6205 = vadd.f32 0.0, %v6204
    %v6206 = vpop.f32.mrb[0].mxu0
    %6207 = vmatprep.mubr.f32.mxu0 0.0
    %6208 = vmatmul.mubr.f32.gmra.mrb[0].mxu0 %v5990
    %v6209 = vpop.f32.mrb[0].mxu0
    %v6210 = vadd.f32 0.0, %v6209
    %v6211 = vpop.f32.mrb[0].mxu0
    %6212 = vmatprep.mubr.f32.mxu0 0.0
    %6213 = vmatmul.mubr.f32.gmra.mrb[0].mxu0 %v5993
    %v6214 = vpop.f32.mrb[0].mxu0
    %v6215 = vadd.f32 0.0, %v6214
    %v6216 = vpop.f32.mrb[0].mxu0
    %6217 = vmatprep.mubr.f32.mxu0 0.0
    %6218 = vmatmul.mubr.f32.gmra.mrb[0].mxu0 %v5996
    %v6219 = vpop.f32.mrb[0].mxu0
    %v6220 = vadd.f32 0.0, %v6219
    %v6221 = vpop.f32.mrb[0].mxu0
    %6222 = vdwg.mxu0
    %v6223 = vpack.c.bf16 %v6070, %v6065
    %v6224 = vpack.c.bf16 %v6080, %v6075
    %v6225 = vpack.c.bf16 %v6090, %v6085
    %v6226 = vpack.c.bf16 %v6100, %v6095
    %v6227 = vpack.c.bf16 %v6110, %v6105
    %v6228 = vpack.c.bf16 %v6120, %v6115
    %v6229 = vpack.c.bf16 %v6130, %v6125
    %v6230 = vpack.c.bf16 %v6140, %v6135
    %v6231 = vpack.c.bf16 %v6150, %v6145
    %v6232 = vpack.c.bf16 %v6160, %v6155
    %v6233 = vpack.c.bf16 %v6170, %v6165
    %v6234 = vpack.c.bf16 %v6180, %v6175
    %v6235 = vpack.c.bf16 %v6190, %v6185
    %v6236 = vpack.c.bf16 %v6200, %v6195
    %v6237 = vpack.c.bf16 %v6210, %v6205
    %v6238 = vpack.c.bf16 %v6220, %v6215
    %v6239 = vld [vmem:[%s81] sm:$0xff]
    %v6240 = vld [vmem:[%s81 + $0x8] sm:$0xff]
    %v6241 = vld [vmem:[%s81 + $0x10] sm:$0xff]
    %v6242 = vld [vmem:[%s81 + $0x18] sm:$0xff]
    %v6243 = vld [vmem:[%s81 + $0x20] sm:$0xff]
    %v6244 = vld [vmem:[%s81 + $0x28] sm:$0xff]
    %v6245 = vld [vmem:[%s81 + $0x30] sm:$0xff]
    %v6246 = vld [vmem:[%s81 + $0x38] sm:$0xff]
    %v6247 = vld [vmem:[%s81 + $0x40] sm:$0xff]
    %v6248 = vld [vmem:[%s81 + $0x48] sm:$0xff]
    %v6249 = vld [vmem:[%s81 + $0x50] sm:$0xff]
    %v6250 = vld [vmem:[%s81 + $0x58] sm:$0xff]
    %v6251 = vld [vmem:[%s81 + $0x60] sm:$0xff]
    %v6252 = vld [vmem:[%s81 + $0x68] sm:$0xff]
    %v6253 = vld [vmem:[%s81 + $0x70] sm:$0xff]
    %v6254 = vld [vmem:[%s81 + $0x78] sm:$0xff]
    %v6255 = vld [vmem:[%s81 + $0x80] sm:$0xff]
    %v6256 = vld [vmem:[%s81 + $0x88] sm:$0xff]
    %v6257 = vld [vmem:[%s81 + $0x90] sm:$0xff]
    %v6258 = vld [vmem:[%s81 + $0x98] sm:$0xff]
    %v6259 = vld [vmem:[%s81 + $0xa0] sm:$0xff]
    %v6260 = vld [vmem:[%s81 + $0xa8] sm:$0xff]
    %v6261 = vld [vmem:[%s81 + $0xb0] sm:$0xff]
    %v6262 = vld [vmem:[%s81 + $0xb8] sm:$0xff]
    %v6263 = vld [vmem:[%s81 + $0xc0] sm:$0xff]
    %v6264 = vld [vmem:[%s81 + $0xc8] sm:$0xff]
    %v6265 = vld [vmem:[%s81 + $0xd0] sm:$0xff]
    %v6266 = vld [vmem:[%s81 + $0xd8] sm:$0xff]
    %v6267 = vld [vmem:[%s81 + $0xe0] sm:$0xff]
    %v6268 = vld [vmem:[%s81 + $0xe8] sm:$0xff]
    %v6269 = vld [vmem:[%s81 + $0xf0] sm:$0xff]
    %v6270 = vld [vmem:[%s81 + $0xf8] sm:$0xff]
    %v6271 = vld [vmem:[%s81 + $0x100] sm:$0xff]
    %v6272 = vld [vmem:[%s81 + $0x108] sm:$0xff]
    %v6273 = vld [vmem:[%s81 + $0x110] sm:$0xff]
    %v6274 = vld [vmem:[%s81 + $0x118] sm:$0xff]
    %v6275 = vld [vmem:[%s81 + $0x120] sm:$0xff]
    %v6276 = vld [vmem:[%s81 + $0x128] sm:$0xff]
    %v6277 = vld [vmem:[%s81 + $0x130] sm:$0xff]
    %v6278 = vld [vmem:[%s81 + $0x138] sm:$0xff]
    %v6279 = vld [vmem:[%s81 + $0x140] sm:$0xff]
    %v6280 = vld [vmem:[%s81 + $0x148] sm:$0xff]
    %v6281 = vld [vmem:[%s81 + $0x150] sm:$0xff]
    %v6282 = vld [vmem:[%s81 + $0x158] sm:$0xff]
    %v6283 = vld [vmem:[%s81 + $0x160] sm:$0xff]
    %v6284 = vld [vmem:[%s81 + $0x168] sm:$0xff]
    %v6285 = vld [vmem:[%s81 + $0x170] sm:$0xff]
    %v6286 = vld [vmem:[%s81 + $0x178] sm:$0xff]
    %v6287 = vld [vmem:[%s81 + $0x180] sm:$0xff]
    %v6288 = vld [vmem:[%s81 + $0x188] sm:$0xff]
    %v6289 = vld [vmem:[%s81 + $0x190] sm:$0xff]
    %v6290 = vld [vmem:[%s81 + $0x198] sm:$0xff]
    %v6291 = vld [vmem:[%s81 + $0x1a0] sm:$0xff]
    %v6292 = vld [vmem:[%s81 + $0x1a8] sm:$0xff]
    %v6293 = vld [vmem:[%s81 + $0x1b0] sm:$0xff]
    %v6294 = vld [vmem:[%s81 + $0x1b8] sm:$0xff]
    %v6295 = vld [vmem:[%s81 + $0x1c0] sm:$0xff]
    %v6296 = vld [vmem:[%s81 + $0x1c8] sm:$0xff]
    %v6297 = vld [vmem:[%s81 + $0x1d0] sm:$0xff]
    %v6298 = vld [vmem:[%s81 + $0x1d8] sm:$0xff]
    %v6299 = vld [vmem:[%s81 + $0x1e0] sm:$0xff]
    %v6300 = vld [vmem:[%s81 + $0x1e8] sm:$0xff]
    %v6301 = vld [vmem:[%s81 + $0x1f0] sm:$0xff]
    %v6302 = vld [vmem:[%s81 + $0x1f8] sm:$0xff]
    %v6303 = vld [vmem:[%s81 + $0x200] sm:$0xff]
    %v6304 = vld [vmem:[%s81 + $0x208] sm:$0xff]
    %v6305 = vld [vmem:[%s81 + $0x210] sm:$0xff]
    %v6306 = vld [vmem:[%s81 + $0x218] sm:$0xff]
    %v6307 = vld [vmem:[%s81 + $0x220] sm:$0xff]
    %v6308 = vld [vmem:[%s81 + $0x228] sm:$0xff]
    %v6309 = vld [vmem:[%s81 + $0x230] sm:$0xff]
    %v6310 = vld [vmem:[%s81 + $0x238] sm:$0xff]
    %v6383 = vunpack.c.l.b16 %v6239
    %v6384 = vunpack.c.h.b16 %v6239
    %v6385 = vunpack.c.l.b16 %v6240
    %v6386 = vunpack.c.h.b16 %v6240
    %v6387 = vunpack.c.l.b16 %v6241
    %v6388 = vunpack.c.h.b16 %v6241
    %v6389 = vunpack.c.l.b16 %v6242
    %v6390 = vunpack.c.h.b16 %v6242
    %v6391 = vunpack.c.l.b16 %v6243
    %v6392 = vunpack.c.h.b16 %v6243
    %v6393 = vunpack.c.l.b16 %v6244
    %v6394 = vunpack.c.h.b16 %v6244
    %v6395 = vunpack.c.l.b16 %v6245
    %v6396 = vunpack.c.h.b16 %v6245
    %v6397 = vunpack.c.l.b16 %v6246
    %v6398 = vunpack.c.h.b16 %v6246
    %v6399 = vunpack.c.l.b16 %v6247
    %v6400 = vunpack.c.h.b16 %v6247
    %v6401 = vunpack.c.l.b16 %v6248
    %v6402 = vunpack.c.h.b16 %v6248
    %v6403 = vunpack.c.l.b16 %v6249
    %v6404 = vunpack.c.h.b16 %v6249
    %v6405 = vunpack.c.l.b16 %v6250
    %v6406 = vunpack.c.h.b16 %v6250
    %v6407 = vunpack.c.l.b16 %v6251
    %v6408 = vunpack.c.h.b16 %v6251
    %v6409 = vunpack.c.l.b16 %v6252
    %v6410 = vunpack.c.h.b16 %v6252
    %v6411 = vunpack.c.l.b16 %v6253
    %v6412 = vunpack.c.h.b16 %v6253
    %v6413 = vunpack.c.l.b16 %v6254
    %v6414 = vunpack.c.h.b16 %v6254
    %v6415 = vunpack.c.l.b16 %v6255
    %v6416 = vunpack.c.h.b16 %v6255
    %v6417 = vunpack.c.l.b16 %v6256
    %v6418 = vunpack.c.h.b16 %v6256
    %v6419 = vunpack.c.l.b16 %v6257
    %v6420 = vunpack.c.h.b16 %v6257
    %v6421 = vunpack.c.l.b16 %v6258
    %v6422 = vunpack.c.h.b16 %v6258
    %v6423 = vunpack.c.l.b16 %v6259
    %v6424 = vunpack.c.h.b16 %v6259
    %v6425 = vunpack.c.l.b16 %v6260
    %v6426 = vunpack.c.h.b16 %v6260
    %v6427 = vunpack.c.l.b16 %v6261
    %v6428 = vunpack.c.h.b16 %v6261
    %v6429 = vunpack.c.l.b16 %v6262
    %v6430 = vunpack.c.h.b16 %v6262
    %v6431 = vunpack.c.l.b16 %v6263
    %v6432 = vunpack.c.h.b16 %v6263
    %v6433 = vunpack.c.l.b16 %v6264
    %v6434 = vunpack.c.h.b16 %v6264
    %v6435 = vunpack.c.l.b16 %v6265
    %v6436 = vunpack.c.h.b16 %v6265
    %v6437 = vunpack.c.l.b16 %v6266
    %v6438 = vunpack.c.h.b16 %v6266
    %v6439 = vunpack.c.l.b16 %v6267
    %v6440 = vunpack.c.h.b16 %v6267
    %v6441 = vunpack.c.l.b16 %v6268
    %v6442 = vunpack.c.h.b16 %v6268
    %v6443 = vunpack.c.l.b16 %v6269
    %v6444 = vunpack.c.h.b16 %v6269
    %v6445 = vunpack.c.l.b16 %v6270
    %v6446 = vunpack.c.h.b16 %v6270
    %v6447 = vunpack.c.l.b16 %v6271
    %v6448 = vunpack.c.h.b16 %v6271
    %v6449 = vunpack.c.l.b16 %v6272
    %v6450 = vunpack.c.h.b16 %v6272
    %v6451 = vunpack.c.l.b16 %v6273
    %v6452 = vunpack.c.h.b16 %v6273
    %v6453 = vunpack.c.l.b16 %v6274
    %v6454 = vunpack.c.h.b16 %v6274
    %v6455 = vunpack.c.l.b16 %v6275
    %v6456 = vunpack.c.h.b16 %v6275
    %v6457 = vunpack.c.l.b16 %v6276
    %v6458 = vunpack.c.h.b16 %v6276
    %v6459 = vunpack.c.l.b16 %v6277
    %v6460 = vunpack.c.h.b16 %v6277
    %v6461 = vunpack.c.l.b16 %v6278
    %v6462 = vunpack.c.h.b16 %v6278
    %v6463 = vunpack.c.l.b16 %v6279
    %v6464 = vunpack.c.h.b16 %v6279
    %v6465 = vunpack.c.l.b16 %v6280
    %v6466 = vunpack.c.h.b16 %v6280
    %v6467 = vunpack.c.l.b16 %v6281
    %v6468 = vunpack.c.h.b16 %v6281
    %v6469 = vunpack.c.l.b16 %v6282
    %v6470 = vunpack.c.h.b16 %v6282
    %v6471 = vunpack.c.l.b16 %v6283
    %v6472 = vunpack.c.h.b16 %v6283
    %v6473 = vunpack.c.l.b16 %v6284
    %v6474 = vunpack.c.h.b16 %v6284
    %v6475 = vunpack.c.l.b16 %v6285
    %v6476 = vunpack.c.h.b16 %v6285
    %v6477 = vunpack.c.l.b16 %v6286
    %v6478 = vunpack.c.h.b16 %v6286
    %v6479 = vunpack.c.l.b16 %v6287
    %v6480 = vunpack.c.h.b16 %v6287
    %v6481 = vunpack.c.l.b16 %v6288
    %v6482 = vunpack.c.h.b16 %v6288
    %v6483 = vunpack.c.l.b16 %v6289
    %v6484 = vunpack.c.h.b16 %v6289
    %v6485 = vunpack.c.l.b16 %v6290
    %v6486 = vunpack.c.h.b16 %v6290
    %v6487 = vunpack.c.l.b16 %v6291
    %v6488 = vunpack.c.h.b16 %v6291
    %v6489 = vunpack.c.l.b16 %v6292
    %v6490 = vunpack.c.h.b16 %v6292
    %v6491 = vunpack.c.l.b16 %v6293
    %v6492 = vunpack.c.h.b16 %v6293
    %v6493 = vunpack.c.l.b16 %v6294
    %v6494 = vunpack.c.h.b16 %v6294
    %v6495 = vunpack.c.l.b16 %v6295
    %v6496 = vunpack.c.h.b16 %v6295
    %v6497 = vunpack.c.l.b16 %v6296
    %v6498 = vunpack.c.h.b16 %v6296
    %v6499 = vunpack.c.l.b16 %v6297
    %v6500 = vunpack.c.h.b16 %v6297
    %v6501 = vunpack.c.l.b16 %v6298
    %v6502 = vunpack.c.h.b16 %v6298
    %v6503 = vunpack.c.l.b16 %v6299
    %v6504 = vunpack.c.h.b16 %v6299
    %v6505 = vunpack.c.l.b16 %v6300
    %v6506 = vunpack.c.h.b16 %v6300
    %v6507 = vunpack.c.l.b16 %v6301
    %v6508 = vunpack.c.h.b16 %v6301
    %v6509 = vunpack.c.l.b16 %v6302
    %v6510 = vunpack.c.h.b16 %v6302
    %v6511 = vunpack.c.l.b16 %v6303
    %v6512 = vunpack.c.h.b16 %v6303
    %v6513 = vunpack.c.l.b16 %v6304
    %v6514 = vunpack.c.h.b16 %v6304
    %v6515 = vunpack.c.l.b16 %v6305
    %v6516 = vunpack.c.h.b16 %v6305
    %v6517 = vunpack.c.l.b16 %v6306
    %v6518 = vunpack.c.h.b16 %v6306
    %v6519 = vunpack.c.l.b16 %v6307
    %v6520 = vunpack.c.h.b16 %v6307
    %v6521 = vunpack.c.l.b16 %v6308
    %v6522 = vunpack.c.h.b16 %v6308
    %v6523 = vunpack.c.l.b16 %v6309
    %v6524 = vunpack.c.h.b16 %v6309
    %v6525 = vunpack.c.l.b16 %v6310
    %v6526 = vunpack.c.h.b16 %v6310
    %v6527 = vpack.c.b16 %v6395, %v6383
    %v6528 = vpack.c.b16 %v6396, %v6384
    %v6529 = vpack.c.b16 %v6397, %v6385
    %v6530 = vpack.c.b16 %v6398, %v6386
    %v6531 = vpack.c.b16 %v6399, %v6387
    %v6532 = vpack.c.b16 %v6400, %v6388
    %v6533 = vpack.c.b16 %v6401, %v6389
    %v6534 = vpack.c.b16 %v6402, %v6390
    %v6535 = vpack.c.b16 %v6403, %v6391
    %v6536 = vpack.c.b16 %v6404, %v6392
    %v6537 = vpack.c.b16 %v6405, %v6393
    %v6538 = vpack.c.b16 %v6406, %v6394
    %v6539 = vpack.c.b16 %v6419, %v6407
    %v6540 = vpack.c.b16 %v6420, %v6408
    %v6541 = vpack.c.b16 %v6421, %v6409
    %v6542 = vpack.c.b16 %v6422, %v6410
    %v6543 = vpack.c.b16 %v6423, %v6411
    %v6544 = vpack.c.b16 %v6424, %v6412
    %v6545 = vpack.c.b16 %v6425, %v6413
    %v6546 = vpack.c.b16 %v6426, %v6414
    %v6547 = vpack.c.b16 %v6427, %v6415
    %v6548 = vpack.c.b16 %v6428, %v6416
    %v6549 = vpack.c.b16 %v6429, %v6417
    %v6550 = vpack.c.b16 %v6430, %v6418
    %v6551 = vpack.c.b16 %v6443, %v6431
    %v6552 = vpack.c.b16 %v6444, %v6432
    %v6553 = vpack.c.b16 %v6445, %v6433
    %v6554 = vpack.c.b16 %v6446, %v6434
    %v6555 = vpack.c.b16 %v6447, %v6435
    %v6556 = vpack.c.b16 %v6448, %v6436
    %v6557 = vpack.c.b16 %v6449, %v6437
    %v6558 = vpack.c.b16 %v6450, %v6438
    %v6559 = vpack.c.b16 %v6451, %v6439
    %v6560 = vpack.c.b16 %v6452, %v6440
    %v6561 = vpack.c.b16 %v6453, %v6441
    %v6562 = vpack.c.b16 %v6454, %v6442
    %v6563 = vpack.c.b16 %v6467, %v6455
    %v6564 = vpack.c.b16 %v6468, %v6456
    %v6565 = vpack.c.b16 %v6469, %v6457
    %v6566 = vpack.c.b16 %v6470, %v6458
    %v6567 = vpack.c.b16 %v6471, %v6459
    %v6568 = vpack.c.b16 %v6472, %v6460
    %v6569 = vpack.c.b16 %v6473, %v6461
    %v6570 = vpack.c.b16 %v6474, %v6462
    %v6571 = vpack.c.b16 %v6475, %v6463
    %v6572 = vpack.c.b16 %v6476, %v6464
    %v6573 = vpack.c.b16 %v6477, %v6465
    %v6574 = vpack.c.b16 %v6478, %v6466
    %v6575 = vpack.c.b16 %v6491, %v6479
    %v6576 = vpack.c.b16 %v6492, %v6480
    %v6577 = vpack.c.b16 %v6493, %v6481
    %v6578 = vpack.c.b16 %v6494, %v6482
    %v6579 = vpack.c.b16 %v6495, %v6483
    %v6580 = vpack.c.b16 %v6496, %v6484
    %v6581 = vpack.c.b16 %v6497, %v6485
    %v6582 = vpack.c.b16 %v6498, %v6486
    %v6583 = vpack.c.b16 %v6499, %v6487
    %v6584 = vpack.c.b16 %v6500, %v6488
    %v6585 = vpack.c.b16 %v6501, %v6489
    %v6586 = vpack.c.b16 %v6502, %v6490
    %v6587 = vpack.c.b16 %v6515, %v6503
    %v6588 = vpack.c.b16 %v6516, %v6504
    %v6589 = vpack.c.b16 %v6517, %v6505
    %v6590 = vpack.c.b16 %v6518, %v6506
    %v6591 = vpack.c.b16 %v6519, %v6507
    %v6592 = vpack.c.b16 %v6520, %v6508
    %v6593 = vpack.c.b16 %v6521, %v6509
    %v6594 = vpack.c.b16 %v6522, %v6510
    %v6595 = vpack.c.b16 %v6523, %v6511
    %v6596 = vpack.c.b16 %v6524, %v6512
    %v6597 = vpack.c.b16 %v6525, %v6513
    %v6598 = vpack.c.b16 %v6526, %v6514
    %vm6671 = vcmask 785408
    %v6673 = vsel %vm6671, %v6223, 0
    %v6676 = vsel %vm6671, %v6224, 0
    %v6679 = vsel %vm6671, %v6225, 0
    %v6682 = vsel %vm6671, %v6226, 0
    %v6685 = vsel %vm6671, %v6227, 0
    %v6688 = vsel %vm6671, %v6228, 0
    %v6691 = vsel %vm6671, %v6229, 0
    %v6694 = vsel %vm6671, %v6230, 0
    %v6697 = vsel %vm6671, %v6231, 0
    %v6700 = vsel %vm6671, %v6232, 0
    %v6703 = vsel %vm6671, %v6233, 0
    %v6706 = vsel %vm6671, %v6234, 0
    %v6709 = vsel %vm6671, %v6235, 0
    %v6712 = vsel %vm6671, %v6236, 0
    %v6715 = vsel %vm6671, %v6237, 0
    %v6718 = vsel %vm6671, %v6238, 0
    %6720 = vmatprep.subr.bf16.mxu0 %v6528
    %6721 = vmatpush1.bf16.msra.mxu0 %v6527
    %6722 = vmatprep.subr.bf16.mxu0 %v6540
    %6723 = vmatpush1.bf16.msra.mxu0 %v6539
    %6724 = vmatprep.subr.bf16.mxu0 %v6552
    %6725 = vmatpush1.bf16.msra.mxu0 %v6551
    %6726 = vmatprep.subr.bf16.mxu0 %v6564
    %6727 = vmatpush1.bf16.msra.mxu0 %v6563
    %6728 = vmatprep.subr.bf16.mxu0 %v6576
    %6729 = vmatpush1.bf16.msra.mxu0 %v6575
    %6730 = vmatprep.subr.bf16.mxu0 %v6588
    %6731 = vmatpush1.bf16.msra.mxu0 %v6587
    %6732 = vmatprep.subr.bf16.mxu0 0
    %6733 = vmatpush1.bf16.msra.mxu0 0
    %6734 = vmatprep.subr.bf16.mxu0 0
    %6735 = vmatpush1.bf16.msra.mxu0 0
    %6736 = vmatprep.subr.bf16.mxu0 0
    %6737 = vmatpush1.bf16.msra.mxu0 0
    %6738 = vmatprep.subr.bf16.mxu0 0
    %6739 = vmatpush1.bf16.msra.mxu0 0
    %6740 = vmatprep.subr.bf16.mxu0 0
    %6741 = vmatpush1.bf16.msra.mxu0 0
    %6742 = vmatprep.subr.bf16.mxu0 0
    %6743 = vmatpush1.bf16.msra.mxu0 0
    %6744 = vmatprep.subr.bf16.mxu0 0
    %6745 = vmatpush1.bf16.msra.mxu0 0
    %6746 = vmatprep.subr.bf16.mxu0 0
    %6747 = vmatpush1.bf16.msra.mxu0 0
    %6748 = vmatprep.subr.bf16.mxu0 0
    %6749 = vmatpush1.bf16.msra.mxu0 0
    %6750 = vmatprep.subr.bf16.mxu0 0
    %6751 = vmatpush1.bf16.msra.mxu0 0
    %6752 = vmatprep.mubr.bf16.mxu0 0
    %6753 = vmatmul.mubr.bf16.gmra.mrb[0].mxu0 %v6673
    %v6754 = vpop.f32.mrb[0].mxu0
    %v6755 = vadd.f32 0.0, %v6754
    %v6756 = vpop.f32.mrb[0].mxu0
    %v6757 = vadd.f32 0.0, %v6756
    %v6758 = vpop.f32.mrb[0].mxu0
    %v6759 = vadd.f32 0.0, %v6758
    %v6760 = vpop.f32.mrb[0].mxu0
    %v6761 = vadd.f32 0.0, %v6760
    %6762 = vmatprep.mubr.bf16.mxu0 0
    %6763 = vmatmul.mubr.bf16.gmra.mrb[0].mxu0 %v6676
    %v6764 = vpop.f32.mrb[0].mxu0
    %v6765 = vadd.f32 0.0, %v6764
    %v6766 = vpop.f32.mrb[0].mxu0
    %v6767 = vadd.f32 0.0, %v6766
    %v6768 = vpop.f32.mrb[0].mxu0
    %v6769 = vadd.f32 0.0, %v6768
    %v6770 = vpop.f32.mrb[0].mxu0
    %v6771 = vadd.f32 0.0, %v6770
    %6772 = vmatprep.mubr.bf16.mxu0 0
    %6773 = vmatmul.mubr.bf16.gmra.mrb[0].mxu0 %v6679
    %v6774 = vpop.f32.mrb[0].mxu0
    %v6775 = vadd.f32 0.0, %v6774
    %v6776 = vpop.f32.mrb[0].mxu0
    %v6777 = vadd.f32 0.0, %v6776
    %v6778 = vpop.f32.mrb[0].mxu0
    %v6779 = vadd.f32 0.0, %v6778
    %v6780 = vpop.f32.mrb[0].mxu0
    %v6781 = vadd.f32 0.0, %v6780
    %6782 = vmatprep.mubr.bf16.mxu0 0
    %6783 = vmatmul.mubr.bf16.gmra.mrb[0].mxu0 %v6682
    %v6784 = vpop.f32.mrb[0].mxu0
    %v6785 = vadd.f32 0.0, %v6784
    %v6786 = vpop.f32.mrb[0].mxu0
    %v6787 = vadd.f32 0.0, %v6786
    %v6788 = vpop.f32.mrb[0].mxu0
    %v6789 = vadd.f32 0.0, %v6788
    %v6790 = vpop.f32.mrb[0].mxu0
    %v6791 = vadd.f32 0.0, %v6790
    %6792 = vmatprep.mubr.bf16.mxu0 0
    %6793 = vmatmul.mubr.bf16.gmra.mrb[0].mxu0 %v6685
    %v6794 = vpop.f32.mrb[0].mxu0
    %v6795 = vadd.f32 0.0, %v6794
    %v6796 = vpop.f32.mrb[0].mxu0
    %v6797 = vadd.f32 0.0, %v6796
    %v6798 = vpop.f32.mrb[0].mxu0
    %v6799 = vadd.f32 0.0, %v6798
    %v6800 = vpop.f32.mrb[0].mxu0
    %v6801 = vadd.f32 0.0, %v6800
    %6802 = vmatprep.mubr.bf16.mxu0 0
    %6803 = vmatmul.mubr.bf16.gmra.mrb[0].mxu0 %v6688
    %v6804 = vpop.f32.mrb[0].mxu0
    %v6805 = vadd.f32 0.0, %v6804
    %v6806 = vpop.f32.mrb[0].mxu0
    %v6807 = vadd.f32 0.0, %v6806
    %v6808 = vpop.f32.mrb[0].mxu0
    %v6809 = vadd.f32 0.0, %v6808
    %v6810 = vpop.f32.mrb[0].mxu0
    %v6811 = vadd.f32 0.0, %v6810
    %6812 = vmatprep.mubr.bf16.mxu0 0
    %6813 = vmatmul.mubr.bf16.gmra.mrb[0].mxu0 %v6691
    %v6814 = vpop.f32.mrb[0].mxu0
    %v6815 = vadd.f32 0.0, %v6814
    %v6816 = vpop.f32.mrb[0].mxu0
    %v6817 = vadd.f32 0.0, %v6816
    %v6818 = vpop.f32.mrb[0].mxu0
    %v6819 = vadd.f32 0.0, %v6818
    %v6820 = vpop.f32.mrb[0].mxu0
    %v6821 = vadd.f32 0.0, %v6820
    %6822 = vmatprep.mubr.bf16.mxu0 0
    %6823 = vmatmul.mubr.bf16.gmra.mrb[0].mxu0 %v6694
    %v6824 = vpop.f32.mrb[0].mxu0
    %v6825 = vadd.f32 0.0, %v6824
    %v6826 = vpop.f32.mrb[0].mxu0
    %v6827 = vadd.f32 0.0, %v6826
    %v6828 = vpop.f32.mrb[0].mxu0
    %v6829 = vadd.f32 0.0, %v6828
    %v6830 = vpop.f32.mrb[0].mxu0
    %v6831 = vadd.f32 0.0, %v6830
    %6832 = vmatprep.mubr.bf16.mxu0 0
    %6833 = vmatmul.mubr.bf16.gmra.mrb[0].mxu0 %v6697
    %v6834 = vpop.f32.mrb[0].mxu0
    %v6835 = vadd.f32 0.0, %v6834
    %v6836 = vpop.f32.mrb[0].mxu0
    %v6837 = vadd.f32 0.0, %v6836
    %v6838 = vpop.f32.mrb[0].mxu0
    %v6839 = vadd.f32 0.0, %v6838
    %v6840 = vpop.f32.mrb[0].mxu0
    %v6841 = vadd.f32 0.0, %v6840
    %6842 = vmatprep.mubr.bf16.mxu0 0
    %6843 = vmatmul.mubr.bf16.gmra.mrb[0].mxu0 %v6700
    %v6844 = vpop.f32.mrb[0].mxu0
    %v6845 = vadd.f32 0.0, %v6844
    %v6846 = vpop.f32.mrb[0].mxu0
    %v6847 = vadd.f32 0.0, %v6846
    %v6848 = vpop.f32.mrb[0].mxu0
    %v6849 = vadd.f32 0.0, %v6848
    %v6850 = vpop.f32.mrb[0].mxu0
    %v6851 = vadd.f32 0.0, %v6850
    %6852 = vmatprep.mubr.bf16.mxu0 0
    %6853 = vmatmul.mubr.bf16.gmra.mrb[0].mxu0 %v6703
    %v6854 = vpop.f32.mrb[0].mxu0
    %v6855 = vadd.f32 0.0, %v6854
    %v6856 = vpop.f32.mrb[0].mxu0
    %v6857 = vadd.f32 0.0, %v6856
    %v6858 = vpop.f32.mrb[0].mxu0
    %v6859 = vadd.f32 0.0, %v6858
    %v6860 = vpop.f32.mrb[0].mxu0
    %v6861 = vadd.f32 0.0, %v6860
    %6862 = vmatprep.mubr.bf16.mxu0 0
    %6863 = vmatmul.mubr.bf16.gmra.mrb[0].mxu0 %v6706
    %v6864 = vpop.f32.mrb[0].mxu0
    %v6865 = vadd.f32 0.0, %v6864
    %v6866 = vpop.f32.mrb[0].mxu0
    %v6867 = vadd.f32 0.0, %v6866
    %v6868 = vpop.f32.mrb[0].mxu0
    %v6869 = vadd.f32 0.0, %v6868
    %v6870 = vpop.f32.mrb[0].mxu0
    %v6871 = vadd.f32 0.0, %v6870
    %6872 = vmatprep.mubr.bf16.mxu0 0
    %6873 = vmatmul.mubr.bf16.gmra.mrb[0].mxu0 %v6709
    %v6874 = vpop.f32.mrb[0].mxu0
    %v6875 = vadd.f32 0.0, %v6874
    %v6876 = vpop.f32.mrb[0].mxu0
    %v6877 = vadd.f32 0.0, %v6876
    %v6878 = vpop.f32.mrb[0].mxu0
    %v6879 = vadd.f32 0.0, %v6878
    %v6880 = vpop.f32.mrb[0].mxu0
    %v6881 = vadd.f32 0.0, %v6880
    %6882 = vmatprep.mubr.bf16.mxu0 0
    %6883 = vmatmul.mubr.bf16.gmra.mrb[0].mxu0 %v6712
    %v6884 = vpop.f32.mrb[0].mxu0
    %v6885 = vadd.f32 0.0, %v6884
    %v6886 = vpop.f32.mrb[0].mxu0
    %v6887 = vadd.f32 0.0, %v6886
    %v6888 = vpop.f32.mrb[0].mxu0
    %v6889 = vadd.f32 0.0, %v6888
    %v6890 = vpop.f32.mrb[0].mxu0
    %v6891 = vadd.f32 0.0, %v6890
    %6892 = vmatprep.mubr.bf16.mxu0 0
    %6893 = vmatmul.mubr.bf16.gmra.mrb[0].mxu0 %v6715
    %v6894 = vpop.f32.mrb[0].mxu0
    %v6895 = vadd.f32 0.0, %v6894
    %v6896 = vpop.f32.mrb[0].mxu0
    %v6897 = vadd.f32 0.0, %v6896
    %v6898 = vpop.f32.mrb[0].mxu0
    %v6899 = vadd.f32 0.0, %v6898
    %v6900 = vpop.f32.mrb[0].mxu0
    %v6901 = vadd.f32 0.0, %v6900
    %6902 = vmatprep.mubr.bf16.mxu0 0
    %6903 = vmatmul.mubr.bf16.gmra.mrb[0].mxu0 %v6718
    %v6904 = vpop.f32.mrb[0].mxu0
    %v6905 = vadd.f32 0.0, %v6904
    %v6906 = vpop.f32.mrb[0].mxu0
    %v6907 = vadd.f32 0.0, %v6906
    %v6908 = vpop.f32.mrb[0].mxu0
    %v6909 = vadd.f32 0.0, %v6908
    %v6910 = vpop.f32.mrb[0].mxu0
    %v6911 = vadd.f32 0.0, %v6910
    %6912 = vdwg.mxu0
    %6913 = vmatprep.subr.bf16.mxu0 %v6530
    %6914 = vmatpush1.bf16.msra.mxu0 %v6529
    %6915 = vmatprep.subr.bf16.mxu0 %v6542
    %6916 = vmatpush1.bf16.msra.mxu0 %v6541
    %6917 = vmatprep.subr.bf16.mxu0 %v6554
    %6918 = vmatpush1.bf16.msra.mxu0 %v6553
    %6919 = vmatprep.subr.bf16.mxu0 %v6566
    %6920 = vmatpush1.bf16.msra.mxu0 %v6565
    %6921 = vmatprep.subr.bf16.mxu0 %v6578
    %6922 = vmatpush1.bf16.msra.mxu0 %v6577
    %6923 = vmatprep.subr.bf16.mxu0 %v6590
    %6924 = vmatpush1.bf16.msra.mxu0 %v6589
    %6925 = vmatprep.subr.bf16.mxu0 0
    %6926 = vmatpush1.bf16.msra.mxu0 0
    %6927 = vmatprep.subr.bf16.mxu0 0
    %6928 = vmatpush1.bf16.msra.mxu0 0
    %6929 = vmatprep.subr.bf16.mxu0 0
    %6930 = vmatpush1.bf16.msra.mxu0 0
    %6931 = vmatprep.subr.bf16.mxu0 0
    %6932 = vmatpush1.bf16.msra.mxu0 0
    %6933 = vmatprep.subr.bf16.mxu0 0
    %6934 = vmatpush1.bf16.msra.mxu0 0
    %6935 = vmatprep.subr.bf16.mxu0 0
    %6936 = vmatpush1.bf16.msra.mxu0 0
    %6937 = vmatprep.subr.bf16.mxu0 0
    %6938 = vmatpush1.bf16.msra.mxu0 0
    %6939 = vmatprep.subr.bf16.mxu0 0
    %6940 = vmatpush1.bf16.msra.mxu0 0
    %6941 = vmatprep.subr.bf16.mxu0 0
    %6942 = vmatpush1.bf16.msra.mxu0 0
    %6943 = vmatprep.subr.bf16.mxu0 0
    %6944 = vmatpush1.bf16.msra.mxu0 0
    %6945 = vmatprep.mubr.bf16.mxu0 0
    %6946 = vmatmul.mubr.bf16.gmra.mrb[0].mxu0 %v6673
    %v6947 = vpop.f32.mrb[0].mxu0
    %v6948 = vadd.f32 0.0, %v6947
    %v6949 = vpop.f32.mrb[0].mxu0
    %v6950 = vadd.f32 0.0, %v6949
    %v6951 = vpop.f32.mrb[0].mxu0
    %v6952 = vadd.f32 0.0, %v6951
    %v6953 = vpop.f32.mrb[0].mxu0
    %v6954 = vadd.f32 0.0, %v6953
    %6955 = vmatprep.mubr.bf16.mxu0 0
    %6956 = vmatmul.mubr.bf16.gmra.mrb[0].mxu0 %v6676
    %v6957 = vpop.f32.mrb[0].mxu0
    %v6958 = vadd.f32 0.0, %v6957
    %v6959 = vpop.f32.mrb[0].mxu0
    %v6960 = vadd.f32 0.0, %v6959
    %v6961 = vpop.f32.mrb[0].mxu0
    %v6962 = vadd.f32 0.0, %v6961
    %v6963 = vpop.f32.mrb[0].mxu0
    %v6964 = vadd.f32 0.0, %v6963
    %6965 = vmatprep.mubr.bf16.mxu0 0
    %6966 = vmatmul.mubr.bf16.gmra.mrb[0].mxu0 %v6679
    %v6967 = vpop.f32.mrb[0].mxu0
    %v6968 = vadd.f32 0.0, %v6967
    %v6969 = vpop.f32.mrb[0].mxu0
    %v6970 = vadd.f32 0.0, %v6969
    %v6971 = vpop.f32.mrb[0].mxu0
    %v6972 = vadd.f32 0.0, %v6971
    %v6973 = vpop.f32.mrb[0].mxu0
    %v6974 = vadd.f32 0.0, %v6973
    %6975 = vmatprep.mubr.bf16.mxu0 0
    %6976 = vmatmul.mubr.bf16.gmra.mrb[0].mxu0 %v6682
    %v6977 = vpop.f32.mrb[0].mxu0
    %v6978 = vadd.f32 0.0, %v6977
    %v6979 = vpop.f32.mrb[0].mxu0
    %v6980 = vadd.f32 0.0, %v6979
    %v6981 = vpop.f32.mrb[0].mxu0
    %v6982 = vadd.f32 0.0, %v6981
    %v6983 = vpop.f32.mrb[0].mxu0
    %v6984 = vadd.f32 0.0, %v6983
    %6985 = vmatprep.mubr.bf16.mxu0 0
    %6986 = vmatmul.mubr.bf16.gmra.mrb[0].mxu0 %v6685
    %v6987 = vpop.f32.mrb[0].mxu0
    %v6988 = vadd.f32 0.0, %v6987
    %v6989 = vpop.f32.mrb[0].mxu0
    %v6990 = vadd.f32 0.0, %v6989
    %v6991 = vpop.f32.mrb[0].mxu0
    %v6992 = vadd.f32 0.0, %v6991
    %v6993 = vpop.f32.mrb[0].mxu0
    %v6994 = vadd.f32 0.0, %v6993
    %6995 = vmatprep.mubr.bf16.mxu0 0
    %6996 = vmatmul.mubr.bf16.gmra.mrb[0].mxu0 %v6688
    %v6997 = vpop.f32.mrb[0].mxu0
    %v6998 = vadd.f32 0.0, %v6997
    %v6999 = vpop.f32.mrb[0].mxu0
    %v7000 = vadd.f32 0.0, %v6999
    %v7001 = vpop.f32.mrb[0].mxu0
    %v7002 = vadd.f32 0.0, %v7001
    %v7003 = vpop.f32.mrb[0].mxu0
    %v7004 = vadd.f32 0.0, %v7003
    %7005 = vmatprep.mubr.bf16.mxu0 0
    %7006 = vmatmul.mubr.bf16.gmra.mrb[0].mxu0 %v6691
    %v7007 = vpop.f32.mrb[0].mxu0
    %v7008 = vadd.f32 0.0, %v7007
    %v7009 = vpop.f32.mrb[0].mxu0
    %v7010 = vadd.f32 0.0, %v7009
    %v7011 = vpop.f32.mrb[0].mxu0
    %v7012 = vadd.f32 0.0, %v7011
    %v7013 = vpop.f32.mrb[0].mxu0
    %v7014 = vadd.f32 0.0, %v7013
    %7015 = vmatprep.mubr.bf16.mxu0 0
    %7016 = vmatmul.mubr.bf16.gmra.mrb[0].mxu0 %v6694
    %v7017 = vpop.f32.mrb[0].mxu0
    %v7018 = vadd.f32 0.0, %v7017
    %v7019 = vpop.f32.mrb[0].mxu0
    %v7020 = vadd.f32 0.0, %v7019
    %v7021 = vpop.f32.mrb[0].mxu0
    %v7022 = vadd.f32 0.0, %v7021
    %v7023 = vpop.f32.mrb[0].mxu0
    %v7024 = vadd.f32 0.0, %v7023
    %7025 = vmatprep.mubr.bf16.mxu0 0
    %7026 = vmatmul.mubr.bf16.gmra.mrb[0].mxu0 %v6697
    %v7027 = vpop.f32.mrb[0].mxu0
    %v7028 = vadd.f32 0.0, %v7027
    %v7029 = vpop.f32.mrb[0].mxu0
    %v7030 = vadd.f32 0.0, %v7029
    %v7031 = vpop.f32.mrb[0].mxu0
    %v7032 = vadd.f32 0.0, %v7031
    %v7033 = vpop.f32.mrb[0].mxu0
    %v7034 = vadd.f32 0.0, %v7033
    %7035 = vmatprep.mubr.bf16.mxu0 0
    %7036 = vmatmul.mubr.bf16.gmra.mrb[0].mxu0 %v6700
    %v7037 = vpop.f32.mrb[0].mxu0
    %v7038 = vadd.f32 0.0, %v7037
    %v7039 = vpop.f32.mrb[0].mxu0
    %v7040 = vadd.f32 0.0, %v7039
    %v7041 = vpop.f32.mrb[0].mxu0
    %v7042 = vadd.f32 0.0, %v7041
    %v7043 = vpop.f32.mrb[0].mxu0
    %v7044 = vadd.f32 0.0, %v7043
    %7045 = vmatprep.mubr.bf16.mxu0 0
    %7046 = vmatmul.mubr.bf16.gmra.mrb[0].mxu0 %v6703
    %v7047 = vpop.f32.mrb[0].mxu0
    %v7048 = vadd.f32 0.0, %v7047
    %v7049 = vpop.f32.mrb[0].mxu0
    %v7050 = vadd.f32 0.0, %v7049
    %v7051 = vpop.f32.mrb[0].mxu0
    %v7052 = vadd.f32 0.0, %v7051
    %v7053 = vpop.f32.mrb[0].mxu0
    %v7054 = vadd.f32 0.0, %v7053
    %7055 = vmatprep.mubr.bf16.mxu0 0
    %7056 = vmatmul.mubr.bf16.gmra.mrb[0].mxu0 %v6706
    %v7057 = vpop.f32.mrb[0].mxu0
    %v7058 = vadd.f32 0.0, %v7057
    %v7059 = vpop.f32.mrb[0].mxu0
    %v7060 = vadd.f32 0.0, %v7059
    %v7061 = vpop.f32.mrb[0].mxu0
    %v7062 = vadd.f32 0.0, %v7061
    %v7063 = vpop.f32.mrb[0].mxu0
    %v7064 = vadd.f32 0.0, %v7063
    %7065 = vmatprep.mubr.bf16.mxu0 0
    %7066 = vmatmul.mubr.bf16.gmra.mrb[0].mxu0 %v6709
    %v7067 = vpop.f32.mrb[0].mxu0
    %v7068 = vadd.f32 0.0, %v7067
    %v7069 = vpop.f32.mrb[0].mxu0
    %v7070 = vadd.f32 0.0, %v7069
    %v7071 = vpop.f32.mrb[0].mxu0
    %v7072 = vadd.f32 0.0, %v7071
    %v7073 = vpop.f32.mrb[0].mxu0
    %v7074 = vadd.f32 0.0, %v7073
    %7075 = vmatprep.mubr.bf16.mxu0 0
    %7076 = vmatmul.mubr.bf16.gmra.mrb[0].mxu0 %v6712
    %v7077 = vpop.f32.mrb[0].mxu0
    %v7078 = vadd.f32 0.0, %v7077
    %v7079 = vpop.f32.mrb[0].mxu0
    %v7080 = vadd.f32 0.0, %v7079
    %v7081 = vpop.f32.mrb[0].mxu0
    %v7082 = vadd.f32 0.0, %v7081
    %v7083 = vpop.f32.mrb[0].mxu0
    %v7084 = vadd.f32 0.0, %v7083
    %7085 = vmatprep.mubr.bf16.mxu0 0
    %7086 = vmatmul.mubr.bf16.gmra.mrb[0].mxu0 %v6715
    %v7087 = vpop.f32.mrb[0].mxu0
    %v7088 = vadd.f32 0.0, %v7087
    %v7089 = vpop.f32.mrb[0].mxu0
    %v7090 = vadd.f32 0.0, %v7089
    %v7091 = vpop.f32.mrb[0].mxu0
    %v7092 = vadd.f32 0.0, %v7091
    %v7093 = vpop.f32.mrb[0].mxu0
    %v7094 = vadd.f32 0.0, %v7093
    %7095 = vmatprep.mubr.bf16.mxu0 0
    %7096 = vmatmul.mubr.bf16.gmra.mrb[0].mxu0 %v6718
    %v7097 = vpop.f32.mrb[0].mxu0
    %v7098 = vadd.f32 0.0, %v7097
    %v7099 = vpop.f32.mrb[0].mxu0
    %v7100 = vadd.f32 0.0, %v7099
    %v7101 = vpop.f32.mrb[0].mxu0
    %v7102 = vadd.f32 0.0, %v7101
    %v7103 = vpop.f32.mrb[0].mxu0
    %v7104 = vadd.f32 0.0, %v7103
    %7105 = vdwg.mxu0
    %7106 = vmatprep.subr.bf16.mxu0 %v6532
    %7107 = vmatpush1.bf16.msra.mxu0 %v6531
    %7108 = vmatprep.subr.bf16.mxu0 %v6544
    %7109 = vmatpush1.bf16.msra.mxu0 %v6543
    %7110 = vmatprep.subr.bf16.mxu0 %v6556
    %7111 = vmatpush1.bf16.msra.mxu0 %v6555
    %7112 = vmatprep.subr.bf16.mxu0 %v6568
    %7113 = vmatpush1.bf16.msra.mxu0 %v6567
    %7114 = vmatprep.subr.bf16.mxu0 %v6580
    %7115 = vmatpush1.bf16.msra.mxu0 %v6579
    %7116 = vmatprep.subr.bf16.mxu0 %v6592
    %7117 = vmatpush1.bf16.msra.mxu0 %v6591
    %7118 = vmatprep.subr.bf16.mxu0 0
    %7119 = vmatpush1.bf16.msra.mxu0 0
    %7120 = vmatprep.subr.bf16.mxu0 0
    %7121 = vmatpush1.bf16.msra.mxu0 0
    %7122 = vmatprep.subr.bf16.mxu0 0
    %7123 = vmatpush1.bf16.msra.mxu0 0
    %7124 = vmatprep.subr.bf16.mxu0 0
    %7125 = vmatpush1.bf16.msra.mxu0 0
    %7126 = vmatprep.subr.bf16.mxu0 0
    %7127 = vmatpush1.bf16.msra.mxu0 0
    %7128 = vmatprep.subr.bf16.mxu0 0
    %7129 = vmatpush1.bf16.msra.mxu0 0
    %7130 = vmatprep.subr.bf16.mxu0 0
    %7131 = vmatpush1.bf16.msra.mxu0 0
    %7132 = vmatprep.subr.bf16.mxu0 0
    %7133 = vmatpush1.bf16.msra.mxu0 0
    %7134 = vmatprep.subr.bf16.mxu0 0
    %7135 = vmatpush1.bf16.msra.mxu0 0
    %7136 = vmatprep.subr.bf16.mxu0 0
    %7137 = vmatpush1.bf16.msra.mxu0 0
    %7138 = vmatprep.mubr.bf16.mxu0 0
    %7139 = vmatmul.mubr.bf16.gmra.mrb[0].mxu0 %v6673
    %v7140 = vpop.f32.mrb[0].mxu0
    %v7141 = vadd.f32 0.0, %v7140
    %v7142 = vpop.f32.mrb[0].mxu0
    %v7143 = vadd.f32 0.0, %v7142
    %v7144 = vpop.f32.mrb[0].mxu0
    %v7145 = vadd.f32 0.0, %v7144
    %v7146 = vpop.f32.mrb[0].mxu0
    %v7147 = vadd.f32 0.0, %v7146
    %7148 = vmatprep.mubr.bf16.mxu0 0
    %7149 = vmatmul.mubr.bf16.gmra.mrb[0].mxu0 %v6676
    %v7150 = vpop.f32.mrb[0].mxu0
    %v7151 = vadd.f32 0.0, %v7150
    %v7152 = vpop.f32.mrb[0].mxu0
    %v7153 = vadd.f32 0.0, %v7152
    %v7154 = vpop.f32.mrb[0].mxu0
    %v7155 = vadd.f32 0.0, %v7154
    %v7156 = vpop.f32.mrb[0].mxu0
    %v7157 = vadd.f32 0.0, %v7156
    %7158 = vmatprep.mubr.bf16.mxu0 0
    %7159 = vmatmul.mubr.bf16.gmra.mrb[0].mxu0 %v6679
    %v7160 = vpop.f32.mrb[0].mxu0
    %v7161 = vadd.f32 0.0, %v7160
    %v7162 = vpop.f32.mrb[0].mxu0
    %v7163 = vadd.f32 0.0, %v7162
    %v7164 = vpop.f32.mrb[0].mxu0
    %v7165 = vadd.f32 0.0, %v7164
    %v7166 = vpop.f32.mrb[0].mxu0
    %v7167 = vadd.f32 0.0, %v7166
    %7168 = vmatprep.mubr.bf16.mxu0 0
    %7169 = vmatmul.mubr.bf16.gmra.mrb[0].mxu0 %v6682
    %v7170 = vpop.f32.mrb[0].mxu0
    %v7171 = vadd.f32 0.0, %v7170
    %v7172 = vpop.f32.mrb[0].mxu0
    %v7173 = vadd.f32 0.0, %v7172
    %v7174 = vpop.f32.mrb[0].mxu0
    %v7175 = vadd.f32 0.0, %v7174
    %v7176 = vpop.f32.mrb[0].mxu0
    %v7177 = vadd.f32 0.0, %v7176
    %7178 = vmatprep.mubr.bf16.mxu0 0
    %7179 = vmatmul.mubr.bf16.gmra.mrb[0].mxu0 %v6685
    %v7180 = vpop.f32.mrb[0].mxu0
    %v7181 = vadd.f32 0.0, %v7180
    %v7182 = vpop.f32.mrb[0].mxu0
    %v7183 = vadd.f32 0.0, %v7182
    %v7184 = vpop.f32.mrb[0].mxu0
    %v7185 = vadd.f32 0.0, %v7184
    %v7186 = vpop.f32.mrb[0].mxu0
    %v7187 = vadd.f32 0.0, %v7186
    %7188 = vmatprep.mubr.bf16.mxu0 0
    %7189 = vmatmul.mubr.bf16.gmra.mrb[0].mxu0 %v6688
    %v7190 = vpop.f32.mrb[0].mxu0
    %v7191 = vadd.f32 0.0, %v7190
    %v7192 = vpop.f32.mrb[0].mxu0
    %v7193 = vadd.f32 0.0, %v7192
    %v7194 = vpop.f32.mrb[0].mxu0
    %v7195 = vadd.f32 0.0, %v7194
    %v7196 = vpop.f32.mrb[0].mxu0
    %v7197 = vadd.f32 0.0, %v7196
    %7198 = vmatprep.mubr.bf16.mxu0 0
    %7199 = vmatmul.mubr.bf16.gmra.mrb[0].mxu0 %v6691
    %v7200 = vpop.f32.mrb[0].mxu0
    %v7201 = vadd.f32 0.0, %v7200
    %v7202 = vpop.f32.mrb[0].mxu0
    %v7203 = vadd.f32 0.0, %v7202
    %v7204 = vpop.f32.mrb[0].mxu0
    %v7205 = vadd.f32 0.0, %v7204
    %v7206 = vpop.f32.mrb[0].mxu0
    %v7207 = vadd.f32 0.0, %v7206
    %7208 = vmatprep.mubr.bf16.mxu0 0
    %7209 = vmatmul.mubr.bf16.gmra.mrb[0].mxu0 %v6694
    %v7210 = vpop.f32.mrb[0].mxu0
    %v7211 = vadd.f32 0.0, %v7210
    %v7212 = vpop.f32.mrb[0].mxu0
    %v7213 = vadd.f32 0.0, %v7212
    %v7214 = vpop.f32.mrb[0].mxu0
    %v7215 = vadd.f32 0.0, %v7214
    %v7216 = vpop.f32.mrb[0].mxu0
    %v7217 = vadd.f32 0.0, %v7216
    %7218 = vmatprep.mubr.bf16.mxu0 0
    %7219 = vmatmul.mubr.bf16.gmra.mrb[0].mxu0 %v6697
    %v7220 = vpop.f32.mrb[0].mxu0
    %v7221 = vadd.f32 0.0, %v7220
    %v7222 = vpop.f32.mrb[0].mxu0
    %v7223 = vadd.f32 0.0, %v7222
    %v7224 = vpop.f32.mrb[0].mxu0
    %v7225 = vadd.f32 0.0, %v7224
    %v7226 = vpop.f32.mrb[0].mxu0
    %v7227 = vadd.f32 0.0, %v7226
    %7228 = vmatprep.mubr.bf16.mxu0 0
    %7229 = vmatmul.mubr.bf16.gmra.mrb[0].mxu0 %v6700
    %v7230 = vpop.f32.mrb[0].mxu0
    %v7231 = vadd.f32 0.0, %v7230
    %v7232 = vpop.f32.mrb[0].mxu0
    %v7233 = vadd.f32 0.0, %v7232
    %v7234 = vpop.f32.mrb[0].mxu0
    %v7235 = vadd.f32 0.0, %v7234
    %v7236 = vpop.f32.mrb[0].mxu0
    %v7237 = vadd.f32 0.0, %v7236
    %7238 = vmatprep.mubr.bf16.mxu0 0
    %7239 = vmatmul.mubr.bf16.gmra.mrb[0].mxu0 %v6703
    %v7240 = vpop.f32.mrb[0].mxu0
    %v7241 = vadd.f32 0.0, %v7240
    %v7242 = vpop.f32.mrb[0].mxu0
    %v7243 = vadd.f32 0.0, %v7242
    %v7244 = vpop.f32.mrb[0].mxu0
    %v7245 = vadd.f32 0.0, %v7244
    %v7246 = vpop.f32.mrb[0].mxu0
    %v7247 = vadd.f32 0.0, %v7246
    %7248 = vmatprep.mubr.bf16.mxu0 0
    %7249 = vmatmul.mubr.bf16.gmra.mrb[0].mxu0 %v6706
    %v7250 = vpop.f32.mrb[0].mxu0
    %v7251 = vadd.f32 0.0, %v7250
    %v7252 = vpop.f32.mrb[0].mxu0
    %v7253 = vadd.f32 0.0, %v7252
    %v7254 = vpop.f32.mrb[0].mxu0
    %v7255 = vadd.f32 0.0, %v7254
    %v7256 = vpop.f32.mrb[0].mxu0
    %v7257 = vadd.f32 0.0, %v7256
    %7258 = vmatprep.mubr.bf16.mxu0 0
    %7259 = vmatmul.mubr.bf16.gmra.mrb[0].mxu0 %v6709
    %v7260 = vpop.f32.mrb[0].mxu0
    %v7261 = vadd.f32 0.0, %v7260
    %v7262 = vpop.f32.mrb[0].mxu0
    %v7263 = vadd.f32 0.0, %v7262
    %v7264 = vpop.f32.mrb[0].mxu0
    %v7265 = vadd.f32 0.0, %v7264
    %v7266 = vpop.f32.mrb[0].mxu0
    %v7267 = vadd.f32 0.0, %v7266
    %7268 = vmatprep.mubr.bf16.mxu0 0
    %7269 = vmatmul.mubr.bf16.gmra.mrb[0].mxu0 %v6712
    %v7270 = vpop.f32.mrb[0].mxu0
    %v7271 = vadd.f32 0.0, %v7270
    %v7272 = vpop.f32.mrb[0].mxu0
    %v7273 = vadd.f32 0.0, %v7272
    %v7274 = vpop.f32.mrb[0].mxu0
    %v7275 = vadd.f32 0.0, %v7274
    %v7276 = vpop.f32.mrb[0].mxu0
    %v7277 = vadd.f32 0.0, %v7276
    %7278 = vmatprep.mubr.bf16.mxu0 0
    %7279 = vmatmul.mubr.bf16.gmra.mrb[0].mxu0 %v6715
    %v7280 = vpop.f32.mrb[0].mxu0
    %v7281 = vadd.f32 0.0, %v7280
    %v7282 = vpop.f32.mrb[0].mxu0
    %v7283 = vadd.f32 0.0, %v7282
    %v7284 = vpop.f32.mrb[0].mxu0
    %v7285 = vadd.f32 0.0, %v7284
    %v7286 = vpop.f32.mrb[0].mxu0
    %v7287 = vadd.f32 0.0, %v7286
    %7288 = vmatprep.mubr.bf16.mxu0 0
    %7289 = vmatmul.mubr.bf16.gmra.mrb[0].mxu0 %v6718
    %v7290 = vpop.f32.mrb[0].mxu0
    %v7291 = vadd.f32 0.0, %v7290
    %v7292 = vpop.f32.mrb[0].mxu0
    %v7293 = vadd.f32 0.0, %v7292
    %v7294 = vpop.f32.mrb[0].mxu0
    %v7295 = vadd.f32 0.0, %v7294
    %v7296 = vpop.f32.mrb[0].mxu0
    %v7297 = vadd.f32 0.0, %v7296
    %7298 = vdwg.mxu0
    %7299 = vmatprep.subr.bf16.mxu0 %v6534
    %7300 = vmatpush1.bf16.msra.mxu0 %v6533
    %7301 = vmatprep.subr.bf16.mxu0 %v6546
    %7302 = vmatpush1.bf16.msra.mxu0 %v6545
    %7303 = vmatprep.subr.bf16.mxu0 %v6558
    %7304 = vmatpush1.bf16.msra.mxu0 %v6557
    %7305 = vmatprep.subr.bf16.mxu0 %v6570
    %7306 = vmatpush1.bf16.msra.mxu0 %v6569
    %7307 = vmatprep.subr.bf16.mxu0 %v6582
    %7308 = vmatpush1.bf16.msra.mxu0 %v6581
    %7309 = vmatprep.subr.bf16.mxu0 %v6594
    %7310 = vmatpush1.bf16.msra.mxu0 %v6593
    %7311 = vmatprep.subr.bf16.mxu0 0
    %7312 = vmatpush1.bf16.msra.mxu0 0
    %7313 = vmatprep.subr.bf16.mxu0 0
    %7314 = vmatpush1.bf16.msra.mxu0 0
    %7315 = vmatprep.subr.bf16.mxu0 0
    %7316 = vmatpush1.bf16.msra.mxu0 0
    %7317 = vmatprep.subr.bf16.mxu0 0
    %7318 = vmatpush1.bf16.msra.mxu0 0
    %7319 = vmatprep.subr.bf16.mxu0 0
    %7320 = vmatpush1.bf16.msra.mxu0 0
    %7321 = vmatprep.subr.bf16.mxu0 0
    %7322 = vmatpush1.bf16.msra.mxu0 0
    %7323 = vmatprep.subr.bf16.mxu0 0
    %7324 = vmatpush1.bf16.msra.mxu0 0
    %7325 = vmatprep.subr.bf16.mxu0 0
    %7326 = vmatpush1.bf16.msra.mxu0 0
    %7327 = vmatprep.subr.bf16.mxu0 0
    %7328 = vmatpush1.bf16.msra.mxu0 0
    %7329 = vmatprep.subr.bf16.mxu0 0
    %7330 = vmatpush1.bf16.msra.mxu0 0
    %7331 = vmatprep.mubr.bf16.mxu0 0
    %7332 = vmatmul.mubr.bf16.gmra.mrb[0].mxu0 %v6673
    %v7333 = vpop.f32.mrb[0].mxu0
    %v7334 = vadd.f32 0.0, %v7333
    %v7335 = vpop.f32.mrb[0].mxu0
    %v7336 = vadd.f32 0.0, %v7335
    %v7337 = vpop.f32.mrb[0].mxu0
    %v7338 = vadd.f32 0.0, %v7337
    %v7339 = vpop.f32.mrb[0].mxu0
    %v7340 = vadd.f32 0.0, %v7339
    %7341 = vmatprep.mubr.bf16.mxu0 0
    %7342 = vmatmul.mubr.bf16.gmra.mrb[0].mxu0 %v6676
    %v7343 = vpop.f32.mrb[0].mxu0
    %v7344 = vadd.f32 0.0, %v7343
    %v7345 = vpop.f32.mrb[0].mxu0
    %v7346 = vadd.f32 0.0, %v7345
    %v7347 = vpop.f32.mrb[0].mxu0
    %v7348 = vadd.f32 0.0, %v7347
    %v7349 = vpop.f32.mrb[0].mxu0
    %v7350 = vadd.f32 0.0, %v7349
    %7351 = vmatprep.mubr.bf16.mxu0 0
    %7352 = vmatmul.mubr.bf16.gmra.mrb[0].mxu0 %v6679
    %v7353 = vpop.f32.mrb[0].mxu0
    %v7354 = vadd.f32 0.0, %v7353
    %v7355 = vpop.f32.mrb[0].mxu0
    %v7356 = vadd.f32 0.0, %v7355
    %v7357 = vpop.f32.mrb[0].mxu0
    %v7358 = vadd.f32 0.0, %v7357
    %v7359 = vpop.f32.mrb[0].mxu0
    %v7360 = vadd.f32 0.0, %v7359
    %7361 = vmatprep.mubr.bf16.mxu0 0
    %7362 = vmatmul.mubr.bf16.gmra.mrb[0].mxu0 %v6682
    %v7363 = vpop.f32.mrb[0].mxu0
    %v7364 = vadd.f32 0.0, %v7363
    %v7365 = vpop.f32.mrb[0].mxu0
    %v7366 = vadd.f32 0.0, %v7365
    %v7367 = vpop.f32.mrb[0].mxu0
    %v7368 = vadd.f32 0.0, %v7367
    %v7369 = vpop.f32.mrb[0].mxu0
    %v7370 = vadd.f32 0.0, %v7369
    %7371 = vmatprep.mubr.bf16.mxu0 0
    %7372 = vmatmul.mubr.bf16.gmra.mrb[0].mxu0 %v6685
    %v7373 = vpop.f32.mrb[0].mxu0
    %v7374 = vadd.f32 0.0, %v7373
    %v7375 = vpop.f32.mrb[0].mxu0
    %v7376 = vadd.f32 0.0, %v7375
    %v7377 = vpop.f32.mrb[0].mxu0
    %v7378 = vadd.f32 0.0, %v7377
    %v7379 = vpop.f32.mrb[0].mxu0
    %v7380 = vadd.f32 0.0, %v7379
    %7381 = vmatprep.mubr.bf16.mxu0 0
    %7382 = vmatmul.mubr.bf16.gmra.mrb[0].mxu0 %v6688
    %v7383 = vpop.f32.mrb[0].mxu0
    %v7384 = vadd.f32 0.0, %v7383
    %v7385 = vpop.f32.mrb[0].mxu0
    %v7386 = vadd.f32 0.0, %v7385
    %v7387 = vpop.f32.mrb[0].mxu0
    %v7388 = vadd.f32 0.0, %v7387
    %v7389 = vpop.f32.mrb[0].mxu0
    %v7390 = vadd.f32 0.0, %v7389
    %7391 = vmatprep.mubr.bf16.mxu0 0
    %7392 = vmatmul.mubr.bf16.gmra.mrb[0].mxu0 %v6691
    %v7393 = vpop.f32.mrb[0].mxu0
    %v7394 = vadd.f32 0.0, %v7393
    %v7395 = vpop.f32.mrb[0].mxu0
    %v7396 = vadd.f32 0.0, %v7395
    %v7397 = vpop.f32.mrb[0].mxu0
    %v7398 = vadd.f32 0.0, %v7397
    %v7399 = vpop.f32.mrb[0].mxu0
    %v7400 = vadd.f32 0.0, %v7399
    %7401 = vmatprep.mubr.bf16.mxu0 0
    %7402 = vmatmul.mubr.bf16.gmra.mrb[0].mxu0 %v6694
    %v7403 = vpop.f32.mrb[0].mxu0
    %v7404 = vadd.f32 0.0, %v7403
    %v7405 = vpop.f32.mrb[0].mxu0
    %v7406 = vadd.f32 0.0, %v7405
    %v7407 = vpop.f32.mrb[0].mxu0
    %v7408 = vadd.f32 0.0, %v7407
    %v7409 = vpop.f32.mrb[0].mxu0
    %v7410 = vadd.f32 0.0, %v7409
    %7411 = vmatprep.mubr.bf16.mxu0 0
    %7412 = vmatmul.mubr.bf16.gmra.mrb[0].mxu0 %v6697
    %v7413 = vpop.f32.mrb[0].mxu0
    %v7414 = vadd.f32 0.0, %v7413
    %v7415 = vpop.f32.mrb[0].mxu0
    %v7416 = vadd.f32 0.0, %v7415
    %v7417 = vpop.f32.mrb[0].mxu0
    %v7418 = vadd.f32 0.0, %v7417
    %v7419 = vpop.f32.mrb[0].mxu0
    %v7420 = vadd.f32 0.0, %v7419
    %7421 = vmatprep.mubr.bf16.mxu0 0
    %7422 = vmatmul.mubr.bf16.gmra.mrb[0].mxu0 %v6700
    %v7423 = vpop.f32.mrb[0].mxu0
    %v7424 = vadd.f32 0.0, %v7423
    %v7425 = vpop.f32.mrb[0].mxu0
    %v7426 = vadd.f32 0.0, %v7425
    %v7427 = vpop.f32.mrb[0].mxu0
    %v7428 = vadd.f32 0.0, %v7427
    %v7429 = vpop.f32.mrb[0].mxu0
    %v7430 = vadd.f32 0.0, %v7429
    %7431 = vmatprep.mubr.bf16.mxu0 0
    %7432 = vmatmul.mubr.bf16.gmra.mrb[0].mxu0 %v6703
    %v7433 = vpop.f32.mrb[0].mxu0
    %v7434 = vadd.f32 0.0, %v7433
    %v7435 = vpop.f32.mrb[0].mxu0
    %v7436 = vadd.f32 0.0, %v7435
    %v7437 = vpop.f32.mrb[0].mxu0
    %v7438 = vadd.f32 0.0, %v7437
    %v7439 = vpop.f32.mrb[0].mxu0
    %v7440 = vadd.f32 0.0, %v7439
    %7441 = vmatprep.mubr.bf16.mxu0 0
    %7442 = vmatmul.mubr.bf16.gmra.mrb[0].mxu0 %v6706
    %v7443 = vpop.f32.mrb[0].mxu0
    %v7444 = vadd.f32 0.0, %v7443
    %v7445 = vpop.f32.mrb[0].mxu0
    %v7446 = vadd.f32 0.0, %v7445
    %v7447 = vpop.f32.mrb[0].mxu0
    %v7448 = vadd.f32 0.0, %v7447
    %v7449 = vpop.f32.mrb[0].mxu0
    %v7450 = vadd.f32 0.0, %v7449
    %7451 = vmatprep.mubr.bf16.mxu0 0
    %7452 = vmatmul.mubr.bf16.gmra.mrb[0].mxu0 %v6709
    %v7453 = vpop.f32.mrb[0].mxu0
    %v7454 = vadd.f32 0.0, %v7453
    %v7455 = vpop.f32.mrb[0].mxu0
    %v7456 = vadd.f32 0.0, %v7455
    %v7457 = vpop.f32.mrb[0].mxu0
    %v7458 = vadd.f32 0.0, %v7457
    %v7459 = vpop.f32.mrb[0].mxu0
    %v7460 = vadd.f32 0.0, %v7459
    %7461 = vmatprep.mubr.bf16.mxu0 0
    %7462 = vmatmul.mubr.bf16.gmra.mrb[0].mxu0 %v6712
    %v7463 = vpop.f32.mrb[0].mxu0
    %v7464 = vadd.f32 0.0, %v7463
    %v7465 = vpop.f32.mrb[0].mxu0
    %v7466 = vadd.f32 0.0, %v7465
    %v7467 = vpop.f32.mrb[0].mxu0
    %v7468 = vadd.f32 0.0, %v7467
    %v7469 = vpop.f32.mrb[0].mxu0
    %v7470 = vadd.f32 0.0, %v7469
    %7471 = vmatprep.mubr.bf16.mxu0 0
    %7472 = vmatmul.mubr.bf16.gmra.mrb[0].mxu0 %v6715
    %v7473 = vpop.f32.mrb[0].mxu0
    %v7474 = vadd.f32 0.0, %v7473
    %v7475 = vpop.f32.mrb[0].mxu0
    %v7476 = vadd.f32 0.0, %v7475
    %v7477 = vpop.f32.mrb[0].mxu0
    %v7478 = vadd.f32 0.0, %v7477
    %v7479 = vpop.f32.mrb[0].mxu0
    %v7480 = vadd.f32 0.0, %v7479
    %7481 = vmatprep.mubr.bf16.mxu0 0
    %7482 = vmatmul.mubr.bf16.gmra.mrb[0].mxu0 %v6718
    %v7483 = vpop.f32.mrb[0].mxu0
    %v7484 = vadd.f32 0.0, %v7483
    %v7485 = vpop.f32.mrb[0].mxu0
    %v7486 = vadd.f32 0.0, %v7485
    %v7487 = vpop.f32.mrb[0].mxu0
    %v7488 = vadd.f32 0.0, %v7487
    %v7489 = vpop.f32.mrb[0].mxu0
    %v7490 = vadd.f32 0.0, %v7489
    %7491 = vdwg.mxu0
    %7492 = vmatprep.subr.bf16.mxu0 %v6536
    %7493 = vmatpush1.bf16.msra.mxu0 %v6535
    %7494 = vmatprep.subr.bf16.mxu0 %v6548
    %7495 = vmatpush1.bf16.msra.mxu0 %v6547
    %7496 = vmatprep.subr.bf16.mxu0 %v6560
    %7497 = vmatpush1.bf16.msra.mxu0 %v6559
    %7498 = vmatprep.subr.bf16.mxu0 %v6572
    %7499 = vmatpush1.bf16.msra.mxu0 %v6571
    %7500 = vmatprep.subr.bf16.mxu0 %v6584
    %7501 = vmatpush1.bf16.msra.mxu0 %v6583
    %7502 = vmatprep.subr.bf16.mxu0 %v6596
    %7503 = vmatpush1.bf16.msra.mxu0 %v6595
    %7504 = vmatprep.subr.bf16.mxu0 0
    %7505 = vmatpush1.bf16.msra.mxu0 0
    %7506 = vmatprep.subr.bf16.mxu0 0
    %7507 = vmatpush1.bf16.msra.mxu0 0
    %7508 = vmatprep.subr.bf16.mxu0 0
    %7509 = vmatpush1.bf16.msra.mxu0 0
    %7510 = vmatprep.subr.bf16.mxu0 0
    %7511 = vmatpush1.bf16.msra.mxu0 0
    %7512 = vmatprep.subr.bf16.mxu0 0
    %7513 = vmatpush1.bf16.msra.mxu0 0
    %7514 = vmatprep.subr.bf16.mxu0 0
    %7515 = vmatpush1.bf16.msra.mxu0 0
    %7516 = vmatprep.subr.bf16.mxu0 0
    %7517 = vmatpush1.bf16.msra.mxu0 0
    %7518 = vmatprep.subr.bf16.mxu0 0
    %7519 = vmatpush1.bf16.msra.mxu0 0
    %7520 = vmatprep.subr.bf16.mxu0 0
    %7521 = vmatpush1.bf16.msra.mxu0 0
    %7522 = vmatprep.subr.bf16.mxu0 0
    %7523 = vmatpush1.bf16.msra.mxu0 0
    %7524 = vmatprep.mubr.bf16.mxu0 0
    %7525 = vmatmul.mubr.bf16.gmra.mrb[0].mxu0 %v6673
    %v7526 = vpop.f32.mrb[0].mxu0
    %v7527 = vadd.f32 0.0, %v7526
    %v7528 = vpop.f32.mrb[0].mxu0
    %v7529 = vadd.f32 0.0, %v7528
    %v7530 = vpop.f32.mrb[0].mxu0
    %v7531 = vadd.f32 0.0, %v7530
    %v7532 = vpop.f32.mrb[0].mxu0
    %v7533 = vadd.f32 0.0, %v7532
    %7534 = vmatprep.mubr.bf16.mxu0 0
    %7535 = vmatmul.mubr.bf16.gmra.mrb[0].mxu0 %v6676
    %v7536 = vpop.f32.mrb[0].mxu0
    %v7537 = vadd.f32 0.0, %v7536
    %v7538 = vpop.f32.mrb[0].mxu0
    %v7539 = vadd.f32 0.0, %v7538
    %v7540 = vpop.f32.mrb[0].mxu0
    %v7541 = vadd.f32 0.0, %v7540
    %v7542 = vpop.f32.mrb[0].mxu0
    %v7543 = vadd.f32 0.0, %v7542
    %7544 = vmatprep.mubr.bf16.mxu0 0
    %7545 = vmatmul.mubr.bf16.gmra.mrb[0].mxu0 %v6679
    %v7546 = vpop.f32.mrb[0].mxu0
    %v7547 = vadd.f32 0.0, %v7546
    %v7548 = vpop.f32.mrb[0].mxu0
    %v7549 = vadd.f32 0.0, %v7548
    %v7550 = vpop.f32.mrb[0].mxu0
    %v7551 = vadd.f32 0.0, %v7550
    %v7552 = vpop.f32.mrb[0].mxu0
    %v7553 = vadd.f32 0.0, %v7552
    %7554 = vmatprep.mubr.bf16.mxu0 0
    %7555 = vmatmul.mubr.bf16.gmra.mrb[0].mxu0 %v6682
    %v7556 = vpop.f32.mrb[0].mxu0
    %v7557 = vadd.f32 0.0, %v7556
    %v7558 = vpop.f32.mrb[0].mxu0
    %v7559 = vadd.f32 0.0, %v7558
    %v7560 = vpop.f32.mrb[0].mxu0
    %v7561 = vadd.f32 0.0, %v7560
    %v7562 = vpop.f32.mrb[0].mxu0
    %v7563 = vadd.f32 0.0, %v7562
    %7564 = vmatprep.mubr.bf16.mxu0 0
    %7565 = vmatmul.mubr.bf16.gmra.mrb[0].mxu0 %v6685
    %v7566 = vpop.f32.mrb[0].mxu0
    %v7567 = vadd.f32 0.0, %v7566
    %v7568 = vpop.f32.mrb[0].mxu0
    %v7569 = vadd.f32 0.0, %v7568
    %v7570 = vpop.f32.mrb[0].mxu0
    %v7571 = vadd.f32 0.0, %v7570
    %v7572 = vpop.f32.mrb[0].mxu0
    %v7573 = vadd.f32 0.0, %v7572
    %7574 = vmatprep.mubr.bf16.mxu0 0
    %7575 = vmatmul.mubr.bf16.gmra.mrb[0].mxu0 %v6688
    %v7576 = vpop.f32.mrb[0].mxu0
    %v7577 = vadd.f32 0.0, %v7576
    %v7578 = vpop.f32.mrb[0].mxu0
    %v7579 = vadd.f32 0.0, %v7578
    %v7580 = vpop.f32.mrb[0].mxu0
    %v7581 = vadd.f32 0.0, %v7580
    %v7582 = vpop.f32.mrb[0].mxu0
    %v7583 = vadd.f32 0.0, %v7582
    %7584 = vmatprep.mubr.bf16.mxu0 0
    %7585 = vmatmul.mubr.bf16.gmra.mrb[0].mxu0 %v6691
    %v7586 = vpop.f32.mrb[0].mxu0
    %v7587 = vadd.f32 0.0, %v7586
    %v7588 = vpop.f32.mrb[0].mxu0
    %v7589 = vadd.f32 0.0, %v7588
    %v7590 = vpop.f32.mrb[0].mxu0
    %v7591 = vadd.f32 0.0, %v7590
    %v7592 = vpop.f32.mrb[0].mxu0
    %v7593 = vadd.f32 0.0, %v7592
    %7594 = vmatprep.mubr.bf16.mxu0 0
    %7595 = vmatmul.mubr.bf16.gmra.mrb[0].mxu0 %v6694
    %v7596 = vpop.f32.mrb[0].mxu0
    %v7597 = vadd.f32 0.0, %v7596
    %v7598 = vpop.f32.mrb[0].mxu0
    %v7599 = vadd.f32 0.0, %v7598
    %v7600 = vpop.f32.mrb[0].mxu0
    %v7601 = vadd.f32 0.0, %v7600
    %v7602 = vpop.f32.mrb[0].mxu0
    %v7603 = vadd.f32 0.0, %v7602
    %7604 = vmatprep.mubr.bf16.mxu0 0
    %7605 = vmatmul.mubr.bf16.gmra.mrb[0].mxu0 %v6697
    %v7606 = vpop.f32.mrb[0].mxu0
    %v7607 = vadd.f32 0.0, %v7606
    %v7608 = vpop.f32.mrb[0].mxu0
    %v7609 = vadd.f32 0.0, %v7608
    %v7610 = vpop.f32.mrb[0].mxu0
    %v7611 = vadd.f32 0.0, %v7610
    %v7612 = vpop.f32.mrb[0].mxu0
    %v7613 = vadd.f32 0.0, %v7612
    %7614 = vmatprep.mubr.bf16.mxu0 0
    %7615 = vmatmul.mubr.bf16.gmra.mrb[0].mxu0 %v6700
    %v7616 = vpop.f32.mrb[0].mxu0
    %v7617 = vadd.f32 0.0, %v7616
    %v7618 = vpop.f32.mrb[0].mxu0
    %v7619 = vadd.f32 0.0, %v7618
    %v7620 = vpop.f32.mrb[0].mxu0
    %v7621 = vadd.f32 0.0, %v7620
    %v7622 = vpop.f32.mrb[0].mxu0
    %v7623 = vadd.f32 0.0, %v7622
    %7624 = vmatprep.mubr.bf16.mxu0 0
    %7625 = vmatmul.mubr.bf16.gmra.mrb[0].mxu0 %v6703
    %v7626 = vpop.f32.mrb[0].mxu0
    %v7627 = vadd.f32 0.0, %v7626
    %v7628 = vpop.f32.mrb[0].mxu0
    %v7629 = vadd.f32 0.0, %v7628
    %v7630 = vpop.f32.mrb[0].mxu0
    %v7631 = vadd.f32 0.0, %v7630
    %v7632 = vpop.f32.mrb[0].mxu0
    %v7633 = vadd.f32 0.0, %v7632
    %7634 = vmatprep.mubr.bf16.mxu0 0
    %7635 = vmatmul.mubr.bf16.gmra.mrb[0].mxu0 %v6706
    %v7636 = vpop.f32.mrb[0].mxu0
    %v7637 = vadd.f32 0.0, %v7636
    %v7638 = vpop.f32.mrb[0].mxu0
    %v7639 = vadd.f32 0.0, %v7638
    %v7640 = vpop.f32.mrb[0].mxu0
    %v7641 = vadd.f32 0.0, %v7640
    %v7642 = vpop.f32.mrb[0].mxu0
    %v7643 = vadd.f32 0.0, %v7642
    %7644 = vmatprep.mubr.bf16.mxu0 0
    %7645 = vmatmul.mubr.bf16.gmra.mrb[0].mxu0 %v6709
    %v7646 = vpop.f32.mrb[0].mxu0
    %v7647 = vadd.f32 0.0, %v7646
    %v7648 = vpop.f32.mrb[0].mxu0
    %v7649 = vadd.f32 0.0, %v7648
    %v7650 = vpop.f32.mrb[0].mxu0
    %v7651 = vadd.f32 0.0, %v7650
    %v7652 = vpop.f32.mrb[0].mxu0
    %v7653 = vadd.f32 0.0, %v7652
    %7654 = vmatprep.mubr.bf16.mxu0 0
    %7655 = vmatmul.mubr.bf16.gmra.mrb[0].mxu0 %v6712
    %v7656 = vpop.f32.mrb[0].mxu0
    %v7657 = vadd.f32 0.0, %v7656
    %v7658 = vpop.f32.mrb[0].mxu0
    %v7659 = vadd.f32 0.0, %v7658
    %v7660 = vpop.f32.mrb[0].mxu0
    %v7661 = vadd.f32 0.0, %v7660
    %v7662 = vpop.f32.mrb[0].mxu0
    %v7663 = vadd.f32 0.0, %v7662
    %7664 = vmatprep.mubr.bf16.mxu0 0
    %7665 = vmatmul.mubr.bf16.gmra.mrb[0].mxu0 %v6715
    %v7666 = vpop.f32.mrb[0].mxu0
    %v7667 = vadd.f32 0.0, %v7666
    %v7668 = vpop.f32.mrb[0].mxu0
    %v7669 = vadd.f32 0.0, %v7668
    %v7670 = vpop.f32.mrb[0].mxu0
    %v7671 = vadd.f32 0.0, %v7670
    %v7672 = vpop.f32.mrb[0].mxu0
    %v7673 = vadd.f32 0.0, %v7672
    %7674 = vmatprep.mubr.bf16.mxu0 0
    %7675 = vmatmul.mubr.bf16.gmra.mrb[0].mxu0 %v6718
    %v7676 = vpop.f32.mrb[0].mxu0
    %v7677 = vadd.f32 0.0, %v7676
    %v7678 = vpop.f32.mrb[0].mxu0
    %v7679 = vadd.f32 0.0, %v7678
    %v7680 = vpop.f32.mrb[0].mxu0
    %v7681 = vadd.f32 0.0, %v7680
    %v7682 = vpop.f32.mrb[0].mxu0
    %v7683 = vadd.f32 0.0, %v7682
    %7684 = vdwg.mxu0
    %7685 = vmatprep.subr.bf16.mxu0 %v6538
    %7686 = vmatpush1.bf16.msra.mxu0 %v6537
    %7687 = vmatprep.subr.bf16.mxu0 %v6550
    %7688 = vmatpush1.bf16.msra.mxu0 %v6549
    %7689 = vmatprep.subr.bf16.mxu0 %v6562
    %7690 = vmatpush1.bf16.msra.mxu0 %v6561
    %7691 = vmatprep.subr.bf16.mxu0 %v6574
    %7692 = vmatpush1.bf16.msra.mxu0 %v6573
    %7693 = vmatprep.subr.bf16.mxu0 %v6586
    %7694 = vmatpush1.bf16.msra.mxu0 %v6585
    %7695 = vmatprep.subr.bf16.mxu0 %v6598
    %7696 = vmatpush1.bf16.msra.mxu0 %v6597
    %7697 = vmatprep.subr.bf16.mxu0 0
    %7698 = vmatpush1.bf16.msra.mxu0 0
    %7699 = vmatprep.subr.bf16.mxu0 0
    %7700 = vmatpush1.bf16.msra.mxu0 0
    %7701 = vmatprep.subr.bf16.mxu0 0
    %7702 = vmatpush1.bf16.msra.mxu0 0
    %7703 = vmatprep.subr.bf16.mxu0 0
    %7704 = vmatpush1.bf16.msra.mxu0 0
    %7705 = vmatprep.subr.bf16.mxu0 0
    %7706 = vmatpush1.bf16.msra.mxu0 0
    %7707 = vmatprep.subr.bf16.mxu0 0
    %7708 = vmatpush1.bf16.msra.mxu0 0
    %7709 = vmatprep.subr.bf16.mxu0 0
    %7710 = vmatpush1.bf16.msra.mxu0 0
    %7711 = vmatprep.subr.bf16.mxu0 0
    %7712 = vmatpush1.bf16.msra.mxu0 0
    %7713 = vmatprep.subr.bf16.mxu0 0
    %7714 = vmatpush1.bf16.msra.mxu0 0
    %7715 = vmatprep.subr.bf16.mxu0 0
    %7716 = vmatpush1.bf16.msra.mxu0 0
    %7717 = vmatprep.mubr.bf16.mxu0 0
    %7718 = vmatmul.mubr.bf16.gmra.mrb[0].mxu0 %v6673
    %v7719 = vpop.f32.mrb[0].mxu0
    %v7720 = vadd.f32 0.0, %v7719
    %v7721 = vpop.f32.mrb[0].mxu0
    %v7722 = vadd.f32 0.0, %v7721
    %v7723 = vpop.f32.mrb[0].mxu0
    %v7724 = vadd.f32 0.0, %v7723
    %v7725 = vpop.f32.mrb[0].mxu0
    %v7726 = vadd.f32 0.0, %v7725
    %7727 = vmatprep.mubr.bf16.mxu0 0
    %7728 = vmatmul.mubr.bf16.gmra.mrb[0].mxu0 %v6676
    %v7729 = vpop.f32.mrb[0].mxu0
    %v7730 = vadd.f32 0.0, %v7729
    %v7731 = vpop.f32.mrb[0].mxu0
    %v7732 = vadd.f32 0.0, %v7731
    %v7733 = vpop.f32.mrb[0].mxu0
    %v7734 = vadd.f32 0.0, %v7733
    %v7735 = vpop.f32.mrb[0].mxu0
    %v7736 = vadd.f32 0.0, %v7735
    %7737 = vmatprep.mubr.bf16.mxu0 0
    %7738 = vmatmul.mubr.bf16.gmra.mrb[0].mxu0 %v6679
    %v7739 = vpop.f32.mrb[0].mxu0
    %v7740 = vadd.f32 0.0, %v7739
    %v7741 = vpop.f32.mrb[0].mxu0
    %v7742 = vadd.f32 0.0, %v7741
    %v7743 = vpop.f32.mrb[0].mxu0
    %v7744 = vadd.f32 0.0, %v7743
    %v7745 = vpop.f32.mrb[0].mxu0
    %v7746 = vadd.f32 0.0, %v7745
    %7747 = vmatprep.mubr.bf16.mxu0 0
    %7748 = vmatmul.mubr.bf16.gmra.mrb[0].mxu0 %v6682
    %v7749 = vpop.f32.mrb[0].mxu0
    %v7750 = vadd.f32 0.0, %v7749
    %v7751 = vpop.f32.mrb[0].mxu0
    %v7752 = vadd.f32 0.0, %v7751
    %v7753 = vpop.f32.mrb[0].mxu0
    %v7754 = vadd.f32 0.0, %v7753
    %v7755 = vpop.f32.mrb[0].mxu0
    %v7756 = vadd.f32 0.0, %v7755
    %7757 = vmatprep.mubr.bf16.mxu0 0
    %7758 = vmatmul.mubr.bf16.gmra.mrb[0].mxu0 %v6685
    %v7759 = vpop.f32.mrb[0].mxu0
    %v7760 = vadd.f32 0.0, %v7759
    %v7761 = vpop.f32.mrb[0].mxu0
    %v7762 = vadd.f32 0.0, %v7761
    %v7763 = vpop.f32.mrb[0].mxu0
    %v7764 = vadd.f32 0.0, %v7763
    %v7765 = vpop.f32.mrb[0].mxu0
    %v7766 = vadd.f32 0.0, %v7765
    %7767 = vmatprep.mubr.bf16.mxu0 0
    %7768 = vmatmul.mubr.bf16.gmra.mrb[0].mxu0 %v6688
    %v7769 = vpop.f32.mrb[0].mxu0
    %v7770 = vadd.f32 0.0, %v7769
    %v7771 = vpop.f32.mrb[0].mxu0
    %v7772 = vadd.f32 0.0, %v7771
    %v7773 = vpop.f32.mrb[0].mxu0
    %v7774 = vadd.f32 0.0, %v7773
    %v7775 = vpop.f32.mrb[0].mxu0
    %v7776 = vadd.f32 0.0, %v7775
    %7777 = vmatprep.mubr.bf16.mxu0 0
    %7778 = vmatmul.mubr.bf16.gmra.mrb[0].mxu0 %v6691
    %v7779 = vpop.f32.mrb[0].mxu0
    %v7780 = vadd.f32 0.0, %v7779
    %v7781 = vpop.f32.mrb[0].mxu0
    %v7782 = vadd.f32 0.0, %v7781
    %v7783 = vpop.f32.mrb[0].mxu0
    %v7784 = vadd.f32 0.0, %v7783
    %v7785 = vpop.f32.mrb[0].mxu0
    %v7786 = vadd.f32 0.0, %v7785
    %7787 = vmatprep.mubr.bf16.mxu0 0
    %7788 = vmatmul.mubr.bf16.gmra.mrb[0].mxu0 %v6694
    %v7789 = vpop.f32.mrb[0].mxu0
    %v7790 = vadd.f32 0.0, %v7789
    %v7791 = vpop.f32.mrb[0].mxu0
    %v7792 = vadd.f32 0.0, %v7791
    %v7793 = vpop.f32.mrb[0].mxu0
    %v7794 = vadd.f32 0.0, %v7793
    %v7795 = vpop.f32.mrb[0].mxu0
    %v7796 = vadd.f32 0.0, %v7795
    %7797 = vmatprep.mubr.bf16.mxu0 0
    %7798 = vmatmul.mubr.bf16.gmra.mrb[0].mxu0 %v6697
    %v7799 = vpop.f32.mrb[0].mxu0
    %v7800 = vadd.f32 0.0, %v7799
    %v7801 = vpop.f32.mrb[0].mxu0
    %v7802 = vadd.f32 0.0, %v7801
    %v7803 = vpop.f32.mrb[0].mxu0
    %v7804 = vadd.f32 0.0, %v7803
    %v7805 = vpop.f32.mrb[0].mxu0
    %v7806 = vadd.f32 0.0, %v7805
    %7807 = vmatprep.mubr.bf16.mxu0 0
    %7808 = vmatmul.mubr.bf16.gmra.mrb[0].mxu0 %v6700
    %v7809 = vpop.f32.mrb[0].mxu0
    %v7810 = vadd.f32 0.0, %v7809
    %v7811 = vpop.f32.mrb[0].mxu0
    %v7812 = vadd.f32 0.0, %v7811
    %v7813 = vpop.f32.mrb[0].mxu0
    %v7814 = vadd.f32 0.0, %v7813
    %v7815 = vpop.f32.mrb[0].mxu0
    %v7816 = vadd.f32 0.0, %v7815
    %7817 = vmatprep.mubr.bf16.mxu0 0
    %7818 = vmatmul.mubr.bf16.gmra.mrb[0].mxu0 %v6703
    %v7819 = vpop.f32.mrb[0].mxu0
    %v7820 = vadd.f32 0.0, %v7819
    %v7821 = vpop.f32.mrb[0].mxu0
    %v7822 = vadd.f32 0.0, %v7821
    %v7823 = vpop.f32.mrb[0].mxu0
    %v7824 = vadd.f32 0.0, %v7823
    %v7825 = vpop.f32.mrb[0].mxu0
    %v7826 = vadd.f32 0.0, %v7825
    %7827 = vmatprep.mubr.bf16.mxu0 0
    %7828 = vmatmul.mubr.bf16.gmra.mrb[0].mxu0 %v6706
    %v7829 = vpop.f32.mrb[0].mxu0
    %v7830 = vadd.f32 0.0, %v7829
    %v7831 = vpop.f32.mrb[0].mxu0
    %v7832 = vadd.f32 0.0, %v7831
    %v7833 = vpop.f32.mrb[0].mxu0
    %v7834 = vadd.f32 0.0, %v7833
    %v7835 = vpop.f32.mrb[0].mxu0
    %v7836 = vadd.f32 0.0, %v7835
    %7837 = vmatprep.mubr.bf16.mxu0 0
    %7838 = vmatmul.mubr.bf16.gmra.mrb[0].mxu0 %v6709
    %v7839 = vpop.f32.mrb[0].mxu0
    %v7840 = vadd.f32 0.0, %v7839
    %v7841 = vpop.f32.mrb[0].mxu0
    %v7842 = vadd.f32 0.0, %v7841
    %v7843 = vpop.f32.mrb[0].mxu0
    %v7844 = vadd.f32 0.0, %v7843
    %v7845 = vpop.f32.mrb[0].mxu0
    %v7846 = vadd.f32 0.0, %v7845
    %7847 = vmatprep.mubr.bf16.mxu0 0
    %7848 = vmatmul.mubr.bf16.gmra.mrb[0].mxu0 %v6712
    %v7849 = vpop.f32.mrb[0].mxu0
    %v7850 = vadd.f32 0.0, %v7849
    %v7851 = vpop.f32.mrb[0].mxu0
    %v7852 = vadd.f32 0.0, %v7851
    %v7853 = vpop.f32.mrb[0].mxu0
    %v7854 = vadd.f32 0.0, %v7853
    %v7855 = vpop.f32.mrb[0].mxu0
    %v7856 = vadd.f32 0.0, %v7855
    %7857 = vmatprep.mubr.bf16.mxu0 0
    %7858 = vmatmul.mubr.bf16.gmra.mrb[0].mxu0 %v6715
    %v7859 = vpop.f32.mrb[0].mxu0
    %v7860 = vadd.f32 0.0, %v7859
    %v7861 = vpop.f32.mrb[0].mxu0
    %v7862 = vadd.f32 0.0, %v7861
    %v7863 = vpop.f32.mrb[0].mxu0
    %v7864 = vadd.f32 0.0, %v7863
    %v7865 = vpop.f32.mrb[0].mxu0
    %v7866 = vadd.f32 0.0, %v7865
    %7867 = vmatprep.mubr.bf16.mxu0 0
    %7868 = vmatmul.mubr.bf16.gmra.mrb[0].mxu0 %v6718
    %v7869 = vpop.f32.mrb[0].mxu0
    %v7870 = vadd.f32 0.0, %v7869
    %v7871 = vpop.f32.mrb[0].mxu0
    %v7872 = vadd.f32 0.0, %v7871
    %v7873 = vpop.f32.mrb[0].mxu0
    %v7874 = vadd.f32 0.0, %v7873
    %v7875 = vpop.f32.mrb[0].mxu0
    %v7876 = vadd.f32 0.0, %v7875
    %7877 = vdwg.mxu0
    %7878 = vst [vmem:[#allocation41] sm:$0xff] %v6755
    %7879 = vst [vmem:[#allocation41 + $0x8] sm:$0xff] %v6757
    %7880 = vst [vmem:[#allocation41 + $0x10] sm:$0xff] %v6759
    %7881 = vst [vmem:[#allocation41 + $0x18] sm:$0xff] %v6761
    %7882 = vst [vmem:[#allocation41 + $0x20] sm:$0xff] %v6765
    %7883 = vst [vmem:[#allocation41 + $0x28] sm:$0xff] %v6767
    %7884 = vst [vmem:[#allocation41 + $0x30] sm:$0xff] %v6769
    %7885 = vst [vmem:[#allocation41 + $0x38] sm:$0xff] %v6771
    %7886 = vst [vmem:[#allocation41 + $0x40] sm:$0xff] %v6775
    %7887 = vst [vmem:[#allocation41 + $0x48] sm:$0xff] %v6777
    %7888 = vst [vmem:[#allocation41 + $0x50] sm:$0xff] %v6779
    %7889 = vst [vmem:[#allocation41 + $0x58] sm:$0xff] %v6781
    %7890 = vst [vmem:[#allocation41 + $0x60] sm:$0xff] %v6785
    %7891 = vst [vmem:[#allocation41 + $0x68] sm:$0xff] %v6787
    %7892 = vst [vmem:[#allocation41 + $0x70] sm:$0xff] %v6789
    %7893 = vst [vmem:[#allocation41 + $0x78] sm:$0xff] %v6791
    %7894 = vst [vmem:[#allocation41 + $0x80] sm:$0xff] %v6795
    %7895 = vst [vmem:[#allocation41 + $0x88] sm:$0xff] %v6797
    %7896 = vst [vmem:[#allocation41 + $0x90] sm:$0xff] %v6799
    %7897 = vst [vmem:[#allocation41 + $0x98] sm:$0xff] %v6801
    %7898 = vst [vmem:[#allocation41 + $0xa0] sm:$0xff] %v6805
    %7899 = vst [vmem:[#allocation41 + $0xa8] sm:$0xff] %v6807
    %7900 = vst [vmem:[#allocation41 + $0xb0] sm:$0xff] %v6809
    %7901 = vst [vmem:[#allocation41 + $0xb8] sm:$0xff] %v6811
    %7902 = vst [vmem:[#allocation41 + $0xc0] sm:$0xff] %v6815
    %7903 = vst [vmem:[#allocation41 + $0xc8] sm:$0xff] %v6817
    %7904 = vst [vmem:[#allocation41 + $0xd0] sm:$0xff] %v6819
    %7905 = vst [vmem:[#allocation41 + $0xd8] sm:$0xff] %v6821
    %7906 = vst [vmem:[#allocation41 + $0xe0] sm:$0xff] %v6825
    %7907 = vst [vmem:[#allocation41 + $0xe8] sm:$0xff] %v6827
    %7908 = vst [vmem:[#allocation41 + $0xf0] sm:$0xff] %v6829
    %7909 = vst [vmem:[#allocation41 + $0xf8] sm:$0xff] %v6831
    %7910 = vst [vmem:[#allocation41 + $0x100] sm:$0xff] %v6835
    %7911 = vst [vmem:[#allocation41 + $0x108] sm:$0xff] %v6837
    %7912 = vst [vmem:[#allocation41 + $0x110] sm:$0xff] %v6839
    %7913 = vst [vmem:[#allocation41 + $0x118] sm:$0xff] %v6841
    %7914 = vst [vmem:[#allocation41 + $0x120] sm:$0xff] %v6845
    %7915 = vst [vmem:[#allocation41 + $0x128] sm:$0xff] %v6847
    %7916 = vst [vmem:[#allocation41 + $0x130] sm:$0xff] %v6849
    %7917 = vst [vmem:[#allocation41 + $0x138] sm:$0xff] %v6851
    %7918 = vst [vmem:[#allocation41 + $0x140] sm:$0xff] %v6855
    %7919 = vst [vmem:[#allocation41 + $0x148] sm:$0xff] %v6857
    %7920 = vst [vmem:[#allocation41 + $0x150] sm:$0xff] %v6859
    %7921 = vst [vmem:[#allocation41 + $0x158] sm:$0xff] %v6861
    %7922 = vst [vmem:[#allocation41 + $0x160] sm:$0xff] %v6865
    %7923 = vst [vmem:[#allocation41 + $0x168] sm:$0xff] %v6867
    %7924 = vst [vmem:[#allocation41 + $0x170] sm:$0xff] %v6869
    %7925 = vst [vmem:[#allocation41 + $0x178] sm:$0xff] %v6871
    %7926 = vst [vmem:[#allocation41 + $0x180] sm:$0xff] %v6875
    %7927 = vst [vmem:[#allocation41 + $0x188] sm:$0xff] %v6877
    %7928 = vst [vmem:[#allocation41 + $0x190] sm:$0xff] %v6879
    %7929 = vst [vmem:[#allocation41 + $0x198] sm:$0xff] %v6881
    %7930 = vst [vmem:[#allocation41 + $0x1a0] sm:$0xff] %v6885
    %7931 = vst [vmem:[#allocation41 + $0x1a8] sm:$0xff] %v6887
    %7932 = vst [vmem:[#allocation41 + $0x1b0] sm:$0xff] %v6889
    %7933 = vst [vmem:[#allocation41 + $0x1b8] sm:$0xff] %v6891
    %7934 = vst [vmem:[#allocation41 + $0x1c0] sm:$0xff] %v6895
    %7935 = vst [vmem:[#allocation41 + $0x1c8] sm:$0xff] %v6897
    %7936 = vst [vmem:[#allocation41 + $0x1d0] sm:$0xff] %v6899
    %7937 = vst [vmem:[#allocation41 + $0x1d8] sm:$0xff] %v6901
    %7938 = vst [vmem:[#allocation41 + $0x1e0] sm:$0xff] %v6905
    %7939 = vst [vmem:[#allocation41 + $0x1e8] sm:$0xff] %v6907
    %7940 = vst [vmem:[#allocation41 + $0x1f0] sm:$0xff] %v6909
    %7941 = vst [vmem:[#allocation41 + $0x1f8] sm:$0xff] %v6911
    %s7942 = scalar_lea.vmem [#allocation41], 512
    %7943 = vst [vmem:[%s7942] sm:$0xff] %v6948
    %7944 = vst [vmem:[%s7942 + $0x8] sm:$0xff] %v6950
    %7945 = vst [vmem:[%s7942 + $0x10] sm:$0xff] %v6952
    %7946 = vst [vmem:[%s7942 + $0x18] sm:$0xff] %v6954
    %7947 = vst [vmem:[%s7942 + $0x20] sm:$0xff] %v6958
    %7948 = vst [vmem:[%s7942 + $0x28] sm:$0xff] %v6960
    %7949 = vst [vmem:[%s7942 + $0x30] sm:$0xff] %v6962
    %7950 = vst [vmem:[%s7942 + $0x38] sm:$0xff] %v6964
    %7951 = vst [vmem:[%s7942 + $0x40] sm:$0xff] %v6968
    %7952 = vst [vmem:[%s7942 + $0x48] sm:$0xff] %v6970
    %7953 = vst [vmem:[%s7942 + $0x50] sm:$0xff] %v6972
    %7954 = vst [vmem:[%s7942 + $0x58] sm:$0xff] %v6974
    %7955 = vst [vmem:[%s7942 + $0x60] sm:$0xff] %v6978
    %7956 = vst [vmem:[%s7942 + $0x68] sm:$0xff] %v6980
    %7957 = vst [vmem:[%s7942 + $0x70] sm:$0xff] %v6982
    %7958 = vst [vmem:[%s7942 + $0x78] sm:$0xff] %v6984
    %7959 = vst [vmem:[%s7942 + $0x80] sm:$0xff] %v6988
    %7960 = vst [vmem:[%s7942 + $0x88] sm:$0xff] %v6990
    %7961 = vst [vmem:[%s7942 + $0x90] sm:$0xff] %v6992
    %7962 = vst [vmem:[%s7942 + $0x98] sm:$0xff] %v6994
    %7963 = vst [vmem:[%s7942 + $0xa0] sm:$0xff] %v6998
    %7964 = vst [vmem:[%s7942 + $0xa8] sm:$0xff] %v7000
    %7965 = vst [vmem:[%s7942 + $0xb0] sm:$0xff] %v7002
    %7966 = vst [vmem:[%s7942 + $0xb8] sm:$0xff] %v7004
    %7967 = vst [vmem:[%s7942 + $0xc0] sm:$0xff] %v7008
    %7968 = vst [vmem:[%s7942 + $0xc8] sm:$0xff] %v7010
    %7969 = vst [vmem:[%s7942 + $0xd0] sm:$0xff] %v7012
    %7970 = vst [vmem:[%s7942 + $0xd8] sm:$0xff] %v7014
    %7971 = vst [vmem:[%s7942 + $0xe0] sm:$0xff] %v7018
    %7972 = vst [vmem:[%s7942 + $0xe8] sm:$0xff] %v7020
    %7973 = vst [vmem:[%s7942 + $0xf0] sm:$0xff] %v7022
    %7974 = vst [vmem:[%s7942 + $0xf8] sm:$0xff] %v7024
    %7975 = vst [vmem:[%s7942 + $0x100] sm:$0xff] %v7028
    %7976 = vst [vmem:[%s7942 + $0x108] sm:$0xff] %v7030
    %7977 = vst [vmem:[%s7942 + $0x110] sm:$0xff] %v7032
    %7978 = vst [vmem:[%s7942 + $0x118] sm:$0xff] %v7034
    %7979 = vst [vmem:[%s7942 + $0x120] sm:$0xff] %v7038
    %7980 = vst [vmem:[%s7942 + $0x128] sm:$0xff] %v7040
    %7981 = vst [vmem:[%s7942 + $0x130] sm:$0xff] %v7042
    %7982 = vst [vmem:[%s7942 + $0x138] sm:$0xff] %v7044
    %7983 = vst [vmem:[%s7942 + $0x140] sm:$0xff] %v7048
    %7984 = vst [vmem:[%s7942 + $0x148] sm:$0xff] %v7050
    %7985 = vst [vmem:[%s7942 + $0x150] sm:$0xff] %v7052
    %7986 = vst [vmem:[%s7942 + $0x158] sm:$0xff] %v7054
    %7987 = vst [vmem:[%s7942 + $0x160] sm:$0xff] %v7058
    %7988 = vst [vmem:[%s7942 + $0x168] sm:$0xff] %v7060
    %7989 = vst [vmem:[%s7942 + $0x170] sm:$0xff] %v7062
    %7990 = vst [vmem:[%s7942 + $0x178] sm:$0xff] %v7064
    %7991 = vst [vmem:[%s7942 + $0x180] sm:$0xff] %v7068
    %7992 = vst [vmem:[%s7942 + $0x188] sm:$0xff] %v7070
    %7993 = vst [vmem:[%s7942 + $0x190] sm:$0xff] %v7072
    %7994 = vst [vmem:[%s7942 + $0x198] sm:$0xff] %v7074
    %7995 = vst [vmem:[%s7942 + $0x1a0] sm:$0xff] %v7078
    %7996 = vst [vmem:[%s7942 + $0x1a8] sm:$0xff] %v7080
    %7997 = vst [vmem:[%s7942 + $0x1b0] sm:$0xff] %v7082
    %7998 = vst [vmem:[%s7942 + $0x1b8] sm:$0xff] %v7084
    %7999 = vst [vmem:[%s7942 + $0x1c0] sm:$0xff] %v7088
    %8000 = vst [vmem:[%s7942 + $0x1c8] sm:$0xff] %v7090
    %8001 = vst [vmem:[%s7942 + $0x1d0] sm:$0xff] %v7092
    %8002 = vst [vmem:[%s7942 + $0x1d8] sm:$0xff] %v7094
    %8003 = vst [vmem:[%s7942 + $0x1e0] sm:$0xff] %v7098
    %8004 = vst [vmem:[%s7942 + $0x1e8] sm:$0xff] %v7100
    %8005 = vst [vmem:[%s7942 + $0x1f0] sm:$0xff] %v7102
    %8006 = vst [vmem:[%s7942 + $0x1f8] sm:$0xff] %v7104
    %s8007 = scalar_lea.vmem [#allocation41], 1024
    %8008 = vst [vmem:[%s8007] sm:$0xff] %v7141
    %8009 = vst [vmem:[%s8007 + $0x8] sm:$0xff] %v7143
    %8010 = vst [vmem:[%s8007 + $0x10] sm:$0xff] %v7145
    %8011 = vst [vmem:[%s8007 + $0x18] sm:$0xff] %v7147
    %8012 = vst [vmem:[%s8007 + $0x20] sm:$0xff] %v7151
    %8013 = vst [vmem:[%s8007 + $0x28] sm:$0xff] %v7153
    %8014 = vst [vmem:[%s8007 + $0x30] sm:$0xff] %v7155
    %8015 = vst [vmem:[%s8007 + $0x38] sm:$0xff] %v7157
    %8016 = vst [vmem:[%s8007 + $0x40] sm:$0xff] %v7161
    %8017 = vst [vmem:[%s8007 + $0x48] sm:$0xff] %v7163
    %8018 = vst [vmem:[%s8007 + $0x50] sm:$0xff] %v7165
    %8019 = vst [vmem:[%s8007 + $0x58] sm:$0xff] %v7167
    %8020 = vst [vmem:[%s8007 + $0x60] sm:$0xff] %v7171
    %8021 = vst [vmem:[%s8007 + $0x68] sm:$0xff] %v7173
    %8022 = vst [vmem:[%s8007 + $0x70] sm:$0xff] %v7175
    %8023 = vst [vmem:[%s8007 + $0x78] sm:$0xff] %v7177
    %8024 = vst [vmem:[%s8007 + $0x80] sm:$0xff] %v7181
    %8025 = vst [vmem:[%s8007 + $0x88] sm:$0xff] %v7183
    %8026 = vst [vmem:[%s8007 + $0x90] sm:$0xff] %v7185
    %8027 = vst [vmem:[%s8007 + $0x98] sm:$0xff] %v7187
    %8028 = vst [vmem:[%s8007 + $0xa0] sm:$0xff] %v7191
    %8029 = vst [vmem:[%s8007 + $0xa8] sm:$0xff] %v7193
    %8030 = vst [vmem:[%s8007 + $0xb0] sm:$0xff] %v7195
    %8031 = vst [vmem:[%s8007 + $0xb8] sm:$0xff] %v7197
    %8032 = vst [vmem:[%s8007 + $0xc0] sm:$0xff] %v7201
    %8033 = vst [vmem:[%s8007 + $0xc8] sm:$0xff] %v7203
    %8034 = vst [vmem:[%s8007 + $0xd0] sm:$0xff] %v7205
    %8035 = vst [vmem:[%s8007 + $0xd8] sm:$0xff] %v7207
    %8036 = vst [vmem:[%s8007 + $0xe0] sm:$0xff] %v7211
    %8037 = vst [vmem:[%s8007 + $0xe8] sm:$0xff] %v7213
    %8038 = vst [vmem:[%s8007 + $0xf0] sm:$0xff] %v7215
    %8039 = vst [vmem:[%s8007 + $0xf8] sm:$0xff] %v7217
    %8040 = vst [vmem:[%s8007 + $0x100] sm:$0xff] %v7221
    %8041 = vst [vmem:[%s8007 + $0x108] sm:$0xff] %v7223
    %8042 = vst [vmem:[%s8007 + $0x110] sm:$0xff] %v7225
    %8043 = vst [vmem:[%s8007 + $0x118] sm:$0xff] %v7227
    %8044 = vst [vmem:[%s8007 + $0x120] sm:$0xff] %v7231
    %8045 = vst [vmem:[%s8007 + $0x128] sm:$0xff] %v7233
    %8046 = vst [vmem:[%s8007 + $0x130] sm:$0xff] %v7235
    %8047 = vst [vmem:[%s8007 + $0x138] sm:$0xff] %v7237
    %8048 = vst [vmem:[%s8007 + $0x140] sm:$0xff] %v7241
    %8049 = vst [vmem:[%s8007 + $0x148] sm:$0xff] %v7243
    %8050 = vst [vmem:[%s8007 + $0x150] sm:$0xff] %v7245
    %8051 = vst [vmem:[%s8007 + $0x158] sm:$0xff] %v7247
    %8052 = vst [vmem:[%s8007 + $0x160] sm:$0xff] %v7251
    %8053 = vst [vmem:[%s8007 + $0x168] sm:$0xff] %v7253
    %8054 = vst [vmem:[%s8007 + $0x170] sm:$0xff] %v7255
    %8055 = vst [vmem:[%s8007 + $0x178] sm:$0xff] %v7257
    %8056 = vst [vmem:[%s8007 + $0x180] sm:$0xff] %v7261
    %8057 = vst [vmem:[%s8007 + $0x188] sm:$0xff] %v7263
    %8058 = vst [vmem:[%s8007 + $0x190] sm:$0xff] %v7265
    %8059 = vst [vmem:[%s8007 + $0x198] sm:$0xff] %v7267
    %8060 = vst [vmem:[%s8007 + $0x1a0] sm:$0xff] %v7271
    %8061 = vst [vmem:[%s8007 + $0x1a8] sm:$0xff] %v7273
    %8062 = vst [vmem:[%s8007 + $0x1b0] sm:$0xff] %v7275
    %8063 = vst [vmem:[%s8007 + $0x1b8] sm:$0xff] %v7277
    %8064 = vst [vmem:[%s8007 + $0x1c0] sm:$0xff] %v7281
    %8065 = vst [vmem:[%s8007 + $0x1c8] sm:$0xff] %v7283
    %8066 = vst [vmem:[%s8007 + $0x1d0] sm:$0xff] %v7285
    %8067 = vst [vmem:[%s8007 + $0x1d8] sm:$0xff] %v7287
    %8068 = vst [vmem:[%s8007 + $0x1e0] sm:$0xff] %v7291
    %8069 = vst [vmem:[%s8007 + $0x1e8] sm:$0xff] %v7293
    %8070 = vst [vmem:[%s8007 + $0x1f0] sm:$0xff] %v7295
    %8071 = vst [vmem:[%s8007 + $0x1f8] sm:$0xff] %v7297
    %s8072 = scalar_lea.vmem [#allocation41], 1536
    %8073 = vst [vmem:[%s8072] sm:$0xff] %v7334
    %8074 = vst [vmem:[%s8072 + $0x8] sm:$0xff] %v7336
    %8075 = vst [vmem:[%s8072 + $0x10] sm:$0xff] %v7338
    %8076 = vst [vmem:[%s8072 + $0x18] sm:$0xff] %v7340
    %8077 = vst [vmem:[%s8072 + $0x20] sm:$0xff] %v7344
    %8078 = vst [vmem:[%s8072 + $0x28] sm:$0xff] %v7346
    %8079 = vst [vmem:[%s8072 + $0x30] sm:$0xff] %v7348
    %8080 = vst [vmem:[%s8072 + $0x38] sm:$0xff] %v7350
    %8081 = vst [vmem:[%s8072 + $0x40] sm:$0xff] %v7354
    %8082 = vst [vmem:[%s8072 + $0x48] sm:$0xff] %v7356
    %8083 = vst [vmem:[%s8072 + $0x50] sm:$0xff] %v7358
    %8084 = vst [vmem:[%s8072 + $0x58] sm:$0xff] %v7360
    %8085 = vst [vmem:[%s8072 + $0x60] sm:$0xff] %v7364
    %8086 = vst [vmem:[%s8072 + $0x68] sm:$0xff] %v7366
    %8087 = vst [vmem:[%s8072 + $0x70] sm:$0xff] %v7368
    %8088 = vst [vmem:[%s8072 + $0x78] sm:$0xff] %v7370
    %8089 = vst [vmem:[%s8072 + $0x80] sm:$0xff] %v7374
    %8090 = vst [vmem:[%s8072 + $0x88] sm:$0xff] %v7376
    %8091 = vst [vmem:[%s8072 + $0x90] sm:$0xff] %v7378
    %8092 = vst [vmem:[%s8072 + $0x98] sm:$0xff] %v7380
    %8093 = vst [vmem:[%s8072 + $0xa0] sm:$0xff] %v7384
    %8094 = vst [vmem:[%s8072 + $0xa8] sm:$0xff] %v7386
    %8095 = vst [vmem:[%s8072 + $0xb0] sm:$0xff] %v7388
    %8096 = vst [vmem:[%s8072 + $0xb8] sm:$0xff] %v7390
    %8097 = vst [vmem:[%s8072 + $0xc0] sm:$0xff] %v7394
    %8098 = vst [vmem:[%s8072 + $0xc8] sm:$0xff] %v7396
    %8099 = vst [vmem:[%s8072 + $0xd0] sm:$0xff] %v7398
    %8100 = vst [vmem:[%s8072 + $0xd8] sm:$0xff] %v7400
    %8101 = vst [vmem:[%s8072 + $0xe0] sm:$0xff] %v7404
    %8102 = vst [vmem:[%s8072 + $0xe8] sm:$0xff] %v7406
    %8103 = vst [vmem:[%s8072 + $0xf0] sm:$0xff] %v7408
    %8104 = vst [vmem:[%s8072 + $0xf8] sm:$0xff] %v7410
    %8105 = vst [vmem:[%s8072 + $0x100] sm:$0xff] %v7414
    %8106 = vst [vmem:[%s8072 + $0x108] sm:$0xff] %v7416
    %8107 = vst [vmem:[%s8072 + $0x110] sm:$0xff] %v7418
    %8108 = vst [vmem:[%s8072 + $0x118] sm:$0xff] %v7420
    %8109 = vst [vmem:[%s8072 + $0x120] sm:$0xff] %v7424
    %8110 = vst [vmem:[%s8072 + $0x128] sm:$0xff] %v7426
    %8111 = vst [vmem:[%s8072 + $0x130] sm:$0xff] %v7428
    %8112 = vst [vmem:[%s8072 + $0x138] sm:$0xff] %v7430
    %8113 = vst [vmem:[%s8072 + $0x140] sm:$0xff] %v7434
    %8114 = vst [vmem:[%s8072 + $0x148] sm:$0xff] %v7436
    %8115 = vst [vmem:[%s8072 + $0x150] sm:$0xff] %v7438
    %8116 = vst [vmem:[%s8072 + $0x158] sm:$0xff] %v7440
    %8117 = vst [vmem:[%s8072 + $0x160] sm:$0xff] %v7444
    %8118 = vst [vmem:[%s8072 + $0x168] sm:$0xff] %v7446
    %8119 = vst [vmem:[%s8072 + $0x170] sm:$0xff] %v7448
    %8120 = vst [vmem:[%s8072 + $0x178] sm:$0xff] %v7450
    %8121 = vst [vmem:[%s8072 + $0x180] sm:$0xff] %v7454
    %8122 = vst [vmem:[%s8072 + $0x188] sm:$0xff] %v7456
    %8123 = vst [vmem:[%s8072 + $0x190] sm:$0xff] %v7458
    %8124 = vst [vmem:[%s8072 + $0x198] sm:$0xff] %v7460
    %8125 = vst [vmem:[%s8072 + $0x1a0] sm:$0xff] %v7464
    %8126 = vst [vmem:[%s8072 + $0x1a8] sm:$0xff] %v7466
    %8127 = vst [vmem:[%s8072 + $0x1b0] sm:$0xff] %v7468
    %8128 = vst [vmem:[%s8072 + $0x1b8] sm:$0xff] %v7470
    %8129 = vst [vmem:[%s8072 + $0x1c0] sm:$0xff] %v7474
    %8130 = vst [vmem:[%s8072 + $0x1c8] sm:$0xff] %v7476
    %8131 = vst [vmem:[%s8072 + $0x1d0] sm:$0xff] %v7478
    %8132 = vst [vmem:[%s8072 + $0x1d8] sm:$0xff] %v7480
    %8133 = vst [vmem:[%s8072 + $0x1e0] sm:$0xff] %v7484
    %8134 = vst [vmem:[%s8072 + $0x1e8] sm:$0xff] %v7486
    %8135 = vst [vmem:[%s8072 + $0x1f0] sm:$0xff] %v7488
    %8136 = vst [vmem:[%s8072 + $0x1f8] sm:$0xff] %v7490
    %s8137 = scalar_lea.vmem [#allocation41], 2048
    %8138 = vst [vmem:[%s8137] sm:$0xff] %v7527
    %8139 = vst [vmem:[%s8137 + $0x8] sm:$0xff] %v7529
    %8140 = vst [vmem:[%s8137 + $0x10] sm:$0xff] %v7531
    %8141 = vst [vmem:[%s8137 + $0x18] sm:$0xff] %v7533
    %8142 = vst [vmem:[%s8137 + $0x20] sm:$0xff] %v7537
    %8143 = vst [vmem:[%s8137 + $0x28] sm:$0xff] %v7539
    %8144 = vst [vmem:[%s8137 + $0x30] sm:$0xff] %v7541
    %8145 = vst [vmem:[%s8137 + $0x38] sm:$0xff] %v7543
    %8146 = vst [vmem:[%s8137 + $0x40] sm:$0xff] %v7547
    %8147 = vst [vmem:[%s8137 + $0x48] sm:$0xff] %v7549
    %8148 = vst [vmem:[%s8137 + $0x50] sm:$0xff] %v7551
    %8149 = vst [vmem:[%s8137 + $0x58] sm:$0xff] %v7553
    %8150 = vst [vmem:[%s8137 + $0x60] sm:$0xff] %v7557
    %8151 = vst [vmem:[%s8137 + $0x68] sm:$0xff] %v7559
    %8152 = vst [vmem:[%s8137 + $0x70] sm:$0xff] %v7561
    %8153 = vst [vmem:[%s8137 + $0x78] sm:$0xff] %v7563
    %8154 = vst [vmem:[%s8137 + $0x80] sm:$0xff] %v7567
    %8155 = vst [vmem:[%s8137 + $0x88] sm:$0xff] %v7569
    %8156 = vst [vmem:[%s8137 + $0x90] sm:$0xff] %v7571
    %8157 = vst [vmem:[%s8137 + $0x98] sm:$0xff] %v7573
    %8158 = vst [vmem:[%s8137 + $0xa0] sm:$0xff] %v7577
    %8159 = vst [vmem:[%s8137 + $0xa8] sm:$0xff] %v7579
    %8160 = vst [vmem:[%s8137 + $0xb0] sm:$0xff] %v7581
    %8161 = vst [vmem:[%s8137 + $0xb8] sm:$0xff] %v7583
    %8162 = vst [vmem:[%s8137 + $0xc0] sm:$0xff] %v7587
    %8163 = vst [vmem:[%s8137 + $0xc8] sm:$0xff] %v7589
    %8164 = vst [vmem:[%s8137 + $0xd0] sm:$0xff] %v7591
    %8165 = vst [vmem:[%s8137 + $0xd8] sm:$0xff] %v7593
    %8166 = vst [vmem:[%s8137 + $0xe0] sm:$0xff] %v7597
    %8167 = vst [vmem:[%s8137 + $0xe8] sm:$0xff] %v7599
    %8168 = vst [vmem:[%s8137 + $0xf0] sm:$0xff] %v7601
    %8169 = vst [vmem:[%s8137 + $0xf8] sm:$0xff] %v7603
    %8170 = vst [vmem:[%s8137 + $0x100] sm:$0xff] %v7607
    %8171 = vst [vmem:[%s8137 + $0x108] sm:$0xff] %v7609
    %8172 = vst [vmem:[%s8137 + $0x110] sm:$0xff] %v7611
    %8173 = vst [vmem:[%s8137 + $0x118] sm:$0xff] %v7613
    %8174 = vst [vmem:[%s8137 + $0x120] sm:$0xff] %v7617
    %8175 = vst [vmem:[%s8137 + $0x128] sm:$0xff] %v7619
    %8176 = vst [vmem:[%s8137 + $0x130] sm:$0xff] %v7621
    %8177 = vst [vmem:[%s8137 + $0x138] sm:$0xff] %v7623
    %8178 = vst [vmem:[%s8137 + $0x140] sm:$0xff] %v7627
    %8179 = vst [vmem:[%s8137 + $0x148] sm:$0xff] %v7629
    %8180 = vst [vmem:[%s8137 + $0x150] sm:$0xff] %v7631
    %8181 = vst [vmem:[%s8137 + $0x158] sm:$0xff] %v7633
    %8182 = vst [vmem:[%s8137 + $0x160] sm:$0xff] %v7637
    %8183 = vst [vmem:[%s8137 + $0x168] sm:$0xff] %v7639
    %8184 = vst [vmem:[%s8137 + $0x170] sm:$0xff] %v7641
    %8185 = vst [vmem:[%s8137 + $0x178] sm:$0xff] %v7643
    %8186 = vst [vmem:[%s8137 + $0x180] sm:$0xff] %v7647
    %8187 = vst [vmem:[%s8137 + $0x188] sm:$0xff] %v7649
    %8188 = vst [vmem:[%s8137 + $0x190] sm:$0xff] %v7651
    %8189 = vst [vmem:[%s8137 + $0x198] sm:$0xff] %v7653
    %8190 = vst [vmem:[%s8137 + $0x1a0] sm:$0xff] %v7657
    %8191 = vst [vmem:[%s8137 + $0x1a8] sm:$0xff] %v7659
    %8192 = vst [vmem:[%s8137 + $0x1b0] sm:$0xff] %v7661
    %8193 = vst [vmem:[%s8137 + $0x1b8] sm:$0xff] %v7663
    %8194 = vst [vmem:[%s8137 + $0x1c0] sm:$0xff] %v7667
    %8195 = vst [vmem:[%s8137 + $0x1c8] sm:$0xff] %v7669
    %8196 = vst [vmem:[%s8137 + $0x1d0] sm:$0xff] %v7671
    %8197 = vst [vmem:[%s8137 + $0x1d8] sm:$0xff] %v7673
    %8198 = vst [vmem:[%s8137 + $0x1e0] sm:$0xff] %v7677
    %8199 = vst [vmem:[%s8137 + $0x1e8] sm:$0xff] %v7679
    %8200 = vst [vmem:[%s8137 + $0x1f0] sm:$0xff] %v7681
    %8201 = vst [vmem:[%s8137 + $0x1f8] sm:$0xff] %v7683
    %s8202 = scalar_lea.vmem [#allocation41], 2560
    %8203 = vst [vmem:[%s8202] sm:$0xff] %v7720
    %8204 = vst [vmem:[%s8202 + $0x8] sm:$0xff] %v7722
    %8205 = vst [vmem:[%s8202 + $0x10] sm:$0xff] %v7724
    %8206 = vst [vmem:[%s8202 + $0x18] sm:$0xff] %v7726
    %8207 = vst [vmem:[%s8202 + $0x20] sm:$0xff] %v7730
    %8208 = vst [vmem:[%s8202 + $0x28] sm:$0xff] %v7732
    %8209 = vst [vmem:[%s8202 + $0x30] sm:$0xff] %v7734
    %8210 = vst [vmem:[%s8202 + $0x38] sm:$0xff] %v7736
    %8211 = vst [vmem:[%s8202 + $0x40] sm:$0xff] %v7740
    %8212 = vst [vmem:[%s8202 + $0x48] sm:$0xff] %v7742
    %8213 = vst [vmem:[%s8202 + $0x50] sm:$0xff] %v7744
    %8214 = vst [vmem:[%s8202 + $0x58] sm:$0xff] %v7746
    %8215 = vst [vmem:[%s8202 + $0x60] sm:$0xff] %v7750
    %8216 = vst [vmem:[%s8202 + $0x68] sm:$0xff] %v7752
    %8217 = vst [vmem:[%s8202 + $0x70] sm:$0xff] %v7754
    %8218 = vst [vmem:[%s8202 + $0x78] sm:$0xff] %v7756
    %8219 = vst [vmem:[%s8202 + $0x80] sm:$0xff] %v7760
    %8220 = vst [vmem:[%s8202 + $0x88] sm:$0xff] %v7762
    %8221 = vst [vmem:[%s8202 + $0x90] sm:$0xff] %v7764
    %8222 = vst [vmem:[%s8202 + $0x98] sm:$0xff] %v7766
    %8223 = vst [vmem:[%s8202 + $0xa0] sm:$0xff] %v7770
    %8224 = vst [vmem:[%s8202 + $0xa8] sm:$0xff] %v7772
    %8225 = vst [vmem:[%s8202 + $0xb0] sm:$0xff] %v7774
    %8226 = vst [vmem:[%s8202 + $0xb8] sm:$0xff] %v7776
    %8227 = vst [vmem:[%s8202 + $0xc0] sm:$0xff] %v7780
    %8228 = vst [vmem:[%s8202 + $0xc8] sm:$0xff] %v7782
    %8229 = vst [vmem:[%s8202 + $0xd0] sm:$0xff] %v7784
    %8230 = vst [vmem:[%s8202 + $0xd8] sm:$0xff] %v7786
    %8231 = vst [vmem:[%s8202 + $0xe0] sm:$0xff] %v7790
    %8232 = vst [vmem:[%s8202 + $0xe8] sm:$0xff] %v7792
    %8233 = vst [vmem:[%s8202 + $0xf0] sm:$0xff] %v7794
    %8234 = vst [vmem:[%s8202 + $0xf8] sm:$0xff] %v7796
    %8235 = vst [vmem:[%s8202 + $0x100] sm:$0xff] %v7800
    %8236 = vst [vmem:[%s8202 + $0x108] sm:$0xff] %v7802
    %8237 = vst [vmem:[%s8202 + $0x110] sm:$0xff] %v7804
    %8238 = vst [vmem:[%s8202 + $0x118] sm:$0xff] %v7806
    %8239 = vst [vmem:[%s8202 + $0x120] sm:$0xff] %v7810
    %8240 = vst [vmem:[%s8202 + $0x128] sm:$0xff] %v7812
    %8241 = vst [vmem:[%s8202 + $0x130] sm:$0xff] %v7814
    %8242 = vst [vmem:[%s8202 + $0x138] sm:$0xff] %v7816
    %8243 = vst [vmem:[%s8202 + $0x140] sm:$0xff] %v7820
    %8244 = vst [vmem:[%s8202 + $0x148] sm:$0xff] %v7822
    %8245 = vst [vmem:[%s8202 + $0x150] sm:$0xff] %v7824
    %8246 = vst [vmem:[%s8202 + $0x158] sm:$0xff] %v7826
    %8247 = vst [vmem:[%s8202 + $0x160] sm:$0xff] %v7830
    %8248 = vst [vmem:[%s8202 + $0x168] sm:$0xff] %v7832
    %8249 = vst [vmem:[%s8202 + $0x170] sm:$0xff] %v7834
    %8250 = vst [vmem:[%s8202 + $0x178] sm:$0xff] %v7836
    %8251 = vst [vmem:[%s8202 + $0x180] sm:$0xff] %v7840
    %8252 = vst [vmem:[%s8202 + $0x188] sm:$0xff] %v7842
    %8253 = vst [vmem:[%s8202 + $0x190] sm:$0xff] %v7844
    %8254 = vst [vmem:[%s8202 + $0x198] sm:$0xff] %v7846
    %8255 = vst [vmem:[%s8202 + $0x1a0] sm:$0xff] %v7850
    %8256 = vst [vmem:[%s8202 + $0x1a8] sm:$0xff] %v7852
    %8257 = vst [vmem:[%s8202 + $0x1b0] sm:$0xff] %v7854
    %8258 = vst [vmem:[%s8202 + $0x1b8] sm:$0xff] %v7856
    %8259 = vst [vmem:[%s8202 + $0x1c0] sm:$0xff] %v7860
    %8260 = vst [vmem:[%s8202 + $0x1c8] sm:$0xff] %v7862
    %8261 = vst [vmem:[%s8202 + $0x1d0] sm:$0xff] %v7864
    %8262 = vst [vmem:[%s8202 + $0x1d8] sm:$0xff] %v7866
    %8263 = vst [vmem:[%s8202 + $0x1e0] sm:$0xff] %v7870
    %8264 = vst [vmem:[%s8202 + $0x1e8] sm:$0xff] %v7872
    %8265 = vst [vmem:[%s8202 + $0x1f0] sm:$0xff] %v7874
    %8266 = vst [vmem:[%s8202 + $0x1f8] sm:$0xff] %v7876
    // Predicated region
    $region266: #{test_prod_server_model.1} parent=1 // pred_check
      _
    $region267: #{test_prod_server_model.1} parent=1 // pred_check_branch
      %8268 = sbr.rel (0) target = $region269
    $region268: #{test_prod_server_model.1} parent=1 // pred_region
      %s8270 = ssub.s32 49152, 49152
      %8271 = vsyncadd [#allocation4], %s8270
      %s8272 = sshll.u32 [#allocation41], 4
      %s8273 = int_to_ptr.vmem [resolvable:$true] %s8272
      %8278 = dma.vmem_to_hbm [thread:$0]  %s8273, 49152, %s83, [#allocation4], 256, 256, 16
    $region269: #{test_prod_server_model.1} parent=1 // pred_fallthru
      _
    // Predicated region
    $region270: #{test_prod_server_model.1} parent=1 // pred_check
      _
    $region271: #{test_prod_server_model.1} parent=1 // pred_check_branch
      %8280 = sbr.rel (0) target = $region273
    $region272: #{test_prod_server_model.1} parent=1 // pred_region
      %8281 = dma.done [#allocation4], 49152
    $region273: #{test_prod_server_model.1} parent=1 // pred_fallthru
      _
    %8282 = vsyncpa [#allocation3], 1
    %8283 = vsyncpa [#allocation6], 1
    %8284 = vsyncpa [#allocation9], 1
    %8285 = vsyncpa [#allocation12], 1
    %8286 = vsyncpa [#allocation15], 1
    %8287 = vsyncpa [#allocation18], 1
    %8288 = vsyncpa [#allocation21], 1
    %8289 = vsyncpa [#allocation24], 1
    %8290 = vsyncpa [#allocation27], 1
    %8291 = vsyncpa [#allocation30], 1
    %8292 = vsyncpa [#allocation33], 1
    %8293 = vsyncpa [#allocation36], 1
    %8294 = vsyncpa [#allocation39], 1
    %8295 = vsyncpa [#allocation4], 1

</llo_original>
